<compile_context>
chip_gen: v5e
topology: v5e:2x2
jax: 0.10.0
libtpu: 0.0.40
codegen_flags: <defaults>
</compile_context>

<pallas_src>
import functools
import math

import numpy as np
import jax
import jax.numpy as jnp
from jax.experimental import pallas as pl
from jax.experimental.pallas import tpu as pltpu

EXPANSION = 4
SCALING_FACTOR = 1.0     # H_t = floor(H * sf), W_t = floor(W * sf)
BN_EPS = 1e-5
LANE = 128               # TPU lane width; channel dims are zero-padded to this.


def _round_up(v, m):
    return ((v + m - 1) // m) * m


# ----------------------------- resampling operator -----------------------------

def _resample_matrix(size_in, size_out):
    """1-D bilinear sampling matrix reproducing F.grid_sample defaults
    (mode='bilinear', padding_mode='zeros', align_corners=False) for a
    linspace(-1, 1, size_out) grid along one axis."""
    grid = np.linspace(-1.0, 1.0, size_out)
    coord = ((grid + 1.0) * size_in - 1.0) / 2.0
    lo = np.floor(coord).astype(np.int64)
    w_hi = coord - lo
    m = np.zeros((size_out, size_in), dtype=np.float32)
    for i in range(size_out):
        for idx, wgt in ((int(lo[i]), 1.0 - w_hi[i]), (int(lo[i]) + 1, w_hi[i])):
            if 0 <= idx < size_in:
                m[i, idx] += wgt
    return m


# ------------------------------- Pallas kernels --------------------------------

def _resample_kernel(xr_ref, e_ref, m_ref, xs_ref, sum_ref, sq_ref):
    """Pass A: grid_sample for one batch, lane-dense output + BN1 statistics.

    xr_ref : (HW, Cin) f32   raw input pixels (row = h*W+w), unpadded
    e_ref  : (Cin, 128) f32  0/1 placement matrix (channel c -> lane c)
    m_ref  : (Rb, HW) bf16   bilinear operator kron(My, Mx)
    xs_ref : (Rb, 128) bf16  resampled activations (lanes >= Cin exactly zero)
    sum/sq : (1, 128) f32    BN1 running sum / sum-of-squares (over all batches)
    """
    # exact channel->lane placement via a tiny matmul (avoids unaligned lane pads)
    xp = jnp.dot(xr_ref[...], e_ref[...], preferred_element_type=jnp.float32)
    xs = jnp.dot(m_ref[...], xp.astype(jnp.bfloat16),
                 preferred_element_type=jnp.float32)              # (Rb, 128)
    xs_b = xs.astype(jnp.bfloat16)
    xs_ref[...] = xs_b

    @pl.when(pl.program_id(0) == 0)
    def _():
        sum_ref[...] = jnp.zeros_like(sum_ref)
        sq_ref[...] = jnp.zeros_like(sq_ref)

    v = xs_b.astype(jnp.float32)          # stats of the values as stored (bf16)
    sum_ref[...] += jnp.sum(v, axis=0, keepdims=True)
    sq_ref[...] += jnp.sum(v * v, axis=0, keepdims=True)


def _conv1_kernel(xs_ref, s1_ref, t1_ref, w1_ref, out_ref, sum_ref, sq_ref):
    """Pass B: bn1 -> relu -> conv1 (1x1) on a (TILE_M, 128) row tile + BN2 stats."""
    xs = xs_ref[...].astype(jnp.float32)
    x1 = xs * s1_ref[...] + t1_ref[...]
    h1 = jnp.maximum(x1, 0.0)
    o1 = jnp.dot(h1.astype(jnp.bfloat16), w1_ref[...],
                 preferred_element_type=jnp.float32)
    o1b = o1.astype(jnp.bfloat16)
    out_ref[...] = o1b

    @pl.when(pl.program_id(0) == 0)
    def _():
        sum_ref[...] = jnp.zeros_like(sum_ref)
        sq_ref[...] = jnp.zeros_like(sq_ref)

    v = o1b.astype(jnp.float32)
    sum_ref[...] += jnp.sum(v, axis=0, keepdims=True)
    sq_ref[...] += jnp.sum(v * v, axis=0, keepdims=True)


def _conv2_kernel(o1_ref, s2_ref, t2_ref, w2_ref, out_ref, sum_ref, sq_ref,
                  hbuf, *, w_t, pad_rows):
    """Pass C: bn2 -> relu -> conv2 (3x3, pad=1) for one batch image + BN3 stats.

    Slab-free 3x3: h2 is written once into a persistent VMEM scratch whose
    border rows are zeroed once (out-of-image taps read exact zeros); the 9
    taps are 9 accumulating (Rb,128)@(128,128) matmuls.  Only the dx=+/-1 taps
    need an iota column mask (row-boundary wrap); dy borders hit the zeros.
    """
    rb = o1_ref.shape[0]

    @pl.when(pl.program_id(0) == 0)
    def _():
        hbuf[...] = jnp.zeros_like(hbuf)        # borders stay zero forever
        sum_ref[...] = jnp.zeros_like(sum_ref)
        sq_ref[...] = jnp.zeros_like(sq_ref)

    o1 = o1_ref[...].astype(jnp.float32)
    h2 = jnp.maximum(o1 * s2_ref[...] + t2_ref[...], 0.0)        # (Rb, 128) f32
    hbuf[pad_rows:pad_rows + rb, :] = h2

    xc = jax.lax.broadcasted_iota(jnp.int32, (rb, 1), 0) % w_t
    not_left = xc > 0               # valid source column for dx = -1
    not_right = xc < (w_t - 1)      # valid source column for dx = +1

    acc = jnp.zeros((rb, out_ref.shape[-1]), jnp.float32)
    for ky in range(3):
        for kx in range(3):
            dy, dx = ky - 1, kx - 1
            start = pad_rows + dy * w_t + dx                      # static offset
            tap = hbuf[start:start + rb, :]                       # zeros off-image
            if dx == -1:
                tap = jnp.where(not_left, tap, 0.0)
            elif dx == 1:
                tap = jnp.where(not_right, tap, 0.0)
            acc += jnp.dot(tap.astype(jnp.bfloat16), w2_ref[ky * 3 + kx],
                           preferred_element_type=jnp.float32)

    o2b = acc.astype(jnp.bfloat16)
    out_ref[...] = o2b
    v = o2b.astype(jnp.float32)
    sum_ref[...] += jnp.sum(v, axis=0, keepdims=True)
    sq_ref[...] += jnp.sum(v * v, axis=0, keepdims=True)


def _conv3_kernel(o2_ref, xs_ref, s3_ref, t3_ref, s1_ref, t1_ref,
                  w3_ref, wn_ref, out_ref):
    """Pass D: bn3 -> relu -> conv3 (1x1) + residual on a (TILE_M, 128) row tile.

    Residual: xs occupies lanes [0:Cin]; conv_new(bn1(xs)) is placed into lanes
    [Cin:Cexp] by wn's column placement -> the torch.cat is plain adds."""
    xs = xs_ref[...].astype(jnp.float32)
    x1 = xs * s1_ref[...] + t1_ref[...]
    resid = xs + jnp.dot(x1.astype(jnp.bfloat16), wn_ref[...],
                         preferred_element_type=jnp.float32)
    h3 = jnp.maximum(o2_ref[...].astype(jnp.float32) * s3_ref[...] + t3_ref[...],
                     0.0)
    o3 = jnp.dot(h3.astype(jnp.bfloat16), w3_ref[...],
                 preferred_element_type=jnp.float32)
    out_ref[...] = o3 + resid


# --------------------------------- wrapper -------------------------------------

def cv_bottleneck_pallas(x, params, scaling_factor=SCALING_FACTOR, tile_m=256):
    n, c_in, h, w = x.shape
    h_t = int(math.floor(h * scaling_factor))
    w_t = int(math.floor(w * scaling_factor))
    planes = params["w1"].shape[0]
    c_exp = params["w3"].shape[0]
    c_new = params["w_new"].shape[0]
    assert c_exp == EXPANSION * planes and c_exp > c_in and c_new == c_exp - c_in
    assert max(c_in, planes, c_exp) <= LANE
    hw = h * w
    rb = h_t * w_t
    r = n * rb
    assert rb % 8 == 0 or n == 1   # per-image block alignment for the 3x3 pass

    # Row-tile size for the pointwise passes.  Sized conservatively (v7x has
    # 64 MiB VMEM); sweep larger (512-4096) on v5e/v6e's 128 MiB for fewer,
    # better-amortized grid steps.
    tm = tile_m
    while tm > 8 and r % tm != 0:
        tm //= 2
    if r % tm != 0:
        tm = r

    f32, bf16 = jnp.float32, jnp.bfloat16

    # ---- host-side constants: resample operator, placement matrix, weights ----
    # TODO(synk): for large H*W restore the separable (My, Mx) form; kron(My,Mx)
    # is only kept dense here because H*W is small.
    m_np = np.kron(_resample_matrix(h, h_t), _resample_matrix(w, w_t))   # (rb, hw)
    m_mat = jnp.asarray(m_np, dtype=bf16)
    e_mat = jnp.asarray(np.eye(c_in, LANE, dtype=np.float32))            # (cin,128)

    def place(w_conv, ci, co, col0=0):           # (co, ci, 1, 1) -> (128, 128)
        buf = jnp.zeros((LANE, LANE), bf16)
        return buf.at[:ci, col0:col0 + co].set(w_conv.reshape(co, ci).T.astype(bf16))

    w1_p = place(params["w1"], c_in, planes)
    wn_p = place(params["w_new"], c_in, c_new, col0=c_in)
    w3_p = place(params["w3"], planes, c_exp)
    w2_io = jnp.transpose(params["w2"], (2, 3, 1, 0))                    # (3,3,ci,co)
    w2_f = jnp.zeros((9, LANE, LANE), bf16)
    for ky in range(3):
        for kx in range(3):
            w2_f = w2_f.at[ky * 3 + kx, :planes, :planes].set(
                w2_io[ky, kx].astype(bf16))

    def padded_vec(v):
        return jnp.pad(v.astype(f32), (0, LANE - v.shape[0])).reshape(1, LANE)

    def bn_affine(ssum, ssq, gamma, beta):
        # TODO(synk): single-pass E[x^2]-E[x]^2 (guarded by max(.,0)); switch to a
        # two-pass / Welford reduction if activations become large-magnitude.
        mean = ssum / r
        var = jnp.maximum(ssq / r - mean * mean, 0.0)
        scale = gamma * jax.lax.rsqrt(var + BN_EPS)
        return scale, beta - mean * scale

    rep1 = pl.BlockSpec((1, LANE), lambda i: (0, 0))
    repw = pl.BlockSpec((LANE, LANE), lambda i: (0, 0))
    blk_row = pl.BlockSpec((tm, LANE), lambda i: (i, 0))
    blk_img = pl.BlockSpec((rb, LANE), lambda i: (i, 0))
    stat = jax.ShapeDtypeStruct((1, LANE), f32)

    # ---- pass A: grid_sample -> lane-dense (R,128) bf16 + BN1 stats ------------
    xr = jnp.transpose(x, (0, 2, 3, 1)).reshape(n, hw, c_in)   # tiny, unpadded
    xs, sum1, sq1 = pl.pallas_call(
        _resample_kernel,
        out_shape=(jax.ShapeDtypeStruct((r, LANE), bf16), stat, stat),
        grid=(n,),
        in_specs=[pl.BlockSpec((None, hw, c_in), lambda i: (i, 0, 0)),
                  pl.BlockSpec((c_in, LANE), lambda i: (0, 0)),
                  pl.BlockSpec((rb, hw), lambda i: (0, 0))],
        out_specs=(blk_img, rep1, rep1),
        compiler_params=pltpu.CompilerParams(
            dimension_semantics=("arbitrary",)),   # stats accumulate across steps
    )(xr, e_mat, m_mat)
    s1, t1 = bn_affine(sum1, sq1, padded_vec(params["bn1_gamma"]),
                       padded_vec(params["bn1_beta"]))

    # ---- pass B: bn1 -> relu -> conv1 (1x1), row-tiled + BN2 stats --------------
    out1, sum2, sq2 = pl.pallas_call(
        _conv1_kernel,
        out_shape=(jax.ShapeDtypeStruct((r, LANE), bf16), stat, stat),
        grid=(r // tm,),
        in_specs=[blk_row, rep1, rep1, repw],
        out_specs=(blk_row, rep1, rep1),
        compiler_params=pltpu.CompilerParams(
            dimension_semantics=("arbitrary",)),
    )(xs, s1, t1, w1_p)
    s2, t2 = bn_affine(sum2, sq2, padded_vec(params["bn2_gamma"]),
                       padded_vec(params["bn2_beta"]))

    # ---- pass C: bn2 -> relu -> conv2 (3x3) per batch image + BN3 stats ---------
    # TODO(synk): for very large images tile rows within a batch with a
    # +/-(Wt+1)-row halo instead of one block per image.
    pad_rows = _round_up(w_t + 1, 8)
    out2, sum3, sq3 = pl.pallas_call(
        functools.partial(_conv2_kernel, w_t=w_t, pad_rows=pad_rows),
        out_shape=(jax.ShapeDtypeStruct((r, LANE), bf16), stat, stat),
        grid=(n,),
        in_specs=[blk_img, rep1, rep1,
                  pl.BlockSpec((9, LANE, LANE), lambda i: (0, 0, 0))],
        out_specs=(blk_img, rep1, rep1),
        scratch_shapes=[pltpu.VMEM((rb + 2 * pad_rows, LANE), f32)],
        compiler_params=pltpu.CompilerParams(
            dimension_semantics=("arbitrary",)),
    )(out1, s2, t2, w2_f)
    s3, t3 = bn_affine(sum3, sq3, padded_vec(params["bn3_gamma"]),
                       padded_vec(params["bn3_beta"]))

    # ---- pass D: bn3 -> relu -> conv3 (1x1) + residual, row-tiled, parallel -----
    out = pl.pallas_call(
        _conv3_kernel,
        out_shape=jax.ShapeDtypeStruct((r, LANE), f32),
        grid=(r // tm,),
        in_specs=[blk_row, blk_row, rep1, rep1, rep1, rep1, repw, repw],
        out_specs=blk_row,
        compiler_params=pltpu.CompilerParams(
            dimension_semantics=("parallel",)),    # megacore-shardable
    )(out2, xs, s3, t3, s1, t1, w3_p, wn_p)

    # NCHW for parity with the torch module; drop this layout plumbing if the
    # consumer accepts the (R,128)/NHWC layout directly.
    return out[:, :c_exp].reshape(n, h_t, w_t, c_exp).transpose(0, 3, 1, 2)


# ------------------------------ pure-JAX reference ------------------------------
# Mirrors the kernel's precision policy (bf16 matmul operands / bf16 activation
# storage, f32 accumulation and BN math).

def _bn_train_nchw(v, gamma, beta):
    mean = jnp.mean(v, axis=(0, 2, 3), keepdims=True)
    var = jnp.mean(jnp.square(v - mean), axis=(0, 2, 3), keepdims=True)
    return ((v - mean) * jax.lax.rsqrt(var + BN_EPS)
            * gamma.reshape(1, -1, 1, 1) + beta.reshape(1, -1, 1, 1))


def _conv_nchw_bf16(v, w, padding=0):
    return jax.lax.conv_general_dilated(
        v.astype(jnp.bfloat16), w.astype(jnp.bfloat16), window_strides=(1, 1),
        padding=[(padding, padding), (padding, padding)],
        dimension_numbers=("NCHW", "OIHW", "NCHW"),
        preferred_element_type=jnp.float32)


def _round_bf16(v):
    return v.astype(jnp.bfloat16).astype(jnp.float32)


def cv_bottleneck_reference(x, params, scaling_factor=SCALING_FACTOR):
    n, c, h, w = x.shape
    h_t = int(math.floor(h * scaling_factor))
    w_t = int(math.floor(w * scaling_factor))
    m = jnp.asarray(np.kron(_resample_matrix(h, h_t), _resample_matrix(w, w_t)),
                    dtype=jnp.bfloat16)                                  # (rb, hw)
    xr = jnp.transpose(x, (0, 2, 3, 1)).reshape(n, h * w, c)
    xs = jnp.einsum("rp,npc->nrc", m, xr.astype(jnp.bfloat16),
                    preferred_element_type=jnp.float32)
    xs = _round_bf16(xs).reshape(n, h_t, w_t, c).transpose(0, 3, 1, 2)   # NCHW
    x1 = _bn_train_nchw(xs, params["bn1_gamma"], params["bn1_beta"])
    xcat = jnp.concatenate([xs, _conv_nchw_bf16(x1, params["w_new"])], axis=1)
    out = _round_bf16(_conv_nchw_bf16(jax.nn.relu(x1), params["w1"]))
    out = _round_bf16(_conv_nchw_bf16(
        jax.nn.relu(_bn_train_nchw(out, params["bn2_gamma"], params["bn2_beta"])),
        params["w2"], padding=1))
    out = _conv_nchw_bf16(
        jax.nn.relu(_bn_train_nchw(out, params["bn3_gamma"], params["bn3_beta"])),
        params["w3"])
    return out + xcat


# ------------------------------- parameter setup --------------------------------

def make_params(key, in_planes, planes):
    c_exp = EXPANSION * planes
    c_new = c_exp - in_planes
    ks = jax.random.split(key, 10)

    def conv_w(k, co, ci, kh, kw):
        fan_in = ci * kh * kw
        return jax.random.normal(k, (co, ci, kh, kw), jnp.float32) / np.sqrt(fan_in)

    return {
        "w_new": conv_w(ks[0], c_new, in_planes, 1, 1),
        "w1": conv_w(ks[1], planes, in_planes, 1, 1),
        "w2": conv_w(ks[2], planes, planes, 3, 3),
        "w3": conv_w(ks[3], c_exp, planes, 1, 1),
        "bn1_gamma": 1.0 + 0.1 * jax.random.normal(ks[4], (in_planes,), jnp.float32),
        "bn1_beta": 0.1 * jax.random.normal(ks[5], (in_planes,), jnp.float32),
        "bn2_gamma": 1.0 + 0.1 * jax.random.normal(ks[6], (planes,), jnp.float32),
        "bn2_beta": 0.1 * jax.random.normal(ks[7], (planes,), jnp.float32),
        "bn3_gamma": 1.0 + 0.1 * jax.random.normal(ks[8], (planes,), jnp.float32),
        "bn3_beta": 0.1 * jax.random.normal(ks[9], (planes,), jnp.float32),
    }


if __name__ == "__main__":
    key = jax.random.PRNGKey(0)
    k_x, k_p = jax.random.split(key)
    in_planes, planes = 4, 4
    x = jax.random.normal(k_x, (2, in_planes, 16, 16), jnp.float32)
    params = make_params(k_p, in_planes, planes)

    fwd = jax.jit(lambda xx: cv_bottleneck_pallas(xx, params))
    out = jax.block_until_ready(fwd(x))
    ref = jax.block_until_ready(cv_bottleneck_reference(x, params))

    assert out.shape == (2, EXPANSION * planes, 16, 16), out.shape
    if not np.allclose(np.asarray(out), np.asarray(ref), atol=2e-2, rtol=2e-2):
        err = float(np.max(np.abs(np.asarray(out) - np.asarray(ref))))
        raise AssertionError(
            f"Pallas kernel does not match the JAX reference (max abs err {err})")
    print("KERNEL_OK")
</pallas_src>

<mosaic_0001>
module attributes {stable_mosaic.version = 11 : i64} {
  func.func @_resample_kernel(%arg0: i32, %arg1: memref<1x256x4xf32, #tpu.memory_space<vmem>>, %arg2: memref<4x128xf32, #tpu.memory_space<vmem>>, %arg3: memref<256x256xbf16, #tpu.memory_space<vmem>>, %arg4: memref<256x128xbf16, #tpu.memory_space<vmem>>, %arg5: memref<1x128xf32, #tpu.memory_space<vmem>>, %arg6: memref<1x128xf32, #tpu.memory_space<vmem>>) attributes {dimension_semantics = [#tpu.dimension_semantics<arbitrary>], iteration_bounds = array<i64: 2>, scalar_prefetch = 0 : i64, scratch_operands = 0 : i64, tpu.core_type = #tpu.core_type<tc>, window_params = [{transform_indices = @transform_0, window_bounds = array<i64: 1, 256, 4>}, {pipeline_mode = #tpu.pipeline_mode<synchronous>, transform_indices = @transform_1, window_bounds = array<i64: 4, 128>}, {pipeline_mode = #tpu.pipeline_mode<synchronous>, transform_indices = @transform_2, window_bounds = array<i64: 256, 256>}, {transform_indices = @transform_3, window_bounds = array<i64: 256, 128>}, {pipeline_mode = #tpu.pipeline_mode<synchronous>, transform_indices = @transform_4, window_bounds = array<i64: 1, 128>}, {pipeline_mode = #tpu.pipeline_mode<synchronous>, transform_indices = @transform_5, window_bounds = array<i64: 1, 128>}]} {
    %c0 = arith.constant 0 : index
    %c0_0 = arith.constant 0 : index
    %c0_1 = arith.constant 0 : index
    %0 = vector.load %arg1[%c0, %c0_0, %c0_1] : memref<1x256x4xf32, #tpu.memory_space<vmem>>, vector<1x256x4xf32>
    %1 = vector.shape_cast %0 : vector<1x256x4xf32> to vector<256x4xf32>
    %c0_2 = arith.constant 0 : index
    %c0_3 = arith.constant 0 : index
    %2 = vector.load %arg2[%c0_2, %c0_3] : memref<4x128xf32, #tpu.memory_space<vmem>>, vector<4x128xf32>
    %cst = arith.constant dense<0.000000e+00> : vector<256x128xf32>
    %3 = tpu.matmul %1, %2, %cst {dimension_numbers = #tpu.dot_dimension_numbers<[1], [0], [0], [1], [0, 0, 1, 1], [], []>} : vector<256x4xf32>, vector<4x128xf32>, vector<256x128xf32> -> vector<256x128xf32>
    %c0_4 = arith.constant 0 : index
    %c0_5 = arith.constant 0 : index
    %4 = vector.load %arg3[%c0_4, %c0_5] : memref<256x256xbf16, #tpu.memory_space<vmem>>, vector<256x256xbf16>
    %5 = arith.truncf %3 : vector<256x128xf32> to vector<256x128xbf16>
    %cst_6 = arith.constant dense<0.000000e+00> : vector<256x128xf32>
    %6 = tpu.matmul %4, %5, %cst_6 {dimension_numbers = #tpu.dot_dimension_numbers<[1], [0], [0], [1], [0, 0, 1, 1], [], []>} : vector<256x256xbf16>, vector<256x128xbf16>, vector<256x128xf32> -> vector<256x128xf32>
    %7 = arith.truncf %6 : vector<256x128xf32> to vector<256x128xbf16>
    %c0_7 = arith.constant 0 : index
    %c0_8 = arith.constant 0 : index
    %8 = vector.load %arg4[%c0_7, %c0_8] : memref<256x128xbf16, #tpu.memory_space<vmem>>, vector<256x128xbf16>
    tpu.vector_store %arg4[%c0_7, %c0_8], %7 {strides = array<i32>} : memref<256x128xbf16, #tpu.memory_space<vmem>>, vector<256x128xbf16>,
    %c0_i32 = arith.constant 0 : i32
    %9 = arith.cmpi eq, %arg0, %c0_i32 : i32
    %10 = arith.extui %9 : i1 to i32
    %c0_i32_9 = arith.constant 0 : i32
    %11 = arith.cmpi ne, %10, %c0_i32_9 : i32
    scf.if %11 {
      %cst_20 = arith.constant 0.000000e+00 : f32
      %24 = vector.broadcast %cst_20 : f32 to vector<1x128xf32>
      %c0_21 = arith.constant 0 : index
      %c0_22 = arith.constant 0 : index
      %25 = vector.load %arg5[%c0_21, %c0_22] : memref<1x128xf32, #tpu.memory_space<vmem>>, vector<1x128xf32>
      tpu.vector_store %arg5[%c0_21, %c0_22], %24 {strides = array<i32>} : memref<1x128xf32, #tpu.memory_space<vmem>>, vector<1x128xf32>,
      %cst_23 = arith.constant 0.000000e+00 : f32
      %26 = vector.broadcast %cst_23 : f32 to vector<1x128xf32>
      %c0_24 = arith.constant 0 : index
      %c0_25 = arith.constant 0 : index
      %27 = vector.load %arg6[%c0_24, %c0_25] : memref<1x128xf32, #tpu.memory_space<vmem>>, vector<1x128xf32>
      tpu.vector_store %arg6[%c0_24, %c0_25], %26 {strides = array<i32>} : memref<1x128xf32, #tpu.memory_space<vmem>>, vector<1x128xf32>,
    } else {
    }
    %12 = arith.extf %7 : vector<256x128xbf16> to vector<256x128xf32>
    %c0_10 = arith.constant 0 : index
    %c0_11 = arith.constant 0 : index
    %13 = vector.load %arg5[%c0_10, %c0_11] : memref<1x128xf32, #tpu.memory_space<vmem>>, vector<1x128xf32>
    %cst_12 = arith.constant dense<0.000000e+00> : vector<128xf32>
    %14 = vector.multi_reduction <add>, %12, %cst_12 [0] : vector<256x128xf32> to vector<128xf32>
    %15 = vector.shape_cast %14 : vector<128xf32> to vector<1x128xf32>
    %16 = arith.addf %13, %15 : vector<1x128xf32>
    %c0_13 = arith.constant 0 : index
    %c0_14 = arith.constant 0 : index
    %17 = vector.load %arg5[%c0_13, %c0_14] : memref<1x128xf32, #tpu.memory_space<vmem>>, vector<1x128xf32>
    tpu.vector_store %arg5[%c0_13, %c0_14], %16 {strides = array<i32>} : memref<1x128xf32, #tpu.memory_space<vmem>>, vector<1x128xf32>,
    %c0_15 = arith.constant 0 : index
    %c0_16 = arith.constant 0 : index
    %18 = vector.load %arg6[%c0_15, %c0_16] : memref<1x128xf32, #tpu.memory_space<vmem>>, vector<1x128xf32>
    %19 = arith.mulf %12, %12 : vector<256x128xf32>
    %cst_17 = arith.constant dense<0.000000e+00> : vector<128xf32>
    %20 = vector.multi_reduction <add>, %19, %cst_17 [0] : vector<256x128xf32> to vector<128xf32>
    %21 = vector.shape_cast %20 : vector<128xf32> to vector<1x128xf32>
    %22 = arith.addf %18, %21 : vector<1x128xf32>
    %c0_18 = arith.constant 0 : index
    %c0_19 = arith.constant 0 : index
    %23 = vector.load %arg6[%c0_18, %c0_19] : memref<1x128xf32, #tpu.memory_space<vmem>>, vector<1x128xf32>
    tpu.vector_store %arg6[%c0_18, %c0_19], %22 {strides = array<i32>} : memref<1x128xf32, #tpu.memory_space<vmem>>, vector<1x128xf32>,
    return
  }
  func.func @transform_0(%arg0: i32) -> (i32, i32, i32) {
    %c0_i32 = arith.constant 0 : i32
    %c0_i32_0 = arith.constant 0 : i32
    %c0_i32_1 = arith.constant 0 : i32
    return %arg0, %c0_i32, %c0_i32_0 : i32, i32, i32
  }
  func.func @transform_1(%arg0: i32) -> (i32, i32) {
    %c0_i32 = arith.constant 0 : i32
    %c0_i32_0 = arith.constant 0 : i32
    %c0_i32_1 = arith.constant 0 : i32
    return %c0_i32, %c0_i32_0 : i32, i32
  }
  func.func @transform_2(%arg0: i32) -> (i32, i32) {
    %c0_i32 = arith.constant 0 : i32
    %c0_i32_0 = arith.constant 0 : i32
    %c0_i32_1 = arith.constant 0 : i32
    return %c0_i32, %c0_i32_0 : i32, i32
  }
  func.func @transform_3(%arg0: i32) -> (i32, i32) {
    %c0_i32 = arith.constant 0 : i32
    %c0_i32_0 = arith.constant 0 : i32
    return %arg0, %c0_i32 : i32, i32
  }
  func.func @transform_4(%arg0: i32) -> (i32, i32) {
    %c0_i32 = arith.constant 0 : i32
    %c0_i32_0 = arith.constant 0 : i32
    %c0_i32_1 = arith.constant 0 : i32
    return %c0_i32, %c0_i32_0 : i32, i32
  }
  func.func @transform_5(%arg0: i32) -> (i32, i32) {
    %c0_i32 = arith.constant 0 : i32
    %c0_i32_0 = arith.constant 0 : i32
    %c0_i32_1 = arith.constant 0 : i32
    return %c0_i32, %c0_i32_0 : i32, i32
  }
}

module attributes {stable_mosaic.version = 11 : i64} {
  func.func @_conv1_kernel(%arg0: i32, %arg1: memref<256x128xbf16, #tpu.memory_space<vmem>>, %arg2: memref<1x128xf32, #tpu.memory_space<vmem>>, %arg3: memref<1x128xf32, #tpu.memory_space<vmem>>, %arg4: memref<128x128xbf16, #tpu.memory_space<vmem>>, %arg5: memref<256x128xbf16, #tpu.memory_space<vmem>>, %arg6: memref<1x128xf32, #tpu.memory_space<vmem>>, %arg7: memref<1x128xf32, #tpu.memory_space<vmem>>) attributes {dimension_semantics = [#tpu.dimension_semantics<arbitrary>], iteration_bounds = array<i64: 2>, scalar_prefetch = 0 : i64, scratch_operands = 0 : i64, tpu.core_type = #tpu.core_type<tc>, window_params = [{transform_indices = @transform_0, window_bounds = array<i64: 256, 128>}, {pipeline_mode = #tpu.pipeline_mode<synchronous>, transform_indices = @transform_1, window_bounds = array<i64: 1, 128>}, {pipeline_mode = #tpu.pipeline_mode<synchronous>, transform_indices = @transform_2, window_bounds = array<i64: 1, 128>}, {pipeline_mode = #tpu.pipeline_mode<synchronous>, transform_indices = @transform_3, window_bounds = array<i64: 128, 128>}, {transform_indices = @transform_4, window_bounds = array<i64: 256, 128>}, {pipeline_mode = #tpu.pipeline_mode<synchronous>, transform_indices = @transform_5, window_bounds = array<i64: 1, 128>}, {pipeline_mode = #tpu.pipeline_mode<synchronous>, transform_indices = @transform_6, window_bounds = array<i64: 1, 128>}]} {
    %c0 = arith.constant 0 : index
    %c0_0 = arith.constant 0 : index
    %0 = vector.load %arg1[%c0, %c0_0] : memref<256x128xbf16, #tpu.memory_space<vmem>>, vector<256x128xbf16>
    %1 = arith.extf %0 : vector<256x128xbf16> to vector<256x128xf32>
    %c0_1 = arith.constant 0 : index
    %c0_2 = arith.constant 0 : index
    %2 = vector.load %arg2[%c0_1, %c0_2] : memref<1x128xf32, #tpu.memory_space<vmem>>, vector<1x128xf32>
    %3 = vector.broadcast %2 : vector<1x128xf32> to vector<256x128xf32>
    %4 = arith.mulf %1, %3 : vector<256x128xf32>
    %c0_3 = arith.constant 0 : index
    %c0_4 = arith.constant 0 : index
    %5 = vector.load %arg3[%c0_3, %c0_4] : memref<1x128xf32, #tpu.memory_space<vmem>>, vector<1x128xf32>
    %6 = vector.broadcast %5 : vector<1x128xf32> to vector<256x128xf32>
    %7 = arith.addf %4, %6 : vector<256x128xf32>
    %cst = arith.constant 0.000000e+00 : f32
    %8 = vector.broadcast %cst : f32 to vector<256x128xf32>
    %9 = arith.maximumf %7, %8 : vector<256x128xf32>
    %10 = arith.truncf %9 : vector<256x128xf32> to vector<256x128xbf16>
    %c0_5 = arith.constant 0 : index
    %c0_6 = arith.constant 0 : index
    %11 = vector.load %arg4[%c0_5, %c0_6] : memref<128x128xbf16, #tpu.memory_space<vmem>>, vector<128x128xbf16>
    %cst_7 = arith.constant dense<0.000000e+00> : vector<256x128xf32>
    %12 = tpu.matmul %10, %11, %cst_7 {dimension_numbers = #tpu.dot_dimension_numbers<[1], [0], [0], [1], [0, 0, 1, 1], [], []>} : vector<256x128xbf16>, vector<128x128xbf16>, vector<256x128xf32> -> vector<256x128xf32>
    %13 = arith.truncf %12 : vector<256x128xf32> to vector<256x128xbf16>
    %c0_8 = arith.constant 0 : index
    %c0_9 = arith.constant 0 : index
    %14 = vector.load %arg5[%c0_8, %c0_9] : memref<256x128xbf16, #tpu.memory_space<vmem>>, vector<256x128xbf16>
    tpu.vector_store %arg5[%c0_8, %c0_9], %13 {strides = array<i32>} : memref<256x128xbf16, #tpu.memory_space<vmem>>, vector<256x128xbf16>,
    %c0_i32 = arith.constant 0 : i32
    %15 = arith.cmpi eq, %arg0, %c0_i32 : i32
    %16 = arith.extui %15 : i1 to i32
    %c0_i32_10 = arith.constant 0 : i32
    %17 = arith.cmpi ne, %16, %c0_i32_10 : i32
    scf.if %17 {
      %cst_21 = arith.constant 0.000000e+00 : f32
      %30 = vector.broadcast %cst_21 : f32 to vector<1x128xf32>
      %c0_22 = arith.constant 0 : index
      %c0_23 = arith.constant 0 : index
      %31 = vector.load %arg6[%c0_22, %c0_23] : memref<1x128xf32, #tpu.memory_space<vmem>>, vector<1x128xf32>
      tpu.vector_store %arg6[%c0_22, %c0_23], %30 {strides = array<i32>} : memref<1x128xf32, #tpu.memory_space<vmem>>, vector<1x128xf32>,
      %cst_24 = arith.constant 0.000000e+00 : f32
      %32 = vector.broadcast %cst_24 : f32 to vector<1x128xf32>
      %c0_25 = arith.constant 0 : index
      %c0_26 = arith.constant 0 : index
      %33 = vector.load %arg7[%c0_25, %c0_26] : memref<1x128xf32, #tpu.memory_space<vmem>>, vector<1x128xf32>
      tpu.vector_store %arg7[%c0_25, %c0_26], %32 {strides = array<i32>} : memref<1x128xf32, #tpu.memory_space<vmem>>, vector<1x128xf32>,
    } else {
    }
    %18 = arith.extf %13 : vector<256x128xbf16> to vector<256x128xf32>
    %c0_11 = arith.constant 0 : index
    %c0_12 = arith.constant 0 : index
    %19 = vector.load %arg6[%c0_11, %c0_12] : memref<1x128xf32, #tpu.memory_space<vmem>>, vector<1x128xf32>
    %cst_13 = arith.constant dense<0.000000e+00> : vector<128xf32>
    %20 = vector.multi_reduction <add>, %18, %cst_13 [0] : vector<256x128xf32> to vector<128xf32>
    %21 = vector.shape_cast %20 : vector<128xf32> to vector<1x128xf32>
    %22 = arith.addf %19, %21 : vector<1x128xf32>
    %c0_14 = arith.constant 0 : index
    %c0_15 = arith.constant 0 : index
    %23 = vector.load %arg6[%c0_14, %c0_15] : memref<1x128xf32, #tpu.memory_space<vmem>>, vector<1x128xf32>
    tpu.vector_store %arg6[%c0_14, %c0_15], %22 {strides = array<i32>} : memref<1x128xf32, #tpu.memory_space<vmem>>, vector<1x128xf32>,
    %c0_16 = arith.constant 0 : index
    %c0_17 = arith.constant 0 : index
    %24 = vector.load %arg7[%c0_16, %c0_17] : memref<1x128xf32, #tpu.memory_space<vmem>>, vector<1x128xf32>
    %25 = arith.mulf %18, %18 : vector<256x128xf32>
    %cst_18 = arith.constant dense<0.000000e+00> : vector<128xf32>
    %26 = vector.multi_reduction <add>, %25, %cst_18 [0] : vector<256x128xf32> to vector<128xf32>
    %27 = vector.shape_cast %26 : vector<128xf32> to vector<1x128xf32>
    %28 = arith.addf %24, %27 : vector<1x128xf32>
    %c0_19 = arith.constant 0 : index
    %c0_20 = arith.constant 0 : index
    %29 = vector.load %arg7[%c0_19, %c0_20] : memref<1x128xf32, #tpu.memory_space<vmem>>, vector<1x128xf32>
    tpu.vector_store %arg7[%c0_19, %c0_20], %28 {strides = array<i32>} : memref<1x128xf32, #tpu.memory_space<vmem>>, vector<1x128xf32>,
    return
  }
  func.func @transform_0(%arg0: i32) -> (i32, i32) {
    %c0_i32 = arith.constant 0 : i32
    %c0_i32_0 = arith.constant 0 : i32
    return %arg0, %c0_i32 : i32, i32
  }
  func.func @transform_1(%arg0: i32) -> (i32, i32) {
    %c0_i32 = arith.constant 0 : i32
    %c0_i32_0 = arith.constant 0 : i32
    %c0_i32_1 = arith.constant 0 : i32
    return %c0_i32, %c0_i32_0 : i32, i32
  }
  func.func @transform_2(%arg0: i32) -> (i32, i32) {
    %c0_i32 = arith.constant 0 : i32
    %c0_i32_0 = arith.constant 0 : i32
    %c0_i32_1 = arith.constant 0 : i32
    return %c0_i32, %c0_i32_0 : i32, i32
  }
  func.func @transform_3(%arg0: i32) -> (i32, i32) {
    %c0_i32 = arith.constant 0 : i32
    %c0_i32_0 = arith.constant 0 : i32
    %c0_i32_1 = arith.constant 0 : i32
    return %c0_i32, %c0_i32_0 : i32, i32
  }
  func.func @transform_4(%arg0: i32) -> (i32, i32) {
    %c0_i32 = arith.constant 0 : i32
    %c0_i32_0 = arith.constant 0 : i32
    return %arg0, %c0_i32 : i32, i32
  }
  func.func @transform_5(%arg0: i32) -> (i32, i32) {
    %c0_i32 = arith.constant 0 : i32
    %c0_i32_0 = arith.constant 0 : i32
    %c0_i32_1 = arith.constant 0 : i32
    return %c0_i32, %c0_i32_0 : i32, i32
  }
  func.func @transform_6(%arg0: i32) -> (i32, i32) {
    %c0_i32 = arith.constant 0 : i32
    %c0_i32_0 = arith.constant 0 : i32
    %c0_i32_1 = arith.constant 0 : i32
    return %c0_i32, %c0_i32_0 : i32, i32
  }
}

module attributes {stable_mosaic.version = 11 : i64} {
  func.func @_conv2_kernel(%arg0: i32, %arg1: memref<256x128xbf16, #tpu.memory_space<vmem>>, %arg2: memref<1x128xf32, #tpu.memory_space<vmem>>, %arg3: memref<1x128xf32, #tpu.memory_space<vmem>>, %arg4: memref<9x128x128xbf16, #tpu.memory_space<vmem>>, %arg5: memref<256x128xbf16, #tpu.memory_space<vmem>>, %arg6: memref<1x128xf32, #tpu.memory_space<vmem>>, %arg7: memref<1x128xf32, #tpu.memory_space<vmem>>, %arg8: memref<304x128xf32, #tpu.memory_space<vmem>>) attributes {dimension_semantics = [#tpu.dimension_semantics<arbitrary>], iteration_bounds = array<i64: 2>, scalar_prefetch = 0 : i64, scratch_operands = 1 : i64, tpu.core_type = #tpu.core_type<tc>, window_params = [{transform_indices = @transform_0, window_bounds = array<i64: 256, 128>}, {pipeline_mode = #tpu.pipeline_mode<synchronous>, transform_indices = @transform_1, window_bounds = array<i64: 1, 128>}, {pipeline_mode = #tpu.pipeline_mode<synchronous>, transform_indices = @transform_2, window_bounds = array<i64: 1, 128>}, {pipeline_mode = #tpu.pipeline_mode<synchronous>, transform_indices = @transform_3, window_bounds = array<i64: 9, 128, 128>}, {transform_indices = @transform_4, window_bounds = array<i64: 256, 128>}, {pipeline_mode = #tpu.pipeline_mode<synchronous>, transform_indices = @transform_5, window_bounds = array<i64: 1, 128>}, {pipeline_mode = #tpu.pipeline_mode<synchronous>, transform_indices = @transform_6, window_bounds = array<i64: 1, 128>}]} {
    %c0_i32 = arith.constant 0 : i32
    %0 = arith.cmpi eq, %arg0, %c0_i32 : i32
    %1 = arith.extui %0 : i1 to i32
    %c0_i32_0 = arith.constant 0 : i32
    %2 = arith.cmpi ne, %1, %c0_i32_0 : i32
    scf.if %2 {
      %cst_71 = arith.constant 0.000000e+00 : f32
      %128 = vector.broadcast %cst_71 : f32 to vector<304x128xf32>
      %c0_72 = arith.constant 0 : index
      %c0_73 = arith.constant 0 : index
      %129 = vector.load %arg8[%c0_72, %c0_73] : memref<304x128xf32, #tpu.memory_space<vmem>>, vector<304x128xf32>
      tpu.vector_store %arg8[%c0_72, %c0_73], %128 {strides = array<i32>} : memref<304x128xf32, #tpu.memory_space<vmem>>, vector<304x128xf32>,
      %cst_74 = arith.constant 0.000000e+00 : f32
      %130 = vector.broadcast %cst_74 : f32 to vector<1x128xf32>
      %c0_75 = arith.constant 0 : index
      %c0_76 = arith.constant 0 : index
      %131 = vector.load %arg6[%c0_75, %c0_76] : memref<1x128xf32, #tpu.memory_space<vmem>>, vector<1x128xf32>
      tpu.vector_store %arg6[%c0_75, %c0_76], %130 {strides = array<i32>} : memref<1x128xf32, #tpu.memory_space<vmem>>, vector<1x128xf32>,
      %cst_77 = arith.constant 0.000000e+00 : f32
      %132 = vector.broadcast %cst_77 : f32 to vector<1x128xf32>
      %c0_78 = arith.constant 0 : index
      %c0_79 = arith.constant 0 : index
      %133 = vector.load %arg7[%c0_78, %c0_79] : memref<1x128xf32, #tpu.memory_space<vmem>>, vector<1x128xf32>
      tpu.vector_store %arg7[%c0_78, %c0_79], %132 {strides = array<i32>} : memref<1x128xf32, #tpu.memory_space<vmem>>, vector<1x128xf32>,
    } else {
    }
    %c0 = arith.constant 0 : index
    %c0_1 = arith.constant 0 : index
    %3 = vector.load %arg1[%c0, %c0_1] : memref<256x128xbf16, #tpu.memory_space<vmem>>, vector<256x128xbf16>
    %4 = arith.extf %3 : vector<256x128xbf16> to vector<256x128xf32>
    %c0_2 = arith.constant 0 : index
    %c0_3 = arith.constant 0 : index
    %5 = vector.load %arg2[%c0_2, %c0_3] : memref<1x128xf32, #tpu.memory_space<vmem>>, vector<1x128xf32>
    %6 = vector.broadcast %5 : vector<1x128xf32> to vector<256x128xf32>
    %7 = arith.mulf %4, %6 : vector<256x128xf32>
    %c0_4 = arith.constant 0 : index
    %c0_5 = arith.constant 0 : index
    %8 = vector.load %arg3[%c0_4, %c0_5] : memref<1x128xf32, #tpu.memory_space<vmem>>, vector<1x128xf32>
    %9 = vector.broadcast %8 : vector<1x128xf32> to vector<256x128xf32>
    %10 = arith.addf %7, %9 : vector<256x128xf32>
    %cst = arith.constant 0.000000e+00 : f32
    %11 = vector.broadcast %cst : f32 to vector<256x128xf32>
    %12 = arith.maximumf %10, %11 : vector<256x128xf32>
    %c24 = arith.constant 24 : index
    %c0_6 = arith.constant 0 : index
    %13 = vector.load %arg8[%c24, %c0_6] : memref<304x128xf32, #tpu.memory_space<vmem>>, vector<256x128xf32>
    tpu.vector_store %arg8[%c24, %c0_6], %12 {strides = array<i32>} : memref<304x128xf32, #tpu.memory_space<vmem>>, vector<256x128xf32>,
    %14 = tpu.iota {dimensions = array<i32: 0>} : vector<256x1xi32>
    %c16_i32 = arith.constant 16 : i32
    %c0_i32_7 = arith.constant 0 : i32
    %15 = arith.cmpi eq, %c16_i32, %c0_i32_7 : i32
    %c1_i32 = arith.constant 1 : i32
    %16 = arith.select %15, %c1_i32, %c16_i32 : i32
    %17 = vector.broadcast %16 : i32 to vector<256x1xi32>
    %18 = arith.remsi %14, %17 : vector<256x1xi32>
    %c0_i32_8 = arith.constant 0 : i32
    %19 = vector.broadcast %c0_i32_8 : i32 to vector<256x1xi32>
    %20 = arith.cmpi ne, %18, %19 : vector<256x1xi32>
    %c0_i32_9 = arith.constant 0 : i32
    %21 = vector.broadcast %c0_i32_9 : i32 to vector<256x1xi32>
    %22 = arith.cmpi slt, %18, %21 : vector<256x1xi32>
    %c0_i32_10 = arith.constant 0 : i32
    %23 = arith.cmpi slt, %16, %c0_i32_10 : i32
    %24 = vector.broadcast %23 : i1 to vector<256x1xi1>
    %25 = vector.broadcast %24 : vector<256x1xi1> to vector<256x1xi1>
    %26 = arith.xori %22, %25 : vector<256x1xi1>
    %27 = arith.andi %26, %20 : vector<256x1xi1>
    %28 = vector.broadcast %16 : i32 to vector<256x1xi32>
    %29 = arith.addi %18, %28 : vector<256x1xi32>
    %30 = arith.select %27, %29, %18 : vector<256x1xi1>, vector<256x1xi32>
    %c0_i32_11 = arith.constant 0 : i32
    %31 = vector.broadcast %c0_i32_11 : i32 to vector<256x1xi32>
    %32 = arith.cmpi sgt, %30, %31 : vector<256x1xi32>
    %c15_i32 = arith.constant 15 : i32
    %33 = vector.broadcast %c15_i32 : i32 to vector<256x1xi32>
    %34 = arith.cmpi slt, %30, %33 : vector<256x1xi32>
    %cst_12 = arith.constant 0.000000e+00 : f32
    %35 = vector.broadcast %cst_12 : f32 to vector<256x128xf32>
    %c7 = arith.constant 7 : index
    %c0_13 = arith.constant 0 : index
    %36 = vector.load %arg8[%c7, %c0_13] : memref<304x128xf32, #tpu.memory_space<vmem>>, vector<256x128xf32>
    %cst_14 = arith.constant 0.000000e+00 : f32
    %37 = vector.shape_cast %32 : vector<256x1xi1> to vector<256x1xi1>
    %38 = vector.broadcast %37 : vector<256x1xi1> to vector<256x128xi1>
    %39 = vector.broadcast %cst_14 : f32 to vector<256x128xf32>
    %40 = arith.select %38, %36, %39 : vector<256x128xi1>, vector<256x128xf32>
    %41 = arith.truncf %40 : vector<256x128xf32> to vector<256x128xbf16>
    %c0_15 = arith.constant 0 : index
    %c0_16 = arith.constant 0 : index
    %c0_17 = arith.constant 0 : index
    %42 = vector.load %arg4[%c0_15, %c0_16, %c0_17] : memref<9x128x128xbf16, #tpu.memory_space<vmem>>, vector<1x128x128xbf16>
    %43 = vector.shape_cast %42 : vector<1x128x128xbf16> to vector<128x128xbf16>
    %cst_18 = arith.constant dense<0.000000e+00> : vector<256x128xf32>
    %44 = tpu.matmul %41, %43, %cst_18 {dimension_numbers = #tpu.dot_dimension_numbers<[1], [0], [0], [1], [0, 0, 1, 1], [], []>} : vector<256x128xbf16>, vector<128x128xbf16>, vector<256x128xf32> -> vector<256x128xf32>
    %45 = arith.addf %35, %44 : vector<256x128xf32>
    %c8 = arith.constant 8 : index
    %c0_19 = arith.constant 0 : index
    %46 = vector.load %arg8[%c8, %c0_19] : memref<304x128xf32, #tpu.memory_space<vmem>>, vector<256x128xf32>
    %47 = arith.truncf %46 : vector<256x128xf32> to vector<256x128xbf16>
    %c1 = arith.constant 1 : index
    %c0_20 = arith.constant 0 : index
    %c0_21 = arith.constant 0 : index
    %48 = vector.load %arg4[%c1, %c0_20, %c0_21] : memref<9x128x128xbf16, #tpu.memory_space<vmem>>, vector<1x128x128xbf16>
    %49 = vector.shape_cast %48 : vector<1x128x128xbf16> to vector<128x128xbf16>
    %cst_22 = arith.constant dense<0.000000e+00> : vector<256x128xf32>
    %50 = tpu.matmul %47, %49, %cst_22 {dimension_numbers = #tpu.dot_dimension_numbers<[1], [0], [0], [1], [0, 0, 1, 1], [], []>} : vector<256x128xbf16>, vector<128x128xbf16>, vector<256x128xf32> -> vector<256x128xf32>
    %51 = arith.addf %45, %50 : vector<256x128xf32>
    %c9 = arith.constant 9 : index
    %c0_23 = arith.constant 0 : index
    %52 = vector.load %arg8[%c9, %c0_23] : memref<304x128xf32, #tpu.memory_space<vmem>>, vector<256x128xf32>
    %cst_24 = arith.constant 0.000000e+00 : f32
    %53 = vector.shape_cast %34 : vector<256x1xi1> to vector<256x1xi1>
    %54 = vector.broadcast %53 : vector<256x1xi1> to vector<256x128xi1>
    %55 = vector.broadcast %cst_24 : f32 to vector<256x128xf32>
    %56 = arith.select %54, %52, %55 : vector<256x128xi1>, vector<256x128xf32>
    %57 = arith.truncf %56 : vector<256x128xf32> to vector<256x128xbf16>
    %c2 = arith.constant 2 : index
    %c0_25 = arith.constant 0 : index
    %c0_26 = arith.constant 0 : index
    %58 = vector.load %arg4[%c2, %c0_25, %c0_26] : memref<9x128x128xbf16, #tpu.memory_space<vmem>>, vector<1x128x128xbf16>
    %59 = vector.shape_cast %58 : vector<1x128x128xbf16> to vector<128x128xbf16>
    %cst_27 = arith.constant dense<0.000000e+00> : vector<256x128xf32>
    %60 = tpu.matmul %57, %59, %cst_27 {dimension_numbers = #tpu.dot_dimension_numbers<[1], [0], [0], [1], [0, 0, 1, 1], [], []>} : vector<256x128xbf16>, vector<128x128xbf16>, vector<256x128xf32> -> vector<256x128xf32>
    %61 = arith.addf %51, %60 : vector<256x128xf32>
    %c23 = arith.constant 23 : index
    %c0_28 = arith.constant 0 : index
    %62 = vector.load %arg8[%c23, %c0_28] : memref<304x128xf32, #tpu.memory_space<vmem>>, vector<256x128xf32>
    %cst_29 = arith.constant 0.000000e+00 : f32
    %63 = vector.shape_cast %32 : vector<256x1xi1> to vector<256x1xi1>
    %64 = vector.broadcast %63 : vector<256x1xi1> to vector<256x128xi1>
    %65 = vector.broadcast %cst_29 : f32 to vector<256x128xf32>
    %66 = arith.select %64, %62, %65 : vector<256x128xi1>, vector<256x128xf32>
    %67 = arith.truncf %66 : vector<256x128xf32> to vector<256x128xbf16>
    %c3 = arith.constant 3 : index
    %c0_30 = arith.constant 0 : index
    %c0_31 = arith.constant 0 : index
    %68 = vector.load %arg4[%c3, %c0_30, %c0_31] : memref<9x128x128xbf16, #tpu.memory_space<vmem>>, vector<1x128x128xbf16>
    %69 = vector.shape_cast %68 : vector<1x128x128xbf16> to vector<128x128xbf16>
    %cst_32 = arith.constant dense<0.000000e+00> : vector<256x128xf32>
    %70 = tpu.matmul %67, %69, %cst_32 {dimension_numbers = #tpu.dot_dimension_numbers<[1], [0], [0], [1], [0, 0, 1, 1], [], []>} : vector<256x128xbf16>, vector<128x128xbf16>, vector<256x128xf32> -> vector<256x128xf32>
    %71 = arith.addf %61, %70 : vector<256x128xf32>
    %c24_33 = arith.constant 24 : index
    %c0_34 = arith.constant 0 : index
    %72 = vector.load %arg8[%c24_33, %c0_34] : memref<304x128xf32, #tpu.memory_space<vmem>>, vector<256x128xf32>
    %73 = arith.truncf %72 : vector<256x128xf32> to vector<256x128xbf16>
    %c4 = arith.constant 4 : index
    %c0_35 = arith.constant 0 : index
    %c0_36 = arith.constant 0 : index
    %74 = vector.load %arg4[%c4, %c0_35, %c0_36] : memref<9x128x128xbf16, #tpu.memory_space<vmem>>, vector<1x128x128xbf16>
    %75 = vector.shape_cast %74 : vector<1x128x128xbf16> to vector<128x128xbf16>
    %cst_37 = arith.constant dense<0.000000e+00> : vector<256x128xf32>
    %76 = tpu.matmul %73, %75, %cst_37 {dimension_numbers = #tpu.dot_dimension_numbers<[1], [0], [0], [1], [0, 0, 1, 1], [], []>} : vector<256x128xbf16>, vector<128x128xbf16>, vector<256x128xf32> -> vector<256x128xf32>
    %77 = arith.addf %71, %76 : vector<256x128xf32>
    %c25 = arith.constant 25 : index
    %c0_38 = arith.constant 0 : index
    %78 = vector.load %arg8[%c25, %c0_38] : memref<304x128xf32, #tpu.memory_space<vmem>>, vector<256x128xf32>
    %cst_39 = arith.constant 0.000000e+00 : f32
    %79 = vector.shape_cast %34 : vector<256x1xi1> to vector<256x1xi1>
    %80 = vector.broadcast %79 : vector<256x1xi1> to vector<256x128xi1>
    %81 = vector.broadcast %cst_39 : f32 to vector<256x128xf32>
    %82 = arith.select %80, %78, %81 : vector<256x128xi1>, vector<256x128xf32>
    %83 = arith.truncf %82 : vector<256x128xf32> to vector<256x128xbf16>
    %c5 = arith.constant 5 : index
    %c0_40 = arith.constant 0 : index
    %c0_41 = arith.constant 0 : index
    %84 = vector.load %arg4[%c5, %c0_40, %c0_41] : memref<9x128x128xbf16, #tpu.memory_space<vmem>>, vector<1x128x128xbf16>
    %85 = vector.shape_cast %84 : vector<1x128x128xbf16> to vector<128x128xbf16>
    %cst_42 = arith.constant dense<0.000000e+00> : vector<256x128xf32>
    %86 = tpu.matmul %83, %85, %cst_42 {dimension_numbers = #tpu.dot_dimension_numbers<[1], [0], [0], [1], [0, 0, 1, 1], [], []>} : vector<256x128xbf16>, vector<128x128xbf16>, vector<256x128xf32> -> vector<256x128xf32>
    %87 = arith.addf %77, %86 : vector<256x128xf32>
    %c39 = arith.constant 39 : index
    %c0_43 = arith.constant 0 : index
    %88 = vector.load %arg8[%c39, %c0_43] : memref<304x128xf32, #tpu.memory_space<vmem>>, vector<256x128xf32>
    %cst_44 = arith.constant 0.000000e+00 : f32
    %89 = vector.shape_cast %32 : vector<256x1xi1> to vector<256x1xi1>
    %90 = vector.broadcast %89 : vector<256x1xi1> to vector<256x128xi1>
    %91 = vector.broadcast %cst_44 : f32 to vector<256x128xf32>
    %92 = arith.select %90, %88, %91 : vector<256x128xi1>, vector<256x128xf32>
    %93 = arith.truncf %92 : vector<256x128xf32> to vector<256x128xbf16>
    %c6 = arith.constant 6 : index
    %c0_45 = arith.constant 0 : index
    %c0_46 = arith.constant 0 : index
    %94 = vector.load %arg4[%c6, %c0_45, %c0_46] : memref<9x128x128xbf16, #tpu.memory_space<vmem>>, vector<1x128x128xbf16>
    %95 = vector.shape_cast %94 : vector<1x128x128xbf16> to vector<128x128xbf16>
    %cst_47 = arith.constant dense<0.000000e+00> : vector<256x128xf32>
    %96 = tpu.matmul %93, %95, %cst_47 {dimension_numbers = #tpu.dot_dimension_numbers<[1], [0], [0], [1], [0, 0, 1, 1], [], []>} : vector<256x128xbf16>, vector<128x128xbf16>, vector<256x128xf32> -> vector<256x128xf32>
    %97 = arith.addf %87, %96 : vector<256x128xf32>
    %c40 = arith.constant 40 : index
    %c0_48 = arith.constant 0 : index
    %98 = vector.load %arg8[%c40, %c0_48] : memref<304x128xf32, #tpu.memory_space<vmem>>, vector<256x128xf32>
    %99 = arith.truncf %98 : vector<256x128xf32> to vector<256x128xbf16>
    %c7_49 = arith.constant 7 : index
    %c0_50 = arith.constant 0 : index
    %c0_51 = arith.constant 0 : index
    %100 = vector.load %arg4[%c7_49, %c0_50, %c0_51] : memref<9x128x128xbf16, #tpu.memory_space<vmem>>, vector<1x128x128xbf16>
    %101 = vector.shape_cast %100 : vector<1x128x128xbf16> to vector<128x128xbf16>
    %cst_52 = arith.constant dense<0.000000e+00> : vector<256x128xf32>
    %102 = tpu.matmul %99, %101, %cst_52 {dimension_numbers = #tpu.dot_dimension_numbers<[1], [0], [0], [1], [0, 0, 1, 1], [], []>} : vector<256x128xbf16>, vector<128x128xbf16>, vector<256x128xf32> -> vector<256x128xf32>
    %103 = arith.addf %97, %102 : vector<256x128xf32>
    %c41 = arith.constant 41 : index
    %c0_53 = arith.constant 0 : index
    %104 = vector.load %arg8[%c41, %c0_53] : memref<304x128xf32, #tpu.memory_space<vmem>>, vector<256x128xf32>
    %cst_54 = arith.constant 0.000000e+00 : f32
    %105 = vector.shape_cast %34 : vector<256x1xi1> to vector<256x1xi1>
    %106 = vector.broadcast %105 : vector<256x1xi1> to vector<256x128xi1>
    %107 = vector.broadcast %cst_54 : f32 to vector<256x128xf32>
    %108 = arith.select %106, %104, %107 : vector<256x128xi1>, vector<256x128xf32>
    %109 = arith.truncf %108 : vector<256x128xf32> to vector<256x128xbf16>
    %c8_55 = arith.constant 8 : index
    %c0_56 = arith.constant 0 : index
    %c0_57 = arith.constant 0 : index
    %110 = vector.load %arg4[%c8_55, %c0_56, %c0_57] : memref<9x128x128xbf16, #tpu.memory_space<vmem>>, vector<1x128x128xbf16>
    %111 = vector.shape_cast %110 : vector<1x128x128xbf16> to vector<128x128xbf16>
    %cst_58 = arith.constant dense<0.000000e+00> : vector<256x128xf32>
    %112 = tpu.matmul %109, %111, %cst_58 {dimension_numbers = #tpu.dot_dimension_numbers<[1], [0], [0], [1], [0, 0, 1, 1], [], []>} : vector<256x128xbf16>, vector<128x128xbf16>, vector<256x128xf32> -> vector<256x128xf32>
    %113 = arith.addf %103, %112 : vector<256x128xf32>
    %114 = arith.truncf %113 : vector<256x128xf32> to vector<256x128xbf16>
    %c0_59 = arith.constant 0 : index
    %c0_60 = arith.constant 0 : index
    %115 = vector.load %arg5[%c0_59, %c0_60] : memref<256x128xbf16, #tpu.memory_space<vmem>>, vector<256x128xbf16>
    tpu.vector_store %arg5[%c0_59, %c0_60], %114 {strides = array<i32>} : memref<256x128xbf16, #tpu.memory_space<vmem>>, vector<256x128xbf16>,
    %116 = arith.extf %114 : vector<256x128xbf16> to vector<256x128xf32>
    %c0_61 = arith.constant 0 : index
    %c0_62 = arith.constant 0 : index
    %117 = vector.load %arg6[%c0_61, %c0_62] : memref<1x128xf32, #tpu.memory_space<vmem>>, vector<1x128xf32>
    %cst_63 = arith.constant dense<0.000000e+00> : vector<128xf32>
    %118 = vector.multi_reduction <add>, %116, %cst_63 [0] : vector<256x128xf32> to vector<128xf32>
    %119 = vector.shape_cast %118 : vector<128xf32> to vector<1x128xf32>
    %120 = arith.addf %117, %119 : vector<1x128xf32>
    %c0_64 = arith.constant 0 : index
    %c0_65 = arith.constant 0 : index
    %121 = vector.load %arg6[%c0_64, %c0_65] : memref<1x128xf32, #tpu.memory_space<vmem>>, vector<1x128xf32>
    tpu.vector_store %arg6[%c0_64, %c0_65], %120 {strides = array<i32>} : memref<1x128xf32, #tpu.memory_space<vmem>>, vector<1x128xf32>,
    %c0_66 = arith.constant 0 : index
    %c0_67 = arith.constant 0 : index
    %122 = vector.load %arg7[%c0_66, %c0_67] : memref<1x128xf32, #tpu.memory_space<vmem>>, vector<1x128xf32>
    %123 = arith.mulf %116, %116 : vector<256x128xf32>
    %cst_68 = arith.constant dense<0.000000e+00> : vector<128xf32>
    %124 = vector.multi_reduction <add>, %123, %cst_68 [0] : vector<256x128xf32> to vector<128xf32>
    %125 = vector.shape_cast %124 : vector<128xf32> to vector<1x128xf32>
    %126 = arith.addf %122, %125 : vector<1x128xf32>
    %c0_69 = arith.constant 0 : index
    %c0_70 = arith.constant 0 : index
    %127 = vector.load %arg7[%c0_69, %c0_70] : memref<1x128xf32, #tpu.memory_space<vmem>>, vector<1x128xf32>
    tpu.vector_store %arg7[%c0_69, %c0_70], %126 {strides = array<i32>} : memref<1x128xf32, #tpu.memory_space<vmem>>, vector<1x128xf32>,
    return
  }
  func.func @transform_0(%arg0: i32) -> (i32, i32) {
    %c0_i32 = arith.constant 0 : i32
    %c0_i32_0 = arith.constant 0 : i32
    return %arg0, %c0_i32 : i32, i32
  }
  func.func @transform_1(%arg0: i32) -> (i32, i32) {
    %c0_i32 = arith.constant 0 : i32
    %c0_i32_0 = arith.constant 0 : i32
    %c0_i32_1 = arith.constant 0 : i32
    return %c0_i32, %c0_i32_0 : i32, i32
  }
  func.func @transform_2(%arg0: i32) -> (i32, i32) {
    %c0_i32 = arith.constant 0 : i32
    %c0_i32_0 = arith.constant 0 : i32
    %c0_i32_1 = arith.constant 0 : i32
    return %c0_i32, %c0_i32_0 : i32, i32
  }
  func.func @transform_3(%arg0: i32) -> (i32, i32, i32) {
    %c0_i32 = arith.constant 0 : i32
    %c0_i32_0 = arith.constant 0 : i32
    %c0_i32_1 = arith.constant 0 : i32
    %c0_i32_2 = arith.constant 0 : i32
    return %c0_i32, %c0_i32_0, %c0_i32_1 : i32, i32, i32
  }
  func.func @transform_4(%arg0: i32) -> (i32, i32) {
    %c0_i32 = arith.constant 0 : i32
    %c0_i32_0 = arith.constant 0 : i32
    return %arg0, %c0_i32 : i32, i32
  }
  func.func @transform_5(%arg0: i32) -> (i32, i32) {
    %c0_i32 = arith.constant 0 : i32
    %c0_i32_0 = arith.constant 0 : i32
    %c0_i32_1 = arith.constant 0 : i32
    return %c0_i32, %c0_i32_0 : i32, i32
  }
  func.func @transform_6(%arg0: i32) -> (i32, i32) {
    %c0_i32 = arith.constant 0 : i32
    %c0_i32_0 = arith.constant 0 : i32
    %c0_i32_1 = arith.constant 0 : i32
    return %c0_i32, %c0_i32_0 : i32, i32
  }
}

module attributes {stable_mosaic.version = 11 : i64} {
  func.func @_conv3_kernel(%arg0: i32, %arg1: memref<256x128xbf16, #tpu.memory_space<vmem>>, %arg2: memref<256x128xbf16, #tpu.memory_space<vmem>>, %arg3: memref<1x128xf32, #tpu.memory_space<vmem>>, %arg4: memref<1x128xf32, #tpu.memory_space<vmem>>, %arg5: memref<1x128xf32, #tpu.memory_space<vmem>>, %arg6: memref<1x128xf32, #tpu.memory_space<vmem>>, %arg7: memref<128x128xbf16, #tpu.memory_space<vmem>>, %arg8: memref<128x128xbf16, #tpu.memory_space<vmem>>, %arg9: memref<256x128xf32, #tpu.memory_space<vmem>>) attributes {dimension_semantics = [#tpu.dimension_semantics<parallel>], iteration_bounds = array<i64: 2>, scalar_prefetch = 0 : i64, scratch_operands = 0 : i64, tpu.core_type = #tpu.core_type<tc>, window_params = [{transform_indices = @transform_0, window_bounds = array<i64: 256, 128>}, {transform_indices = @transform_1, window_bounds = array<i64: 256, 128>}, {pipeline_mode = #tpu.pipeline_mode<synchronous>, transform_indices = @transform_2, window_bounds = array<i64: 1, 128>}, {pipeline_mode = #tpu.pipeline_mode<synchronous>, transform_indices = @transform_3, window_bounds = array<i64: 1, 128>}, {pipeline_mode = #tpu.pipeline_mode<synchronous>, transform_indices = @transform_4, window_bounds = array<i64: 1, 128>}, {pipeline_mode = #tpu.pipeline_mode<synchronous>, transform_indices = @transform_5, window_bounds = array<i64: 1, 128>}, {pipeline_mode = #tpu.pipeline_mode<synchronous>, transform_indices = @transform_6, window_bounds = array<i64: 128, 128>}, {pipeline_mode = #tpu.pipeline_mode<synchronous>, transform_indices = @transform_7, window_bounds = array<i64: 128, 128>}, {transform_indices = @transform_8, window_bounds = array<i64: 256, 128>}]} {
    %c0 = arith.constant 0 : index
    %c0_0 = arith.constant 0 : index
    %0 = vector.load %arg2[%c0, %c0_0] : memref<256x128xbf16, #tpu.memory_space<vmem>>, vector<256x128xbf16>
    %1 = arith.extf %0 : vector<256x128xbf16> to vector<256x128xf32>
    %c0_1 = arith.constant 0 : index
    %c0_2 = arith.constant 0 : index
    %2 = vector.load %arg5[%c0_1, %c0_2] : memref<1x128xf32, #tpu.memory_space<vmem>>, vector<1x128xf32>
    %3 = vector.broadcast %2 : vector<1x128xf32> to vector<256x128xf32>
    %4 = arith.mulf %1, %3 : vector<256x128xf32>
    %c0_3 = arith.constant 0 : index
    %c0_4 = arith.constant 0 : index
    %5 = vector.load %arg6[%c0_3, %c0_4] : memref<1x128xf32, #tpu.memory_space<vmem>>, vector<1x128xf32>
    %6 = vector.broadcast %5 : vector<1x128xf32> to vector<256x128xf32>
    %7 = arith.addf %4, %6 : vector<256x128xf32>
    %8 = arith.truncf %7 : vector<256x128xf32> to vector<256x128xbf16>
    %c0_5 = arith.constant 0 : index
    %c0_6 = arith.constant 0 : index
    %9 = vector.load %arg8[%c0_5, %c0_6] : memref<128x128xbf16, #tpu.memory_space<vmem>>, vector<128x128xbf16>
    %cst = arith.constant dense<0.000000e+00> : vector<256x128xf32>
    %10 = tpu.matmul %8, %9, %cst {dimension_numbers = #tpu.dot_dimension_numbers<[1], [0], [0], [1], [0, 0, 1, 1], [], []>} : vector<256x128xbf16>, vector<128x128xbf16>, vector<256x128xf32> -> vector<256x128xf32>
    %11 = arith.addf %1, %10 : vector<256x128xf32>
    %c0_7 = arith.constant 0 : index
    %c0_8 = arith.constant 0 : index
    %12 = vector.load %arg1[%c0_7, %c0_8] : memref<256x128xbf16, #tpu.memory_space<vmem>>, vector<256x128xbf16>
    %13 = arith.extf %12 : vector<256x128xbf16> to vector<256x128xf32>
    %c0_9 = arith.constant 0 : index
    %c0_10 = arith.constant 0 : index
    %14 = vector.load %arg3[%c0_9, %c0_10] : memref<1x128xf32, #tpu.memory_space<vmem>>, vector<1x128xf32>
    %15 = vector.broadcast %14 : vector<1x128xf32> to vector<256x128xf32>
    %16 = arith.mulf %13, %15 : vector<256x128xf32>
    %c0_11 = arith.constant 0 : index
    %c0_12 = arith.constant 0 : index
    %17 = vector.load %arg4[%c0_11, %c0_12] : memref<1x128xf32, #tpu.memory_space<vmem>>, vector<1x128xf32>
    %18 = vector.broadcast %17 : vector<1x128xf32> to vector<256x128xf32>
    %19 = arith.addf %16, %18 : vector<256x128xf32>
    %cst_13 = arith.constant 0.000000e+00 : f32
    %20 = vector.broadcast %cst_13 : f32 to vector<256x128xf32>
    %21 = arith.maximumf %19, %20 : vector<256x128xf32>
    %22 = arith.truncf %21 : vector<256x128xf32> to vector<256x128xbf16>
    %c0_14 = arith.constant 0 : index
    %c0_15 = arith.constant 0 : index
    %23 = vector.load %arg7[%c0_14, %c0_15] : memref<128x128xbf16, #tpu.memory_space<vmem>>, vector<128x128xbf16>
    %cst_16 = arith.constant dense<0.000000e+00> : vector<256x128xf32>
    %24 = tpu.matmul %22, %23, %cst_16 {dimension_numbers = #tpu.dot_dimension_numbers<[1], [0], [0], [1], [0, 0, 1, 1], [], []>} : vector<256x128xbf16>, vector<128x128xbf16>, vector<256x128xf32> -> vector<256x128xf32>
    %25 = arith.addf %24, %11 : vector<256x128xf32>
    %c0_17 = arith.constant 0 : index
    %c0_18 = arith.constant 0 : index
    %26 = vector.load %arg9[%c0_17, %c0_18] : memref<256x128xf32, #tpu.memory_space<vmem>>, vector<256x128xf32>
    tpu.vector_store %arg9[%c0_17, %c0_18], %25 {strides = array<i32>} : memref<256x128xf32, #tpu.memory_space<vmem>>, vector<256x128xf32>,
    return
  }
  func.func @transform_0(%arg0: i32) -> (i32, i32) {
    %c0_i32 = arith.constant 0 : i32
    %c0_i32_0 = arith.constant 0 : i32
    return %arg0, %c0_i32 : i32, i32
  }
  func.func @transform_1(%arg0: i32) -> (i32, i32) {
    %c0_i32 = arith.constant 0 : i32
    %c0_i32_0 = arith.constant 0 : i32
    return %arg0, %c0_i32 : i32, i32
  }
  func.func @transform_2(%arg0: i32) -> (i32, i32) {
    %c0_i32 = arith.constant 0 : i32
    %c0_i32_0 = arith.constant 0 : i32
    %c0_i32_1 = arith.constant 0 : i32
    return %c0_i32, %c0_i32_0 : i32, i32
  }
  func.func @transform_3(%arg0: i32) -> (i32, i32) {
    %c0_i32 = arith.constant 0 : i32
    %c0_i32_0 = arith.constant 0 : i32
    %c0_i32_1 = arith.constant 0 : i32
    return %c0_i32, %c0_i32_0 : i32, i32
  }
  func.func @transform_4(%arg0: i32) -> (i32, i32) {
    %c0_i32 = arith.constant 0 : i32
    %c0_i32_0 = arith.constant 0 : i32
    %c0_i32_1 = arith.constant 0 : i32
    return %c0_i32, %c0_i32_0 : i32, i32
  }
  func.func @transform_5(%arg0: i32) -> (i32, i32) {
    %c0_i32 = arith.constant 0 : i32
    %c0_i32_0 = arith.constant 0 : i32
    %c0_i32_1 = arith.constant 0 : i32
    return %c0_i32, %c0_i32_0 : i32, i32
  }
  func.func @transform_6(%arg0: i32) -> (i32, i32) {
    %c0_i32 = arith.constant 0 : i32
    %c0_i32_0 = arith.constant 0 : i32
    %c0_i32_1 = arith.constant 0 : i32
    return %c0_i32, %c0_i32_0 : i32, i32
  }
  func.func @transform_7(%arg0: i32) -> (i32, i32) {
    %c0_i32 = arith.constant 0 : i32
    %c0_i32_0 = arith.constant 0 : i32
    %c0_i32_1 = arith.constant 0 : i32
    return %c0_i32, %c0_i32_0 : i32, i32
  }
  func.func @transform_8(%arg0: i32) -> (i32, i32) {
    %c0_i32 = arith.constant 0 : i32
    %c0_i32_0 = arith.constant 0 : i32
    return %arg0, %c0_i32 : i32, i32
  }
}

</mosaic_0001>

<llo_original>
// kernel: _lambda_.4
$region0: #{_lambda_.4}
  #allocation0 [shape = 'u32[]', space=smem, size = 0x4, offset = 0x4, fixed_abs, tag = 'smem constant byte address 0x4 - core index']
  #allocation1 [shape = 'u32[72,128]{1,0:T(1,128)}', space=vmem, size = 0x9000, scoped, tag = 'internal scratch']
  %s0 = inlined_call_operand.vmem [shape: f32[2,256,4], index: 0, kind: input, shape index: {}]
  %s1 = inlined_call_operand.vmem [shape: f32[4,128], index: 1, kind: input, shape index: {}]
  %s2 = inlined_call_operand.hbm [shape: bf16[256,256], index: 2, kind: input, shape index: {}]
  %s3 = inlined_call_operand.vmem [shape: bf16[512,128], index: 3, kind: output, shape index: {0}]
  %s4 = inlined_call_operand.vmem [shape: f32[1,128], index: 4, kind: output, shape index: {1}]
  %s5 = inlined_call_operand.vmem [shape: f32[1,128], index: 5, kind: output, shape index: {2}]
  %6 = xla_tuple %s3, %s4, %s5
  %s7 = sld [smem:[#allocation0]]
  $region69: #{_lambda_.4} parent=0
    _
  %s9 = ssub.s32 1, %s7
  %s10 = scalar_select 0, %s9, %s7
  $region1: #{_lambda_.4} parent=0
    #allocation2 [shape = 'u8[131072]{0}', space=vmem, size = 0x20000, scoped, tag = 'input window, operand 2, single buffered']
    #allocation3 [shape = 's32[2]{0}', space=sflag, size = 0x8, scoped, tag = 'scoped memory for _lambda_.4']
    %11 = vsyncpa [#allocation3], 0
    loop: start=0, step=1, limit=4
    $region2: #{_lambda_.4} parent=1 // loop_pre_header
      _
    $region3: #{_lambda_.4} parent=1 // loop_header
      %s13 = sphi 0, %s17
      %p14 = scmp.ge.s32.totalorder %s13, 4
      %s23 = sphi 0, %s25
      %s26 = sphi 0, %s23
      %s27 = sphi 0, %s26
      %s43 = sphi 0, %s27
      %s47 = sphi 0, %s47
      %s49 = sphi 0, %s47
      %s50 = sphi 0, %s49
      %s64 = sphi 0, %s50
      %s68 = sphi 0, %s68
      %s70 = sphi 0, %s68
      %s71 = sphi 0, %s70
      %s85 = sphi 0, %s71
      %s91 = sphi 0, %s93
      %s94 = sphi 0, %s91
      %s95 = sphi 0, %s94
      %s111 = sphi 0, %s95
      %s115 = sphi 0, %s115
      %s117 = sphi 0, %s115
      %s118 = sphi 0, %s117
      %s132 = sphi 0, %s118
      %s136 = sphi 0, %s136
      %s138 = sphi 0, %s136
      %s139 = sphi 0, %s138
      %s153 = sphi 0, %s139
    $region4: #{_lambda_.4} parent=1 // loop_header_branch
      %16 = sbr.rel (%p14) target = $region8
    $region5: #{_lambda_.4} parent=1 // loop_body
      %s18 = ssub.s32 %s13, 1
      %s19 = ssub.s32 %s13, 2
      %s20 = sadd.s32 %s13, 1
      %s21 = ssub.s32 %s13, %s20
      %p22 = scmp.eq.s32.totalorder %s21, 0
      %s24 = sadd.s32 %s23, 1
      %s25 = scalar_select %p22, %s23, %s24
      %p28 = pneg %p22
      %p29 = scmp.eq.s32.totalorder %s13, 1
      %p30 = por %p28, %p29
      %p31 = scmp.ne.s32.totalorder %s23, %s26
      %p32 = scmp.eq.s32.totalorder %s13, 0
      %p33 = por %p31, %p32
      %p34 = scmp.ne.s32.totalorder %s23, %s26
      %p35 = scmp.eq.s32.totalorder %s18, 1
      %p36 = por %p34, %p35
      %p37 = scmp.ne.s32.totalorder %s26, %s27
      %p38 = scmp.eq.s32.totalorder %s18, 0
      %p39 = por %p37, %p38
      %p40 = scmp.ne.s32.totalorder %s26, %s27
      %p41 = scmp.eq.s32.totalorder %s19, 1
      %p42 = por %p40, %p41
      %p44 = scmp.ne.s32.totalorder %s27, %s43
      %p45 = scmp.eq.s32.totalorder %s19, 0
      %p46 = por %p44, %p45
      %s48 = sadd.s32 %s47, 1
      %p51 = scmp.eq.s32.totalorder %s13, 1
      %p52 = scmp.ne.s32.totalorder %s47, %s49
      %p53 = scmp.eq.s32.totalorder %s13, 0
      %p54 = por %p52, %p53
      %p55 = scmp.ne.s32.totalorder %s47, %s49
      %p56 = scmp.eq.s32.totalorder %s18, 1
      %p57 = por %p55, %p56
      %p58 = scmp.ne.s32.totalorder %s49, %s50
      %p59 = scmp.eq.s32.totalorder %s18, 0
      %p60 = por %p58, %p59
      %p61 = scmp.ne.s32.totalorder %s49, %s50
      %p62 = scmp.eq.s32.totalorder %s19, 1
      %p63 = por %p61, %p62
      %p65 = scmp.ne.s32.totalorder %s50, %s64
      %p66 = scmp.eq.s32.totalorder %s19, 0
      %p67 = por %p65, %p66
      %s69 = sadd.s32 %s68, 1
      %p72 = scmp.eq.s32.totalorder %s13, 1
      %p73 = scmp.ne.s32.totalorder %s68, %s70
      %p74 = scmp.eq.s32.totalorder %s13, 0
      %p75 = por %p73, %p74
      %p76 = scmp.ne.s32.totalorder %s68, %s70
      %p77 = scmp.eq.s32.totalorder %s18, 1
      %p78 = por %p76, %p77
      %p79 = scmp.ne.s32.totalorder %s70, %s71
      %p80 = scmp.eq.s32.totalorder %s18, 0
      %p81 = por %p79, %p80
      %p82 = scmp.ne.s32.totalorder %s70, %s71
      %p83 = scmp.eq.s32.totalorder %s19, 1
      %p84 = por %p82, %p83
      %p86 = scmp.ne.s32.totalorder %s71, %s85
      %p87 = scmp.eq.s32.totalorder %s19, 0
      %p88 = por %p86, %p87
      %s89 = ssub.s32 %s13, %s20
      %p90 = scmp.eq.s32.totalorder %s89, 0
      %s92 = sadd.s32 %s91, 1
      %s93 = scalar_select %p90, %s91, %s92
      %p96 = pneg %p90
      %p97 = scmp.eq.s32.totalorder %s13, 1
      %p98 = por %p96, %p97
      %p99 = scmp.ne.s32.totalorder %s91, %s94
      %p100 = scmp.eq.s32.totalorder %s13, 0
      %p101 = por %p99, %p100
      %p102 = scmp.ne.s32.totalorder %s91, %s94
      %p103 = scmp.eq.s32.totalorder %s18, 1
      %p104 = por %p102, %p103
      %p105 = scmp.ne.s32.totalorder %s94, %s95
      %p106 = scmp.eq.s32.totalorder %s18, 0
      %p107 = por %p105, %p106
      %p108 = scmp.ne.s32.totalorder %s94, %s95
      %p109 = scmp.eq.s32.totalorder %s19, 1
      %p110 = por %p108, %p109
      %p112 = scmp.ne.s32.totalorder %s95, %s111
      %p113 = scmp.eq.s32.totalorder %s19, 0
      %p114 = por %p112, %p113
      %s116 = sadd.s32 %s115, 1
      %p119 = scmp.eq.s32.totalorder %s13, 1
      %p120 = scmp.ne.s32.totalorder %s115, %s117
      %p121 = scmp.eq.s32.totalorder %s13, 0
      %p122 = por %p120, %p121
      %p123 = scmp.ne.s32.totalorder %s115, %s117
      %p124 = scmp.eq.s32.totalorder %s18, 1
      %p125 = por %p123, %p124
      %p126 = scmp.ne.s32.totalorder %s117, %s118
      %p127 = scmp.eq.s32.totalorder %s18, 0
      %p128 = por %p126, %p127
      %p129 = scmp.ne.s32.totalorder %s117, %s118
      %p130 = scmp.eq.s32.totalorder %s19, 1
      %p131 = por %p129, %p130
      %p133 = scmp.ne.s32.totalorder %s118, %s132
      %p134 = scmp.eq.s32.totalorder %s19, 0
      %p135 = por %p133, %p134
      %s137 = sadd.s32 %s136, 1
      %p140 = scmp.eq.s32.totalorder %s13, 1
      %p141 = scmp.ne.s32.totalorder %s136, %s138
      %p142 = scmp.eq.s32.totalorder %s13, 0
      %p143 = por %p141, %p142
      %p144 = scmp.ne.s32.totalorder %s136, %s138
      %p145 = scmp.eq.s32.totalorder %s18, 1
      %p146 = por %p144, %p145
      %p147 = scmp.ne.s32.totalorder %s138, %s139
      %p148 = scmp.eq.s32.totalorder %s18, 0
      %p149 = por %p147, %p148
      %p150 = scmp.ne.s32.totalorder %s138, %s139
      %p151 = scmp.eq.s32.totalorder %s19, 1
      %p152 = por %p150, %p151
      %p154 = scmp.ne.s32.totalorder %s139, %s153
      %p155 = scmp.eq.s32.totalorder %s19, 0
      %p156 = por %p154, %p155
      %p157 = scmp.le.s32.totalorder 1, %s13
      %p158 = scmp.lt.s32.totalorder %s13, 3
      %p159 = pnand %p157, %p158
      %p160 = pneg %p159
      // Predicated region
      $region9: #{_lambda_.4} parent=5 // pred_check
        _
      $region10: #{_lambda_.4} parent=5 // pred_check_branch
        %162 = sbr.rel (%p159) target = $region12
      $region11: #{_lambda_.4} parent=5 // pred_region
        %s163 = ssub.s32 %s13, 1
        // Predicated region
        $region13: #{_lambda_.4} parent=11 // pred_check
          %p164 = pneg %p60
        $region14: #{_lambda_.4} parent=11 // pred_check_branch
          %166 = sbr.rel (%p164) target = $region16
        $region15: #{_lambda_.4} parent=11 // pred_region
          _
        $region16: #{_lambda_.4} parent=11 // pred_fallthru
          _
        // Predicated region
        $region17: #{_lambda_.4} parent=11 // pred_check
          %p167 = pneg %p81
        $region18: #{_lambda_.4} parent=11 // pred_check_branch
          %169 = sbr.rel (%p167) target = $region20
        $region19: #{_lambda_.4} parent=11 // pred_region
          %171 = vsyncadd [#allocation3], 0
          %s172 = sshll.u32 %s2, 4
          %s173 = int_to_ptr.hbm [resolvable:$true] %s172
          %s174 = sshll.u32 [#allocation2], 4
          %s175 = int_to_ptr.vmem [resolvable:$true] %s174
          %180 = dma.hbm_to_vmem [thread:$0]  %s173, 4096, %s175, [#allocation3], 128, 128, 8
        $region20: #{_lambda_.4} parent=11 // pred_fallthru
          _
      $region12: #{_lambda_.4} parent=5 // pred_fallthru
        _
      %p181 = scmp.lt.s32.totalorder %s13, 2
      // Predicated region
      $region21: #{_lambda_.4} parent=5 // pred_check
        %p182 = pneg %p181
      $region22: #{_lambda_.4} parent=5 // pred_check_branch
        %184 = sbr.rel (%p182) target = $region24
      $region23: #{_lambda_.4} parent=5 // pred_region
        // Predicated region
        $region25: #{_lambda_.4} parent=23 // pred_check
          %p185 = pneg %p33
        $region26: #{_lambda_.4} parent=23 // pred_check_branch
          %187 = sbr.rel (%p185) target = $region28
        $region27: #{_lambda_.4} parent=23 // pred_region
          %p188 = scmp.lt.s32.totalorder %s13, 1
          %s189 = scalar_select %p188, %s13, 1
          %s190 = smul.addr %s189, 32
          %s191 = smul.addr %s190, 8
          %s192 = scalar_lea.vmem %s0, %s191
        $region28: #{_lambda_.4} parent=23 // pred_fallthru
          _
      $region24: #{_lambda_.4} parent=5 // pred_fallthru
        _
      %p193 = scmp.le.s32.totalorder 1, %s13
      %p194 = scmp.lt.s32.totalorder %s13, 3
      %p195 = pnand %p193, %p194
      %p196 = pneg %p195
      // Predicated region
      $region29: #{_lambda_.4} parent=5 // pred_check
        _
      $region30: #{_lambda_.4} parent=5 // pred_check_branch
        %198 = sbr.rel (%p195) target = $region32
      $region31: #{_lambda_.4} parent=5 // pred_region
        %s199 = ssub.s32 %s13, 1
        // Predicated region
        $region33: #{_lambda_.4} parent=31 // pred_check
          %p200 = pneg %p81
        $region34: #{_lambda_.4} parent=31 // pred_check_branch
          %202 = sbr.rel (%p200) target = $region36
        $region35: #{_lambda_.4} parent=31 // pred_region
          %204 = dma.done [#allocation3], 4096
        $region36: #{_lambda_.4} parent=31 // pred_fallthru
          _
        %p205 = scmp.lt.s32.totalorder %s18, 1
        %s206 = scalar_select %p205, %s18, 1
        %s207 = smul.addr %s206, 32
        %s208 = smul.addr %s207, 8
        %s209 = scalar_lea.vmem %s0, %s208
        %p210 = pneg %p39
        %p211 = pneg %p36
        %p212 = pneg %p60
        %p213 = pneg %p57
        %p214 = pneg %p81
        %p215 = pneg %p78
        %p216 = pneg %p107
        %p217 = pneg %p104
        %s218 = smul.u32 32, %s18
        %p219 = scmp.lt.s32.totalorder %s218, 63
        %s220 = scalar_select %p219, %s218, 63
        %s221 = smul.addr %s220, 4
        %s222 = scalar_lea.vmem %s3, %s221
        %p223 = pneg %p128
        %p224 = pneg %p125
        %p225 = pneg %p149
        %p226 = pneg %p146
        %p227 = scmp.lt.s32.totalorder %s18, 1
        %s228 = scalar_select %p227, %s18, 1
        %s229 = smul.addr %s228, 32
        %s230 = smul.addr %s229, 8
        %s231 = scalar_lea.vmem %s0, %s230
        %s232 = smul.u32 32, %s18
        %p233 = scmp.lt.s32.totalorder %s232, 63
        %s234 = scalar_select %p233, %s232, 63
        %s235 = smul.addr %s234, 4
        %s236 = scalar_lea.vmem %s3, %s235
        %s237 = smul.u32 32, %s18
        %v238 = vld [vmem:[%s231] sm:$0xff]
        %v239 = vld [vmem:[%s231 + $0x8] sm:$0xff]
        %v240 = vld [vmem:[%s231 + $0x10] sm:$0xff]
        %v241 = vld [vmem:[%s231 + $0x18] sm:$0xff]
        %v242 = vld [vmem:[%s231 + $0x20] sm:$0xff]
        %v243 = vld [vmem:[%s231 + $0x28] sm:$0xff]
        %v244 = vld [vmem:[%s231 + $0x30] sm:$0xff]
        %v245 = vld [vmem:[%s231 + $0x38] sm:$0xff]
        %v246 = vld [vmem:[%s231 + $0x40] sm:$0xff]
        %v247 = vld [vmem:[%s231 + $0x48] sm:$0xff]
        %v248 = vld [vmem:[%s231 + $0x50] sm:$0xff]
        %v249 = vld [vmem:[%s231 + $0x58] sm:$0xff]
        %v250 = vld [vmem:[%s231 + $0x60] sm:$0xff]
        %v251 = vld [vmem:[%s231 + $0x68] sm:$0xff]
        %v252 = vld [vmem:[%s231 + $0x70] sm:$0xff]
        %v253 = vld [vmem:[%s231 + $0x78] sm:$0xff]
        %v254 = vld [vmem:[%s231 + $0x80] sm:$0xff]
        %v255 = vld [vmem:[%s231 + $0x88] sm:$0xff]
        %v256 = vld [vmem:[%s231 + $0x90] sm:$0xff]
        %v257 = vld [vmem:[%s231 + $0x98] sm:$0xff]
        %v258 = vld [vmem:[%s231 + $0xa0] sm:$0xff]
        %v259 = vld [vmem:[%s231 + $0xa8] sm:$0xff]
        %v260 = vld [vmem:[%s231 + $0xb0] sm:$0xff]
        %v261 = vld [vmem:[%s231 + $0xb8] sm:$0xff]
        %v262 = vld [vmem:[%s231 + $0xc0] sm:$0xff]
        %v263 = vld [vmem:[%s231 + $0xc8] sm:$0xff]
        %v264 = vld [vmem:[%s231 + $0xd0] sm:$0xff]
        %v265 = vld [vmem:[%s231 + $0xd8] sm:$0xff]
        %v266 = vld [vmem:[%s231 + $0xe0] sm:$0xff]
        %v267 = vld [vmem:[%s231 + $0xe8] sm:$0xff]
        %v268 = vld [vmem:[%s231 + $0xf0] sm:$0xff]
        %v269 = vld [vmem:[%s231 + $0xf8] sm:$0xff]
        %v270 = vld [vmem:[%s1] sm:$0xf]
        %vm271 = vcmask 31744
        %v273 = vsel %vm271, %v238, 0
        %v276 = vsel %vm271, %v239, 0
        %v279 = vsel %vm271, %v240, 0
        %v282 = vsel %vm271, %v241, 0
        %v285 = vsel %vm271, %v242, 0
        %v288 = vsel %vm271, %v243, 0
        %v291 = vsel %vm271, %v244, 0
        %v294 = vsel %vm271, %v245, 0
        %v297 = vsel %vm271, %v246, 0
        %v300 = vsel %vm271, %v247, 0
        %v303 = vsel %vm271, %v248, 0
        %v306 = vsel %vm271, %v249, 0
        %v309 = vsel %vm271, %v250, 0
        %v312 = vsel %vm271, %v251, 0
        %v315 = vsel %vm271, %v252, 0
        %v318 = vsel %vm271, %v253, 0
        %v321 = vsel %vm271, %v254, 0
        %v324 = vsel %vm271, %v255, 0
        %v327 = vsel %vm271, %v256, 0
        %v330 = vsel %vm271, %v257, 0
        %v333 = vsel %vm271, %v258, 0
        %v336 = vsel %vm271, %v259, 0
        %v339 = vsel %vm271, %v260, 0
        %v342 = vsel %vm271, %v261, 0
        %v345 = vsel %vm271, %v262, 0
        %v348 = vsel %vm271, %v263, 0
        %v351 = vsel %vm271, %v264, 0
        %v354 = vsel %vm271, %v265, 0
        %v357 = vsel %vm271, %v266, 0
        %v360 = vsel %vm271, %v267, 0
        %v363 = vsel %vm271, %v268, 0
        %v366 = vsel %vm271, %v269, 0
        %vm368 = vcmask 1043456
        %v370 = vsel %vm368, %v270, 0
        %372 = vmatpush.msra.mxu0 0.0
        %373 = vmatpush.msra.mxu0 0.0
        %374 = vmatpush.msra.mxu0 0.0
        %375 = vmatpush.msra.mxu0 0.0
        %376 = vmatpush.msra.mxu0 0.0
        %377 = vmatpush.msra.mxu0 0.0
        %378 = vmatpush.msra.mxu0 0.0
        %379 = vmatpush.msra.mxu0 0.0
        %380 = vmatpush.msra.mxu0 0.0
        %381 = vmatpush.msra.mxu0 0.0
        %382 = vmatpush.msra.mxu0 0.0
        %383 = vmatpush.msra.mxu0 0.0
        %384 = vmatpush.msra.mxu0 0.0
        %385 = vmatpush.msra.mxu0 0.0
        %386 = vmatpush.msra.mxu0 0.0
        %387 = vmatpush.msra.mxu0 %v370
        %388 = vmatmul.f32.gmra.mxu0 %v273
        %v389 = vpop.f32.mrf.mxu0
        %v390 = vadd.f32 0.0, %v389
        %391 = vmatmul.f32.gmra.mxu0 %v276
        %v392 = vpop.f32.mrf.mxu0
        %v393 = vadd.f32 0.0, %v392
        %394 = vmatmul.f32.gmra.mxu0 %v279
        %v395 = vpop.f32.mrf.mxu0
        %v396 = vadd.f32 0.0, %v395
        %397 = vmatmul.f32.gmra.mxu0 %v282
        %v398 = vpop.f32.mrf.mxu0
        %v399 = vadd.f32 0.0, %v398
        %400 = vmatmul.f32.gmra.mxu0 %v285
        %v401 = vpop.f32.mrf.mxu0
        %v402 = vadd.f32 0.0, %v401
        %403 = vmatmul.f32.gmra.mxu0 %v288
        %v404 = vpop.f32.mrf.mxu0
        %v405 = vadd.f32 0.0, %v404
        %406 = vmatmul.f32.gmra.mxu0 %v291
        %v407 = vpop.f32.mrf.mxu0
        %v408 = vadd.f32 0.0, %v407
        %409 = vmatmul.f32.gmra.mxu0 %v294
        %v410 = vpop.f32.mrf.mxu0
        %v411 = vadd.f32 0.0, %v410
        %412 = vmatmul.f32.gmra.mxu0 %v297
        %v413 = vpop.f32.mrf.mxu0
        %v414 = vadd.f32 0.0, %v413
        %415 = vmatmul.f32.gmra.mxu0 %v300
        %v416 = vpop.f32.mrf.mxu0
        %v417 = vadd.f32 0.0, %v416
        %418 = vmatmul.f32.gmra.mxu0 %v303
        %v419 = vpop.f32.mrf.mxu0
        %v420 = vadd.f32 0.0, %v419
        %421 = vmatmul.f32.gmra.mxu0 %v306
        %v422 = vpop.f32.mrf.mxu0
        %v423 = vadd.f32 0.0, %v422
        %424 = vmatmul.f32.gmra.mxu0 %v309
        %v425 = vpop.f32.mrf.mxu0
        %v426 = vadd.f32 0.0, %v425
        %427 = vmatmul.f32.gmra.mxu0 %v312
        %v428 = vpop.f32.mrf.mxu0
        %v429 = vadd.f32 0.0, %v428
        %430 = vmatmul.f32.gmra.mxu0 %v315
        %v431 = vpop.f32.mrf.mxu0
        %v432 = vadd.f32 0.0, %v431
        %433 = vmatmul.f32.gmra.mxu0 %v318
        %v434 = vpop.f32.mrf.mxu0
        %v435 = vadd.f32 0.0, %v434
        %436 = vmatmul.f32.gmra.mxu0 %v321
        %v437 = vpop.f32.mrf.mxu0
        %v438 = vadd.f32 0.0, %v437
        %439 = vmatmul.f32.gmra.mxu0 %v324
        %v440 = vpop.f32.mrf.mxu0
        %v441 = vadd.f32 0.0, %v440
        %442 = vmatmul.f32.gmra.mxu0 %v327
        %v443 = vpop.f32.mrf.mxu0
        %v444 = vadd.f32 0.0, %v443
        %445 = vmatmul.f32.gmra.mxu0 %v330
        %v446 = vpop.f32.mrf.mxu0
        %v447 = vadd.f32 0.0, %v446
        %448 = vmatmul.f32.gmra.mxu0 %v333
        %v449 = vpop.f32.mrf.mxu0
        %v450 = vadd.f32 0.0, %v449
        %451 = vmatmul.f32.gmra.mxu0 %v336
        %v452 = vpop.f32.mrf.mxu0
        %v453 = vadd.f32 0.0, %v452
        %454 = vmatmul.f32.gmra.mxu0 %v339
        %v455 = vpop.f32.mrf.mxu0
        %v456 = vadd.f32 0.0, %v455
        %457 = vmatmul.f32.gmra.mxu0 %v342
        %v458 = vpop.f32.mrf.mxu0
        %v459 = vadd.f32 0.0, %v458
        %460 = vmatmul.f32.gmra.mxu0 %v345
        %v461 = vpop.f32.mrf.mxu0
        %v462 = vadd.f32 0.0, %v461
        %463 = vmatmul.f32.gmra.mxu0 %v348
        %v464 = vpop.f32.mrf.mxu0
        %v465 = vadd.f32 0.0, %v464
        %466 = vmatmul.f32.gmra.mxu0 %v351
        %v467 = vpop.f32.mrf.mxu0
        %v468 = vadd.f32 0.0, %v467
        %469 = vmatmul.f32.gmra.mxu0 %v354
        %v470 = vpop.f32.mrf.mxu0
        %v471 = vadd.f32 0.0, %v470
        %472 = vmatmul.f32.gmra.mxu0 %v357
        %v473 = vpop.f32.mrf.mxu0
        %v474 = vadd.f32 0.0, %v473
        %475 = vmatmul.f32.gmra.mxu0 %v360
        %v476 = vpop.f32.mrf.mxu0
        %v477 = vadd.f32 0.0, %v476
        %478 = vmatmul.f32.gmra.mxu0 %v363
        %v479 = vpop.f32.mrf.mxu0
        %v480 = vadd.f32 0.0, %v479
        %481 = vmatmul.f32.gmra.mxu0 %v366
        %v482 = vpop.f32.mrf.mxu0
        %v483 = vadd.f32 0.0, %v482
        %484 = vdwg.mxu0
        %v485 = vld [vmem:[#allocation2] sm:$0xff]
        %v486 = vld [vmem:[#allocation2 + $0x8] sm:$0xff]
        %v487 = vld [vmem:[#allocation2 + $0x10] sm:$0xff]
        %v488 = vld [vmem:[#allocation2 + $0x18] sm:$0xff]
        %v489 = vld [vmem:[#allocation2 + $0x20] sm:$0xff]
        %v490 = vld [vmem:[#allocation2 + $0x28] sm:$0xff]
        %v491 = vld [vmem:[#allocation2 + $0x30] sm:$0xff]
        %v492 = vld [vmem:[#allocation2 + $0x38] sm:$0xff]
        %v493 = vld [vmem:[#allocation2 + $0x40] sm:$0xff]
        %v494 = vld [vmem:[#allocation2 + $0x48] sm:$0xff]
        %v495 = vld [vmem:[#allocation2 + $0x50] sm:$0xff]
        %v496 = vld [vmem:[#allocation2 + $0x58] sm:$0xff]
        %v497 = vld [vmem:[#allocation2 + $0x60] sm:$0xff]
        %v498 = vld [vmem:[#allocation2 + $0x68] sm:$0xff]
        %v499 = vld [vmem:[#allocation2 + $0x70] sm:$0xff]
        %v500 = vld [vmem:[#allocation2 + $0x78] sm:$0xff]
        %v501 = vld [vmem:[#allocation2 + $0x80] sm:$0xff]
        %v502 = vld [vmem:[#allocation2 + $0x88] sm:$0xff]
        %v503 = vld [vmem:[#allocation2 + $0x90] sm:$0xff]
        %v504 = vld [vmem:[#allocation2 + $0x98] sm:$0xff]
        %v505 = vld [vmem:[#allocation2 + $0xa0] sm:$0xff]
        %v506 = vld [vmem:[#allocation2 + $0xa8] sm:$0xff]
        %v507 = vld [vmem:[#allocation2 + $0xb0] sm:$0xff]
        %v508 = vld [vmem:[#allocation2 + $0xb8] sm:$0xff]
        %v509 = vld [vmem:[#allocation2 + $0xc0] sm:$0xff]
        %v510 = vld [vmem:[#allocation2 + $0xc8] sm:$0xff]
        %v511 = vld [vmem:[#allocation2 + $0xd0] sm:$0xff]
        %v512 = vld [vmem:[#allocation2 + $0xd8] sm:$0xff]
        %v513 = vld [vmem:[#allocation2 + $0xe0] sm:$0xff]
        %v514 = vld [vmem:[#allocation2 + $0xe8] sm:$0xff]
        %v515 = vld [vmem:[#allocation2 + $0xf0] sm:$0xff]
        %v516 = vld [vmem:[#allocation2 + $0xf8] sm:$0xff]
        %v517 = vpack.c.bf16 %v393, %v390
        %v518 = vpack.c.bf16 %v399, %v396
        %v519 = vpack.c.bf16 %v405, %v402
        %v520 = vpack.c.bf16 %v411, %v408
        %v521 = vpack.c.bf16 %v417, %v414
        %v522 = vpack.c.bf16 %v423, %v420
        %v523 = vpack.c.bf16 %v429, %v426
        %v524 = vpack.c.bf16 %v435, %v432
        %v525 = vpack.c.bf16 %v441, %v438
        %v526 = vpack.c.bf16 %v447, %v444
        %v527 = vpack.c.bf16 %v453, %v450
        %v528 = vpack.c.bf16 %v459, %v456
        %v529 = vpack.c.bf16 %v465, %v462
        %v530 = vpack.c.bf16 %v471, %v468
        %v531 = vpack.c.bf16 %v477, %v474
        %v532 = vpack.c.bf16 %v483, %v480
        %v565 = vunpack.c.l.b16 %v485
        %v566 = vunpack.c.h.b16 %v485
        %v567 = vunpack.c.l.b16 %v486
        %v568 = vunpack.c.h.b16 %v486
        %v569 = vunpack.c.l.b16 %v487
        %v570 = vunpack.c.h.b16 %v487
        %v571 = vunpack.c.l.b16 %v488
        %v572 = vunpack.c.h.b16 %v488
        %v573 = vunpack.c.l.b16 %v489
        %v574 = vunpack.c.h.b16 %v489
        %v575 = vunpack.c.l.b16 %v490
        %v576 = vunpack.c.h.b16 %v490
        %v577 = vunpack.c.l.b16 %v491
        %v578 = vunpack.c.h.b16 %v491
        %v579 = vunpack.c.l.b16 %v492
        %v580 = vunpack.c.h.b16 %v492
        %v581 = vunpack.c.l.b16 %v493
        %v582 = vunpack.c.h.b16 %v493
        %v583 = vunpack.c.l.b16 %v494
        %v584 = vunpack.c.h.b16 %v494
        %v585 = vunpack.c.l.b16 %v495
        %v586 = vunpack.c.h.b16 %v495
        %v587 = vunpack.c.l.b16 %v496
        %v588 = vunpack.c.h.b16 %v496
        %v589 = vunpack.c.l.b16 %v497
        %v590 = vunpack.c.h.b16 %v497
        %v591 = vunpack.c.l.b16 %v498
        %v592 = vunpack.c.h.b16 %v498
        %v593 = vunpack.c.l.b16 %v499
        %v594 = vunpack.c.h.b16 %v499
        %v595 = vunpack.c.l.b16 %v500
        %v596 = vunpack.c.h.b16 %v500
        %v597 = vunpack.c.l.b16 %v501
        %v598 = vunpack.c.h.b16 %v501
        %v599 = vunpack.c.l.b16 %v502
        %v600 = vunpack.c.h.b16 %v502
        %v601 = vunpack.c.l.b16 %v503
        %v602 = vunpack.c.h.b16 %v503
        %v603 = vunpack.c.l.b16 %v504
        %v604 = vunpack.c.h.b16 %v504
        %v605 = vunpack.c.l.b16 %v505
        %v606 = vunpack.c.h.b16 %v505
        %v607 = vunpack.c.l.b16 %v506
        %v608 = vunpack.c.h.b16 %v506
        %v609 = vunpack.c.l.b16 %v507
        %v610 = vunpack.c.h.b16 %v507
        %v611 = vunpack.c.l.b16 %v508
        %v612 = vunpack.c.h.b16 %v508
        %v613 = vunpack.c.l.b16 %v509
        %v614 = vunpack.c.h.b16 %v509
        %v615 = vunpack.c.l.b16 %v510
        %v616 = vunpack.c.h.b16 %v510
        %v617 = vunpack.c.l.b16 %v511
        %v618 = vunpack.c.h.b16 %v511
        %v619 = vunpack.c.l.b16 %v512
        %v620 = vunpack.c.h.b16 %v512
        %v621 = vunpack.c.l.b16 %v513
        %v622 = vunpack.c.h.b16 %v513
        %v623 = vunpack.c.l.b16 %v514
        %v624 = vunpack.c.h.b16 %v514
        %v625 = vunpack.c.l.b16 %v515
        %v626 = vunpack.c.h.b16 %v515
        %v627 = vunpack.c.l.b16 %v516
        %v628 = vunpack.c.h.b16 %v516
        %v629 = vpack.c.b16 %v567, %v565
        %v630 = vpack.c.b16 %v568, %v566
        %v631 = vpack.c.b16 %v571, %v569
        %v632 = vpack.c.b16 %v572, %v570
        %v633 = vpack.c.b16 %v575, %v573
        %v634 = vpack.c.b16 %v576, %v574
        %v635 = vpack.c.b16 %v579, %v577
        %v636 = vpack.c.b16 %v580, %v578
        %v637 = vpack.c.b16 %v583, %v581
        %v638 = vpack.c.b16 %v584, %v582
        %v639 = vpack.c.b16 %v587, %v585
        %v640 = vpack.c.b16 %v588, %v586
        %v641 = vpack.c.b16 %v591, %v589
        %v642 = vpack.c.b16 %v592, %v590
        %v643 = vpack.c.b16 %v595, %v593
        %v644 = vpack.c.b16 %v596, %v594
        %v645 = vpack.c.b16 %v599, %v597
        %v646 = vpack.c.b16 %v600, %v598
        %v647 = vpack.c.b16 %v603, %v601
        %v648 = vpack.c.b16 %v604, %v602
        %v649 = vpack.c.b16 %v607, %v605
        %v650 = vpack.c.b16 %v608, %v606
        %v651 = vpack.c.b16 %v611, %v609
        %v652 = vpack.c.b16 %v612, %v610
        %v653 = vpack.c.b16 %v615, %v613
        %v654 = vpack.c.b16 %v616, %v614
        %v655 = vpack.c.b16 %v619, %v617
        %v656 = vpack.c.b16 %v620, %v618
        %v657 = vpack.c.b16 %v623, %v621
        %v658 = vpack.c.b16 %v624, %v622
        %v659 = vpack.c.b16 %v627, %v625
        %v660 = vpack.c.b16 %v628, %v626
        %693 = vmatpush.bf16.msra.mxu0 %v524
        %694 = vmatpush.bf16.msra.mxu0 %v523
        %695 = vmatpush.bf16.msra.mxu0 %v522
        %696 = vmatpush.bf16.msra.mxu0 %v521
        %697 = vmatpush.bf16.msra.mxu0 %v520
        %698 = vmatpush.bf16.msra.mxu0 %v519
        %699 = vmatpush.bf16.msra.mxu0 %v518
        %700 = vmatpush.bf16.msra.mxu0 %v517
        %701 = vmatmul.bf16.gmra.mxu0 %v629
        %v702 = vpop.f32.mrf.mxu0
        %v703 = vadd.f32 0.0, %v702
        %v704 = vpop.f32.mrf.mxu0
        %v705 = vadd.f32 0.0, %v704
        %706 = vmatmul.bf16.gmra.mxu0 %v631
        %v707 = vpop.f32.mrf.mxu0
        %v708 = vadd.f32 0.0, %v707
        %v709 = vpop.f32.mrf.mxu0
        %v710 = vadd.f32 0.0, %v709
        %711 = vmatmul.bf16.gmra.mxu0 %v633
        %v712 = vpop.f32.mrf.mxu0
        %v713 = vadd.f32 0.0, %v712
        %v714 = vpop.f32.mrf.mxu0
        %v715 = vadd.f32 0.0, %v714
        %716 = vmatmul.bf16.gmra.mxu0 %v635
        %v717 = vpop.f32.mrf.mxu0
        %v718 = vadd.f32 0.0, %v717
        %v719 = vpop.f32.mrf.mxu0
        %v720 = vadd.f32 0.0, %v719
        %721 = vmatmul.bf16.gmra.mxu0 %v637
        %v722 = vpop.f32.mrf.mxu0
        %v723 = vadd.f32 0.0, %v722
        %v724 = vpop.f32.mrf.mxu0
        %v725 = vadd.f32 0.0, %v724
        %726 = vmatmul.bf16.gmra.mxu0 %v639
        %v727 = vpop.f32.mrf.mxu0
        %v728 = vadd.f32 0.0, %v727
        %v729 = vpop.f32.mrf.mxu0
        %v730 = vadd.f32 0.0, %v729
        %731 = vmatmul.bf16.gmra.mxu0 %v641
        %v732 = vpop.f32.mrf.mxu0
        %v733 = vadd.f32 0.0, %v732
        %v734 = vpop.f32.mrf.mxu0
        %v735 = vadd.f32 0.0, %v734
        %736 = vmatmul.bf16.gmra.mxu0 %v643
        %v737 = vpop.f32.mrf.mxu0
        %v738 = vadd.f32 0.0, %v737
        %v739 = vpop.f32.mrf.mxu0
        %v740 = vadd.f32 0.0, %v739
        %741 = vmatmul.bf16.gmra.mxu0 %v645
        %v742 = vpop.f32.mrf.mxu0
        %v743 = vadd.f32 0.0, %v742
        %v744 = vpop.f32.mrf.mxu0
        %v745 = vadd.f32 0.0, %v744
        %746 = vmatmul.bf16.gmra.mxu0 %v647
        %v747 = vpop.f32.mrf.mxu0
        %v748 = vadd.f32 0.0, %v747
        %v749 = vpop.f32.mrf.mxu0
        %v750 = vadd.f32 0.0, %v749
        %751 = vmatmul.bf16.gmra.mxu0 %v649
        %v752 = vpop.f32.mrf.mxu0
        %v753 = vadd.f32 0.0, %v752
        %v754 = vpop.f32.mrf.mxu0
        %v755 = vadd.f32 0.0, %v754
        %756 = vmatmul.bf16.gmra.mxu0 %v651
        %v757 = vpop.f32.mrf.mxu0
        %v758 = vadd.f32 0.0, %v757
        %v759 = vpop.f32.mrf.mxu0
        %v760 = vadd.f32 0.0, %v759
        %761 = vmatmul.bf16.gmra.mxu0 %v653
        %v762 = vpop.f32.mrf.mxu0
        %v763 = vadd.f32 0.0, %v762
        %v764 = vpop.f32.mrf.mxu0
        %v765 = vadd.f32 0.0, %v764
        %766 = vmatmul.bf16.gmra.mxu0 %v655
        %v767 = vpop.f32.mrf.mxu0
        %v768 = vadd.f32 0.0, %v767
        %v769 = vpop.f32.mrf.mxu0
        %v770 = vadd.f32 0.0, %v769
        %771 = vmatmul.bf16.gmra.mxu0 %v657
        %v772 = vpop.f32.mrf.mxu0
        %v773 = vadd.f32 0.0, %v772
        %v774 = vpop.f32.mrf.mxu0
        %v775 = vadd.f32 0.0, %v774
        %776 = vmatmul.bf16.gmra.mxu0 %v659
        %v777 = vpop.f32.mrf.mxu0
        %v778 = vadd.f32 0.0, %v777
        %v779 = vpop.f32.mrf.mxu0
        %v780 = vadd.f32 0.0, %v779
        %781 = vdwg.mxu0
        %782 = vmatpush.bf16.msra.mxu0 %v532
        %783 = vmatpush.bf16.msra.mxu0 %v531
        %784 = vmatpush.bf16.msra.mxu0 %v530
        %785 = vmatpush.bf16.msra.mxu0 %v529
        %786 = vmatpush.bf16.msra.mxu0 %v528
        %787 = vmatpush.bf16.msra.mxu0 %v527
        %788 = vmatpush.bf16.msra.mxu0 %v526
        %789 = vmatpush.bf16.msra.mxu0 %v525
        %790 = vmatmul.bf16.gmra.mxu0 %v630
        %v791 = vpop.f32.mrf.mxu0
        %v792 = vadd.f32 %v703, %v791
        %v793 = vpop.f32.mrf.mxu0
        %v794 = vadd.f32 %v705, %v793
        %795 = vmatmul.bf16.gmra.mxu0 %v632
        %v796 = vpop.f32.mrf.mxu0
        %v797 = vadd.f32 %v708, %v796
        %v798 = vpop.f32.mrf.mxu0
        %v799 = vadd.f32 %v710, %v798
        %800 = vmatmul.bf16.gmra.mxu0 %v634
        %v801 = vpop.f32.mrf.mxu0
        %v802 = vadd.f32 %v713, %v801
        %v803 = vpop.f32.mrf.mxu0
        %v804 = vadd.f32 %v715, %v803
        %805 = vmatmul.bf16.gmra.mxu0 %v636
        %v806 = vpop.f32.mrf.mxu0
        %v807 = vadd.f32 %v718, %v806
        %v808 = vpop.f32.mrf.mxu0
        %v809 = vadd.f32 %v720, %v808
        %810 = vmatmul.bf16.gmra.mxu0 %v638
        %v811 = vpop.f32.mrf.mxu0
        %v812 = vadd.f32 %v723, %v811
        %v813 = vpop.f32.mrf.mxu0
        %v814 = vadd.f32 %v725, %v813
        %815 = vmatmul.bf16.gmra.mxu0 %v640
        %v816 = vpop.f32.mrf.mxu0
        %v817 = vadd.f32 %v728, %v816
        %v818 = vpop.f32.mrf.mxu0
        %v819 = vadd.f32 %v730, %v818
        %820 = vmatmul.bf16.gmra.mxu0 %v642
        %v821 = vpop.f32.mrf.mxu0
        %v822 = vadd.f32 %v733, %v821
        %v823 = vpop.f32.mrf.mxu0
        %v824 = vadd.f32 %v735, %v823
        %825 = vmatmul.bf16.gmra.mxu0 %v644
        %v826 = vpop.f32.mrf.mxu0
        %v827 = vadd.f32 %v738, %v826
        %v828 = vpop.f32.mrf.mxu0
        %v829 = vadd.f32 %v740, %v828
        %830 = vmatmul.bf16.gmra.mxu0 %v646
        %v831 = vpop.f32.mrf.mxu0
        %v832 = vadd.f32 %v743, %v831
        %v833 = vpop.f32.mrf.mxu0
        %v834 = vadd.f32 %v745, %v833
        %835 = vmatmul.bf16.gmra.mxu0 %v648
        %v836 = vpop.f32.mrf.mxu0
        %v837 = vadd.f32 %v748, %v836
        %v838 = vpop.f32.mrf.mxu0
        %v839 = vadd.f32 %v750, %v838
        %840 = vmatmul.bf16.gmra.mxu0 %v650
        %v841 = vpop.f32.mrf.mxu0
        %v842 = vadd.f32 %v753, %v841
        %v843 = vpop.f32.mrf.mxu0
        %v844 = vadd.f32 %v755, %v843
        %845 = vmatmul.bf16.gmra.mxu0 %v652
        %v846 = vpop.f32.mrf.mxu0
        %v847 = vadd.f32 %v758, %v846
        %v848 = vpop.f32.mrf.mxu0
        %v849 = vadd.f32 %v760, %v848
        %850 = vmatmul.bf16.gmra.mxu0 %v654
        %v851 = vpop.f32.mrf.mxu0
        %v852 = vadd.f32 %v763, %v851
        %v853 = vpop.f32.mrf.mxu0
        %v854 = vadd.f32 %v765, %v853
        %855 = vmatmul.bf16.gmra.mxu0 %v656
        %v856 = vpop.f32.mrf.mxu0
        %v857 = vadd.f32 %v768, %v856
        %v858 = vpop.f32.mrf.mxu0
        %v859 = vadd.f32 %v770, %v858
        %860 = vmatmul.bf16.gmra.mxu0 %v658
        %v861 = vpop.f32.mrf.mxu0
        %v862 = vadd.f32 %v773, %v861
        %v863 = vpop.f32.mrf.mxu0
        %v864 = vadd.f32 %v775, %v863
        %865 = vmatmul.bf16.gmra.mxu0 %v660
        %v866 = vpop.f32.mrf.mxu0
        %v867 = vadd.f32 %v778, %v866
        %v868 = vpop.f32.mrf.mxu0
        %v869 = vadd.f32 %v780, %v868
        %870 = vdwg.mxu0
        %v871 = vpack.c.bf16 %v792, %v792
        %v872 = vpack.c.bf16 %v794, %v794
        %v873 = vpack.c.bf16 %v797, %v797
        %v874 = vpack.c.bf16 %v799, %v799
        %v875 = vpack.c.bf16 %v802, %v802
        %v876 = vpack.c.bf16 %v804, %v804
        %v877 = vpack.c.bf16 %v807, %v807
        %v878 = vpack.c.bf16 %v809, %v809
        %v879 = vpack.c.bf16 %v812, %v812
        %v880 = vpack.c.bf16 %v814, %v814
        %v881 = vpack.c.bf16 %v817, %v817
        %v882 = vpack.c.bf16 %v819, %v819
        %v883 = vpack.c.bf16 %v822, %v822
        %v884 = vpack.c.bf16 %v824, %v824
        %v885 = vpack.c.bf16 %v827, %v827
        %v886 = vpack.c.bf16 %v829, %v829
        %v887 = vpack.c.bf16 %v832, %v832
        %v888 = vpack.c.bf16 %v834, %v834
        %v889 = vpack.c.bf16 %v837, %v837
        %v890 = vpack.c.bf16 %v839, %v839
        %v891 = vpack.c.bf16 %v842, %v842
        %v892 = vpack.c.bf16 %v844, %v844
        %v893 = vpack.c.bf16 %v847, %v847
        %v894 = vpack.c.bf16 %v849, %v849
        %v895 = vpack.c.bf16 %v852, %v852
        %v896 = vpack.c.bf16 %v854, %v854
        %v897 = vpack.c.bf16 %v857, %v857
        %v898 = vpack.c.bf16 %v859, %v859
        %v899 = vpack.c.bf16 %v862, %v862
        %v900 = vpack.c.bf16 %v864, %v864
        %v901 = vpack.c.bf16 %v867, %v867
        %v902 = vpack.c.bf16 %v869, %v869
        %903 = vst [vmem:[%s236] sm:$0xf] %v871
        %904 = vst [vmem:[%s236 + $0x4] sm:$0xf] %v872
        %905 = vst [vmem:[%s236 + $0x8] sm:$0xf] %v873
        %906 = vst [vmem:[%s236 + $0xc] sm:$0xf] %v874
        %907 = vst [vmem:[%s236 + $0x10] sm:$0xf] %v875
        %908 = vst [vmem:[%s236 + $0x14] sm:$0xf] %v876
        %909 = vst [vmem:[%s236 + $0x18] sm:$0xf] %v877
        %910 = vst [vmem:[%s236 + $0x1c] sm:$0xf] %v878
        %911 = vst [vmem:[%s236 + $0x20] sm:$0xf] %v879
        %912 = vst [vmem:[%s236 + $0x24] sm:$0xf] %v880
        %913 = vst [vmem:[%s236 + $0x28] sm:$0xf] %v881
        %914 = vst [vmem:[%s236 + $0x2c] sm:$0xf] %v882
        %915 = vst [vmem:[%s236 + $0x30] sm:$0xf] %v883
        %916 = vst [vmem:[%s236 + $0x34] sm:$0xf] %v884
        %917 = vst [vmem:[%s236 + $0x38] sm:$0xf] %v885
        %918 = vst [vmem:[%s236 + $0x3c] sm:$0xf] %v886
        %919 = vst [vmem:[%s236 + $0x40] sm:$0xf] %v887
        %920 = vst [vmem:[%s236 + $0x44] sm:$0xf] %v888
        %921 = vst [vmem:[%s236 + $0x48] sm:$0xf] %v889
        %922 = vst [vmem:[%s236 + $0x4c] sm:$0xf] %v890
        %923 = vst [vmem:[%s236 + $0x50] sm:$0xf] %v891
        %924 = vst [vmem:[%s236 + $0x54] sm:$0xf] %v892
        %925 = vst [vmem:[%s236 + $0x58] sm:$0xf] %v893
        %926 = vst [vmem:[%s236 + $0x5c] sm:$0xf] %v894
        %927 = vst [vmem:[%s236 + $0x60] sm:$0xf] %v895
        %928 = vst [vmem:[%s236 + $0x64] sm:$0xf] %v896
        %929 = vst [vmem:[%s236 + $0x68] sm:$0xf] %v897
        %930 = vst [vmem:[%s236 + $0x6c] sm:$0xf] %v898
        %931 = vst [vmem:[%s236 + $0x70] sm:$0xf] %v899
        %932 = vst [vmem:[%s236 + $0x74] sm:$0xf] %v900
        %933 = vst [vmem:[%s236 + $0x78] sm:$0xf] %v901
        %934 = vst [vmem:[%s236 + $0x7c] sm:$0xf] %v902
        %p935 = scmp.eq.s32.totalorder %s18, 0
        // Predicated region
        $region37: #{_lambda_.4} parent=31 // pred_check
          %p936 = pneg %p935
        $region38: #{_lambda_.4} parent=31 // pred_check_branch
          %938 = sbr.rel (%p936) target = $region40
        $region39: #{_lambda_.4} parent=31 // pred_region
          %939 = vst [vmem:[%s4] sm:$0x1] 0.0
          %940 = vst [vmem:[%s5] sm:$0x1] 0.0
        $region40: #{_lambda_.4} parent=31 // pred_fallthru
          _
        %v941 = vunpack.c.l.bf16 %v871
        %v942 = vunpack.c.l.bf16 %v872
        %v943 = vunpack.c.l.bf16 %v873
        %v944 = vunpack.c.l.bf16 %v874
        %v945 = vunpack.c.l.bf16 %v875
        %v946 = vunpack.c.l.bf16 %v876
        %v947 = vunpack.c.l.bf16 %v877
        %v948 = vunpack.c.l.bf16 %v878
        %v949 = vunpack.c.l.bf16 %v879
        %v950 = vunpack.c.l.bf16 %v880
        %v951 = vunpack.c.l.bf16 %v881
        %v952 = vunpack.c.l.bf16 %v882
        %v953 = vunpack.c.l.bf16 %v883
        %v954 = vunpack.c.l.bf16 %v884
        %v955 = vunpack.c.l.bf16 %v885
        %v956 = vunpack.c.l.bf16 %v886
        %v957 = vunpack.c.l.bf16 %v887
        %v958 = vunpack.c.l.bf16 %v888
        %v959 = vunpack.c.l.bf16 %v889
        %v960 = vunpack.c.l.bf16 %v890
        %v961 = vunpack.c.l.bf16 %v891
        %v962 = vunpack.c.l.bf16 %v892
        %v963 = vunpack.c.l.bf16 %v893
        %v964 = vunpack.c.l.bf16 %v894
        %v965 = vunpack.c.l.bf16 %v895
        %v966 = vunpack.c.l.bf16 %v896
        %v967 = vunpack.c.l.bf16 %v897
        %v968 = vunpack.c.l.bf16 %v898
        %v969 = vunpack.c.l.bf16 %v899
        %v970 = vunpack.c.l.bf16 %v900
        %v971 = vunpack.c.l.bf16 %v901
        %v972 = vunpack.c.l.bf16 %v902
        %v973 = vld [vmem:[%s4] sm:$0x1]
        %v974 = vadd.f32 %v941, %v942
        %v975 = vadd.f32 %v974, %v943
        %v976 = vadd.f32 %v975, %v944
        %v977 = vadd.f32 %v976, %v945
        %v978 = vadd.f32 %v977, %v946
        %v979 = vadd.f32 %v978, %v947
        %v980 = vadd.f32 %v979, %v948
        %v981 = vadd.f32 %v980, %v949
        %v982 = vadd.f32 %v981, %v950
        %v983 = vadd.f32 %v982, %v951
        %v984 = vadd.f32 %v983, %v952
        %v985 = vadd.f32 %v984, %v953
        %v986 = vadd.f32 %v985, %v954
        %v987 = vadd.f32 %v986, %v955
        %v988 = vadd.f32 %v987, %v956
        %v989 = vadd.f32 %v988, %v957
        %v990 = vadd.f32 %v989, %v958
        %v991 = vadd.f32 %v990, %v959
        %v992 = vadd.f32 %v991, %v960
        %v993 = vadd.f32 %v992, %v961
        %v994 = vadd.f32 %v993, %v962
        %v995 = vadd.f32 %v994, %v963
        %v996 = vadd.f32 %v995, %v964
        %v997 = vadd.f32 %v996, %v965
        %v998 = vadd.f32 %v997, %v966
        %v999 = vadd.f32 %v998, %v967
        %v1000 = vadd.f32 %v999, %v968
        %v1001 = vadd.f32 %v1000, %v969
        %v1002 = vadd.f32 %v1001, %v970
        %v1003 = vadd.f32 %v1002, %v971
        %v1004 = vadd.f32 %v1003, %v972
        %v1005 = vrot.slane %v1004, 4
        %v1006 = vadd.f32 %v1004, %v1005
        %v1007 = vrot.slane %v1006, 2
        %v1008 = vadd.f32 %v1006, %v1007
        %v1009 = vrot.slane %v1008, 1
        %v1010 = vadd.f32 %v1008, %v1009
        %v1011 = vadd.f32 %v973, %v1010
        %1012 = vst [vmem:[%s4] sm:$0x1] %v1011
        %v1013 = vld [vmem:[%s5] sm:$0x1]
        %v1014 = vmul.f32 %v941, %v941
        %v1015 = vmul.f32 %v942, %v942
        %v1016 = vmul.f32 %v943, %v943
        %v1017 = vmul.f32 %v944, %v944
        %v1018 = vmul.f32 %v945, %v945
        %v1019 = vmul.f32 %v946, %v946
        %v1020 = vmul.f32 %v947, %v947
        %v1021 = vmul.f32 %v948, %v948
        %v1022 = vmul.f32 %v949, %v949
        %v1023 = vmul.f32 %v950, %v950
        %v1024 = vmul.f32 %v951, %v951
        %v1025 = vmul.f32 %v952, %v952
        %v1026 = vmul.f32 %v953, %v953
        %v1027 = vmul.f32 %v954, %v954
        %v1028 = vmul.f32 %v955, %v955
        %v1029 = vmul.f32 %v956, %v956
        %v1030 = vmul.f32 %v957, %v957
        %v1031 = vmul.f32 %v958, %v958
        %v1032 = vmul.f32 %v959, %v959
        %v1033 = vmul.f32 %v960, %v960
        %v1034 = vmul.f32 %v961, %v961
        %v1035 = vmul.f32 %v962, %v962
        %v1036 = vmul.f32 %v963, %v963
        %v1037 = vmul.f32 %v964, %v964
        %v1038 = vmul.f32 %v965, %v965
        %v1039 = vmul.f32 %v966, %v966
        %v1040 = vmul.f32 %v967, %v967
        %v1041 = vmul.f32 %v968, %v968
        %v1042 = vmul.f32 %v969, %v969
        %v1043 = vmul.f32 %v970, %v970
        %v1044 = vmul.f32 %v971, %v971
        %v1045 = vmul.f32 %v972, %v972
        %v1046 = vadd.f32 %v1014, %v1015
        %v1047 = vadd.f32 %v1046, %v1016
        %v1048 = vadd.f32 %v1047, %v1017
        %v1049 = vadd.f32 %v1048, %v1018
        %v1050 = vadd.f32 %v1049, %v1019
        %v1051 = vadd.f32 %v1050, %v1020
        %v1052 = vadd.f32 %v1051, %v1021
        %v1053 = vadd.f32 %v1052, %v1022
        %v1054 = vadd.f32 %v1053, %v1023
        %v1055 = vadd.f32 %v1054, %v1024
        %v1056 = vadd.f32 %v1055, %v1025
        %v1057 = vadd.f32 %v1056, %v1026
        %v1058 = vadd.f32 %v1057, %v1027
        %v1059 = vadd.f32 %v1058, %v1028
        %v1060 = vadd.f32 %v1059, %v1029
        %v1061 = vadd.f32 %v1060, %v1030
        %v1062 = vadd.f32 %v1061, %v1031
        %v1063 = vadd.f32 %v1062, %v1032
        %v1064 = vadd.f32 %v1063, %v1033
        %v1065 = vadd.f32 %v1064, %v1034
        %v1066 = vadd.f32 %v1065, %v1035
        %v1067 = vadd.f32 %v1066, %v1036
        %v1068 = vadd.f32 %v1067, %v1037
        %v1069 = vadd.f32 %v1068, %v1038
        %v1070 = vadd.f32 %v1069, %v1039
        %v1071 = vadd.f32 %v1070, %v1040
        %v1072 = vadd.f32 %v1071, %v1041
        %v1073 = vadd.f32 %v1072, %v1042
        %v1074 = vadd.f32 %v1073, %v1043
        %v1075 = vadd.f32 %v1074, %v1044
        %v1076 = vadd.f32 %v1075, %v1045
        %v1077 = vrot.slane %v1076, 4
        %v1078 = vadd.f32 %v1076, %v1077
        %v1079 = vrot.slane %v1078, 2
        %v1080 = vadd.f32 %v1078, %v1079
        %v1081 = vrot.slane %v1080, 1
        %v1082 = vadd.f32 %v1080, %v1081
        %v1083 = vadd.f32 %v1013, %v1082
        %1084 = vst [vmem:[%s5] sm:$0x1] %v1083
        %s1085 = smul.u32 32, %s18
        %p1086 = scmp.lt.s32.totalorder %s1085, 63
        %s1087 = scalar_select %p1086, %s1085, 63
        %s1088 = smul.addr %s1087, 4
        %s1089 = scalar_lea.vmem %s3, %s1088
        // Predicated region
        $region41: #{_lambda_.4} parent=31 // pred_check
          %p1090 = pneg %p104
        $region42: #{_lambda_.4} parent=31 // pred_check_branch
          %1092 = sbr.rel (%p1090) target = $region44
        $region43: #{_lambda_.4} parent=31 // pred_region
          %s1093 = smul.u32 32, %s18
        $region44: #{_lambda_.4} parent=31 // pred_fallthru
          _
        // Predicated region
        $region45: #{_lambda_.4} parent=31 // pred_check
          %p1094 = pneg %p125
        $region46: #{_lambda_.4} parent=31 // pred_check_branch
          %1096 = sbr.rel (%p1094) target = $region48
        $region47: #{_lambda_.4} parent=31 // pred_region
          _
        $region48: #{_lambda_.4} parent=31 // pred_fallthru
          _
        // Predicated region
        $region49: #{_lambda_.4} parent=31 // pred_check
          %p1097 = pneg %p146
        $region50: #{_lambda_.4} parent=31 // pred_check_branch
          %1099 = sbr.rel (%p1097) target = $region52
        $region51: #{_lambda_.4} parent=31 // pred_region
          _
        $region52: #{_lambda_.4} parent=31 // pred_fallthru
          _
        // Predicated region
        $region53: #{_lambda_.4} parent=31 // pred_check
          %p1100 = pneg %p125
        $region54: #{_lambda_.4} parent=31 // pred_check_branch
          %1102 = sbr.rel (%p1100) target = $region56
        $region55: #{_lambda_.4} parent=31 // pred_region
          _
        $region56: #{_lambda_.4} parent=31 // pred_fallthru
          _
        // Predicated region
        $region57: #{_lambda_.4} parent=31 // pred_check
          %p1103 = pneg %p146
        $region58: #{_lambda_.4} parent=31 // pred_check_branch
          %1105 = sbr.rel (%p1103) target = $region60
        $region59: #{_lambda_.4} parent=31 // pred_region
          _
        $region60: #{_lambda_.4} parent=31 // pred_fallthru
          _
      $region32: #{_lambda_.4} parent=5 // pred_fallthru
        _
      %p1106 = scmp.le.s32.totalorder 2, %s13
      // Predicated region
      $region61: #{_lambda_.4} parent=5 // pred_check
        %p1107 = pneg %p1106
      $region62: #{_lambda_.4} parent=5 // pred_check_branch
        %1109 = sbr.rel (%p1107) target = $region64
      $region63: #{_lambda_.4} parent=5 // pred_region
        %s1110 = ssub.s32 %s13, 2
        // Predicated region
        $region65: #{_lambda_.4} parent=63 // pred_check
          %p1111 = pneg %p110
        $region66: #{_lambda_.4} parent=63 // pred_check_branch
          %1113 = sbr.rel (%p1111) target = $region68
        $region67: #{_lambda_.4} parent=63 // pred_region
          %s1114 = smul.u32 32, %s19
          %p1115 = scmp.lt.s32.totalorder %s1114, 63
          %s1116 = scalar_select %p1115, %s1114, 63
          %s1117 = smul.addr %s1116, 4
          %s1118 = scalar_lea.vmem %s3, %s1117
        $region68: #{_lambda_.4} parent=63 // pred_fallthru
          _
      $region64: #{_lambda_.4} parent=5 // pred_fallthru
        _
    $region6: #{_lambda_.4} parent=1 // loop_footer
      %s17 = sadd.s32 1, %s13
    $region7: #{_lambda_.4} parent=1 // loop_footer_branch
      %12 = sbr.rel target = $region3
    $region8: #{_lambda_.4} parent=1 // loop_exit
      _
    %1119 = vsyncpa [#allocation3], 1
    %s1120 = scalar_lea.sflag [#allocation3], 1
    %1121 = vsyncpa %s1120, 1

// kernel: _lambda_.5
$region0: #{_lambda_.5}
  #allocation0 [shape = 'u32[]', space=smem, size = 0x4, offset = 0x4, fixed_abs, tag = 'smem constant byte address 0x4 - core index']
  #allocation1 [shape = 'u32[72,128]{1,0:T(1,128)}', space=vmem, size = 0x9000, scoped, tag = 'internal scratch']
  %s0 = inlined_call_operand.vmem [shape: bf16[512,128], index: 0, kind: input, shape index: {}]
  %s1 = inlined_call_operand.vmem [shape: f32[1,128], index: 1, kind: input, shape index: {}]
  %s2 = inlined_call_operand.vmem [shape: f32[1,128], index: 2, kind: input, shape index: {}]
  %s3 = inlined_call_operand.vmem [shape: bf16[128,128], index: 3, kind: input, shape index: {}]
  %s4 = inlined_call_operand.vmem [shape: bf16[512,128], index: 4, kind: output, shape index: {0}]
  %s5 = inlined_call_operand.vmem [shape: f32[1,128], index: 5, kind: output, shape index: {1}]
  %s6 = inlined_call_operand.vmem [shape: f32[1,128], index: 6, kind: output, shape index: {2}]
  %7 = xla_tuple %s4, %s5, %s6
  %s8 = sld [smem:[#allocation0]]
  $region69: #{_lambda_.5} parent=0
    _
  %s10 = ssub.s32 1, %s8
  %s11 = scalar_select 0, %s10, %s8
  loop: start=0, step=1, limit=4
  $region2: #{_lambda_.5} parent=0 // loop_pre_header
    _
  $region3: #{_lambda_.5} parent=0 // loop_header
    %s13 = sphi 0, %s17
    %p14 = scmp.ge.s32.totalorder %s13, 4
    %s23 = sphi 0, %s25
    %s26 = sphi 0, %s23
    %s27 = sphi 0, %s26
    %s43 = sphi 0, %s27
    %s47 = sphi 0, %s47
    %s49 = sphi 0, %s47
    %s50 = sphi 0, %s49
    %s64 = sphi 0, %s50
    %s68 = sphi 0, %s68
    %s70 = sphi 0, %s68
    %s71 = sphi 0, %s70
    %s85 = sphi 0, %s71
    %s89 = sphi 0, %s89
    %s91 = sphi 0, %s89
    %s92 = sphi 0, %s91
    %s106 = sphi 0, %s92
    %s112 = sphi 0, %s114
    %s115 = sphi 0, %s112
    %s116 = sphi 0, %s115
    %s132 = sphi 0, %s116
    %s136 = sphi 0, %s136
    %s138 = sphi 0, %s136
    %s139 = sphi 0, %s138
    %s153 = sphi 0, %s139
    %s157 = sphi 0, %s157
    %s159 = sphi 0, %s157
    %s160 = sphi 0, %s159
    %s174 = sphi 0, %s160
  $region4: #{_lambda_.5} parent=0 // loop_header_branch
    %16 = sbr.rel (%p14) target = $region8
  $region5: #{_lambda_.5} parent=0 // loop_body
    %s18 = ssub.s32 %s13, 1
    %s19 = ssub.s32 %s13, 2
    %s20 = sadd.s32 %s13, 1
    %s21 = ssub.s32 %s13, %s20
    %p22 = scmp.eq.s32.totalorder %s21, 0
    %s24 = sadd.s32 %s23, 1
    %s25 = scalar_select %p22, %s23, %s24
    %p28 = pneg %p22
    %p29 = scmp.eq.s32.totalorder %s13, 1
    %p30 = por %p28, %p29
    %p31 = scmp.ne.s32.totalorder %s23, %s26
    %p32 = scmp.eq.s32.totalorder %s13, 0
    %p33 = por %p31, %p32
    %p34 = scmp.ne.s32.totalorder %s23, %s26
    %p35 = scmp.eq.s32.totalorder %s18, 1
    %p36 = por %p34, %p35
    %p37 = scmp.ne.s32.totalorder %s26, %s27
    %p38 = scmp.eq.s32.totalorder %s18, 0
    %p39 = por %p37, %p38
    %p40 = scmp.ne.s32.totalorder %s26, %s27
    %p41 = scmp.eq.s32.totalorder %s19, 1
    %p42 = por %p40, %p41
    %p44 = scmp.ne.s32.totalorder %s27, %s43
    %p45 = scmp.eq.s32.totalorder %s19, 0
    %p46 = por %p44, %p45
    %s48 = sadd.s32 %s47, 1
    %p51 = scmp.eq.s32.totalorder %s13, 1
    %p52 = scmp.ne.s32.totalorder %s47, %s49
    %p53 = scmp.eq.s32.totalorder %s13, 0
    %p54 = por %p52, %p53
    %p55 = scmp.ne.s32.totalorder %s47, %s49
    %p56 = scmp.eq.s32.totalorder %s18, 1
    %p57 = por %p55, %p56
    %p58 = scmp.ne.s32.totalorder %s49, %s50
    %p59 = scmp.eq.s32.totalorder %s18, 0
    %p60 = por %p58, %p59
    %p61 = scmp.ne.s32.totalorder %s49, %s50
    %p62 = scmp.eq.s32.totalorder %s19, 1
    %p63 = por %p61, %p62
    %p65 = scmp.ne.s32.totalorder %s50, %s64
    %p66 = scmp.eq.s32.totalorder %s19, 0
    %p67 = por %p65, %p66
    %s69 = sadd.s32 %s68, 1
    %p72 = scmp.eq.s32.totalorder %s13, 1
    %p73 = scmp.ne.s32.totalorder %s68, %s70
    %p74 = scmp.eq.s32.totalorder %s13, 0
    %p75 = por %p73, %p74
    %p76 = scmp.ne.s32.totalorder %s68, %s70
    %p77 = scmp.eq.s32.totalorder %s18, 1
    %p78 = por %p76, %p77
    %p79 = scmp.ne.s32.totalorder %s70, %s71
    %p80 = scmp.eq.s32.totalorder %s18, 0
    %p81 = por %p79, %p80
    %p82 = scmp.ne.s32.totalorder %s70, %s71
    %p83 = scmp.eq.s32.totalorder %s19, 1
    %p84 = por %p82, %p83
    %p86 = scmp.ne.s32.totalorder %s71, %s85
    %p87 = scmp.eq.s32.totalorder %s19, 0
    %p88 = por %p86, %p87
    %s90 = sadd.s32 %s89, 1
    %p93 = scmp.eq.s32.totalorder %s13, 1
    %p94 = scmp.ne.s32.totalorder %s89, %s91
    %p95 = scmp.eq.s32.totalorder %s13, 0
    %p96 = por %p94, %p95
    %p97 = scmp.ne.s32.totalorder %s89, %s91
    %p98 = scmp.eq.s32.totalorder %s18, 1
    %p99 = por %p97, %p98
    %p100 = scmp.ne.s32.totalorder %s91, %s92
    %p101 = scmp.eq.s32.totalorder %s18, 0
    %p102 = por %p100, %p101
    %p103 = scmp.ne.s32.totalorder %s91, %s92
    %p104 = scmp.eq.s32.totalorder %s19, 1
    %p105 = por %p103, %p104
    %p107 = scmp.ne.s32.totalorder %s92, %s106
    %p108 = scmp.eq.s32.totalorder %s19, 0
    %p109 = por %p107, %p108
    %s110 = ssub.s32 %s13, %s20
    %p111 = scmp.eq.s32.totalorder %s110, 0
    %s113 = sadd.s32 %s112, 1
    %s114 = scalar_select %p111, %s112, %s113
    %p117 = pneg %p111
    %p118 = scmp.eq.s32.totalorder %s13, 1
    %p119 = por %p117, %p118
    %p120 = scmp.ne.s32.totalorder %s112, %s115
    %p121 = scmp.eq.s32.totalorder %s13, 0
    %p122 = por %p120, %p121
    %p123 = scmp.ne.s32.totalorder %s112, %s115
    %p124 = scmp.eq.s32.totalorder %s18, 1
    %p125 = por %p123, %p124
    %p126 = scmp.ne.s32.totalorder %s115, %s116
    %p127 = scmp.eq.s32.totalorder %s18, 0
    %p128 = por %p126, %p127
    %p129 = scmp.ne.s32.totalorder %s115, %s116
    %p130 = scmp.eq.s32.totalorder %s19, 1
    %p131 = por %p129, %p130
    %p133 = scmp.ne.s32.totalorder %s116, %s132
    %p134 = scmp.eq.s32.totalorder %s19, 0
    %p135 = por %p133, %p134
    %s137 = sadd.s32 %s136, 1
    %p140 = scmp.eq.s32.totalorder %s13, 1
    %p141 = scmp.ne.s32.totalorder %s136, %s138
    %p142 = scmp.eq.s32.totalorder %s13, 0
    %p143 = por %p141, %p142
    %p144 = scmp.ne.s32.totalorder %s136, %s138
    %p145 = scmp.eq.s32.totalorder %s18, 1
    %p146 = por %p144, %p145
    %p147 = scmp.ne.s32.totalorder %s138, %s139
    %p148 = scmp.eq.s32.totalorder %s18, 0
    %p149 = por %p147, %p148
    %p150 = scmp.ne.s32.totalorder %s138, %s139
    %p151 = scmp.eq.s32.totalorder %s19, 1
    %p152 = por %p150, %p151
    %p154 = scmp.ne.s32.totalorder %s139, %s153
    %p155 = scmp.eq.s32.totalorder %s19, 0
    %p156 = por %p154, %p155
    %s158 = sadd.s32 %s157, 1
    %p161 = scmp.eq.s32.totalorder %s13, 1
    %p162 = scmp.ne.s32.totalorder %s157, %s159
    %p163 = scmp.eq.s32.totalorder %s13, 0
    %p164 = por %p162, %p163
    %p165 = scmp.ne.s32.totalorder %s157, %s159
    %p166 = scmp.eq.s32.totalorder %s18, 1
    %p167 = por %p165, %p166
    %p168 = scmp.ne.s32.totalorder %s159, %s160
    %p169 = scmp.eq.s32.totalorder %s18, 0
    %p170 = por %p168, %p169
    %p171 = scmp.ne.s32.totalorder %s159, %s160
    %p172 = scmp.eq.s32.totalorder %s19, 1
    %p173 = por %p171, %p172
    %p175 = scmp.ne.s32.totalorder %s160, %s174
    %p176 = scmp.eq.s32.totalorder %s19, 0
    %p177 = por %p175, %p176
    %p178 = scmp.le.s32.totalorder 1, %s13
    %p179 = scmp.lt.s32.totalorder %s13, 3
    %p180 = pnand %p178, %p179
    %p181 = pneg %p180
    // Predicated region
    $region9: #{_lambda_.5} parent=5 // pred_check
      _
    $region10: #{_lambda_.5} parent=5 // pred_check_branch
      %183 = sbr.rel (%p180) target = $region12
    $region11: #{_lambda_.5} parent=5 // pred_region
      %s184 = ssub.s32 %s13, 1
      // Predicated region
      $region13: #{_lambda_.5} parent=11 // pred_check
        %p185 = pneg %p60
      $region14: #{_lambda_.5} parent=11 // pred_check_branch
        %187 = sbr.rel (%p185) target = $region16
      $region15: #{_lambda_.5} parent=11 // pred_region
        _
      $region16: #{_lambda_.5} parent=11 // pred_fallthru
        _
      // Predicated region
      $region17: #{_lambda_.5} parent=11 // pred_check
        %p188 = pneg %p81
      $region18: #{_lambda_.5} parent=11 // pred_check_branch
        %190 = sbr.rel (%p188) target = $region20
      $region19: #{_lambda_.5} parent=11 // pred_region
        _
      $region20: #{_lambda_.5} parent=11 // pred_fallthru
        _
      // Predicated region
      $region21: #{_lambda_.5} parent=11 // pred_check
        %p191 = pneg %p102
      $region22: #{_lambda_.5} parent=11 // pred_check_branch
        %193 = sbr.rel (%p191) target = $region24
      $region23: #{_lambda_.5} parent=11 // pred_region
        _
      $region24: #{_lambda_.5} parent=11 // pred_fallthru
        _
    $region12: #{_lambda_.5} parent=5 // pred_fallthru
      _
    %p194 = scmp.lt.s32.totalorder %s13, 2
    // Predicated region
    $region25: #{_lambda_.5} parent=5 // pred_check
      %p195 = pneg %p194
    $region26: #{_lambda_.5} parent=5 // pred_check_branch
      %197 = sbr.rel (%p195) target = $region28
    $region27: #{_lambda_.5} parent=5 // pred_region
      // Predicated region
      $region29: #{_lambda_.5} parent=27 // pred_check
        %p198 = pneg %p33
      $region30: #{_lambda_.5} parent=27 // pred_check_branch
        %200 = sbr.rel (%p198) target = $region32
      $region31: #{_lambda_.5} parent=27 // pred_region
        %s201 = smul.u32 32, %s13
        %p202 = scmp.lt.s32.totalorder %s201, 63
        %s203 = scalar_select %p202, %s201, 63
        %s204 = smul.addr %s203, 4
        %s205 = scalar_lea.vmem %s0, %s204
        %s206 = smul.u32 32, %s13
      $region32: #{_lambda_.5} parent=27 // pred_fallthru
        _
    $region28: #{_lambda_.5} parent=5 // pred_fallthru
      _
    %p207 = scmp.le.s32.totalorder 1, %s13
    %p208 = scmp.lt.s32.totalorder %s13, 3
    %p209 = pnand %p207, %p208
    %p210 = pneg %p209
    // Predicated region
    $region33: #{_lambda_.5} parent=5 // pred_check
      _
    $region34: #{_lambda_.5} parent=5 // pred_check_branch
      %212 = sbr.rel (%p209) target = $region36
    $region35: #{_lambda_.5} parent=5 // pred_region
      %s213 = ssub.s32 %s13, 1
      %s214 = smul.u32 32, %s18
      %p215 = scmp.lt.s32.totalorder %s214, 63
      %s216 = scalar_select %p215, %s214, 63
      %s217 = smul.addr %s216, 4
      %s218 = scalar_lea.vmem %s0, %s217
      %p219 = pneg %p39
      %p220 = pneg %p36
      %p221 = pneg %p60
      %p222 = pneg %p57
      %p223 = pneg %p81
      %p224 = pneg %p78
      %p225 = pneg %p102
      %p226 = pneg %p99
      %p227 = pneg %p128
      %p228 = pneg %p125
      %s229 = smul.u32 32, %s18
      %p230 = scmp.lt.s32.totalorder %s229, 63
      %s231 = scalar_select %p230, %s229, 63
      %s232 = smul.addr %s231, 4
      %s233 = scalar_lea.vmem %s4, %s232
      %p234 = pneg %p149
      %p235 = pneg %p146
      %p236 = pneg %p170
      %p237 = pneg %p167
      %s238 = smul.u32 32, %s18
      %p239 = scmp.lt.s32.totalorder %s238, 63
      %s240 = scalar_select %p239, %s238, 63
      %s241 = smul.addr %s240, 4
      %s242 = scalar_lea.vmem %s0, %s241
      %s243 = smul.u32 32, %s18
      %s244 = smul.u32 32, %s18
      %p245 = scmp.lt.s32.totalorder %s244, 63
      %s246 = scalar_select %p245, %s244, 63
      %s247 = smul.addr %s246, 4
      %s248 = scalar_lea.vmem %s4, %s247
      %s249 = smul.u32 32, %s18
      %v250 = vld [vmem:[%s242] sm:$0xf]
      %v251 = vld [vmem:[%s242 + $0x4] sm:$0xf]
      %v252 = vld [vmem:[%s242 + $0x8] sm:$0xf]
      %v253 = vld [vmem:[%s242 + $0xc] sm:$0xf]
      %v254 = vld [vmem:[%s242 + $0x10] sm:$0xf]
      %v255 = vld [vmem:[%s242 + $0x14] sm:$0xf]
      %v256 = vld [vmem:[%s242 + $0x18] sm:$0xf]
      %v257 = vld [vmem:[%s242 + $0x1c] sm:$0xf]
      %v258 = vld [vmem:[%s242 + $0x20] sm:$0xf]
      %v259 = vld [vmem:[%s242 + $0x24] sm:$0xf]
      %v260 = vld [vmem:[%s242 + $0x28] sm:$0xf]
      %v261 = vld [vmem:[%s242 + $0x2c] sm:$0xf]
      %v262 = vld [vmem:[%s242 + $0x30] sm:$0xf]
      %v263 = vld [vmem:[%s242 + $0x34] sm:$0xf]
      %v264 = vld [vmem:[%s242 + $0x38] sm:$0xf]
      %v265 = vld [vmem:[%s242 + $0x3c] sm:$0xf]
      %v266 = vld [vmem:[%s242 + $0x40] sm:$0xf]
      %v267 = vld [vmem:[%s242 + $0x44] sm:$0xf]
      %v268 = vld [vmem:[%s242 + $0x48] sm:$0xf]
      %v269 = vld [vmem:[%s242 + $0x4c] sm:$0xf]
      %v270 = vld [vmem:[%s242 + $0x50] sm:$0xf]
      %v271 = vld [vmem:[%s242 + $0x54] sm:$0xf]
      %v272 = vld [vmem:[%s242 + $0x58] sm:$0xf]
      %v273 = vld [vmem:[%s242 + $0x5c] sm:$0xf]
      %v274 = vld [vmem:[%s242 + $0x60] sm:$0xf]
      %v275 = vld [vmem:[%s242 + $0x64] sm:$0xf]
      %v276 = vld [vmem:[%s242 + $0x68] sm:$0xf]
      %v277 = vld [vmem:[%s242 + $0x6c] sm:$0xf]
      %v278 = vld [vmem:[%s242 + $0x70] sm:$0xf]
      %v279 = vld [vmem:[%s242 + $0x74] sm:$0xf]
      %v280 = vld [vmem:[%s242 + $0x78] sm:$0xf]
      %v281 = vld [vmem:[%s242 + $0x7c] sm:$0xf]
      %v282 = vunpack.c.l.bf16 %v250
      %v283 = vunpack.c.l.bf16 %v251
      %v284 = vunpack.c.l.bf16 %v252
      %v285 = vunpack.c.l.bf16 %v253
      %v286 = vunpack.c.l.bf16 %v254
      %v287 = vunpack.c.l.bf16 %v255
      %v288 = vunpack.c.l.bf16 %v256
      %v289 = vunpack.c.l.bf16 %v257
      %v290 = vunpack.c.l.bf16 %v258
      %v291 = vunpack.c.l.bf16 %v259
      %v292 = vunpack.c.l.bf16 %v260
      %v293 = vunpack.c.l.bf16 %v261
      %v294 = vunpack.c.l.bf16 %v262
      %v295 = vunpack.c.l.bf16 %v263
      %v296 = vunpack.c.l.bf16 %v264
      %v297 = vunpack.c.l.bf16 %v265
      %v298 = vunpack.c.l.bf16 %v266
      %v299 = vunpack.c.l.bf16 %v267
      %v300 = vunpack.c.l.bf16 %v268
      %v301 = vunpack.c.l.bf16 %v269
      %v302 = vunpack.c.l.bf16 %v270
      %v303 = vunpack.c.l.bf16 %v271
      %v304 = vunpack.c.l.bf16 %v272
      %v305 = vunpack.c.l.bf16 %v273
      %v306 = vunpack.c.l.bf16 %v274
      %v307 = vunpack.c.l.bf16 %v275
      %v308 = vunpack.c.l.bf16 %v276
      %v309 = vunpack.c.l.bf16 %v277
      %v310 = vunpack.c.l.bf16 %v278
      %v311 = vunpack.c.l.bf16 %v279
      %v312 = vunpack.c.l.bf16 %v280
      %v313 = vunpack.c.l.bf16 %v281
      %v314 = vld [vmem:[%s1] sm:$0x1]
      %v316 = vperm.slane %v314, 0
      %v318 = vmul.f32 %v282, %v316
      %v319 = vmul.f32 %v283, %v316
      %v320 = vmul.f32 %v284, %v316
      %v321 = vmul.f32 %v285, %v316
      %v322 = vmul.f32 %v286, %v316
      %v323 = vmul.f32 %v287, %v316
      %v324 = vmul.f32 %v288, %v316
      %v325 = vmul.f32 %v289, %v316
      %v326 = vmul.f32 %v290, %v316
      %v327 = vmul.f32 %v291, %v316
      %v328 = vmul.f32 %v292, %v316
      %v329 = vmul.f32 %v293, %v316
      %v330 = vmul.f32 %v294, %v316
      %v331 = vmul.f32 %v295, %v316
      %v332 = vmul.f32 %v296, %v316
      %v333 = vmul.f32 %v297, %v316
      %v334 = vmul.f32 %v298, %v316
      %v335 = vmul.f32 %v299, %v316
      %v336 = vmul.f32 %v300, %v316
      %v337 = vmul.f32 %v301, %v316
      %v338 = vmul.f32 %v302, %v316
      %v339 = vmul.f32 %v303, %v316
      %v340 = vmul.f32 %v304, %v316
      %v341 = vmul.f32 %v305, %v316
      %v342 = vmul.f32 %v306, %v316
      %v343 = vmul.f32 %v307, %v316
      %v344 = vmul.f32 %v308, %v316
      %v345 = vmul.f32 %v309, %v316
      %v346 = vmul.f32 %v310, %v316
      %v347 = vmul.f32 %v311, %v316
      %v348 = vmul.f32 %v312, %v316
      %v349 = vmul.f32 %v313, %v316
      %v350 = vld [vmem:[%s2] sm:$0x1]
      %v352 = vperm.slane %v350, 0
      %v354 = vadd.f32 %v318, %v352
      %v355 = vadd.f32 %v319, %v352
      %v356 = vadd.f32 %v320, %v352
      %v357 = vadd.f32 %v321, %v352
      %v358 = vadd.f32 %v322, %v352
      %v359 = vadd.f32 %v323, %v352
      %v360 = vadd.f32 %v324, %v352
      %v361 = vadd.f32 %v325, %v352
      %v362 = vadd.f32 %v326, %v352
      %v363 = vadd.f32 %v327, %v352
      %v364 = vadd.f32 %v328, %v352
      %v365 = vadd.f32 %v329, %v352
      %v366 = vadd.f32 %v330, %v352
      %v367 = vadd.f32 %v331, %v352
      %v368 = vadd.f32 %v332, %v352
      %v369 = vadd.f32 %v333, %v352
      %v370 = vadd.f32 %v334, %v352
      %v371 = vadd.f32 %v335, %v352
      %v372 = vadd.f32 %v336, %v352
      %v373 = vadd.f32 %v337, %v352
      %v374 = vadd.f32 %v338, %v352
      %v375 = vadd.f32 %v339, %v352
      %v376 = vadd.f32 %v340, %v352
      %v377 = vadd.f32 %v341, %v352
      %v378 = vadd.f32 %v342, %v352
      %v379 = vadd.f32 %v343, %v352
      %v380 = vadd.f32 %v344, %v352
      %v381 = vadd.f32 %v345, %v352
      %v382 = vadd.f32 %v346, %v352
      %v383 = vadd.f32 %v347, %v352
      %v384 = vadd.f32 %v348, %v352
      %v385 = vadd.f32 %v349, %v352
      %v386 = vmax.f32 %v354, 0.0
      %v387 = vmax.f32 %v355, 0.0
      %v388 = vmax.f32 %v356, 0.0
      %v389 = vmax.f32 %v357, 0.0
      %v390 = vmax.f32 %v358, 0.0
      %v391 = vmax.f32 %v359, 0.0
      %v392 = vmax.f32 %v360, 0.0
      %v393 = vmax.f32 %v361, 0.0
      %v394 = vmax.f32 %v362, 0.0
      %v395 = vmax.f32 %v363, 0.0
      %v396 = vmax.f32 %v364, 0.0
      %v397 = vmax.f32 %v365, 0.0
      %v398 = vmax.f32 %v366, 0.0
      %v399 = vmax.f32 %v367, 0.0
      %v400 = vmax.f32 %v368, 0.0
      %v401 = vmax.f32 %v369, 0.0
      %v402 = vmax.f32 %v370, 0.0
      %v403 = vmax.f32 %v371, 0.0
      %v404 = vmax.f32 %v372, 0.0
      %v405 = vmax.f32 %v373, 0.0
      %v406 = vmax.f32 %v374, 0.0
      %v407 = vmax.f32 %v375, 0.0
      %v408 = vmax.f32 %v376, 0.0
      %v409 = vmax.f32 %v377, 0.0
      %v410 = vmax.f32 %v378, 0.0
      %v411 = vmax.f32 %v379, 0.0
      %v412 = vmax.f32 %v380, 0.0
      %v413 = vmax.f32 %v381, 0.0
      %v414 = vmax.f32 %v382, 0.0
      %v415 = vmax.f32 %v383, 0.0
      %v416 = vmax.f32 %v384, 0.0
      %v417 = vmax.f32 %v385, 0.0
      %v418 = vpack.c.bf16 %v387, %v386
      %v419 = vpack.c.bf16 %v389, %v388
      %v420 = vpack.c.bf16 %v391, %v390
      %v421 = vpack.c.bf16 %v393, %v392
      %v422 = vpack.c.bf16 %v395, %v394
      %v423 = vpack.c.bf16 %v397, %v396
      %v424 = vpack.c.bf16 %v399, %v398
      %v425 = vpack.c.bf16 %v401, %v400
      %v426 = vpack.c.bf16 %v403, %v402
      %v427 = vpack.c.bf16 %v405, %v404
      %v428 = vpack.c.bf16 %v407, %v406
      %v429 = vpack.c.bf16 %v409, %v408
      %v430 = vpack.c.bf16 %v411, %v410
      %v431 = vpack.c.bf16 %v413, %v412
      %v432 = vpack.c.bf16 %v415, %v414
      %v433 = vpack.c.bf16 %v417, %v416
      %v434 = vld [vmem:[%s3] sm:$0xf]
      %v435 = vld [vmem:[%s3 + $0x4] sm:$0xf]
      %v436 = vld [vmem:[%s3 + $0x8] sm:$0xf]
      %v437 = vld [vmem:[%s3 + $0xc] sm:$0xf]
      %v438 = vld [vmem:[%s3 + $0x10] sm:$0xf]
      %v439 = vld [vmem:[%s3 + $0x14] sm:$0xf]
      %v440 = vld [vmem:[%s3 + $0x18] sm:$0xf]
      %v441 = vld [vmem:[%s3 + $0x1c] sm:$0xf]
      %v442 = vld [vmem:[%s3 + $0x20] sm:$0xf]
      %v443 = vld [vmem:[%s3 + $0x24] sm:$0xf]
      %v444 = vld [vmem:[%s3 + $0x28] sm:$0xf]
      %v445 = vld [vmem:[%s3 + $0x2c] sm:$0xf]
      %v446 = vld [vmem:[%s3 + $0x30] sm:$0xf]
      %v447 = vld [vmem:[%s3 + $0x34] sm:$0xf]
      %v448 = vld [vmem:[%s3 + $0x38] sm:$0xf]
      %v449 = vld [vmem:[%s3 + $0x3c] sm:$0xf]
      %v466 = vunpack.c.l.b16 %v434
      %v467 = vunpack.c.l.b16 %v435
      %v468 = vunpack.c.l.b16 %v436
      %v469 = vunpack.c.l.b16 %v437
      %v470 = vunpack.c.l.b16 %v438
      %v471 = vunpack.c.l.b16 %v439
      %v472 = vunpack.c.l.b16 %v440
      %v473 = vunpack.c.l.b16 %v441
      %v474 = vunpack.c.l.b16 %v442
      %v475 = vunpack.c.l.b16 %v443
      %v476 = vunpack.c.l.b16 %v444
      %v477 = vunpack.c.l.b16 %v445
      %v478 = vunpack.c.l.b16 %v446
      %v479 = vunpack.c.l.b16 %v447
      %v480 = vunpack.c.l.b16 %v448
      %v481 = vunpack.c.l.b16 %v449
      %v482 = vpack.c.b16 %v467, %v466
      %v483 = vpack.c.b16 %v469, %v468
      %v484 = vpack.c.b16 %v471, %v470
      %v485 = vpack.c.b16 %v473, %v472
      %v486 = vpack.c.b16 %v475, %v474
      %v487 = vpack.c.b16 %v477, %v476
      %v488 = vpack.c.b16 %v479, %v478
      %v489 = vpack.c.b16 %v481, %v480
      %498 = vmatpush.bf16.msra.mxu0 %v489
      %499 = vmatpush.bf16.msra.mxu0 %v488
      %500 = vmatpush.bf16.msra.mxu0 %v487
      %501 = vmatpush.bf16.msra.mxu0 %v486
      %502 = vmatpush.bf16.msra.mxu0 %v485
      %503 = vmatpush.bf16.msra.mxu0 %v484
      %504 = vmatpush.bf16.msra.mxu0 %v483
      %505 = vmatpush.bf16.msra.mxu0 %v482
      %506 = vmatmul.bf16.gmra.mxu0 %v418
      %v507 = vpop.f32.mrf.mxu0
      %v508 = vadd.f32 0.0, %v507
      %v509 = vpop.f32.mrf.mxu0
      %v510 = vadd.f32 0.0, %v509
      %511 = vmatmul.bf16.gmra.mxu0 %v419
      %v512 = vpop.f32.mrf.mxu0
      %v513 = vadd.f32 0.0, %v512
      %v514 = vpop.f32.mrf.mxu0
      %v515 = vadd.f32 0.0, %v514
      %516 = vmatmul.bf16.gmra.mxu0 %v420
      %v517 = vpop.f32.mrf.mxu0
      %v518 = vadd.f32 0.0, %v517
      %v519 = vpop.f32.mrf.mxu0
      %v520 = vadd.f32 0.0, %v519
      %521 = vmatmul.bf16.gmra.mxu0 %v421
      %v522 = vpop.f32.mrf.mxu0
      %v523 = vadd.f32 0.0, %v522
      %v524 = vpop.f32.mrf.mxu0
      %v525 = vadd.f32 0.0, %v524
      %526 = vmatmul.bf16.gmra.mxu0 %v422
      %v527 = vpop.f32.mrf.mxu0
      %v528 = vadd.f32 0.0, %v527
      %v529 = vpop.f32.mrf.mxu0
      %v530 = vadd.f32 0.0, %v529
      %531 = vmatmul.bf16.gmra.mxu0 %v423
      %v532 = vpop.f32.mrf.mxu0
      %v533 = vadd.f32 0.0, %v532
      %v534 = vpop.f32.mrf.mxu0
      %v535 = vadd.f32 0.0, %v534
      %536 = vmatmul.bf16.gmra.mxu0 %v424
      %v537 = vpop.f32.mrf.mxu0
      %v538 = vadd.f32 0.0, %v537
      %v539 = vpop.f32.mrf.mxu0
      %v540 = vadd.f32 0.0, %v539
      %541 = vmatmul.bf16.gmra.mxu0 %v425
      %v542 = vpop.f32.mrf.mxu0
      %v543 = vadd.f32 0.0, %v542
      %v544 = vpop.f32.mrf.mxu0
      %v545 = vadd.f32 0.0, %v544
      %546 = vmatmul.bf16.gmra.mxu0 %v426
      %v547 = vpop.f32.mrf.mxu0
      %v548 = vadd.f32 0.0, %v547
      %v549 = vpop.f32.mrf.mxu0
      %v550 = vadd.f32 0.0, %v549
      %551 = vmatmul.bf16.gmra.mxu0 %v427
      %v552 = vpop.f32.mrf.mxu0
      %v553 = vadd.f32 0.0, %v552
      %v554 = vpop.f32.mrf.mxu0
      %v555 = vadd.f32 0.0, %v554
      %556 = vmatmul.bf16.gmra.mxu0 %v428
      %v557 = vpop.f32.mrf.mxu0
      %v558 = vadd.f32 0.0, %v557
      %v559 = vpop.f32.mrf.mxu0
      %v560 = vadd.f32 0.0, %v559
      %561 = vmatmul.bf16.gmra.mxu0 %v429
      %v562 = vpop.f32.mrf.mxu0
      %v563 = vadd.f32 0.0, %v562
      %v564 = vpop.f32.mrf.mxu0
      %v565 = vadd.f32 0.0, %v564
      %566 = vmatmul.bf16.gmra.mxu0 %v430
      %v567 = vpop.f32.mrf.mxu0
      %v568 = vadd.f32 0.0, %v567
      %v569 = vpop.f32.mrf.mxu0
      %v570 = vadd.f32 0.0, %v569
      %571 = vmatmul.bf16.gmra.mxu0 %v431
      %v572 = vpop.f32.mrf.mxu0
      %v573 = vadd.f32 0.0, %v572
      %v574 = vpop.f32.mrf.mxu0
      %v575 = vadd.f32 0.0, %v574
      %576 = vmatmul.bf16.gmra.mxu0 %v432
      %v577 = vpop.f32.mrf.mxu0
      %v578 = vadd.f32 0.0, %v577
      %v579 = vpop.f32.mrf.mxu0
      %v580 = vadd.f32 0.0, %v579
      %581 = vmatmul.bf16.gmra.mxu0 %v433
      %v582 = vpop.f32.mrf.mxu0
      %v583 = vadd.f32 0.0, %v582
      %v584 = vpop.f32.mrf.mxu0
      %v585 = vadd.f32 0.0, %v584
      %586 = vdwg.mxu0
      %v587 = vpack.c.bf16 %v508, %v508
      %v588 = vpack.c.bf16 %v510, %v510
      %v589 = vpack.c.bf16 %v513, %v513
      %v590 = vpack.c.bf16 %v515, %v515
      %v591 = vpack.c.bf16 %v518, %v518
      %v592 = vpack.c.bf16 %v520, %v520
      %v593 = vpack.c.bf16 %v523, %v523
      %v594 = vpack.c.bf16 %v525, %v525
      %v595 = vpack.c.bf16 %v528, %v528
      %v596 = vpack.c.bf16 %v530, %v530
      %v597 = vpack.c.bf16 %v533, %v533
      %v598 = vpack.c.bf16 %v535, %v535
      %v599 = vpack.c.bf16 %v538, %v538
      %v600 = vpack.c.bf16 %v540, %v540
      %v601 = vpack.c.bf16 %v543, %v543
      %v602 = vpack.c.bf16 %v545, %v545
      %v603 = vpack.c.bf16 %v548, %v548
      %v604 = vpack.c.bf16 %v550, %v550
      %v605 = vpack.c.bf16 %v553, %v553
      %v606 = vpack.c.bf16 %v555, %v555
      %v607 = vpack.c.bf16 %v558, %v558
      %v608 = vpack.c.bf16 %v560, %v560
      %v609 = vpack.c.bf16 %v563, %v563
      %v610 = vpack.c.bf16 %v565, %v565
      %v611 = vpack.c.bf16 %v568, %v568
      %v612 = vpack.c.bf16 %v570, %v570
      %v613 = vpack.c.bf16 %v573, %v573
      %v614 = vpack.c.bf16 %v575, %v575
      %v615 = vpack.c.bf16 %v578, %v578
      %v616 = vpack.c.bf16 %v580, %v580
      %v617 = vpack.c.bf16 %v583, %v583
      %v618 = vpack.c.bf16 %v585, %v585
      %619 = vst [vmem:[%s248] sm:$0xf] %v587
      %620 = vst [vmem:[%s248 + $0x4] sm:$0xf] %v588
      %621 = vst [vmem:[%s248 + $0x8] sm:$0xf] %v589
      %622 = vst [vmem:[%s248 + $0xc] sm:$0xf] %v590
      %623 = vst [vmem:[%s248 + $0x10] sm:$0xf] %v591
      %624 = vst [vmem:[%s248 + $0x14] sm:$0xf] %v592
      %625 = vst [vmem:[%s248 + $0x18] sm:$0xf] %v593
      %626 = vst [vmem:[%s248 + $0x1c] sm:$0xf] %v594
      %627 = vst [vmem:[%s248 + $0x20] sm:$0xf] %v595
      %628 = vst [vmem:[%s248 + $0x24] sm:$0xf] %v596
      %629 = vst [vmem:[%s248 + $0x28] sm:$0xf] %v597
      %630 = vst [vmem:[%s248 + $0x2c] sm:$0xf] %v598
      %631 = vst [vmem:[%s248 + $0x30] sm:$0xf] %v599
      %632 = vst [vmem:[%s248 + $0x34] sm:$0xf] %v600
      %633 = vst [vmem:[%s248 + $0x38] sm:$0xf] %v601
      %634 = vst [vmem:[%s248 + $0x3c] sm:$0xf] %v602
      %635 = vst [vmem:[%s248 + $0x40] sm:$0xf] %v603
      %636 = vst [vmem:[%s248 + $0x44] sm:$0xf] %v604
      %637 = vst [vmem:[%s248 + $0x48] sm:$0xf] %v605
      %638 = vst [vmem:[%s248 + $0x4c] sm:$0xf] %v606
      %639 = vst [vmem:[%s248 + $0x50] sm:$0xf] %v607
      %640 = vst [vmem:[%s248 + $0x54] sm:$0xf] %v608
      %641 = vst [vmem:[%s248 + $0x58] sm:$0xf] %v609
      %642 = vst [vmem:[%s248 + $0x5c] sm:$0xf] %v610
      %643 = vst [vmem:[%s248 + $0x60] sm:$0xf] %v611
      %644 = vst [vmem:[%s248 + $0x64] sm:$0xf] %v612
      %645 = vst [vmem:[%s248 + $0x68] sm:$0xf] %v613
      %646 = vst [vmem:[%s248 + $0x6c] sm:$0xf] %v614
      %647 = vst [vmem:[%s248 + $0x70] sm:$0xf] %v615
      %648 = vst [vmem:[%s248 + $0x74] sm:$0xf] %v616
      %649 = vst [vmem:[%s248 + $0x78] sm:$0xf] %v617
      %650 = vst [vmem:[%s248 + $0x7c] sm:$0xf] %v618
      %p651 = scmp.eq.s32.totalorder %s18, 0
      // Predicated region
      $region37: #{_lambda_.5} parent=35 // pred_check
        %p652 = pneg %p651
      $region38: #{_lambda_.5} parent=35 // pred_check_branch
        %654 = sbr.rel (%p652) target = $region40
      $region39: #{_lambda_.5} parent=35 // pred_region
        %655 = vst [vmem:[%s5] sm:$0x1] 0.0
        %656 = vst [vmem:[%s6] sm:$0x1] 0.0
      $region40: #{_lambda_.5} parent=35 // pred_fallthru
        _
      %v657 = vunpack.c.l.bf16 %v587
      %v658 = vunpack.c.l.bf16 %v588
      %v659 = vunpack.c.l.bf16 %v589
      %v660 = vunpack.c.l.bf16 %v590
      %v661 = vunpack.c.l.bf16 %v591
      %v662 = vunpack.c.l.bf16 %v592
      %v663 = vunpack.c.l.bf16 %v593
      %v664 = vunpack.c.l.bf16 %v594
      %v665 = vunpack.c.l.bf16 %v595
      %v666 = vunpack.c.l.bf16 %v596
      %v667 = vunpack.c.l.bf16 %v597
      %v668 = vunpack.c.l.bf16 %v598
      %v669 = vunpack.c.l.bf16 %v599
      %v670 = vunpack.c.l.bf16 %v600
      %v671 = vunpack.c.l.bf16 %v601
      %v672 = vunpack.c.l.bf16 %v602
      %v673 = vunpack.c.l.bf16 %v603
      %v674 = vunpack.c.l.bf16 %v604
      %v675 = vunpack.c.l.bf16 %v605
      %v676 = vunpack.c.l.bf16 %v606
      %v677 = vunpack.c.l.bf16 %v607
      %v678 = vunpack.c.l.bf16 %v608
      %v679 = vunpack.c.l.bf16 %v609
      %v680 = vunpack.c.l.bf16 %v610
      %v681 = vunpack.c.l.bf16 %v611
      %v682 = vunpack.c.l.bf16 %v612
      %v683 = vunpack.c.l.bf16 %v613
      %v684 = vunpack.c.l.bf16 %v614
      %v685 = vunpack.c.l.bf16 %v615
      %v686 = vunpack.c.l.bf16 %v616
      %v687 = vunpack.c.l.bf16 %v617
      %v688 = vunpack.c.l.bf16 %v618
      %v689 = vld [vmem:[%s5] sm:$0x1]
      %v690 = vadd.f32 %v657, %v658
      %v691 = vadd.f32 %v690, %v659
      %v692 = vadd.f32 %v691, %v660
      %v693 = vadd.f32 %v692, %v661
      %v694 = vadd.f32 %v693, %v662
      %v695 = vadd.f32 %v694, %v663
      %v696 = vadd.f32 %v695, %v664
      %v697 = vadd.f32 %v696, %v665
      %v698 = vadd.f32 %v697, %v666
      %v699 = vadd.f32 %v698, %v667
      %v700 = vadd.f32 %v699, %v668
      %v701 = vadd.f32 %v700, %v669
      %v702 = vadd.f32 %v701, %v670
      %v703 = vadd.f32 %v702, %v671
      %v704 = vadd.f32 %v703, %v672
      %v705 = vadd.f32 %v704, %v673
      %v706 = vadd.f32 %v705, %v674
      %v707 = vadd.f32 %v706, %v675
      %v708 = vadd.f32 %v707, %v676
      %v709 = vadd.f32 %v708, %v677
      %v710 = vadd.f32 %v709, %v678
      %v711 = vadd.f32 %v710, %v679
      %v712 = vadd.f32 %v711, %v680
      %v713 = vadd.f32 %v712, %v681
      %v714 = vadd.f32 %v713, %v682
      %v715 = vadd.f32 %v714, %v683
      %v716 = vadd.f32 %v715, %v684
      %v717 = vadd.f32 %v716, %v685
      %v718 = vadd.f32 %v717, %v686
      %v719 = vadd.f32 %v718, %v687
      %v720 = vadd.f32 %v719, %v688
      %v721 = vrot.slane %v720, 4
      %v722 = vadd.f32 %v720, %v721
      %v723 = vrot.slane %v722, 2
      %v724 = vadd.f32 %v722, %v723
      %v725 = vrot.slane %v724, 1
      %v726 = vadd.f32 %v724, %v725
      %v727 = vadd.f32 %v689, %v726
      %728 = vst [vmem:[%s5] sm:$0x1] %v727
      %v729 = vld [vmem:[%s6] sm:$0x1]
      %v730 = vmul.f32 %v657, %v657
      %v731 = vmul.f32 %v658, %v658
      %v732 = vmul.f32 %v659, %v659
      %v733 = vmul.f32 %v660, %v660
      %v734 = vmul.f32 %v661, %v661
      %v735 = vmul.f32 %v662, %v662
      %v736 = vmul.f32 %v663, %v663
      %v737 = vmul.f32 %v664, %v664
      %v738 = vmul.f32 %v665, %v665
      %v739 = vmul.f32 %v666, %v666
      %v740 = vmul.f32 %v667, %v667
      %v741 = vmul.f32 %v668, %v668
      %v742 = vmul.f32 %v669, %v669
      %v743 = vmul.f32 %v670, %v670
      %v744 = vmul.f32 %v671, %v671
      %v745 = vmul.f32 %v672, %v672
      %v746 = vmul.f32 %v673, %v673
      %v747 = vmul.f32 %v674, %v674
      %v748 = vmul.f32 %v675, %v675
      %v749 = vmul.f32 %v676, %v676
      %v750 = vmul.f32 %v677, %v677
      %v751 = vmul.f32 %v678, %v678
      %v752 = vmul.f32 %v679, %v679
      %v753 = vmul.f32 %v680, %v680
      %v754 = vmul.f32 %v681, %v681
      %v755 = vmul.f32 %v682, %v682
      %v756 = vmul.f32 %v683, %v683
      %v757 = vmul.f32 %v684, %v684
      %v758 = vmul.f32 %v685, %v685
      %v759 = vmul.f32 %v686, %v686
      %v760 = vmul.f32 %v687, %v687
      %v761 = vmul.f32 %v688, %v688
      %v762 = vadd.f32 %v730, %v731
      %v763 = vadd.f32 %v762, %v732
      %v764 = vadd.f32 %v763, %v733
      %v765 = vadd.f32 %v764, %v734
      %v766 = vadd.f32 %v765, %v735
      %v767 = vadd.f32 %v766, %v736
      %v768 = vadd.f32 %v767, %v737
      %v769 = vadd.f32 %v768, %v738
      %v770 = vadd.f32 %v769, %v739
      %v771 = vadd.f32 %v770, %v740
      %v772 = vadd.f32 %v771, %v741
      %v773 = vadd.f32 %v772, %v742
      %v774 = vadd.f32 %v773, %v743
      %v775 = vadd.f32 %v774, %v744
      %v776 = vadd.f32 %v775, %v745
      %v777 = vadd.f32 %v776, %v746
      %v778 = vadd.f32 %v777, %v747
      %v779 = vadd.f32 %v778, %v748
      %v780 = vadd.f32 %v779, %v749
      %v781 = vadd.f32 %v780, %v750
      %v782 = vadd.f32 %v781, %v751
      %v783 = vadd.f32 %v782, %v752
      %v784 = vadd.f32 %v783, %v753
      %v785 = vadd.f32 %v784, %v754
      %v786 = vadd.f32 %v785, %v755
      %v787 = vadd.f32 %v786, %v756
      %v788 = vadd.f32 %v787, %v757
      %v789 = vadd.f32 %v788, %v758
      %v790 = vadd.f32 %v789, %v759
      %v791 = vadd.f32 %v790, %v760
      %v792 = vadd.f32 %v791, %v761
      %v793 = vrot.slane %v792, 4
      %v794 = vadd.f32 %v792, %v793
      %v795 = vrot.slane %v794, 2
      %v796 = vadd.f32 %v794, %v795
      %v797 = vrot.slane %v796, 1
      %v798 = vadd.f32 %v796, %v797
      %v799 = vadd.f32 %v729, %v798
      %800 = vst [vmem:[%s6] sm:$0x1] %v799
      %s801 = smul.u32 32, %s18
      %p802 = scmp.lt.s32.totalorder %s801, 63
      %s803 = scalar_select %p802, %s801, 63
      %s804 = smul.addr %s803, 4
      %s805 = scalar_lea.vmem %s4, %s804
      // Predicated region
      $region41: #{_lambda_.5} parent=35 // pred_check
        %p806 = pneg %p125
      $region42: #{_lambda_.5} parent=35 // pred_check_branch
        %808 = sbr.rel (%p806) target = $region44
      $region43: #{_lambda_.5} parent=35 // pred_region
        %s809 = smul.u32 32, %s18
      $region44: #{_lambda_.5} parent=35 // pred_fallthru
        _
      // Predicated region
      $region45: #{_lambda_.5} parent=35 // pred_check
        %p810 = pneg %p146
      $region46: #{_lambda_.5} parent=35 // pred_check_branch
        %812 = sbr.rel (%p810) target = $region48
      $region47: #{_lambda_.5} parent=35 // pred_region
        _
      $region48: #{_lambda_.5} parent=35 // pred_fallthru
        _
      // Predicated region
      $region49: #{_lambda_.5} parent=35 // pred_check
        %p813 = pneg %p167
      $region50: #{_lambda_.5} parent=35 // pred_check_branch
        %815 = sbr.rel (%p813) target = $region52
      $region51: #{_lambda_.5} parent=35 // pred_region
        _
      $region52: #{_lambda_.5} parent=35 // pred_fallthru
        _
      // Predicated region
      $region53: #{_lambda_.5} parent=35 // pred_check
        %p816 = pneg %p146
      $region54: #{_lambda_.5} parent=35 // pred_check_branch
        %818 = sbr.rel (%p816) target = $region56
      $region55: #{_lambda_.5} parent=35 // pred_region
        _
      $region56: #{_lambda_.5} parent=35 // pred_fallthru
        _
      // Predicated region
      $region57: #{_lambda_.5} parent=35 // pred_check
        %p819 = pneg %p167
      $region58: #{_lambda_.5} parent=35 // pred_check_branch
        %821 = sbr.rel (%p819) target = $region60
      $region59: #{_lambda_.5} parent=35 // pred_region
        _
      $region60: #{_lambda_.5} parent=35 // pred_fallthru
        _
    $region36: #{_lambda_.5} parent=5 // pred_fallthru
      _
    %p822 = scmp.le.s32.totalorder 2, %s13
    // Predicated region
    $region61: #{_lambda_.5} parent=5 // pred_check
      %p823 = pneg %p822
    $region62: #{_lambda_.5} parent=5 // pred_check_branch
      %825 = sbr.rel (%p823) target = $region64
    $region63: #{_lambda_.5} parent=5 // pred_region
      %s826 = ssub.s32 %s13, 2
      // Predicated region
      $region65: #{_lambda_.5} parent=63 // pred_check
        %p827 = pneg %p131
      $region66: #{_lambda_.5} parent=63 // pred_check_branch
        %829 = sbr.rel (%p827) target = $region68
      $region67: #{_lambda_.5} parent=63 // pred_region
        %s830 = smul.u32 32, %s19
        %p831 = scmp.lt.s32.totalorder %s830, 63
        %s832 = scalar_select %p831, %s830, 63
        %s833 = smul.addr %s832, 4
        %s834 = scalar_lea.vmem %s4, %s833
      $region68: #{_lambda_.5} parent=63 // pred_fallthru
        _
    $region64: #{_lambda_.5} parent=5 // pred_fallthru
      _
  $region6: #{_lambda_.5} parent=0 // loop_footer
    %s17 = sadd.s32 1, %s13
  $region7: #{_lambda_.5} parent=0 // loop_footer_branch
    %12 = sbr.rel target = $region3
  $region8: #{_lambda_.5} parent=0 // loop_exit
    _

// kernel: _lambda_.7
$region0: #{_lambda_.7}
  #allocation0 [shape = 'u32[]', space=smem, size = 0x4, offset = 0x4, fixed_abs, tag = 'smem constant byte address 0x4 - core index']
  #allocation1 [shape = 'u32[72,128]{1,0:T(1,128)}', space=vmem, size = 0x9000, scoped, tag = 'internal scratch']
  %s0 = inlined_call_operand.vmem [shape: bf16[512,128], index: 0, kind: input, shape index: {}]
  %s1 = inlined_call_operand.vmem [shape: bf16[512,128], index: 1, kind: input, shape index: {}]
  %s2 = inlined_call_operand.vmem [shape: f32[1,128], index: 2, kind: input, shape index: {}]
  %s3 = inlined_call_operand.vmem [shape: f32[1,128], index: 3, kind: input, shape index: {}]
  %s4 = inlined_call_operand.vmem [shape: f32[1,128], index: 4, kind: input, shape index: {}]
  %s5 = inlined_call_operand.vmem [shape: f32[1,128], index: 5, kind: input, shape index: {}]
  %s6 = inlined_call_operand.vmem [shape: bf16[128,128], index: 6, kind: input, shape index: {}]
  %s7 = inlined_call_operand.vmem [shape: bf16[128,128], index: 7, kind: input, shape index: {}]
  %s8 = inlined_call_operand.vmem [shape: f32[512,128], index: 8, kind: output, shape index: {}]
  %s9 = sld [smem:[#allocation0]]
  $region65: #{_lambda_.7} parent=0
    _
  %s11 = ssub.s32 1, %s9
  %s12 = scalar_select 0, %s11, %s9
  loop: start=0, step=1, limit=4
  $region2: #{_lambda_.7} parent=0 // loop_pre_header
    _
  $region3: #{_lambda_.7} parent=0 // loop_header
    %s14 = sphi 0, %s18
    %p15 = scmp.ge.s32.totalorder %s14, 4
    %s24 = sphi 0, %s26
    %s27 = sphi 0, %s24
    %s28 = sphi 0, %s27
    %s44 = sphi 0, %s28
    %s50 = sphi 0, %s52
    %s53 = sphi 0, %s50
    %s54 = sphi 0, %s53
    %s70 = sphi 0, %s54
    %s74 = sphi 0, %s74
    %s76 = sphi 0, %s74
    %s77 = sphi 0, %s76
    %s91 = sphi 0, %s77
    %s95 = sphi 0, %s95
    %s97 = sphi 0, %s95
    %s98 = sphi 0, %s97
    %s112 = sphi 0, %s98
    %s116 = sphi 0, %s116
    %s118 = sphi 0, %s116
    %s119 = sphi 0, %s118
    %s133 = sphi 0, %s119
    %s137 = sphi 0, %s137
    %s139 = sphi 0, %s137
    %s140 = sphi 0, %s139
    %s154 = sphi 0, %s140
    %s158 = sphi 0, %s158
    %s160 = sphi 0, %s158
    %s161 = sphi 0, %s160
    %s175 = sphi 0, %s161
    %s179 = sphi 0, %s179
    %s181 = sphi 0, %s179
    %s182 = sphi 0, %s181
    %s196 = sphi 0, %s182
    %s202 = sphi 0, %s204
    %s205 = sphi 0, %s202
    %s206 = sphi 0, %s205
    %s222 = sphi 0, %s206
  $region4: #{_lambda_.7} parent=0 // loop_header_branch
    %17 = sbr.rel (%p15) target = $region8
  $region5: #{_lambda_.7} parent=0 // loop_body
    %s19 = ssub.s32 %s14, 1
    %s20 = ssub.s32 %s14, 2
    %s21 = sadd.s32 %s14, 1
    %s22 = ssub.s32 %s14, %s21
    %p23 = scmp.eq.s32.totalorder %s22, 0
    %s25 = sadd.s32 %s24, 1
    %s26 = scalar_select %p23, %s24, %s25
    %p29 = pneg %p23
    %p30 = scmp.eq.s32.totalorder %s14, 1
    %p31 = por %p29, %p30
    %p32 = scmp.ne.s32.totalorder %s24, %s27
    %p33 = scmp.eq.s32.totalorder %s14, 0
    %p34 = por %p32, %p33
    %p35 = scmp.ne.s32.totalorder %s24, %s27
    %p36 = scmp.eq.s32.totalorder %s19, 1
    %p37 = por %p35, %p36
    %p38 = scmp.ne.s32.totalorder %s27, %s28
    %p39 = scmp.eq.s32.totalorder %s19, 0
    %p40 = por %p38, %p39
    %p41 = scmp.ne.s32.totalorder %s27, %s28
    %p42 = scmp.eq.s32.totalorder %s20, 1
    %p43 = por %p41, %p42
    %p45 = scmp.ne.s32.totalorder %s28, %s44
    %p46 = scmp.eq.s32.totalorder %s20, 0
    %p47 = por %p45, %p46
    %s48 = ssub.s32 %s14, %s21
    %p49 = scmp.eq.s32.totalorder %s48, 0
    %s51 = sadd.s32 %s50, 1
    %s52 = scalar_select %p49, %s50, %s51
    %p55 = pneg %p49
    %p56 = scmp.eq.s32.totalorder %s14, 1
    %p57 = por %p55, %p56
    %p58 = scmp.ne.s32.totalorder %s50, %s53
    %p59 = scmp.eq.s32.totalorder %s14, 0
    %p60 = por %p58, %p59
    %p61 = scmp.ne.s32.totalorder %s50, %s53
    %p62 = scmp.eq.s32.totalorder %s19, 1
    %p63 = por %p61, %p62
    %p64 = scmp.ne.s32.totalorder %s53, %s54
    %p65 = scmp.eq.s32.totalorder %s19, 0
    %p66 = por %p64, %p65
    %p67 = scmp.ne.s32.totalorder %s53, %s54
    %p68 = scmp.eq.s32.totalorder %s20, 1
    %p69 = por %p67, %p68
    %p71 = scmp.ne.s32.totalorder %s54, %s70
    %p72 = scmp.eq.s32.totalorder %s20, 0
    %p73 = por %p71, %p72
    %s75 = sadd.s32 %s74, 1
    %p78 = scmp.eq.s32.totalorder %s14, 1
    %p79 = scmp.ne.s32.totalorder %s74, %s76
    %p80 = scmp.eq.s32.totalorder %s14, 0
    %p81 = por %p79, %p80
    %p82 = scmp.ne.s32.totalorder %s74, %s76
    %p83 = scmp.eq.s32.totalorder %s19, 1
    %p84 = por %p82, %p83
    %p85 = scmp.ne.s32.totalorder %s76, %s77
    %p86 = scmp.eq.s32.totalorder %s19, 0
    %p87 = por %p85, %p86
    %p88 = scmp.ne.s32.totalorder %s76, %s77
    %p89 = scmp.eq.s32.totalorder %s20, 1
    %p90 = por %p88, %p89
    %p92 = scmp.ne.s32.totalorder %s77, %s91
    %p93 = scmp.eq.s32.totalorder %s20, 0
    %p94 = por %p92, %p93
    %s96 = sadd.s32 %s95, 1
    %p99 = scmp.eq.s32.totalorder %s14, 1
    %p100 = scmp.ne.s32.totalorder %s95, %s97
    %p101 = scmp.eq.s32.totalorder %s14, 0
    %p102 = por %p100, %p101
    %p103 = scmp.ne.s32.totalorder %s95, %s97
    %p104 = scmp.eq.s32.totalorder %s19, 1
    %p105 = por %p103, %p104
    %p106 = scmp.ne.s32.totalorder %s97, %s98
    %p107 = scmp.eq.s32.totalorder %s19, 0
    %p108 = por %p106, %p107
    %p109 = scmp.ne.s32.totalorder %s97, %s98
    %p110 = scmp.eq.s32.totalorder %s20, 1
    %p111 = por %p109, %p110
    %p113 = scmp.ne.s32.totalorder %s98, %s112
    %p114 = scmp.eq.s32.totalorder %s20, 0
    %p115 = por %p113, %p114
    %s117 = sadd.s32 %s116, 1
    %p120 = scmp.eq.s32.totalorder %s14, 1
    %p121 = scmp.ne.s32.totalorder %s116, %s118
    %p122 = scmp.eq.s32.totalorder %s14, 0
    %p123 = por %p121, %p122
    %p124 = scmp.ne.s32.totalorder %s116, %s118
    %p125 = scmp.eq.s32.totalorder %s19, 1
    %p126 = por %p124, %p125
    %p127 = scmp.ne.s32.totalorder %s118, %s119
    %p128 = scmp.eq.s32.totalorder %s19, 0
    %p129 = por %p127, %p128
    %p130 = scmp.ne.s32.totalorder %s118, %s119
    %p131 = scmp.eq.s32.totalorder %s20, 1
    %p132 = por %p130, %p131
    %p134 = scmp.ne.s32.totalorder %s119, %s133
    %p135 = scmp.eq.s32.totalorder %s20, 0
    %p136 = por %p134, %p135
    %s138 = sadd.s32 %s137, 1
    %p141 = scmp.eq.s32.totalorder %s14, 1
    %p142 = scmp.ne.s32.totalorder %s137, %s139
    %p143 = scmp.eq.s32.totalorder %s14, 0
    %p144 = por %p142, %p143
    %p145 = scmp.ne.s32.totalorder %s137, %s139
    %p146 = scmp.eq.s32.totalorder %s19, 1
    %p147 = por %p145, %p146
    %p148 = scmp.ne.s32.totalorder %s139, %s140
    %p149 = scmp.eq.s32.totalorder %s19, 0
    %p150 = por %p148, %p149
    %p151 = scmp.ne.s32.totalorder %s139, %s140
    %p152 = scmp.eq.s32.totalorder %s20, 1
    %p153 = por %p151, %p152
    %p155 = scmp.ne.s32.totalorder %s140, %s154
    %p156 = scmp.eq.s32.totalorder %s20, 0
    %p157 = por %p155, %p156
    %s159 = sadd.s32 %s158, 1
    %p162 = scmp.eq.s32.totalorder %s14, 1
    %p163 = scmp.ne.s32.totalorder %s158, %s160
    %p164 = scmp.eq.s32.totalorder %s14, 0
    %p165 = por %p163, %p164
    %p166 = scmp.ne.s32.totalorder %s158, %s160
    %p167 = scmp.eq.s32.totalorder %s19, 1
    %p168 = por %p166, %p167
    %p169 = scmp.ne.s32.totalorder %s160, %s161
    %p170 = scmp.eq.s32.totalorder %s19, 0
    %p171 = por %p169, %p170
    %p172 = scmp.ne.s32.totalorder %s160, %s161
    %p173 = scmp.eq.s32.totalorder %s20, 1
    %p174 = por %p172, %p173
    %p176 = scmp.ne.s32.totalorder %s161, %s175
    %p177 = scmp.eq.s32.totalorder %s20, 0
    %p178 = por %p176, %p177
    %s180 = sadd.s32 %s179, 1
    %p183 = scmp.eq.s32.totalorder %s14, 1
    %p184 = scmp.ne.s32.totalorder %s179, %s181
    %p185 = scmp.eq.s32.totalorder %s14, 0
    %p186 = por %p184, %p185
    %p187 = scmp.ne.s32.totalorder %s179, %s181
    %p188 = scmp.eq.s32.totalorder %s19, 1
    %p189 = por %p187, %p188
    %p190 = scmp.ne.s32.totalorder %s181, %s182
    %p191 = scmp.eq.s32.totalorder %s19, 0
    %p192 = por %p190, %p191
    %p193 = scmp.ne.s32.totalorder %s181, %s182
    %p194 = scmp.eq.s32.totalorder %s20, 1
    %p195 = por %p193, %p194
    %p197 = scmp.ne.s32.totalorder %s182, %s196
    %p198 = scmp.eq.s32.totalorder %s20, 0
    %p199 = por %p197, %p198
    %s200 = ssub.s32 %s14, %s21
    %p201 = scmp.eq.s32.totalorder %s200, 0
    %s203 = sadd.s32 %s202, 1
    %s204 = scalar_select %p201, %s202, %s203
    %p207 = pneg %p201
    %p208 = scmp.eq.s32.totalorder %s14, 1
    %p209 = por %p207, %p208
    %p210 = scmp.ne.s32.totalorder %s202, %s205
    %p211 = scmp.eq.s32.totalorder %s14, 0
    %p212 = por %p210, %p211
    %p213 = scmp.ne.s32.totalorder %s202, %s205
    %p214 = scmp.eq.s32.totalorder %s19, 1
    %p215 = por %p213, %p214
    %p216 = scmp.ne.s32.totalorder %s205, %s206
    %p217 = scmp.eq.s32.totalorder %s19, 0
    %p218 = por %p216, %p217
    %p219 = scmp.ne.s32.totalorder %s205, %s206
    %p220 = scmp.eq.s32.totalorder %s20, 1
    %p221 = por %p219, %p220
    %p223 = scmp.ne.s32.totalorder %s206, %s222
    %p224 = scmp.eq.s32.totalorder %s20, 0
    %p225 = por %p223, %p224
    %p226 = scmp.le.s32.totalorder 1, %s14
    %p227 = scmp.lt.s32.totalorder %s14, 3
    %p228 = pnand %p226, %p227
    %p229 = pneg %p228
    // Predicated region
    $region9: #{_lambda_.7} parent=5 // pred_check
      _
    $region10: #{_lambda_.7} parent=5 // pred_check_branch
      %231 = sbr.rel (%p228) target = $region12
    $region11: #{_lambda_.7} parent=5 // pred_region
      %s232 = ssub.s32 %s14, 1
      // Predicated region
      $region13: #{_lambda_.7} parent=11 // pred_check
        %p233 = pneg %p87
      $region14: #{_lambda_.7} parent=11 // pred_check_branch
        %235 = sbr.rel (%p233) target = $region16
      $region15: #{_lambda_.7} parent=11 // pred_region
        _
      $region16: #{_lambda_.7} parent=11 // pred_fallthru
        _
      // Predicated region
      $region17: #{_lambda_.7} parent=11 // pred_check
        %p236 = pneg %p108
      $region18: #{_lambda_.7} parent=11 // pred_check_branch
        %238 = sbr.rel (%p236) target = $region20
      $region19: #{_lambda_.7} parent=11 // pred_region
        _
      $region20: #{_lambda_.7} parent=11 // pred_fallthru
        _
      // Predicated region
      $region21: #{_lambda_.7} parent=11 // pred_check
        %p239 = pneg %p129
      $region22: #{_lambda_.7} parent=11 // pred_check_branch
        %241 = sbr.rel (%p239) target = $region24
      $region23: #{_lambda_.7} parent=11 // pred_region
        _
      $region24: #{_lambda_.7} parent=11 // pred_fallthru
        _
      // Predicated region
      $region25: #{_lambda_.7} parent=11 // pred_check
        %p242 = pneg %p150
      $region26: #{_lambda_.7} parent=11 // pred_check_branch
        %244 = sbr.rel (%p242) target = $region28
      $region27: #{_lambda_.7} parent=11 // pred_region
        _
      $region28: #{_lambda_.7} parent=11 // pred_fallthru
        _
      // Predicated region
      $region29: #{_lambda_.7} parent=11 // pred_check
        %p245 = pneg %p171
      $region30: #{_lambda_.7} parent=11 // pred_check_branch
        %247 = sbr.rel (%p245) target = $region32
      $region31: #{_lambda_.7} parent=11 // pred_region
        _
      $region32: #{_lambda_.7} parent=11 // pred_fallthru
        _
      // Predicated region
      $region33: #{_lambda_.7} parent=11 // pred_check
        %p248 = pneg %p192
      $region34: #{_lambda_.7} parent=11 // pred_check_branch
        %250 = sbr.rel (%p248) target = $region36
      $region35: #{_lambda_.7} parent=11 // pred_region
        _
      $region36: #{_lambda_.7} parent=11 // pred_fallthru
        _
    $region12: #{_lambda_.7} parent=5 // pred_fallthru
      _
    %p251 = scmp.lt.s32.totalorder %s14, 2
    // Predicated region
    $region37: #{_lambda_.7} parent=5 // pred_check
      %p252 = pneg %p251
    $region38: #{_lambda_.7} parent=5 // pred_check_branch
      %254 = sbr.rel (%p252) target = $region40
    $region39: #{_lambda_.7} parent=5 // pred_region
      // Predicated region
      $region41: #{_lambda_.7} parent=39 // pred_check
        %p255 = pneg %p34
      $region42: #{_lambda_.7} parent=39 // pred_check_branch
        %257 = sbr.rel (%p255) target = $region44
      $region43: #{_lambda_.7} parent=39 // pred_region
        %s258 = smul.u32 32, %s14
        %p259 = scmp.lt.s32.totalorder %s258, 63
        %s260 = scalar_select %p259, %s258, 63
        %s261 = smul.addr %s260, 4
        %s262 = scalar_lea.vmem %s0, %s261
        %s263 = smul.u32 32, %s14
      $region44: #{_lambda_.7} parent=39 // pred_fallthru
        _
      // Predicated region
      $region45: #{_lambda_.7} parent=39 // pred_check
        %p264 = pneg %p60
      $region46: #{_lambda_.7} parent=39 // pred_check_branch
        %266 = sbr.rel (%p264) target = $region48
      $region47: #{_lambda_.7} parent=39 // pred_region
        %s267 = smul.u32 32, %s14
        %p268 = scmp.lt.s32.totalorder %s267, 63
        %s269 = scalar_select %p268, %s267, 63
        %s270 = smul.addr %s269, 4
        %s271 = scalar_lea.vmem %s1, %s270
        %s272 = smul.u32 32, %s14
      $region48: #{_lambda_.7} parent=39 // pred_fallthru
        _
    $region40: #{_lambda_.7} parent=5 // pred_fallthru
      _
    %p273 = scmp.le.s32.totalorder 1, %s14
    %p274 = scmp.lt.s32.totalorder %s14, 3
    %p275 = pnand %p273, %p274
    %p276 = pneg %p275
    // Predicated region
    $region49: #{_lambda_.7} parent=5 // pred_check
      _
    $region50: #{_lambda_.7} parent=5 // pred_check_branch
      %278 = sbr.rel (%p275) target = $region52
    $region51: #{_lambda_.7} parent=5 // pred_region
      %s279 = ssub.s32 %s14, 1
      %s280 = smul.u32 32, %s19
      %p281 = scmp.lt.s32.totalorder %s280, 63
      %s282 = scalar_select %p281, %s280, 63
      %s283 = smul.addr %s282, 4
      %s284 = scalar_lea.vmem %s0, %s283
      %p285 = pneg %p40
      %p286 = pneg %p37
      %s287 = smul.u32 32, %s19
      %p288 = scmp.lt.s32.totalorder %s287, 63
      %s289 = scalar_select %p288, %s287, 63
      %s290 = smul.addr %s289, 4
      %s291 = scalar_lea.vmem %s1, %s290
      %p292 = pneg %p66
      %p293 = pneg %p63
      %p294 = pneg %p87
      %p295 = pneg %p84
      %p296 = pneg %p108
      %p297 = pneg %p105
      %p298 = pneg %p129
      %p299 = pneg %p126
      %p300 = pneg %p150
      %p301 = pneg %p147
      %p302 = pneg %p171
      %p303 = pneg %p168
      %p304 = pneg %p192
      %p305 = pneg %p189
      %p306 = pneg %p218
      %p307 = pneg %p215
      %s308 = smul.u32 32, %s19
      %p309 = scmp.lt.s32.totalorder %s308, 63
      %s310 = scalar_select %p309, %s308, 63
      %s311 = smul.addr %s310, 8
      %s312 = scalar_lea.vmem %s8, %s311
      %s313 = smul.u32 32, %s19
      %p314 = scmp.lt.s32.totalorder %s313, 63
      %s315 = scalar_select %p314, %s313, 63
      %s316 = smul.addr %s315, 4
      %s317 = scalar_lea.vmem %s0, %s316
      %s318 = smul.u32 32, %s19
      %s319 = smul.u32 32, %s19
      %p320 = scmp.lt.s32.totalorder %s319, 63
      %s321 = scalar_select %p320, %s319, 63
      %s322 = smul.addr %s321, 4
      %s323 = scalar_lea.vmem %s1, %s322
      %s324 = smul.u32 32, %s19
      %s325 = smul.u32 32, %s19
      %p326 = scmp.lt.s32.totalorder %s325, 63
      %s327 = scalar_select %p326, %s325, 63
      %s328 = smul.addr %s327, 8
      %s329 = scalar_lea.vmem %s8, %s328
      %s330 = smul.u32 32, %s19
      %v331 = vld [vmem:[%s323] sm:$0xf]
      %v332 = vld [vmem:[%s323 + $0x4] sm:$0xf]
      %v333 = vld [vmem:[%s323 + $0x8] sm:$0xf]
      %v334 = vld [vmem:[%s323 + $0xc] sm:$0xf]
      %v335 = vld [vmem:[%s323 + $0x10] sm:$0xf]
      %v336 = vld [vmem:[%s323 + $0x14] sm:$0xf]
      %v337 = vld [vmem:[%s323 + $0x18] sm:$0xf]
      %v338 = vld [vmem:[%s323 + $0x1c] sm:$0xf]
      %v339 = vld [vmem:[%s323 + $0x20] sm:$0xf]
      %v340 = vld [vmem:[%s323 + $0x24] sm:$0xf]
      %v341 = vld [vmem:[%s323 + $0x28] sm:$0xf]
      %v342 = vld [vmem:[%s323 + $0x2c] sm:$0xf]
      %v343 = vld [vmem:[%s323 + $0x30] sm:$0xf]
      %v344 = vld [vmem:[%s323 + $0x34] sm:$0xf]
      %v345 = vld [vmem:[%s323 + $0x38] sm:$0xf]
      %v346 = vld [vmem:[%s323 + $0x3c] sm:$0xf]
      %v347 = vld [vmem:[%s323 + $0x40] sm:$0xf]
      %v348 = vld [vmem:[%s323 + $0x44] sm:$0xf]
      %v349 = vld [vmem:[%s323 + $0x48] sm:$0xf]
      %v350 = vld [vmem:[%s323 + $0x4c] sm:$0xf]
      %v351 = vld [vmem:[%s323 + $0x50] sm:$0xf]
      %v352 = vld [vmem:[%s323 + $0x54] sm:$0xf]
      %v353 = vld [vmem:[%s323 + $0x58] sm:$0xf]
      %v354 = vld [vmem:[%s323 + $0x5c] sm:$0xf]
      %v355 = vld [vmem:[%s323 + $0x60] sm:$0xf]
      %v356 = vld [vmem:[%s323 + $0x64] sm:$0xf]
      %v357 = vld [vmem:[%s323 + $0x68] sm:$0xf]
      %v358 = vld [vmem:[%s323 + $0x6c] sm:$0xf]
      %v359 = vld [vmem:[%s323 + $0x70] sm:$0xf]
      %v360 = vld [vmem:[%s323 + $0x74] sm:$0xf]
      %v361 = vld [vmem:[%s323 + $0x78] sm:$0xf]
      %v362 = vld [vmem:[%s323 + $0x7c] sm:$0xf]
      %v363 = vunpack.c.l.bf16 %v331
      %v364 = vunpack.c.l.bf16 %v332
      %v365 = vunpack.c.l.bf16 %v333
      %v366 = vunpack.c.l.bf16 %v334
      %v367 = vunpack.c.l.bf16 %v335
      %v368 = vunpack.c.l.bf16 %v336
      %v369 = vunpack.c.l.bf16 %v337
      %v370 = vunpack.c.l.bf16 %v338
      %v371 = vunpack.c.l.bf16 %v339
      %v372 = vunpack.c.l.bf16 %v340
      %v373 = vunpack.c.l.bf16 %v341
      %v374 = vunpack.c.l.bf16 %v342
      %v375 = vunpack.c.l.bf16 %v343
      %v376 = vunpack.c.l.bf16 %v344
      %v377 = vunpack.c.l.bf16 %v345
      %v378 = vunpack.c.l.bf16 %v346
      %v379 = vunpack.c.l.bf16 %v347
      %v380 = vunpack.c.l.bf16 %v348
      %v381 = vunpack.c.l.bf16 %v349
      %v382 = vunpack.c.l.bf16 %v350
      %v383 = vunpack.c.l.bf16 %v351
      %v384 = vunpack.c.l.bf16 %v352
      %v385 = vunpack.c.l.bf16 %v353
      %v386 = vunpack.c.l.bf16 %v354
      %v387 = vunpack.c.l.bf16 %v355
      %v388 = vunpack.c.l.bf16 %v356
      %v389 = vunpack.c.l.bf16 %v357
      %v390 = vunpack.c.l.bf16 %v358
      %v391 = vunpack.c.l.bf16 %v359
      %v392 = vunpack.c.l.bf16 %v360
      %v393 = vunpack.c.l.bf16 %v361
      %v394 = vunpack.c.l.bf16 %v362
      %v395 = vld [vmem:[%s4] sm:$0x1]
      %v397 = vperm.slane %v395, 0
      %v399 = vmul.f32 %v363, %v397
      %v400 = vmul.f32 %v364, %v397
      %v401 = vmul.f32 %v365, %v397
      %v402 = vmul.f32 %v366, %v397
      %v403 = vmul.f32 %v367, %v397
      %v404 = vmul.f32 %v368, %v397
      %v405 = vmul.f32 %v369, %v397
      %v406 = vmul.f32 %v370, %v397
      %v407 = vmul.f32 %v371, %v397
      %v408 = vmul.f32 %v372, %v397
      %v409 = vmul.f32 %v373, %v397
      %v410 = vmul.f32 %v374, %v397
      %v411 = vmul.f32 %v375, %v397
      %v412 = vmul.f32 %v376, %v397
      %v413 = vmul.f32 %v377, %v397
      %v414 = vmul.f32 %v378, %v397
      %v415 = vmul.f32 %v379, %v397
      %v416 = vmul.f32 %v380, %v397
      %v417 = vmul.f32 %v381, %v397
      %v418 = vmul.f32 %v382, %v397
      %v419 = vmul.f32 %v383, %v397
      %v420 = vmul.f32 %v384, %v397
      %v421 = vmul.f32 %v385, %v397
      %v422 = vmul.f32 %v386, %v397
      %v423 = vmul.f32 %v387, %v397
      %v424 = vmul.f32 %v388, %v397
      %v425 = vmul.f32 %v389, %v397
      %v426 = vmul.f32 %v390, %v397
      %v427 = vmul.f32 %v391, %v397
      %v428 = vmul.f32 %v392, %v397
      %v429 = vmul.f32 %v393, %v397
      %v430 = vmul.f32 %v394, %v397
      %v431 = vld [vmem:[%s5] sm:$0x1]
      %v433 = vperm.slane %v431, 0
      %v435 = vadd.f32 %v399, %v433
      %v436 = vadd.f32 %v400, %v433
      %v437 = vadd.f32 %v401, %v433
      %v438 = vadd.f32 %v402, %v433
      %v439 = vadd.f32 %v403, %v433
      %v440 = vadd.f32 %v404, %v433
      %v441 = vadd.f32 %v405, %v433
      %v442 = vadd.f32 %v406, %v433
      %v443 = vadd.f32 %v407, %v433
      %v444 = vadd.f32 %v408, %v433
      %v445 = vadd.f32 %v409, %v433
      %v446 = vadd.f32 %v410, %v433
      %v447 = vadd.f32 %v411, %v433
      %v448 = vadd.f32 %v412, %v433
      %v449 = vadd.f32 %v413, %v433
      %v450 = vadd.f32 %v414, %v433
      %v451 = vadd.f32 %v415, %v433
      %v452 = vadd.f32 %v416, %v433
      %v453 = vadd.f32 %v417, %v433
      %v454 = vadd.f32 %v418, %v433
      %v455 = vadd.f32 %v419, %v433
      %v456 = vadd.f32 %v420, %v433
      %v457 = vadd.f32 %v421, %v433
      %v458 = vadd.f32 %v422, %v433
      %v459 = vadd.f32 %v423, %v433
      %v460 = vadd.f32 %v424, %v433
      %v461 = vadd.f32 %v425, %v433
      %v462 = vadd.f32 %v426, %v433
      %v463 = vadd.f32 %v427, %v433
      %v464 = vadd.f32 %v428, %v433
      %v465 = vadd.f32 %v429, %v433
      %v466 = vadd.f32 %v430, %v433
      %v467 = vpack.c.bf16 %v436, %v435
      %v468 = vpack.c.bf16 %v438, %v437
      %v469 = vpack.c.bf16 %v440, %v439
      %v470 = vpack.c.bf16 %v442, %v441
      %v471 = vpack.c.bf16 %v444, %v443
      %v472 = vpack.c.bf16 %v446, %v445
      %v473 = vpack.c.bf16 %v448, %v447
      %v474 = vpack.c.bf16 %v450, %v449
      %v475 = vpack.c.bf16 %v452, %v451
      %v476 = vpack.c.bf16 %v454, %v453
      %v477 = vpack.c.bf16 %v456, %v455
      %v478 = vpack.c.bf16 %v458, %v457
      %v479 = vpack.c.bf16 %v460, %v459
      %v480 = vpack.c.bf16 %v462, %v461
      %v481 = vpack.c.bf16 %v464, %v463
      %v482 = vpack.c.bf16 %v466, %v465
      %v483 = vld [vmem:[%s7] sm:$0xf]
      %v484 = vld [vmem:[%s7 + $0x4] sm:$0xf]
      %v485 = vld [vmem:[%s7 + $0x8] sm:$0xf]
      %v486 = vld [vmem:[%s7 + $0xc] sm:$0xf]
      %v487 = vld [vmem:[%s7 + $0x10] sm:$0xf]
      %v488 = vld [vmem:[%s7 + $0x14] sm:$0xf]
      %v489 = vld [vmem:[%s7 + $0x18] sm:$0xf]
      %v490 = vld [vmem:[%s7 + $0x1c] sm:$0xf]
      %v491 = vld [vmem:[%s7 + $0x20] sm:$0xf]
      %v492 = vld [vmem:[%s7 + $0x24] sm:$0xf]
      %v493 = vld [vmem:[%s7 + $0x28] sm:$0xf]
      %v494 = vld [vmem:[%s7 + $0x2c] sm:$0xf]
      %v495 = vld [vmem:[%s7 + $0x30] sm:$0xf]
      %v496 = vld [vmem:[%s7 + $0x34] sm:$0xf]
      %v497 = vld [vmem:[%s7 + $0x38] sm:$0xf]
      %v498 = vld [vmem:[%s7 + $0x3c] sm:$0xf]
      %v515 = vunpack.c.l.b16 %v483
      %v516 = vunpack.c.l.b16 %v484
      %v517 = vunpack.c.l.b16 %v485
      %v518 = vunpack.c.l.b16 %v486
      %v519 = vunpack.c.l.b16 %v487
      %v520 = vunpack.c.l.b16 %v488
      %v521 = vunpack.c.l.b16 %v489
      %v522 = vunpack.c.l.b16 %v490
      %v523 = vunpack.c.l.b16 %v491
      %v524 = vunpack.c.l.b16 %v492
      %v525 = vunpack.c.l.b16 %v493
      %v526 = vunpack.c.l.b16 %v494
      %v527 = vunpack.c.l.b16 %v495
      %v528 = vunpack.c.l.b16 %v496
      %v529 = vunpack.c.l.b16 %v497
      %v530 = vunpack.c.l.b16 %v498
      %v531 = vpack.c.b16 %v516, %v515
      %v532 = vpack.c.b16 %v518, %v517
      %v533 = vpack.c.b16 %v520, %v519
      %v534 = vpack.c.b16 %v522, %v521
      %v535 = vpack.c.b16 %v524, %v523
      %v536 = vpack.c.b16 %v526, %v525
      %v537 = vpack.c.b16 %v528, %v527
      %v538 = vpack.c.b16 %v530, %v529
      %547 = vmatpush.bf16.msra.mxu0 %v538
      %548 = vmatpush.bf16.msra.mxu0 %v537
      %549 = vmatpush.bf16.msra.mxu0 %v536
      %550 = vmatpush.bf16.msra.mxu0 %v535
      %551 = vmatpush.bf16.msra.mxu0 %v534
      %552 = vmatpush.bf16.msra.mxu0 %v533
      %553 = vmatpush.bf16.msra.mxu0 %v532
      %554 = vmatpush.bf16.msra.mxu0 %v531
      %555 = vmatmul.bf16.gmra.mxu0 %v467
      %v556 = vpop.f32.mrf.mxu0
      %v557 = vadd.f32 0.0, %v556
      %v558 = vpop.f32.mrf.mxu0
      %v559 = vadd.f32 0.0, %v558
      %560 = vmatmul.bf16.gmra.mxu0 %v468
      %v561 = vpop.f32.mrf.mxu0
      %v562 = vadd.f32 0.0, %v561
      %v563 = vpop.f32.mrf.mxu0
      %v564 = vadd.f32 0.0, %v563
      %565 = vmatmul.bf16.gmra.mxu0 %v469
      %v566 = vpop.f32.mrf.mxu0
      %v567 = vadd.f32 0.0, %v566
      %v568 = vpop.f32.mrf.mxu0
      %v569 = vadd.f32 0.0, %v568
      %570 = vmatmul.bf16.gmra.mxu0 %v470
      %v571 = vpop.f32.mrf.mxu0
      %v572 = vadd.f32 0.0, %v571
      %v573 = vpop.f32.mrf.mxu0
      %v574 = vadd.f32 0.0, %v573
      %575 = vmatmul.bf16.gmra.mxu0 %v471
      %v576 = vpop.f32.mrf.mxu0
      %v577 = vadd.f32 0.0, %v576
      %v578 = vpop.f32.mrf.mxu0
      %v579 = vadd.f32 0.0, %v578
      %580 = vmatmul.bf16.gmra.mxu0 %v472
      %v581 = vpop.f32.mrf.mxu0
      %v582 = vadd.f32 0.0, %v581
      %v583 = vpop.f32.mrf.mxu0
      %v584 = vadd.f32 0.0, %v583
      %585 = vmatmul.bf16.gmra.mxu0 %v473
      %v586 = vpop.f32.mrf.mxu0
      %v587 = vadd.f32 0.0, %v586
      %v588 = vpop.f32.mrf.mxu0
      %v589 = vadd.f32 0.0, %v588
      %590 = vmatmul.bf16.gmra.mxu0 %v474
      %v591 = vpop.f32.mrf.mxu0
      %v592 = vadd.f32 0.0, %v591
      %v593 = vpop.f32.mrf.mxu0
      %v594 = vadd.f32 0.0, %v593
      %595 = vmatmul.bf16.gmra.mxu0 %v475
      %v596 = vpop.f32.mrf.mxu0
      %v597 = vadd.f32 0.0, %v596
      %v598 = vpop.f32.mrf.mxu0
      %v599 = vadd.f32 0.0, %v598
      %600 = vmatmul.bf16.gmra.mxu0 %v476
      %v601 = vpop.f32.mrf.mxu0
      %v602 = vadd.f32 0.0, %v601
      %v603 = vpop.f32.mrf.mxu0
      %v604 = vadd.f32 0.0, %v603
      %605 = vmatmul.bf16.gmra.mxu0 %v477
      %v606 = vpop.f32.mrf.mxu0
      %v607 = vadd.f32 0.0, %v606
      %v608 = vpop.f32.mrf.mxu0
      %v609 = vadd.f32 0.0, %v608
      %610 = vmatmul.bf16.gmra.mxu0 %v478
      %v611 = vpop.f32.mrf.mxu0
      %v612 = vadd.f32 0.0, %v611
      %v613 = vpop.f32.mrf.mxu0
      %v614 = vadd.f32 0.0, %v613
      %615 = vmatmul.bf16.gmra.mxu0 %v479
      %v616 = vpop.f32.mrf.mxu0
      %v617 = vadd.f32 0.0, %v616
      %v618 = vpop.f32.mrf.mxu0
      %v619 = vadd.f32 0.0, %v618
      %620 = vmatmul.bf16.gmra.mxu0 %v480
      %v621 = vpop.f32.mrf.mxu0
      %v622 = vadd.f32 0.0, %v621
      %v623 = vpop.f32.mrf.mxu0
      %v624 = vadd.f32 0.0, %v623
      %625 = vmatmul.bf16.gmra.mxu0 %v481
      %v626 = vpop.f32.mrf.mxu0
      %v627 = vadd.f32 0.0, %v626
      %v628 = vpop.f32.mrf.mxu0
      %v629 = vadd.f32 0.0, %v628
      %630 = vmatmul.bf16.gmra.mxu0 %v482
      %v631 = vpop.f32.mrf.mxu0
      %v632 = vadd.f32 0.0, %v631
      %v633 = vpop.f32.mrf.mxu0
      %v634 = vadd.f32 0.0, %v633
      %635 = vdwg.mxu0
      %v636 = vadd.f32 %v363, %v557
      %v637 = vadd.f32 %v364, %v559
      %v638 = vadd.f32 %v365, %v562
      %v639 = vadd.f32 %v366, %v564
      %v640 = vadd.f32 %v367, %v567
      %v641 = vadd.f32 %v368, %v569
      %v642 = vadd.f32 %v369, %v572
      %v643 = vadd.f32 %v370, %v574
      %v644 = vadd.f32 %v371, %v577
      %v645 = vadd.f32 %v372, %v579
      %v646 = vadd.f32 %v373, %v582
      %v647 = vadd.f32 %v374, %v584
      %v648 = vadd.f32 %v375, %v587
      %v649 = vadd.f32 %v376, %v589
      %v650 = vadd.f32 %v377, %v592
      %v651 = vadd.f32 %v378, %v594
      %v652 = vadd.f32 %v379, %v597
      %v653 = vadd.f32 %v380, %v599
      %v654 = vadd.f32 %v381, %v602
      %v655 = vadd.f32 %v382, %v604
      %v656 = vadd.f32 %v383, %v607
      %v657 = vadd.f32 %v384, %v609
      %v658 = vadd.f32 %v385, %v612
      %v659 = vadd.f32 %v386, %v614
      %v660 = vadd.f32 %v387, %v617
      %v661 = vadd.f32 %v388, %v619
      %v662 = vadd.f32 %v389, %v622
      %v663 = vadd.f32 %v390, %v624
      %v664 = vadd.f32 %v391, %v627
      %v665 = vadd.f32 %v392, %v629
      %v666 = vadd.f32 %v393, %v632
      %v667 = vadd.f32 %v394, %v634
      %v668 = vld [vmem:[%s317] sm:$0xf]
      %v669 = vld [vmem:[%s317 + $0x4] sm:$0xf]
      %v670 = vld [vmem:[%s317 + $0x8] sm:$0xf]
      %v671 = vld [vmem:[%s317 + $0xc] sm:$0xf]
      %v672 = vld [vmem:[%s317 + $0x10] sm:$0xf]
      %v673 = vld [vmem:[%s317 + $0x14] sm:$0xf]
      %v674 = vld [vmem:[%s317 + $0x18] sm:$0xf]
      %v675 = vld [vmem:[%s317 + $0x1c] sm:$0xf]
      %v676 = vld [vmem:[%s317 + $0x20] sm:$0xf]
      %v677 = vld [vmem:[%s317 + $0x24] sm:$0xf]
      %v678 = vld [vmem:[%s317 + $0x28] sm:$0xf]
      %v679 = vld [vmem:[%s317 + $0x2c] sm:$0xf]
      %v680 = vld [vmem:[%s317 + $0x30] sm:$0xf]
      %v681 = vld [vmem:[%s317 + $0x34] sm:$0xf]
      %v682 = vld [vmem:[%s317 + $0x38] sm:$0xf]
      %v683 = vld [vmem:[%s317 + $0x3c] sm:$0xf]
      %v684 = vld [vmem:[%s317 + $0x40] sm:$0xf]
      %v685 = vld [vmem:[%s317 + $0x44] sm:$0xf]
      %v686 = vld [vmem:[%s317 + $0x48] sm:$0xf]
      %v687 = vld [vmem:[%s317 + $0x4c] sm:$0xf]
      %v688 = vld [vmem:[%s317 + $0x50] sm:$0xf]
      %v689 = vld [vmem:[%s317 + $0x54] sm:$0xf]
      %v690 = vld [vmem:[%s317 + $0x58] sm:$0xf]
      %v691 = vld [vmem:[%s317 + $0x5c] sm:$0xf]
      %v692 = vld [vmem:[%s317 + $0x60] sm:$0xf]
      %v693 = vld [vmem:[%s317 + $0x64] sm:$0xf]
      %v694 = vld [vmem:[%s317 + $0x68] sm:$0xf]
      %v695 = vld [vmem:[%s317 + $0x6c] sm:$0xf]
      %v696 = vld [vmem:[%s317 + $0x70] sm:$0xf]
      %v697 = vld [vmem:[%s317 + $0x74] sm:$0xf]
      %v698 = vld [vmem:[%s317 + $0x78] sm:$0xf]
      %v699 = vld [vmem:[%s317 + $0x7c] sm:$0xf]
      %v700 = vunpack.c.l.bf16 %v668
      %v701 = vunpack.c.l.bf16 %v669
      %v702 = vunpack.c.l.bf16 %v670
      %v703 = vunpack.c.l.bf16 %v671
      %v704 = vunpack.c.l.bf16 %v672
      %v705 = vunpack.c.l.bf16 %v673
      %v706 = vunpack.c.l.bf16 %v674
      %v707 = vunpack.c.l.bf16 %v675
      %v708 = vunpack.c.l.bf16 %v676
      %v709 = vunpack.c.l.bf16 %v677
      %v710 = vunpack.c.l.bf16 %v678
      %v711 = vunpack.c.l.bf16 %v679
      %v712 = vunpack.c.l.bf16 %v680
      %v713 = vunpack.c.l.bf16 %v681
      %v714 = vunpack.c.l.bf16 %v682
      %v715 = vunpack.c.l.bf16 %v683
      %v716 = vunpack.c.l.bf16 %v684
      %v717 = vunpack.c.l.bf16 %v685
      %v718 = vunpack.c.l.bf16 %v686
      %v719 = vunpack.c.l.bf16 %v687
      %v720 = vunpack.c.l.bf16 %v688
      %v721 = vunpack.c.l.bf16 %v689
      %v722 = vunpack.c.l.bf16 %v690
      %v723 = vunpack.c.l.bf16 %v691
      %v724 = vunpack.c.l.bf16 %v692
      %v725 = vunpack.c.l.bf16 %v693
      %v726 = vunpack.c.l.bf16 %v694
      %v727 = vunpack.c.l.bf16 %v695
      %v728 = vunpack.c.l.bf16 %v696
      %v729 = vunpack.c.l.bf16 %v697
      %v730 = vunpack.c.l.bf16 %v698
      %v731 = vunpack.c.l.bf16 %v699
      %v732 = vld [vmem:[%s2] sm:$0x1]
      %v734 = vperm.slane %v732, 0
      %v736 = vmul.f32 %v700, %v734
      %v737 = vmul.f32 %v701, %v734
      %v738 = vmul.f32 %v702, %v734
      %v739 = vmul.f32 %v703, %v734
      %v740 = vmul.f32 %v704, %v734
      %v741 = vmul.f32 %v705, %v734
      %v742 = vmul.f32 %v706, %v734
      %v743 = vmul.f32 %v707, %v734
      %v744 = vmul.f32 %v708, %v734
      %v745 = vmul.f32 %v709, %v734
      %v746 = vmul.f32 %v710, %v734
      %v747 = vmul.f32 %v711, %v734
      %v748 = vmul.f32 %v712, %v734
      %v749 = vmul.f32 %v713, %v734
      %v750 = vmul.f32 %v714, %v734
      %v751 = vmul.f32 %v715, %v734
      %v752 = vmul.f32 %v716, %v734
      %v753 = vmul.f32 %v717, %v734
      %v754 = vmul.f32 %v718, %v734
      %v755 = vmul.f32 %v719, %v734
      %v756 = vmul.f32 %v720, %v734
      %v757 = vmul.f32 %v721, %v734
      %v758 = vmul.f32 %v722, %v734
      %v759 = vmul.f32 %v723, %v734
      %v760 = vmul.f32 %v724, %v734
      %v761 = vmul.f32 %v725, %v734
      %v762 = vmul.f32 %v726, %v734
      %v763 = vmul.f32 %v727, %v734
      %v764 = vmul.f32 %v728, %v734
      %v765 = vmul.f32 %v729, %v734
      %v766 = vmul.f32 %v730, %v734
      %v767 = vmul.f32 %v731, %v734
      %v768 = vld [vmem:[%s3] sm:$0x1]
      %v770 = vperm.slane %v768, 0
      %v772 = vadd.f32 %v736, %v770
      %v773 = vadd.f32 %v737, %v770
      %v774 = vadd.f32 %v738, %v770
      %v775 = vadd.f32 %v739, %v770
      %v776 = vadd.f32 %v740, %v770
      %v777 = vadd.f32 %v741, %v770
      %v778 = vadd.f32 %v742, %v770
      %v779 = vadd.f32 %v743, %v770
      %v780 = vadd.f32 %v744, %v770
      %v781 = vadd.f32 %v745, %v770
      %v782 = vadd.f32 %v746, %v770
      %v783 = vadd.f32 %v747, %v770
      %v784 = vadd.f32 %v748, %v770
      %v785 = vadd.f32 %v749, %v770
      %v786 = vadd.f32 %v750, %v770
      %v787 = vadd.f32 %v751, %v770
      %v788 = vadd.f32 %v752, %v770
      %v789 = vadd.f32 %v753, %v770
      %v790 = vadd.f32 %v754, %v770
      %v791 = vadd.f32 %v755, %v770
      %v792 = vadd.f32 %v756, %v770
      %v793 = vadd.f32 %v757, %v770
      %v794 = vadd.f32 %v758, %v770
      %v795 = vadd.f32 %v759, %v770
      %v796 = vadd.f32 %v760, %v770
      %v797 = vadd.f32 %v761, %v770
      %v798 = vadd.f32 %v762, %v770
      %v799 = vadd.f32 %v763, %v770
      %v800 = vadd.f32 %v764, %v770
      %v801 = vadd.f32 %v765, %v770
      %v802 = vadd.f32 %v766, %v770
      %v803 = vadd.f32 %v767, %v770
      %v804 = vmax.f32 %v772, 0.0
      %v805 = vmax.f32 %v773, 0.0
      %v806 = vmax.f32 %v774, 0.0
      %v807 = vmax.f32 %v775, 0.0
      %v808 = vmax.f32 %v776, 0.0
      %v809 = vmax.f32 %v777, 0.0
      %v810 = vmax.f32 %v778, 0.0
      %v811 = vmax.f32 %v779, 0.0
      %v812 = vmax.f32 %v780, 0.0
      %v813 = vmax.f32 %v781, 0.0
      %v814 = vmax.f32 %v782, 0.0
      %v815 = vmax.f32 %v783, 0.0
      %v816 = vmax.f32 %v784, 0.0
      %v817 = vmax.f32 %v785, 0.0
      %v818 = vmax.f32 %v786, 0.0
      %v819 = vmax.f32 %v787, 0.0
      %v820 = vmax.f32 %v788, 0.0
      %v821 = vmax.f32 %v789, 0.0
      %v822 = vmax.f32 %v790, 0.0
      %v823 = vmax.f32 %v791, 0.0
      %v824 = vmax.f32 %v792, 0.0
      %v825 = vmax.f32 %v793, 0.0
      %v826 = vmax.f32 %v794, 0.0
      %v827 = vmax.f32 %v795, 0.0
      %v828 = vmax.f32 %v796, 0.0
      %v829 = vmax.f32 %v797, 0.0
      %v830 = vmax.f32 %v798, 0.0
      %v831 = vmax.f32 %v799, 0.0
      %v832 = vmax.f32 %v800, 0.0
      %v833 = vmax.f32 %v801, 0.0
      %v834 = vmax.f32 %v802, 0.0
      %v835 = vmax.f32 %v803, 0.0
      %v836 = vpack.c.bf16 %v805, %v804
      %v837 = vpack.c.bf16 %v807, %v806
      %v838 = vpack.c.bf16 %v809, %v808
      %v839 = vpack.c.bf16 %v811, %v810
      %v840 = vpack.c.bf16 %v813, %v812
      %v841 = vpack.c.bf16 %v815, %v814
      %v842 = vpack.c.bf16 %v817, %v816
      %v843 = vpack.c.bf16 %v819, %v818
      %v844 = vpack.c.bf16 %v821, %v820
      %v845 = vpack.c.bf16 %v823, %v822
      %v846 = vpack.c.bf16 %v825, %v824
      %v847 = vpack.c.bf16 %v827, %v826
      %v848 = vpack.c.bf16 %v829, %v828
      %v849 = vpack.c.bf16 %v831, %v830
      %v850 = vpack.c.bf16 %v833, %v832
      %v851 = vpack.c.bf16 %v835, %v834
      %v852 = vld [vmem:[%s6] sm:$0xf]
      %v853 = vld [vmem:[%s6 + $0x4] sm:$0xf]
      %v854 = vld [vmem:[%s6 + $0x8] sm:$0xf]
      %v855 = vld [vmem:[%s6 + $0xc] sm:$0xf]
      %v856 = vld [vmem:[%s6 + $0x10] sm:$0xf]
      %v857 = vld [vmem:[%s6 + $0x14] sm:$0xf]
      %v858 = vld [vmem:[%s6 + $0x18] sm:$0xf]
      %v859 = vld [vmem:[%s6 + $0x1c] sm:$0xf]
      %v860 = vld [vmem:[%s6 + $0x20] sm:$0xf]
      %v861 = vld [vmem:[%s6 + $0x24] sm:$0xf]
      %v862 = vld [vmem:[%s6 + $0x28] sm:$0xf]
      %v863 = vld [vmem:[%s6 + $0x2c] sm:$0xf]
      %v864 = vld [vmem:[%s6 + $0x30] sm:$0xf]
      %v865 = vld [vmem:[%s6 + $0x34] sm:$0xf]
      %v866 = vld [vmem:[%s6 + $0x38] sm:$0xf]
      %v867 = vld [vmem:[%s6 + $0x3c] sm:$0xf]
      %v884 = vunpack.c.l.b16 %v852
      %v885 = vunpack.c.l.b16 %v853
      %v886 = vunpack.c.l.b16 %v854
      %v887 = vunpack.c.l.b16 %v855
      %v888 = vunpack.c.l.b16 %v856
      %v889 = vunpack.c.l.b16 %v857
      %v890 = vunpack.c.l.b16 %v858
      %v891 = vunpack.c.l.b16 %v859
      %v892 = vunpack.c.l.b16 %v860
      %v893 = vunpack.c.l.b16 %v861
      %v894 = vunpack.c.l.b16 %v862
      %v895 = vunpack.c.l.b16 %v863
      %v896 = vunpack.c.l.b16 %v864
      %v897 = vunpack.c.l.b16 %v865
      %v898 = vunpack.c.l.b16 %v866
      %v899 = vunpack.c.l.b16 %v867
      %v900 = vpack.c.b16 %v885, %v884
      %v901 = vpack.c.b16 %v887, %v886
      %v902 = vpack.c.b16 %v889, %v888
      %v903 = vpack.c.b16 %v891, %v890
      %v904 = vpack.c.b16 %v893, %v892
      %v905 = vpack.c.b16 %v895, %v894
      %v906 = vpack.c.b16 %v897, %v896
      %v907 = vpack.c.b16 %v899, %v898
      %916 = vmatpush.bf16.msra.mxu0 %v907
      %917 = vmatpush.bf16.msra.mxu0 %v906
      %918 = vmatpush.bf16.msra.mxu0 %v905
      %919 = vmatpush.bf16.msra.mxu0 %v904
      %920 = vmatpush.bf16.msra.mxu0 %v903
      %921 = vmatpush.bf16.msra.mxu0 %v902
      %922 = vmatpush.bf16.msra.mxu0 %v901
      %923 = vmatpush.bf16.msra.mxu0 %v900
      %924 = vmatmul.bf16.gmra.mxu0 %v836
      %v925 = vpop.f32.mrf.mxu0
      %v926 = vadd.f32 %v636, %v925
      %v927 = vpop.f32.mrf.mxu0
      %v928 = vadd.f32 %v637, %v927
      %929 = vmatmul.bf16.gmra.mxu0 %v837
      %v930 = vpop.f32.mrf.mxu0
      %v931 = vadd.f32 %v638, %v930
      %v932 = vpop.f32.mrf.mxu0
      %v933 = vadd.f32 %v639, %v932
      %934 = vmatmul.bf16.gmra.mxu0 %v838
      %v935 = vpop.f32.mrf.mxu0
      %v936 = vadd.f32 %v640, %v935
      %v937 = vpop.f32.mrf.mxu0
      %v938 = vadd.f32 %v641, %v937
      %939 = vmatmul.bf16.gmra.mxu0 %v839
      %v940 = vpop.f32.mrf.mxu0
      %v941 = vadd.f32 %v642, %v940
      %v942 = vpop.f32.mrf.mxu0
      %v943 = vadd.f32 %v643, %v942
      %944 = vmatmul.bf16.gmra.mxu0 %v840
      %v945 = vpop.f32.mrf.mxu0
      %v946 = vadd.f32 %v644, %v945
      %v947 = vpop.f32.mrf.mxu0
      %v948 = vadd.f32 %v645, %v947
      %949 = vmatmul.bf16.gmra.mxu0 %v841
      %v950 = vpop.f32.mrf.mxu0
      %v951 = vadd.f32 %v646, %v950
      %v952 = vpop.f32.mrf.mxu0
      %v953 = vadd.f32 %v647, %v952
      %954 = vmatmul.bf16.gmra.mxu0 %v842
      %v955 = vpop.f32.mrf.mxu0
      %v956 = vadd.f32 %v648, %v955
      %v957 = vpop.f32.mrf.mxu0
      %v958 = vadd.f32 %v649, %v957
      %959 = vmatmul.bf16.gmra.mxu0 %v843
      %v960 = vpop.f32.mrf.mxu0
      %v961 = vadd.f32 %v650, %v960
      %v962 = vpop.f32.mrf.mxu0
      %v963 = vadd.f32 %v651, %v962
      %964 = vmatmul.bf16.gmra.mxu0 %v844
      %v965 = vpop.f32.mrf.mxu0
      %v966 = vadd.f32 %v652, %v965
      %v967 = vpop.f32.mrf.mxu0
      %v968 = vadd.f32 %v653, %v967
      %969 = vmatmul.bf16.gmra.mxu0 %v845
      %v970 = vpop.f32.mrf.mxu0
      %v971 = vadd.f32 %v654, %v970
      %v972 = vpop.f32.mrf.mxu0
      %v973 = vadd.f32 %v655, %v972
      %974 = vmatmul.bf16.gmra.mxu0 %v846
      %v975 = vpop.f32.mrf.mxu0
      %v976 = vadd.f32 %v656, %v975
      %v977 = vpop.f32.mrf.mxu0
      %v978 = vadd.f32 %v657, %v977
      %979 = vmatmul.bf16.gmra.mxu0 %v847
      %v980 = vpop.f32.mrf.mxu0
      %v981 = vadd.f32 %v658, %v980
      %v982 = vpop.f32.mrf.mxu0
      %v983 = vadd.f32 %v659, %v982
      %984 = vmatmul.bf16.gmra.mxu0 %v848
      %v985 = vpop.f32.mrf.mxu0
      %v986 = vadd.f32 %v660, %v985
      %v987 = vpop.f32.mrf.mxu0
      %v988 = vadd.f32 %v661, %v987
      %989 = vmatmul.bf16.gmra.mxu0 %v849
      %v990 = vpop.f32.mrf.mxu0
      %v991 = vadd.f32 %v662, %v990
      %v992 = vpop.f32.mrf.mxu0
      %v993 = vadd.f32 %v663, %v992
      %994 = vmatmul.bf16.gmra.mxu0 %v850
      %v995 = vpop.f32.mrf.mxu0
      %v996 = vadd.f32 %v664, %v995
      %v997 = vpop.f32.mrf.mxu0
      %v998 = vadd.f32 %v665, %v997
      %999 = vmatmul.bf16.gmra.mxu0 %v851
      %v1000 = vpop.f32.mrf.mxu0
      %v1001 = vadd.f32 %v666, %v1000
      %v1002 = vpop.f32.mrf.mxu0
      %v1003 = vadd.f32 %v667, %v1002
      %1004 = vdwg.mxu0
      %1005 = vst [vmem:[%s329] sm:$0xff] %v926
      %1006 = vst [vmem:[%s329 + $0x8] sm:$0xff] %v928
      %1007 = vst [vmem:[%s329 + $0x10] sm:$0xff] %v931
      %1008 = vst [vmem:[%s329 + $0x18] sm:$0xff] %v933
      %1009 = vst [vmem:[%s329 + $0x20] sm:$0xff] %v936
      %1010 = vst [vmem:[%s329 + $0x28] sm:$0xff] %v938
      %1011 = vst [vmem:[%s329 + $0x30] sm:$0xff] %v941
      %1012 = vst [vmem:[%s329 + $0x38] sm:$0xff] %v943
      %1013 = vst [vmem:[%s329 + $0x40] sm:$0xff] %v946
      %1014 = vst [vmem:[%s329 + $0x48] sm:$0xff] %v948
      %1015 = vst [vmem:[%s329 + $0x50] sm:$0xff] %v951
      %1016 = vst [vmem:[%s329 + $0x58] sm:$0xff] %v953
      %1017 = vst [vmem:[%s329 + $0x60] sm:$0xff] %v956
      %1018 = vst [vmem:[%s329 + $0x68] sm:$0xff] %v958
      %1019 = vst [vmem:[%s329 + $0x70] sm:$0xff] %v961
      %1020 = vst [vmem:[%s329 + $0x78] sm:$0xff] %v963
      %1021 = vst [vmem:[%s329 + $0x80] sm:$0xff] %v966
      %1022 = vst [vmem:[%s329 + $0x88] sm:$0xff] %v968
      %1023 = vst [vmem:[%s329 + $0x90] sm:$0xff] %v971
      %1024 = vst [vmem:[%s329 + $0x98] sm:$0xff] %v973
      %1025 = vst [vmem:[%s329 + $0xa0] sm:$0xff] %v976
      %1026 = vst [vmem:[%s329 + $0xa8] sm:$0xff] %v978
      %1027 = vst [vmem:[%s329 + $0xb0] sm:$0xff] %v981
      %1028 = vst [vmem:[%s329 + $0xb8] sm:$0xff] %v983
      %1029 = vst [vmem:[%s329 + $0xc0] sm:$0xff] %v986
      %1030 = vst [vmem:[%s329 + $0xc8] sm:$0xff] %v988
      %1031 = vst [vmem:[%s329 + $0xd0] sm:$0xff] %v991
      %1032 = vst [vmem:[%s329 + $0xd8] sm:$0xff] %v993
      %1033 = vst [vmem:[%s329 + $0xe0] sm:$0xff] %v996
      %1034 = vst [vmem:[%s329 + $0xe8] sm:$0xff] %v998
      %1035 = vst [vmem:[%s329 + $0xf0] sm:$0xff] %v1001
      %1036 = vst [vmem:[%s329 + $0xf8] sm:$0xff] %v1003
      %s1037 = smul.u32 32, %s19
      %p1038 = scmp.lt.s32.totalorder %s1037, 63
      %s1039 = scalar_select %p1038, %s1037, 63
      %s1040 = smul.addr %s1039, 8
      %s1041 = scalar_lea.vmem %s8, %s1040
      // Predicated region
      $region53: #{_lambda_.7} parent=51 // pred_check
        %p1042 = pneg %p215
      $region54: #{_lambda_.7} parent=51 // pred_check_branch
        %1044 = sbr.rel (%p1042) target = $region56
      $region55: #{_lambda_.7} parent=51 // pred_region
        %s1045 = smul.u32 32, %s19
      $region56: #{_lambda_.7} parent=51 // pred_fallthru
        _
    $region52: #{_lambda_.7} parent=5 // pred_fallthru
      _
    %p1046 = scmp.le.s32.totalorder 2, %s14
    // Predicated region
    $region57: #{_lambda_.7} parent=5 // pred_check
      %p1047 = pneg %p1046
    $region58: #{_lambda_.7} parent=5 // pred_check_branch
      %1049 = sbr.rel (%p1047) target = $region60
    $region59: #{_lambda_.7} parent=5 // pred_region
      %s1050 = ssub.s32 %s14, 2
      // Predicated region
      $region61: #{_lambda_.7} parent=59 // pred_check
        %p1051 = pneg %p221
      $region62: #{_lambda_.7} parent=59 // pred_check_branch
        %1053 = sbr.rel (%p1051) target = $region64
      $region63: #{_lambda_.7} parent=59 // pred_region
        %s1054 = smul.u32 32, %s20
        %p1055 = scmp.lt.s32.totalorder %s1054, 63
        %s1056 = scalar_select %p1055, %s1054, 63
        %s1057 = smul.addr %s1056, 8
        %s1058 = scalar_lea.vmem %s8, %s1057
      $region64: #{_lambda_.7} parent=59 // pred_fallthru
        _
    $region60: #{_lambda_.7} parent=5 // pred_fallthru
      _
  $region6: #{_lambda_.7} parent=0 // loop_footer
    %s18 = sadd.s32 1, %s14
  $region7: #{_lambda_.7} parent=0 // loop_footer_branch
    %13 = sbr.rel target = $region3
  $region8: #{_lambda_.7} parent=0 // loop_exit
    _

// kernel: _lambda_.6
$region0: #{_lambda_.6}
  #allocation0 [shape = 'u32[]', space=smem, size = 0x4, offset = 0x4, fixed_abs, tag = 'smem constant byte address 0x4 - core index']
  #allocation1 [shape = 'u32[72,128]{1,0:T(1,128)}', space=vmem, size = 0x9000, scoped, tag = 'internal scratch']
  #allocation2 [shape = 'f32[304,128]{1,0:T(8,128)}', space=vmem, size = 0x26000, scoped, tag = 'scratch operand']
  %s0 = inlined_call_operand.vmem [shape: bf16[512,128], index: 0, kind: input, shape index: {}]
  %s1 = inlined_call_operand.vmem [shape: f32[1,128], index: 1, kind: input, shape index: {}]
  %s2 = inlined_call_operand.vmem [shape: f32[1,128], index: 2, kind: input, shape index: {}]
  %s3 = inlined_call_operand.vmem [shape: bf16[9,128,128], index: 3, kind: input, shape index: {}]
  %s4 = inlined_call_operand.vmem [shape: bf16[512,128], index: 4, kind: output, shape index: {0}]
  %s5 = inlined_call_operand.vmem [shape: f32[1,128], index: 5, kind: output, shape index: {1}]
  %s6 = inlined_call_operand.vmem [shape: f32[1,128], index: 6, kind: output, shape index: {2}]
  %7 = xla_tuple %s4, %s5, %s6
  %s8 = sld [smem:[#allocation0]]
  $region69: #{_lambda_.6} parent=0
    _
  %s10 = ssub.s32 1, %s8
  %s11 = scalar_select 0, %s10, %s8
  loop: start=0, step=1, limit=4
  $region2: #{_lambda_.6} parent=0 // loop_pre_header
    _
  $region3: #{_lambda_.6} parent=0 // loop_header
    %s13 = sphi 0, %s17
    %p14 = scmp.ge.s32.totalorder %s13, 4
    %s23 = sphi 0, %s25
    %s26 = sphi 0, %s23
    %s27 = sphi 0, %s26
    %s43 = sphi 0, %s27
    %s47 = sphi 0, %s47
    %s49 = sphi 0, %s47
    %s50 = sphi 0, %s49
    %s64 = sphi 0, %s50
    %s68 = sphi 0, %s68
    %s70 = sphi 0, %s68
    %s71 = sphi 0, %s70
    %s85 = sphi 0, %s71
    %s89 = sphi 0, %s89
    %s91 = sphi 0, %s89
    %s92 = sphi 0, %s91
    %s106 = sphi 0, %s92
    %s112 = sphi 0, %s114
    %s115 = sphi 0, %s112
    %s116 = sphi 0, %s115
    %s132 = sphi 0, %s116
    %s136 = sphi 0, %s136
    %s138 = sphi 0, %s136
    %s139 = sphi 0, %s138
    %s153 = sphi 0, %s139
    %s157 = sphi 0, %s157
    %s159 = sphi 0, %s157
    %s160 = sphi 0, %s159
    %s174 = sphi 0, %s160
  $region4: #{_lambda_.6} parent=0 // loop_header_branch
    %16 = sbr.rel (%p14) target = $region8
  $region5: #{_lambda_.6} parent=0 // loop_body
    %s18 = ssub.s32 %s13, 1
    %s19 = ssub.s32 %s13, 2
    %s20 = sadd.s32 %s13, 1
    %s21 = ssub.s32 %s13, %s20
    %p22 = scmp.eq.s32.totalorder %s21, 0
    %s24 = sadd.s32 %s23, 1
    %s25 = scalar_select %p22, %s23, %s24
    %p28 = pneg %p22
    %p29 = scmp.eq.s32.totalorder %s13, 1
    %p30 = por %p28, %p29
    %p31 = scmp.ne.s32.totalorder %s23, %s26
    %p32 = scmp.eq.s32.totalorder %s13, 0
    %p33 = por %p31, %p32
    %p34 = scmp.ne.s32.totalorder %s23, %s26
    %p35 = scmp.eq.s32.totalorder %s18, 1
    %p36 = por %p34, %p35
    %p37 = scmp.ne.s32.totalorder %s26, %s27
    %p38 = scmp.eq.s32.totalorder %s18, 0
    %p39 = por %p37, %p38
    %p40 = scmp.ne.s32.totalorder %s26, %s27
    %p41 = scmp.eq.s32.totalorder %s19, 1
    %p42 = por %p40, %p41
    %p44 = scmp.ne.s32.totalorder %s27, %s43
    %p45 = scmp.eq.s32.totalorder %s19, 0
    %p46 = por %p44, %p45
    %s48 = sadd.s32 %s47, 1
    %p51 = scmp.eq.s32.totalorder %s13, 1
    %p52 = scmp.ne.s32.totalorder %s47, %s49
    %p53 = scmp.eq.s32.totalorder %s13, 0
    %p54 = por %p52, %p53
    %p55 = scmp.ne.s32.totalorder %s47, %s49
    %p56 = scmp.eq.s32.totalorder %s18, 1
    %p57 = por %p55, %p56
    %p58 = scmp.ne.s32.totalorder %s49, %s50
    %p59 = scmp.eq.s32.totalorder %s18, 0
    %p60 = por %p58, %p59
    %p61 = scmp.ne.s32.totalorder %s49, %s50
    %p62 = scmp.eq.s32.totalorder %s19, 1
    %p63 = por %p61, %p62
    %p65 = scmp.ne.s32.totalorder %s50, %s64
    %p66 = scmp.eq.s32.totalorder %s19, 0
    %p67 = por %p65, %p66
    %s69 = sadd.s32 %s68, 1
    %p72 = scmp.eq.s32.totalorder %s13, 1
    %p73 = scmp.ne.s32.totalorder %s68, %s70
    %p74 = scmp.eq.s32.totalorder %s13, 0
    %p75 = por %p73, %p74
    %p76 = scmp.ne.s32.totalorder %s68, %s70
    %p77 = scmp.eq.s32.totalorder %s18, 1
    %p78 = por %p76, %p77
    %p79 = scmp.ne.s32.totalorder %s70, %s71
    %p80 = scmp.eq.s32.totalorder %s18, 0
    %p81 = por %p79, %p80
    %p82 = scmp.ne.s32.totalorder %s70, %s71
    %p83 = scmp.eq.s32.totalorder %s19, 1
    %p84 = por %p82, %p83
    %p86 = scmp.ne.s32.totalorder %s71, %s85
    %p87 = scmp.eq.s32.totalorder %s19, 0
    %p88 = por %p86, %p87
    %s90 = sadd.s32 %s89, 1
    %p93 = scmp.eq.s32.totalorder %s13, 1
    %p94 = scmp.ne.s32.totalorder %s89, %s91
    %p95 = scmp.eq.s32.totalorder %s13, 0
    %p96 = por %p94, %p95
    %p97 = scmp.ne.s32.totalorder %s89, %s91
    %p98 = scmp.eq.s32.totalorder %s18, 1
    %p99 = por %p97, %p98
    %p100 = scmp.ne.s32.totalorder %s91, %s92
    %p101 = scmp.eq.s32.totalorder %s18, 0
    %p102 = por %p100, %p101
    %p103 = scmp.ne.s32.totalorder %s91, %s92
    %p104 = scmp.eq.s32.totalorder %s19, 1
    %p105 = por %p103, %p104
    %p107 = scmp.ne.s32.totalorder %s92, %s106
    %p108 = scmp.eq.s32.totalorder %s19, 0
    %p109 = por %p107, %p108
    %s110 = ssub.s32 %s13, %s20
    %p111 = scmp.eq.s32.totalorder %s110, 0
    %s113 = sadd.s32 %s112, 1
    %s114 = scalar_select %p111, %s112, %s113
    %p117 = pneg %p111
    %p118 = scmp.eq.s32.totalorder %s13, 1
    %p119 = por %p117, %p118
    %p120 = scmp.ne.s32.totalorder %s112, %s115
    %p121 = scmp.eq.s32.totalorder %s13, 0
    %p122 = por %p120, %p121
    %p123 = scmp.ne.s32.totalorder %s112, %s115
    %p124 = scmp.eq.s32.totalorder %s18, 1
    %p125 = por %p123, %p124
    %p126 = scmp.ne.s32.totalorder %s115, %s116
    %p127 = scmp.eq.s32.totalorder %s18, 0
    %p128 = por %p126, %p127
    %p129 = scmp.ne.s32.totalorder %s115, %s116
    %p130 = scmp.eq.s32.totalorder %s19, 1
    %p131 = por %p129, %p130
    %p133 = scmp.ne.s32.totalorder %s116, %s132
    %p134 = scmp.eq.s32.totalorder %s19, 0
    %p135 = por %p133, %p134
    %s137 = sadd.s32 %s136, 1
    %p140 = scmp.eq.s32.totalorder %s13, 1
    %p141 = scmp.ne.s32.totalorder %s136, %s138
    %p142 = scmp.eq.s32.totalorder %s13, 0
    %p143 = por %p141, %p142
    %p144 = scmp.ne.s32.totalorder %s136, %s138
    %p145 = scmp.eq.s32.totalorder %s18, 1
    %p146 = por %p144, %p145
    %p147 = scmp.ne.s32.totalorder %s138, %s139
    %p148 = scmp.eq.s32.totalorder %s18, 0
    %p149 = por %p147, %p148
    %p150 = scmp.ne.s32.totalorder %s138, %s139
    %p151 = scmp.eq.s32.totalorder %s19, 1
    %p152 = por %p150, %p151
    %p154 = scmp.ne.s32.totalorder %s139, %s153
    %p155 = scmp.eq.s32.totalorder %s19, 0
    %p156 = por %p154, %p155
    %s158 = sadd.s32 %s157, 1
    %p161 = scmp.eq.s32.totalorder %s13, 1
    %p162 = scmp.ne.s32.totalorder %s157, %s159
    %p163 = scmp.eq.s32.totalorder %s13, 0
    %p164 = por %p162, %p163
    %p165 = scmp.ne.s32.totalorder %s157, %s159
    %p166 = scmp.eq.s32.totalorder %s18, 1
    %p167 = por %p165, %p166
    %p168 = scmp.ne.s32.totalorder %s159, %s160
    %p169 = scmp.eq.s32.totalorder %s18, 0
    %p170 = por %p168, %p169
    %p171 = scmp.ne.s32.totalorder %s159, %s160
    %p172 = scmp.eq.s32.totalorder %s19, 1
    %p173 = por %p171, %p172
    %p175 = scmp.ne.s32.totalorder %s160, %s174
    %p176 = scmp.eq.s32.totalorder %s19, 0
    %p177 = por %p175, %p176
    %p178 = scmp.le.s32.totalorder 1, %s13
    %p179 = scmp.lt.s32.totalorder %s13, 3
    %p180 = pnand %p178, %p179
    %p181 = pneg %p180
    // Predicated region
    $region9: #{_lambda_.6} parent=5 // pred_check
      _
    $region10: #{_lambda_.6} parent=5 // pred_check_branch
      %183 = sbr.rel (%p180) target = $region12
    $region11: #{_lambda_.6} parent=5 // pred_region
      %s184 = ssub.s32 %s13, 1
      // Predicated region
      $region13: #{_lambda_.6} parent=11 // pred_check
        %p185 = pneg %p60
      $region14: #{_lambda_.6} parent=11 // pred_check_branch
        %187 = sbr.rel (%p185) target = $region16
      $region15: #{_lambda_.6} parent=11 // pred_region
        _
      $region16: #{_lambda_.6} parent=11 // pred_fallthru
        _
      // Predicated region
      $region17: #{_lambda_.6} parent=11 // pred_check
        %p188 = pneg %p81
      $region18: #{_lambda_.6} parent=11 // pred_check_branch
        %190 = sbr.rel (%p188) target = $region20
      $region19: #{_lambda_.6} parent=11 // pred_region
        _
      $region20: #{_lambda_.6} parent=11 // pred_fallthru
        _
      // Predicated region
      $region21: #{_lambda_.6} parent=11 // pred_check
        %p191 = pneg %p102
      $region22: #{_lambda_.6} parent=11 // pred_check_branch
        %193 = sbr.rel (%p191) target = $region24
      $region23: #{_lambda_.6} parent=11 // pred_region
        _
      $region24: #{_lambda_.6} parent=11 // pred_fallthru
        _
    $region12: #{_lambda_.6} parent=5 // pred_fallthru
      _
    %p194 = scmp.lt.s32.totalorder %s13, 2
    // Predicated region
    $region25: #{_lambda_.6} parent=5 // pred_check
      %p195 = pneg %p194
    $region26: #{_lambda_.6} parent=5 // pred_check_branch
      %197 = sbr.rel (%p195) target = $region28
    $region27: #{_lambda_.6} parent=5 // pred_region
      // Predicated region
      $region29: #{_lambda_.6} parent=27 // pred_check
        %p198 = pneg %p33
      $region30: #{_lambda_.6} parent=27 // pred_check_branch
        %200 = sbr.rel (%p198) target = $region32
      $region31: #{_lambda_.6} parent=27 // pred_region
        %s201 = smul.u32 32, %s13
        %p202 = scmp.lt.s32.totalorder %s201, 63
        %s203 = scalar_select %p202, %s201, 63
        %s204 = smul.addr %s203, 4
        %s205 = scalar_lea.vmem %s0, %s204
        %s206 = smul.u32 32, %s13
      $region32: #{_lambda_.6} parent=27 // pred_fallthru
        _
    $region28: #{_lambda_.6} parent=5 // pred_fallthru
      _
    %p207 = scmp.le.s32.totalorder 1, %s13
    %p208 = scmp.lt.s32.totalorder %s13, 3
    %p209 = pnand %p207, %p208
    %p210 = pneg %p209
    // Predicated region
    $region33: #{_lambda_.6} parent=5 // pred_check
      _
    $region34: #{_lambda_.6} parent=5 // pred_check_branch
      %212 = sbr.rel (%p209) target = $region36
    $region35: #{_lambda_.6} parent=5 // pred_region
      %s213 = ssub.s32 %s13, 1
      %s214 = smul.u32 32, %s18
      %p215 = scmp.lt.s32.totalorder %s214, 63
      %s216 = scalar_select %p215, %s214, 63
      %s217 = smul.addr %s216, 4
      %s218 = scalar_lea.vmem %s0, %s217
      %p219 = pneg %p39
      %p220 = pneg %p36
      %p221 = pneg %p60
      %p222 = pneg %p57
      %p223 = pneg %p81
      %p224 = pneg %p78
      %p225 = pneg %p102
      %p226 = pneg %p99
      %p227 = pneg %p128
      %p228 = pneg %p125
      %s229 = smul.u32 32, %s18
      %p230 = scmp.lt.s32.totalorder %s229, 63
      %s231 = scalar_select %p230, %s229, 63
      %s232 = smul.addr %s231, 4
      %s233 = scalar_lea.vmem %s4, %s232
      %p234 = pneg %p149
      %p235 = pneg %p146
      %p236 = pneg %p170
      %p237 = pneg %p167
      %s238 = smul.u32 32, %s18
      %p239 = scmp.lt.s32.totalorder %s238, 63
      %s240 = scalar_select %p239, %s238, 63
      %s241 = smul.addr %s240, 4
      %s242 = scalar_lea.vmem %s0, %s241
      %s243 = smul.u32 32, %s18
      %s244 = smul.u32 32, %s18
      %p245 = scmp.lt.s32.totalorder %s244, 63
      %s246 = scalar_select %p245, %s244, 63
      %s247 = smul.addr %s246, 4
      %s248 = scalar_lea.vmem %s4, %s247
      %s249 = smul.u32 32, %s18
      %p250 = scmp.eq.s32.totalorder %s18, 0
      // Predicated region
      $region37: #{_lambda_.6} parent=35 // pred_check
        %p251 = pneg %p250
      $region38: #{_lambda_.6} parent=35 // pred_check_branch
        %253 = sbr.rel (%p251) target = $region40
      $region39: #{_lambda_.6} parent=35 // pred_region
        %254 = vst [vmem:[#allocation2] sm:$0xff] 0.0
        %255 = vst [vmem:[#allocation2 + $0x8] sm:$0xff] 0.0
        %256 = vst [vmem:[#allocation2 + $0x10] sm:$0xff] 0.0
        %257 = vst [vmem:[#allocation2 + $0x18] sm:$0xff] 0.0
        %258 = vst [vmem:[#allocation2 + $0x20] sm:$0xff] 0.0
        %259 = vst [vmem:[#allocation2 + $0x28] sm:$0xff] 0.0
        %260 = vst [vmem:[#allocation2 + $0x30] sm:$0xff] 0.0
        %261 = vst [vmem:[#allocation2 + $0x38] sm:$0xff] 0.0
        %262 = vst [vmem:[#allocation2 + $0x40] sm:$0xff] 0.0
        %263 = vst [vmem:[#allocation2 + $0x48] sm:$0xff] 0.0
        %264 = vst [vmem:[#allocation2 + $0x50] sm:$0xff] 0.0
        %265 = vst [vmem:[#allocation2 + $0x58] sm:$0xff] 0.0
        %266 = vst [vmem:[#allocation2 + $0x60] sm:$0xff] 0.0
        %267 = vst [vmem:[#allocation2 + $0x68] sm:$0xff] 0.0
        %268 = vst [vmem:[#allocation2 + $0x70] sm:$0xff] 0.0
        %269 = vst [vmem:[#allocation2 + $0x78] sm:$0xff] 0.0
        %270 = vst [vmem:[#allocation2 + $0x80] sm:$0xff] 0.0
        %271 = vst [vmem:[#allocation2 + $0x88] sm:$0xff] 0.0
        %272 = vst [vmem:[#allocation2 + $0x90] sm:$0xff] 0.0
        %273 = vst [vmem:[#allocation2 + $0x98] sm:$0xff] 0.0
        %274 = vst [vmem:[#allocation2 + $0xa0] sm:$0xff] 0.0
        %275 = vst [vmem:[#allocation2 + $0xa8] sm:$0xff] 0.0
        %276 = vst [vmem:[#allocation2 + $0xb0] sm:$0xff] 0.0
        %277 = vst [vmem:[#allocation2 + $0xb8] sm:$0xff] 0.0
        %278 = vst [vmem:[#allocation2 + $0xc0] sm:$0xff] 0.0
        %279 = vst [vmem:[#allocation2 + $0xc8] sm:$0xff] 0.0
        %280 = vst [vmem:[#allocation2 + $0xd0] sm:$0xff] 0.0
        %281 = vst [vmem:[#allocation2 + $0xd8] sm:$0xff] 0.0
        %282 = vst [vmem:[#allocation2 + $0xe0] sm:$0xff] 0.0
        %283 = vst [vmem:[#allocation2 + $0xe8] sm:$0xff] 0.0
        %284 = vst [vmem:[#allocation2 + $0xf0] sm:$0xff] 0.0
        %285 = vst [vmem:[#allocation2 + $0xf8] sm:$0xff] 0.0
        %286 = vst [vmem:[#allocation2 + $0x100] sm:$0xff] 0.0
        %287 = vst [vmem:[#allocation2 + $0x108] sm:$0xff] 0.0
        %288 = vst [vmem:[#allocation2 + $0x110] sm:$0xff] 0.0
        %289 = vst [vmem:[#allocation2 + $0x118] sm:$0xff] 0.0
        %290 = vst [vmem:[#allocation2 + $0x120] sm:$0xff] 0.0
        %291 = vst [vmem:[#allocation2 + $0x128] sm:$0xff] 0.0
        %292 = vst [vmem:[%s5] sm:$0x1] 0.0
        %293 = vst [vmem:[%s6] sm:$0x1] 0.0
      $region40: #{_lambda_.6} parent=35 // pred_fallthru
        _
      %v294 = vld [vmem:[%s242] sm:$0xf]
      %v295 = vld [vmem:[%s242 + $0x4] sm:$0xf]
      %v296 = vld [vmem:[%s242 + $0x8] sm:$0xf]
      %v297 = vld [vmem:[%s242 + $0xc] sm:$0xf]
      %v298 = vld [vmem:[%s242 + $0x10] sm:$0xf]
      %v299 = vld [vmem:[%s242 + $0x14] sm:$0xf]
      %v300 = vld [vmem:[%s242 + $0x18] sm:$0xf]
      %v301 = vld [vmem:[%s242 + $0x1c] sm:$0xf]
      %v302 = vld [vmem:[%s242 + $0x20] sm:$0xf]
      %v303 = vld [vmem:[%s242 + $0x24] sm:$0xf]
      %v304 = vld [vmem:[%s242 + $0x28] sm:$0xf]
      %v305 = vld [vmem:[%s242 + $0x2c] sm:$0xf]
      %v306 = vld [vmem:[%s242 + $0x30] sm:$0xf]
      %v307 = vld [vmem:[%s242 + $0x34] sm:$0xf]
      %v308 = vld [vmem:[%s242 + $0x38] sm:$0xf]
      %v309 = vld [vmem:[%s242 + $0x3c] sm:$0xf]
      %v310 = vld [vmem:[%s242 + $0x40] sm:$0xf]
      %v311 = vld [vmem:[%s242 + $0x44] sm:$0xf]
      %v312 = vld [vmem:[%s242 + $0x48] sm:$0xf]
      %v313 = vld [vmem:[%s242 + $0x4c] sm:$0xf]
      %v314 = vld [vmem:[%s242 + $0x50] sm:$0xf]
      %v315 = vld [vmem:[%s242 + $0x54] sm:$0xf]
      %v316 = vld [vmem:[%s242 + $0x58] sm:$0xf]
      %v317 = vld [vmem:[%s242 + $0x5c] sm:$0xf]
      %v318 = vld [vmem:[%s242 + $0x60] sm:$0xf]
      %v319 = vld [vmem:[%s242 + $0x64] sm:$0xf]
      %v320 = vld [vmem:[%s242 + $0x68] sm:$0xf]
      %v321 = vld [vmem:[%s242 + $0x6c] sm:$0xf]
      %v322 = vld [vmem:[%s242 + $0x70] sm:$0xf]
      %v323 = vld [vmem:[%s242 + $0x74] sm:$0xf]
      %v324 = vld [vmem:[%s242 + $0x78] sm:$0xf]
      %v325 = vld [vmem:[%s242 + $0x7c] sm:$0xf]
      %v326 = vunpack.c.l.bf16 %v294
      %v327 = vunpack.c.l.bf16 %v295
      %v328 = vunpack.c.l.bf16 %v296
      %v329 = vunpack.c.l.bf16 %v297
      %v330 = vunpack.c.l.bf16 %v298
      %v331 = vunpack.c.l.bf16 %v299
      %v332 = vunpack.c.l.bf16 %v300
      %v333 = vunpack.c.l.bf16 %v301
      %v334 = vunpack.c.l.bf16 %v302
      %v335 = vunpack.c.l.bf16 %v303
      %v336 = vunpack.c.l.bf16 %v304
      %v337 = vunpack.c.l.bf16 %v305
      %v338 = vunpack.c.l.bf16 %v306
      %v339 = vunpack.c.l.bf16 %v307
      %v340 = vunpack.c.l.bf16 %v308
      %v341 = vunpack.c.l.bf16 %v309
      %v342 = vunpack.c.l.bf16 %v310
      %v343 = vunpack.c.l.bf16 %v311
      %v344 = vunpack.c.l.bf16 %v312
      %v345 = vunpack.c.l.bf16 %v313
      %v346 = vunpack.c.l.bf16 %v314
      %v347 = vunpack.c.l.bf16 %v315
      %v348 = vunpack.c.l.bf16 %v316
      %v349 = vunpack.c.l.bf16 %v317
      %v350 = vunpack.c.l.bf16 %v318
      %v351 = vunpack.c.l.bf16 %v319
      %v352 = vunpack.c.l.bf16 %v320
      %v353 = vunpack.c.l.bf16 %v321
      %v354 = vunpack.c.l.bf16 %v322
      %v355 = vunpack.c.l.bf16 %v323
      %v356 = vunpack.c.l.bf16 %v324
      %v357 = vunpack.c.l.bf16 %v325
      %v358 = vld [vmem:[%s1] sm:$0x1]
      %v360 = vperm.slane %v358, 0
      %v362 = vmul.f32 %v326, %v360
      %v363 = vmul.f32 %v327, %v360
      %v364 = vmul.f32 %v328, %v360
      %v365 = vmul.f32 %v329, %v360
      %v366 = vmul.f32 %v330, %v360
      %v367 = vmul.f32 %v331, %v360
      %v368 = vmul.f32 %v332, %v360
      %v369 = vmul.f32 %v333, %v360
      %v370 = vmul.f32 %v334, %v360
      %v371 = vmul.f32 %v335, %v360
      %v372 = vmul.f32 %v336, %v360
      %v373 = vmul.f32 %v337, %v360
      %v374 = vmul.f32 %v338, %v360
      %v375 = vmul.f32 %v339, %v360
      %v376 = vmul.f32 %v340, %v360
      %v377 = vmul.f32 %v341, %v360
      %v378 = vmul.f32 %v342, %v360
      %v379 = vmul.f32 %v343, %v360
      %v380 = vmul.f32 %v344, %v360
      %v381 = vmul.f32 %v345, %v360
      %v382 = vmul.f32 %v346, %v360
      %v383 = vmul.f32 %v347, %v360
      %v384 = vmul.f32 %v348, %v360
      %v385 = vmul.f32 %v349, %v360
      %v386 = vmul.f32 %v350, %v360
      %v387 = vmul.f32 %v351, %v360
      %v388 = vmul.f32 %v352, %v360
      %v389 = vmul.f32 %v353, %v360
      %v390 = vmul.f32 %v354, %v360
      %v391 = vmul.f32 %v355, %v360
      %v392 = vmul.f32 %v356, %v360
      %v393 = vmul.f32 %v357, %v360
      %v394 = vld [vmem:[%s2] sm:$0x1]
      %v396 = vperm.slane %v394, 0
      %v398 = vadd.f32 %v362, %v396
      %v399 = vadd.f32 %v363, %v396
      %v400 = vadd.f32 %v364, %v396
      %v401 = vadd.f32 %v365, %v396
      %v402 = vadd.f32 %v366, %v396
      %v403 = vadd.f32 %v367, %v396
      %v404 = vadd.f32 %v368, %v396
      %v405 = vadd.f32 %v369, %v396
      %v406 = vadd.f32 %v370, %v396
      %v407 = vadd.f32 %v371, %v396
      %v408 = vadd.f32 %v372, %v396
      %v409 = vadd.f32 %v373, %v396
      %v410 = vadd.f32 %v374, %v396
      %v411 = vadd.f32 %v375, %v396
      %v412 = vadd.f32 %v376, %v396
      %v413 = vadd.f32 %v377, %v396
      %v414 = vadd.f32 %v378, %v396
      %v415 = vadd.f32 %v379, %v396
      %v416 = vadd.f32 %v380, %v396
      %v417 = vadd.f32 %v381, %v396
      %v418 = vadd.f32 %v382, %v396
      %v419 = vadd.f32 %v383, %v396
      %v420 = vadd.f32 %v384, %v396
      %v421 = vadd.f32 %v385, %v396
      %v422 = vadd.f32 %v386, %v396
      %v423 = vadd.f32 %v387, %v396
      %v424 = vadd.f32 %v388, %v396
      %v425 = vadd.f32 %v389, %v396
      %v426 = vadd.f32 %v390, %v396
      %v427 = vadd.f32 %v391, %v396
      %v428 = vadd.f32 %v392, %v396
      %v429 = vadd.f32 %v393, %v396
      %v430 = vmax.f32 %v398, 0.0
      %v431 = vmax.f32 %v399, 0.0
      %v432 = vmax.f32 %v400, 0.0
      %v433 = vmax.f32 %v401, 0.0
      %v434 = vmax.f32 %v402, 0.0
      %v435 = vmax.f32 %v403, 0.0
      %v436 = vmax.f32 %v404, 0.0
      %v437 = vmax.f32 %v405, 0.0
      %v438 = vmax.f32 %v406, 0.0
      %v439 = vmax.f32 %v407, 0.0
      %v440 = vmax.f32 %v408, 0.0
      %v441 = vmax.f32 %v409, 0.0
      %v442 = vmax.f32 %v410, 0.0
      %v443 = vmax.f32 %v411, 0.0
      %v444 = vmax.f32 %v412, 0.0
      %v445 = vmax.f32 %v413, 0.0
      %v446 = vmax.f32 %v414, 0.0
      %v447 = vmax.f32 %v415, 0.0
      %v448 = vmax.f32 %v416, 0.0
      %v449 = vmax.f32 %v417, 0.0
      %v450 = vmax.f32 %v418, 0.0
      %v451 = vmax.f32 %v419, 0.0
      %v452 = vmax.f32 %v420, 0.0
      %v453 = vmax.f32 %v421, 0.0
      %v454 = vmax.f32 %v422, 0.0
      %v455 = vmax.f32 %v423, 0.0
      %v456 = vmax.f32 %v424, 0.0
      %v457 = vmax.f32 %v425, 0.0
      %v458 = vmax.f32 %v426, 0.0
      %v459 = vmax.f32 %v427, 0.0
      %v460 = vmax.f32 %v428, 0.0
      %v461 = vmax.f32 %v429, 0.0
      %462 = vst [vmem:[#allocation2 + $0x18] sm:$0xff] %v430
      %463 = vst [vmem:[#allocation2 + $0x20] sm:$0xff] %v431
      %464 = vst [vmem:[#allocation2 + $0x28] sm:$0xff] %v432
      %465 = vst [vmem:[#allocation2 + $0x30] sm:$0xff] %v433
      %466 = vst [vmem:[#allocation2 + $0x38] sm:$0xff] %v434
      %467 = vst [vmem:[#allocation2 + $0x40] sm:$0xff] %v435
      %468 = vst [vmem:[#allocation2 + $0x48] sm:$0xff] %v436
      %469 = vst [vmem:[#allocation2 + $0x50] sm:$0xff] %v437
      %470 = vst [vmem:[#allocation2 + $0x58] sm:$0xff] %v438
      %471 = vst [vmem:[#allocation2 + $0x60] sm:$0xff] %v439
      %472 = vst [vmem:[#allocation2 + $0x68] sm:$0xff] %v440
      %473 = vst [vmem:[#allocation2 + $0x70] sm:$0xff] %v441
      %474 = vst [vmem:[#allocation2 + $0x78] sm:$0xff] %v442
      %475 = vst [vmem:[#allocation2 + $0x80] sm:$0xff] %v443
      %476 = vst [vmem:[#allocation2 + $0x88] sm:$0xff] %v444
      %477 = vst [vmem:[#allocation2 + $0x90] sm:$0xff] %v445
      %478 = vst [vmem:[#allocation2 + $0x98] sm:$0xff] %v446
      %479 = vst [vmem:[#allocation2 + $0xa0] sm:$0xff] %v447
      %480 = vst [vmem:[#allocation2 + $0xa8] sm:$0xff] %v448
      %481 = vst [vmem:[#allocation2 + $0xb0] sm:$0xff] %v449
      %482 = vst [vmem:[#allocation2 + $0xb8] sm:$0xff] %v450
      %483 = vst [vmem:[#allocation2 + $0xc0] sm:$0xff] %v451
      %484 = vst [vmem:[#allocation2 + $0xc8] sm:$0xff] %v452
      %485 = vst [vmem:[#allocation2 + $0xd0] sm:$0xff] %v453
      %486 = vst [vmem:[#allocation2 + $0xd8] sm:$0xff] %v454
      %487 = vst [vmem:[#allocation2 + $0xe0] sm:$0xff] %v455
      %488 = vst [vmem:[#allocation2 + $0xe8] sm:$0xff] %v456
      %489 = vst [vmem:[#allocation2 + $0xf0] sm:$0xff] %v457
      %490 = vst [vmem:[#allocation2 + $0xf8] sm:$0xff] %v458
      %491 = vst [vmem:[#allocation2 + $0x100] sm:$0xff] %v459
      %492 = vst [vmem:[#allocation2 + $0x108] sm:$0xff] %v460
      %493 = vst [vmem:[#allocation2 + $0x110] sm:$0xff] %v461
      %v494 = vlaneseq
      %v495 = vshrl.u32 %v494, 7
      %v496 = vadd.s32 %v495, 8
      %v497 = vadd.s32 %v495, 16
      %v498 = vadd.s32 %v495, 24
      %v499 = vadd.s32 %v495, 32
      %v500 = vadd.s32 %v495, 40
      %v501 = vadd.s32 %v495, 48
      %v502 = vadd.s32 %v495, 56
      %v503 = vadd.s32 %v495, 64
      %v504 = vadd.s32 %v495, 72
      %v505 = vadd.s32 %v495, 80
      %v506 = vadd.s32 %v495, 88
      %v507 = vadd.s32 %v495, 96
      %v508 = vadd.s32 %v495, 104
      %v509 = vadd.s32 %v495, 112
      %v510 = vadd.s32 %v495, 120
      %v511 = vadd.s32 %v495, 128
      %v512 = vadd.s32 %v495, 136
      %v513 = vadd.s32 %v495, 144
      %v514 = vadd.s32 %v495, 152
      %v515 = vadd.s32 %v495, 160
      %v516 = vadd.s32 %v495, 168
      %v517 = vadd.s32 %v495, 176
      %v518 = vadd.s32 %v495, 184
      %v519 = vadd.s32 %v495, 192
      %v520 = vadd.s32 %v495, 200
      %v521 = vadd.s32 %v495, 208
      %v522 = vadd.s32 %v495, 216
      %v523 = vadd.s32 %v495, 224
      %v524 = vadd.s32 %v495, 232
      %v525 = vadd.s32 %v495, 240
      %v526 = vadd.s32 %v495, 248
      %vm527 = vcmp.lt.s32.totalorder %v495, 0
      %v528 = vsub.s32 0, %v495
      %v529 = vsel %vm527, %v528, %v495
      %v530 = vshrl.u32 %v529, 4
      %v531 = vand.u32 %v529, 15
      %v532 = vsub.s32 0, %v531
      %v533 = vsel %vm527, %v532, %v531
      %vm534 = vcmp.lt.s32.totalorder %v496, 0
      %v535 = vsub.s32 0, %v496
      %v536 = vsel %vm534, %v535, %v496
      %v537 = vshrl.u32 %v536, 4
      %v538 = vand.u32 %v536, 15
      %v539 = vsub.s32 0, %v538
      %v540 = vsel %vm534, %v539, %v538
      %vm541 = vcmp.lt.s32.totalorder %v497, 0
      %v542 = vsub.s32 0, %v497
      %v543 = vsel %vm541, %v542, %v497
      %v544 = vshrl.u32 %v543, 4
      %v545 = vand.u32 %v543, 15
      %v546 = vsub.s32 0, %v545
      %v547 = vsel %vm541, %v546, %v545
      %vm548 = vcmp.lt.s32.totalorder %v498, 0
      %v549 = vsub.s32 0, %v498
      %v550 = vsel %vm548, %v549, %v498
      %v551 = vshrl.u32 %v550, 4
      %v552 = vand.u32 %v550, 15
      %v553 = vsub.s32 0, %v552
      %v554 = vsel %vm548, %v553, %v552
      %vm555 = vcmp.lt.s32.totalorder %v499, 0
      %v556 = vsub.s32 0, %v499
      %v557 = vsel %vm555, %v556, %v499
      %v558 = vshrl.u32 %v557, 4
      %v559 = vand.u32 %v557, 15
      %v560 = vsub.s32 0, %v559
      %v561 = vsel %vm555, %v560, %v559
      %vm562 = vcmp.lt.s32.totalorder %v500, 0
      %v563 = vsub.s32 0, %v500
      %v564 = vsel %vm562, %v563, %v500
      %v565 = vshrl.u32 %v564, 4
      %v566 = vand.u32 %v564, 15
      %v567 = vsub.s32 0, %v566
      %v568 = vsel %vm562, %v567, %v566
      %vm569 = vcmp.lt.s32.totalorder %v501, 0
      %v570 = vsub.s32 0, %v501
      %v571 = vsel %vm569, %v570, %v501
      %v572 = vshrl.u32 %v571, 4
      %v573 = vand.u32 %v571, 15
      %v574 = vsub.s32 0, %v573
      %v575 = vsel %vm569, %v574, %v573
      %vm576 = vcmp.lt.s32.totalorder %v502, 0
      %v577 = vsub.s32 0, %v502
      %v578 = vsel %vm576, %v577, %v502
      %v579 = vshrl.u32 %v578, 4
      %v580 = vand.u32 %v578, 15
      %v581 = vsub.s32 0, %v580
      %v582 = vsel %vm576, %v581, %v580
      %vm583 = vcmp.lt.s32.totalorder %v503, 0
      %v584 = vsub.s32 0, %v503
      %v585 = vsel %vm583, %v584, %v503
      %v586 = vshrl.u32 %v585, 4
      %v587 = vand.u32 %v585, 15
      %v588 = vsub.s32 0, %v587
      %v589 = vsel %vm583, %v588, %v587
      %vm590 = vcmp.lt.s32.totalorder %v504, 0
      %v591 = vsub.s32 0, %v504
      %v592 = vsel %vm590, %v591, %v504
      %v593 = vshrl.u32 %v592, 4
      %v594 = vand.u32 %v592, 15
      %v595 = vsub.s32 0, %v594
      %v596 = vsel %vm590, %v595, %v594
      %vm597 = vcmp.lt.s32.totalorder %v505, 0
      %v598 = vsub.s32 0, %v505
      %v599 = vsel %vm597, %v598, %v505
      %v600 = vshrl.u32 %v599, 4
      %v601 = vand.u32 %v599, 15
      %v602 = vsub.s32 0, %v601
      %v603 = vsel %vm597, %v602, %v601
      %vm604 = vcmp.lt.s32.totalorder %v506, 0
      %v605 = vsub.s32 0, %v506
      %v606 = vsel %vm604, %v605, %v506
      %v607 = vshrl.u32 %v606, 4
      %v608 = vand.u32 %v606, 15
      %v609 = vsub.s32 0, %v608
      %v610 = vsel %vm604, %v609, %v608
      %vm611 = vcmp.lt.s32.totalorder %v507, 0
      %v612 = vsub.s32 0, %v507
      %v613 = vsel %vm611, %v612, %v507
      %v614 = vshrl.u32 %v613, 4
      %v615 = vand.u32 %v613, 15
      %v616 = vsub.s32 0, %v615
      %v617 = vsel %vm611, %v616, %v615
      %vm618 = vcmp.lt.s32.totalorder %v508, 0
      %v619 = vsub.s32 0, %v508
      %v620 = vsel %vm618, %v619, %v508
      %v621 = vshrl.u32 %v620, 4
      %v622 = vand.u32 %v620, 15
      %v623 = vsub.s32 0, %v622
      %v624 = vsel %vm618, %v623, %v622
      %vm625 = vcmp.lt.s32.totalorder %v509, 0
      %v626 = vsub.s32 0, %v509
      %v627 = vsel %vm625, %v626, %v509
      %v628 = vshrl.u32 %v627, 4
      %v629 = vand.u32 %v627, 15
      %v630 = vsub.s32 0, %v629
      %v631 = vsel %vm625, %v630, %v629
      %vm632 = vcmp.lt.s32.totalorder %v510, 0
      %v633 = vsub.s32 0, %v510
      %v634 = vsel %vm632, %v633, %v510
      %v635 = vshrl.u32 %v634, 4
      %v636 = vand.u32 %v634, 15
      %v637 = vsub.s32 0, %v636
      %v638 = vsel %vm632, %v637, %v636
      %vm639 = vcmp.lt.s32.totalorder %v511, 0
      %v640 = vsub.s32 0, %v511
      %v641 = vsel %vm639, %v640, %v511
      %v642 = vshrl.u32 %v641, 4
      %v643 = vand.u32 %v641, 15
      %v644 = vsub.s32 0, %v643
      %v645 = vsel %vm639, %v644, %v643
      %vm646 = vcmp.lt.s32.totalorder %v512, 0
      %v647 = vsub.s32 0, %v512
      %v648 = vsel %vm646, %v647, %v512
      %v649 = vshrl.u32 %v648, 4
      %v650 = vand.u32 %v648, 15
      %v651 = vsub.s32 0, %v650
      %v652 = vsel %vm646, %v651, %v650
      %vm653 = vcmp.lt.s32.totalorder %v513, 0
      %v654 = vsub.s32 0, %v513
      %v655 = vsel %vm653, %v654, %v513
      %v656 = vshrl.u32 %v655, 4
      %v657 = vand.u32 %v655, 15
      %v658 = vsub.s32 0, %v657
      %v659 = vsel %vm653, %v658, %v657
      %vm660 = vcmp.lt.s32.totalorder %v514, 0
      %v661 = vsub.s32 0, %v514
      %v662 = vsel %vm660, %v661, %v514
      %v663 = vshrl.u32 %v662, 4
      %v664 = vand.u32 %v662, 15
      %v665 = vsub.s32 0, %v664
      %v666 = vsel %vm660, %v665, %v664
      %vm667 = vcmp.lt.s32.totalorder %v515, 0
      %v668 = vsub.s32 0, %v515
      %v669 = vsel %vm667, %v668, %v515
      %v670 = vshrl.u32 %v669, 4
      %v671 = vand.u32 %v669, 15
      %v672 = vsub.s32 0, %v671
      %v673 = vsel %vm667, %v672, %v671
      %vm674 = vcmp.lt.s32.totalorder %v516, 0
      %v675 = vsub.s32 0, %v516
      %v676 = vsel %vm674, %v675, %v516
      %v677 = vshrl.u32 %v676, 4
      %v678 = vand.u32 %v676, 15
      %v679 = vsub.s32 0, %v678
      %v680 = vsel %vm674, %v679, %v678
      %vm681 = vcmp.lt.s32.totalorder %v517, 0
      %v682 = vsub.s32 0, %v517
      %v683 = vsel %vm681, %v682, %v517
      %v684 = vshrl.u32 %v683, 4
      %v685 = vand.u32 %v683, 15
      %v686 = vsub.s32 0, %v685
      %v687 = vsel %vm681, %v686, %v685
      %vm688 = vcmp.lt.s32.totalorder %v518, 0
      %v689 = vsub.s32 0, %v518
      %v690 = vsel %vm688, %v689, %v518
      %v691 = vshrl.u32 %v690, 4
      %v692 = vand.u32 %v690, 15
      %v693 = vsub.s32 0, %v692
      %v694 = vsel %vm688, %v693, %v692
      %vm695 = vcmp.lt.s32.totalorder %v519, 0
      %v696 = vsub.s32 0, %v519
      %v697 = vsel %vm695, %v696, %v519
      %v698 = vshrl.u32 %v697, 4
      %v699 = vand.u32 %v697, 15
      %v700 = vsub.s32 0, %v699
      %v701 = vsel %vm695, %v700, %v699
      %vm702 = vcmp.lt.s32.totalorder %v520, 0
      %v703 = vsub.s32 0, %v520
      %v704 = vsel %vm702, %v703, %v520
      %v705 = vshrl.u32 %v704, 4
      %v706 = vand.u32 %v704, 15
      %v707 = vsub.s32 0, %v706
      %v708 = vsel %vm702, %v707, %v706
      %vm709 = vcmp.lt.s32.totalorder %v521, 0
      %v710 = vsub.s32 0, %v521
      %v711 = vsel %vm709, %v710, %v521
      %v712 = vshrl.u32 %v711, 4
      %v713 = vand.u32 %v711, 15
      %v714 = vsub.s32 0, %v713
      %v715 = vsel %vm709, %v714, %v713
      %vm716 = vcmp.lt.s32.totalorder %v522, 0
      %v717 = vsub.s32 0, %v522
      %v718 = vsel %vm716, %v717, %v522
      %v719 = vshrl.u32 %v718, 4
      %v720 = vand.u32 %v718, 15
      %v721 = vsub.s32 0, %v720
      %v722 = vsel %vm716, %v721, %v720
      %vm723 = vcmp.lt.s32.totalorder %v523, 0
      %v724 = vsub.s32 0, %v523
      %v725 = vsel %vm723, %v724, %v523
      %v726 = vshrl.u32 %v725, 4
      %v727 = vand.u32 %v725, 15
      %v728 = vsub.s32 0, %v727
      %v729 = vsel %vm723, %v728, %v727
      %vm730 = vcmp.lt.s32.totalorder %v524, 0
      %v731 = vsub.s32 0, %v524
      %v732 = vsel %vm730, %v731, %v524
      %v733 = vshrl.u32 %v732, 4
      %v734 = vand.u32 %v732, 15
      %v735 = vsub.s32 0, %v734
      %v736 = vsel %vm730, %v735, %v734
      %vm737 = vcmp.lt.s32.totalorder %v525, 0
      %v738 = vsub.s32 0, %v525
      %v739 = vsel %vm737, %v738, %v525
      %v740 = vshrl.u32 %v739, 4
      %v741 = vand.u32 %v739, 15
      %v742 = vsub.s32 0, %v741
      %v743 = vsel %vm737, %v742, %v741
      %vm744 = vcmp.lt.s32.totalorder %v526, 0
      %v745 = vsub.s32 0, %v526
      %v746 = vsel %vm744, %v745, %v526
      %v747 = vshrl.u32 %v746, 4
      %v748 = vand.u32 %v746, 15
      %v749 = vsub.s32 0, %v748
      %v750 = vsel %vm744, %v749, %v748
      %vm751 = vcmp.ne.s32.totalorder %v533, 0
      %vm752 = vcmp.ne.s32.totalorder %v540, 0
      %vm753 = vcmp.ne.s32.totalorder %v547, 0
      %vm754 = vcmp.ne.s32.totalorder %v554, 0
      %vm755 = vcmp.ne.s32.totalorder %v561, 0
      %vm756 = vcmp.ne.s32.totalorder %v568, 0
      %vm757 = vcmp.ne.s32.totalorder %v575, 0
      %vm758 = vcmp.ne.s32.totalorder %v582, 0
      %vm759 = vcmp.ne.s32.totalorder %v589, 0
      %vm760 = vcmp.ne.s32.totalorder %v596, 0
      %vm761 = vcmp.ne.s32.totalorder %v603, 0
      %vm762 = vcmp.ne.s32.totalorder %v610, 0
      %vm763 = vcmp.ne.s32.totalorder %v617, 0
      %vm764 = vcmp.ne.s32.totalorder %v624, 0
      %vm765 = vcmp.ne.s32.totalorder %v631, 0
      %vm766 = vcmp.ne.s32.totalorder %v638, 0
      %vm767 = vcmp.ne.s32.totalorder %v645, 0
      %vm768 = vcmp.ne.s32.totalorder %v652, 0
      %vm769 = vcmp.ne.s32.totalorder %v659, 0
      %vm770 = vcmp.ne.s32.totalorder %v666, 0
      %vm771 = vcmp.ne.s32.totalorder %v673, 0
      %vm772 = vcmp.ne.s32.totalorder %v680, 0
      %vm773 = vcmp.ne.s32.totalorder %v687, 0
      %vm774 = vcmp.ne.s32.totalorder %v694, 0
      %vm775 = vcmp.ne.s32.totalorder %v701, 0
      %vm776 = vcmp.ne.s32.totalorder %v708, 0
      %vm777 = vcmp.ne.s32.totalorder %v715, 0
      %vm778 = vcmp.ne.s32.totalorder %v722, 0
      %vm779 = vcmp.ne.s32.totalorder %v729, 0
      %vm780 = vcmp.ne.s32.totalorder %v736, 0
      %vm781 = vcmp.ne.s32.totalorder %v743, 0
      %vm782 = vcmp.ne.s32.totalorder %v750, 0
      %vm783 = vcmp.lt.s32.totalorder %v533, 0
      %vm784 = vcmp.lt.s32.totalorder %v540, 0
      %vm785 = vcmp.lt.s32.totalorder %v547, 0
      %vm786 = vcmp.lt.s32.totalorder %v554, 0
      %vm787 = vcmp.lt.s32.totalorder %v561, 0
      %vm788 = vcmp.lt.s32.totalorder %v568, 0
      %vm789 = vcmp.lt.s32.totalorder %v575, 0
      %vm790 = vcmp.lt.s32.totalorder %v582, 0
      %vm791 = vcmp.lt.s32.totalorder %v589, 0
      %vm792 = vcmp.lt.s32.totalorder %v596, 0
      %vm793 = vcmp.lt.s32.totalorder %v603, 0
      %vm794 = vcmp.lt.s32.totalorder %v610, 0
      %vm795 = vcmp.lt.s32.totalorder %v617, 0
      %vm796 = vcmp.lt.s32.totalorder %v624, 0
      %vm797 = vcmp.lt.s32.totalorder %v631, 0
      %vm798 = vcmp.lt.s32.totalorder %v638, 0
      %vm799 = vcmp.lt.s32.totalorder %v645, 0
      %vm800 = vcmp.lt.s32.totalorder %v652, 0
      %vm801 = vcmp.lt.s32.totalorder %v659, 0
      %vm802 = vcmp.lt.s32.totalorder %v666, 0
      %vm803 = vcmp.lt.s32.totalorder %v673, 0
      %vm804 = vcmp.lt.s32.totalorder %v680, 0
      %vm805 = vcmp.lt.s32.totalorder %v687, 0
      %vm806 = vcmp.lt.s32.totalorder %v694, 0
      %vm807 = vcmp.lt.s32.totalorder %v701, 0
      %vm808 = vcmp.lt.s32.totalorder %v708, 0
      %vm809 = vcmp.lt.s32.totalorder %v715, 0
      %vm810 = vcmp.lt.s32.totalorder %v722, 0
      %vm811 = vcmp.lt.s32.totalorder %v729, 0
      %vm812 = vcmp.lt.s32.totalorder %v736, 0
      %vm813 = vcmp.lt.s32.totalorder %v743, 0
      %vm814 = vcmp.lt.s32.totalorder %v750, 0
      %vm815 = vmand %vm783, %vm751
      %vm816 = vmand %vm784, %vm752
      %vm817 = vmand %vm785, %vm753
      %vm818 = vmand %vm786, %vm754
      %vm819 = vmand %vm787, %vm755
      %vm820 = vmand %vm788, %vm756
      %vm821 = vmand %vm789, %vm757
      %vm822 = vmand %vm790, %vm758
      %vm823 = vmand %vm791, %vm759
      %vm824 = vmand %vm792, %vm760
      %vm825 = vmand %vm793, %vm761
      %vm826 = vmand %vm794, %vm762
      %vm827 = vmand %vm795, %vm763
      %vm828 = vmand %vm796, %vm764
      %vm829 = vmand %vm797, %vm765
      %vm830 = vmand %vm798, %vm766
      %vm831 = vmand %vm799, %vm767
      %vm832 = vmand %vm800, %vm768
      %vm833 = vmand %vm801, %vm769
      %vm834 = vmand %vm802, %vm770
      %vm835 = vmand %vm803, %vm771
      %vm836 = vmand %vm804, %vm772
      %vm837 = vmand %vm805, %vm773
      %vm838 = vmand %vm806, %vm774
      %vm839 = vmand %vm807, %vm775
      %vm840 = vmand %vm808, %vm776
      %vm841 = vmand %vm809, %vm777
      %vm842 = vmand %vm810, %vm778
      %vm843 = vmand %vm811, %vm779
      %vm844 = vmand %vm812, %vm780
      %vm845 = vmand %vm813, %vm781
      %vm846 = vmand %vm814, %vm782
      %v847 = vadd.s32 %v533, 16
      %v848 = vadd.s32 %v540, 16
      %v849 = vadd.s32 %v547, 16
      %v850 = vadd.s32 %v554, 16
      %v851 = vadd.s32 %v561, 16
      %v852 = vadd.s32 %v568, 16
      %v853 = vadd.s32 %v575, 16
      %v854 = vadd.s32 %v582, 16
      %v855 = vadd.s32 %v589, 16
      %v856 = vadd.s32 %v596, 16
      %v857 = vadd.s32 %v603, 16
      %v858 = vadd.s32 %v610, 16
      %v859 = vadd.s32 %v617, 16
      %v860 = vadd.s32 %v624, 16
      %v861 = vadd.s32 %v631, 16
      %v862 = vadd.s32 %v638, 16
      %v863 = vadd.s32 %v645, 16
      %v864 = vadd.s32 %v652, 16
      %v865 = vadd.s32 %v659, 16
      %v866 = vadd.s32 %v666, 16
      %v867 = vadd.s32 %v673, 16
      %v868 = vadd.s32 %v680, 16
      %v869 = vadd.s32 %v687, 16
      %v870 = vadd.s32 %v694, 16
      %v871 = vadd.s32 %v701, 16
      %v872 = vadd.s32 %v708, 16
      %v873 = vadd.s32 %v715, 16
      %v874 = vadd.s32 %v722, 16
      %v875 = vadd.s32 %v729, 16
      %v876 = vadd.s32 %v736, 16
      %v877 = vadd.s32 %v743, 16
      %v878 = vadd.s32 %v750, 16
      %v879 = vsel %vm815, %v847, %v533
      %v880 = vsel %vm816, %v848, %v540
      %v881 = vsel %vm817, %v849, %v547
      %v882 = vsel %vm818, %v850, %v554
      %v883 = vsel %vm819, %v851, %v561
      %v884 = vsel %vm820, %v852, %v568
      %v885 = vsel %vm821, %v853, %v575
      %v886 = vsel %vm822, %v854, %v582
      %v887 = vsel %vm823, %v855, %v589
      %v888 = vsel %vm824, %v856, %v596
      %v889 = vsel %vm825, %v857, %v603
      %v890 = vsel %vm826, %v858, %v610
      %v891 = vsel %vm827, %v859, %v617
      %v892 = vsel %vm828, %v860, %v624
      %v893 = vsel %vm829, %v861, %v631
      %v894 = vsel %vm830, %v862, %v638
      %v895 = vsel %vm831, %v863, %v645
      %v896 = vsel %vm832, %v864, %v652
      %v897 = vsel %vm833, %v865, %v659
      %v898 = vsel %vm834, %v866, %v666
      %v899 = vsel %vm835, %v867, %v673
      %v900 = vsel %vm836, %v868, %v680
      %v901 = vsel %vm837, %v869, %v687
      %v902 = vsel %vm838, %v870, %v694
      %v903 = vsel %vm839, %v871, %v701
      %v904 = vsel %vm840, %v872, %v708
      %v905 = vsel %vm841, %v873, %v715
      %v906 = vsel %vm842, %v874, %v722
      %v907 = vsel %vm843, %v875, %v729
      %v908 = vsel %vm844, %v876, %v736
      %v909 = vsel %vm845, %v877, %v743
      %v910 = vsel %vm846, %v878, %v750
      %vm911 = vcmp.gt.s32.totalorder %v879, 0
      %vm912 = vcmp.gt.s32.totalorder %v880, 0
      %vm913 = vcmp.gt.s32.totalorder %v881, 0
      %vm914 = vcmp.gt.s32.totalorder %v882, 0
      %vm915 = vcmp.gt.s32.totalorder %v883, 0
      %vm916 = vcmp.gt.s32.totalorder %v884, 0
      %vm917 = vcmp.gt.s32.totalorder %v885, 0
      %vm918 = vcmp.gt.s32.totalorder %v886, 0
      %vm919 = vcmp.gt.s32.totalorder %v887, 0
      %vm920 = vcmp.gt.s32.totalorder %v888, 0
      %vm921 = vcmp.gt.s32.totalorder %v889, 0
      %vm922 = vcmp.gt.s32.totalorder %v890, 0
      %vm923 = vcmp.gt.s32.totalorder %v891, 0
      %vm924 = vcmp.gt.s32.totalorder %v892, 0
      %vm925 = vcmp.gt.s32.totalorder %v893, 0
      %vm926 = vcmp.gt.s32.totalorder %v894, 0
      %vm927 = vcmp.gt.s32.totalorder %v895, 0
      %vm928 = vcmp.gt.s32.totalorder %v896, 0
      %vm929 = vcmp.gt.s32.totalorder %v897, 0
      %vm930 = vcmp.gt.s32.totalorder %v898, 0
      %vm931 = vcmp.gt.s32.totalorder %v899, 0
      %vm932 = vcmp.gt.s32.totalorder %v900, 0
      %vm933 = vcmp.gt.s32.totalorder %v901, 0
      %vm934 = vcmp.gt.s32.totalorder %v902, 0
      %vm935 = vcmp.gt.s32.totalorder %v903, 0
      %vm936 = vcmp.gt.s32.totalorder %v904, 0
      %vm937 = vcmp.gt.s32.totalorder %v905, 0
      %vm938 = vcmp.gt.s32.totalorder %v906, 0
      %vm939 = vcmp.gt.s32.totalorder %v907, 0
      %vm940 = vcmp.gt.s32.totalorder %v908, 0
      %vm941 = vcmp.gt.s32.totalorder %v909, 0
      %vm942 = vcmp.gt.s32.totalorder %v910, 0
      %vm943 = vcmp.lt.s32.totalorder %v879, 15
      %vm944 = vcmp.lt.s32.totalorder %v880, 15
      %vm945 = vcmp.lt.s32.totalorder %v881, 15
      %vm946 = vcmp.lt.s32.totalorder %v882, 15
      %vm947 = vcmp.lt.s32.totalorder %v883, 15
      %vm948 = vcmp.lt.s32.totalorder %v884, 15
      %vm949 = vcmp.lt.s32.totalorder %v885, 15
      %vm950 = vcmp.lt.s32.totalorder %v886, 15
      %vm951 = vcmp.lt.s32.totalorder %v887, 15
      %vm952 = vcmp.lt.s32.totalorder %v888, 15
      %vm953 = vcmp.lt.s32.totalorder %v889, 15
      %vm954 = vcmp.lt.s32.totalorder %v890, 15
      %vm955 = vcmp.lt.s32.totalorder %v891, 15
      %vm956 = vcmp.lt.s32.totalorder %v892, 15
      %vm957 = vcmp.lt.s32.totalorder %v893, 15
      %vm958 = vcmp.lt.s32.totalorder %v894, 15
      %vm959 = vcmp.lt.s32.totalorder %v895, 15
      %vm960 = vcmp.lt.s32.totalorder %v896, 15
      %vm961 = vcmp.lt.s32.totalorder %v897, 15
      %vm962 = vcmp.lt.s32.totalorder %v898, 15
      %vm963 = vcmp.lt.s32.totalorder %v899, 15
      %vm964 = vcmp.lt.s32.totalorder %v900, 15
      %vm965 = vcmp.lt.s32.totalorder %v901, 15
      %vm966 = vcmp.lt.s32.totalorder %v902, 15
      %vm967 = vcmp.lt.s32.totalorder %v903, 15
      %vm968 = vcmp.lt.s32.totalorder %v904, 15
      %vm969 = vcmp.lt.s32.totalorder %v905, 15
      %vm970 = vcmp.lt.s32.totalorder %v906, 15
      %vm971 = vcmp.lt.s32.totalorder %v907, 15
      %vm972 = vcmp.lt.s32.totalorder %v908, 15
      %vm973 = vcmp.lt.s32.totalorder %v909, 15
      %vm974 = vcmp.lt.s32.totalorder %v910, 15
      %v975 = vld [vmem:[#allocation2 + $0x7] sm:$0xff]
      %v976 = vld [vmem:[#allocation2 + $0xf] sm:$0xff]
      %v977 = vld [vmem:[#allocation2 + $0x17] sm:$0xff]
      %v978 = vld [vmem:[#allocation2 + $0x1f] sm:$0xff]
      %v979 = vld [vmem:[#allocation2 + $0x27] sm:$0xff]
      %v980 = vld [vmem:[#allocation2 + $0x2f] sm:$0xff]
      %v981 = vld [vmem:[#allocation2 + $0x37] sm:$0xff]
      %v982 = vld [vmem:[#allocation2 + $0x3f] sm:$0xff]
      %v983 = vld [vmem:[#allocation2 + $0x47] sm:$0xff]
      %v984 = vld [vmem:[#allocation2 + $0x4f] sm:$0xff]
      %v985 = vld [vmem:[#allocation2 + $0x57] sm:$0xff]
      %v986 = vld [vmem:[#allocation2 + $0x5f] sm:$0xff]
      %v987 = vld [vmem:[#allocation2 + $0x67] sm:$0xff]
      %v988 = vld [vmem:[#allocation2 + $0x6f] sm:$0xff]
      %v989 = vld [vmem:[#allocation2 + $0x77] sm:$0xff]
      %v990 = vld [vmem:[#allocation2 + $0x7f] sm:$0xff]
      %v991 = vld [vmem:[#allocation2 + $0x87] sm:$0xff]
      %v992 = vld [vmem:[#allocation2 + $0x8f] sm:$0xff]
      %v993 = vld [vmem:[#allocation2 + $0x97] sm:$0xff]
      %v994 = vld [vmem:[#allocation2 + $0x9f] sm:$0xff]
      %v995 = vld [vmem:[#allocation2 + $0xa7] sm:$0xff]
      %v996 = vld [vmem:[#allocation2 + $0xaf] sm:$0xff]
      %v997 = vld [vmem:[#allocation2 + $0xb7] sm:$0xff]
      %v998 = vld [vmem:[#allocation2 + $0xbf] sm:$0xff]
      %v999 = vld [vmem:[#allocation2 + $0xc7] sm:$0xff]
      %v1000 = vld [vmem:[#allocation2 + $0xcf] sm:$0xff]
      %v1001 = vld [vmem:[#allocation2 + $0xd7] sm:$0xff]
      %v1002 = vld [vmem:[#allocation2 + $0xdf] sm:$0xff]
      %v1003 = vld [vmem:[#allocation2 + $0xe7] sm:$0xff]
      %v1004 = vld [vmem:[#allocation2 + $0xef] sm:$0xff]
      %v1005 = vld [vmem:[#allocation2 + $0xf7] sm:$0xff]
      %v1006 = vld [vmem:[#allocation2 + $0xff] sm:$0xff]
      %v1007 = vsel %vm911, 1, 0
      %v1008 = vsel %vm912, 1, 0
      %v1009 = vsel %vm913, 1, 0
      %v1010 = vsel %vm914, 1, 0
      %v1011 = vsel %vm915, 1, 0
      %v1012 = vsel %vm916, 1, 0
      %v1013 = vsel %vm917, 1, 0
      %v1014 = vsel %vm918, 1, 0
      %v1015 = vsel %vm919, 1, 0
      %v1016 = vsel %vm920, 1, 0
      %v1017 = vsel %vm921, 1, 0
      %v1018 = vsel %vm922, 1, 0
      %v1019 = vsel %vm923, 1, 0
      %v1020 = vsel %vm924, 1, 0
      %v1021 = vsel %vm925, 1, 0
      %v1022 = vsel %vm926, 1, 0
      %v1023 = vsel %vm927, 1, 0
      %v1024 = vsel %vm928, 1, 0
      %v1025 = vsel %vm929, 1, 0
      %v1026 = vsel %vm930, 1, 0
      %v1027 = vsel %vm931, 1, 0
      %v1028 = vsel %vm932, 1, 0
      %v1029 = vsel %vm933, 1, 0
      %v1030 = vsel %vm934, 1, 0
      %v1031 = vsel %vm935, 1, 0
      %v1032 = vsel %vm936, 1, 0
      %v1033 = vsel %vm937, 1, 0
      %v1034 = vsel %vm938, 1, 0
      %v1035 = vsel %vm939, 1, 0
      %v1036 = vsel %vm940, 1, 0
      %v1037 = vsel %vm941, 1, 0
      %v1038 = vsel %vm942, 1, 0
      %vm1039 = vcmp.eq.s32.totalorder %v1007, 1
      %vm1040 = vcmp.eq.s32.totalorder %v1008, 1
      %vm1041 = vcmp.eq.s32.totalorder %v1009, 1
      %vm1042 = vcmp.eq.s32.totalorder %v1010, 1
      %vm1043 = vcmp.eq.s32.totalorder %v1011, 1
      %vm1044 = vcmp.eq.s32.totalorder %v1012, 1
      %vm1045 = vcmp.eq.s32.totalorder %v1013, 1
      %vm1046 = vcmp.eq.s32.totalorder %v1014, 1
      %vm1047 = vcmp.eq.s32.totalorder %v1015, 1
      %vm1048 = vcmp.eq.s32.totalorder %v1016, 1
      %vm1049 = vcmp.eq.s32.totalorder %v1017, 1
      %vm1050 = vcmp.eq.s32.totalorder %v1018, 1
      %vm1051 = vcmp.eq.s32.totalorder %v1019, 1
      %vm1052 = vcmp.eq.s32.totalorder %v1020, 1
      %vm1053 = vcmp.eq.s32.totalorder %v1021, 1
      %vm1054 = vcmp.eq.s32.totalorder %v1022, 1
      %vm1055 = vcmp.eq.s32.totalorder %v1023, 1
      %vm1056 = vcmp.eq.s32.totalorder %v1024, 1
      %vm1057 = vcmp.eq.s32.totalorder %v1025, 1
      %vm1058 = vcmp.eq.s32.totalorder %v1026, 1
      %vm1059 = vcmp.eq.s32.totalorder %v1027, 1
      %vm1060 = vcmp.eq.s32.totalorder %v1028, 1
      %vm1061 = vcmp.eq.s32.totalorder %v1029, 1
      %vm1062 = vcmp.eq.s32.totalorder %v1030, 1
      %vm1063 = vcmp.eq.s32.totalorder %v1031, 1
      %vm1064 = vcmp.eq.s32.totalorder %v1032, 1
      %vm1065 = vcmp.eq.s32.totalorder %v1033, 1
      %vm1066 = vcmp.eq.s32.totalorder %v1034, 1
      %vm1067 = vcmp.eq.s32.totalorder %v1035, 1
      %vm1068 = vcmp.eq.s32.totalorder %v1036, 1
      %vm1069 = vcmp.eq.s32.totalorder %v1037, 1
      %vm1070 = vcmp.eq.s32.totalorder %v1038, 1
      %v1071 = vsel %vm1039, %v975, 0.0
      %v1072 = vsel %vm1040, %v976, 0.0
      %v1073 = vsel %vm1041, %v977, 0.0
      %v1074 = vsel %vm1042, %v978, 0.0
      %v1075 = vsel %vm1043, %v979, 0.0
      %v1076 = vsel %vm1044, %v980, 0.0
      %v1077 = vsel %vm1045, %v981, 0.0
      %v1078 = vsel %vm1046, %v982, 0.0
      %v1079 = vsel %vm1047, %v983, 0.0
      %v1080 = vsel %vm1048, %v984, 0.0
      %v1081 = vsel %vm1049, %v985, 0.0
      %v1082 = vsel %vm1050, %v986, 0.0
      %v1083 = vsel %vm1051, %v987, 0.0
      %v1084 = vsel %vm1052, %v988, 0.0
      %v1085 = vsel %vm1053, %v989, 0.0
      %v1086 = vsel %vm1054, %v990, 0.0
      %v1087 = vsel %vm1055, %v991, 0.0
      %v1088 = vsel %vm1056, %v992, 0.0
      %v1089 = vsel %vm1057, %v993, 0.0
      %v1090 = vsel %vm1058, %v994, 0.0
      %v1091 = vsel %vm1059, %v995, 0.0
      %v1092 = vsel %vm1060, %v996, 0.0
      %v1093 = vsel %vm1061, %v997, 0.0
      %v1094 = vsel %vm1062, %v998, 0.0
      %v1095 = vsel %vm1063, %v999, 0.0
      %v1096 = vsel %vm1064, %v1000, 0.0
      %v1097 = vsel %vm1065, %v1001, 0.0
      %v1098 = vsel %vm1066, %v1002, 0.0
      %v1099 = vsel %vm1067, %v1003, 0.0
      %v1100 = vsel %vm1068, %v1004, 0.0
      %v1101 = vsel %vm1069, %v1005, 0.0
      %v1102 = vsel %vm1070, %v1006, 0.0
      %v1103 = vpack.c.bf16 %v1072, %v1071
      %v1104 = vpack.c.bf16 %v1074, %v1073
      %v1105 = vpack.c.bf16 %v1076, %v1075
      %v1106 = vpack.c.bf16 %v1078, %v1077
      %v1107 = vpack.c.bf16 %v1080, %v1079
      %v1108 = vpack.c.bf16 %v1082, %v1081
      %v1109 = vpack.c.bf16 %v1084, %v1083
      %v1110 = vpack.c.bf16 %v1086, %v1085
      %v1111 = vpack.c.bf16 %v1088, %v1087
      %v1112 = vpack.c.bf16 %v1090, %v1089
      %v1113 = vpack.c.bf16 %v1092, %v1091
      %v1114 = vpack.c.bf16 %v1094, %v1093
      %v1115 = vpack.c.bf16 %v1096, %v1095
      %v1116 = vpack.c.bf16 %v1098, %v1097
      %v1117 = vpack.c.bf16 %v1100, %v1099
      %v1118 = vpack.c.bf16 %v1102, %v1101
      %v1119 = vld [vmem:[%s3] sm:$0xf]
      %v1120 = vld [vmem:[%s3 + $0x4] sm:$0xf]
      %v1121 = vld [vmem:[%s3 + $0x8] sm:$0xf]
      %v1122 = vld [vmem:[%s3 + $0xc] sm:$0xf]
      %v1123 = vld [vmem:[%s3 + $0x10] sm:$0xf]
      %v1124 = vld [vmem:[%s3 + $0x14] sm:$0xf]
      %v1125 = vld [vmem:[%s3 + $0x18] sm:$0xf]
      %v1126 = vld [vmem:[%s3 + $0x1c] sm:$0xf]
      %v1127 = vld [vmem:[%s3 + $0x20] sm:$0xf]
      %v1128 = vld [vmem:[%s3 + $0x24] sm:$0xf]
      %v1129 = vld [vmem:[%s3 + $0x28] sm:$0xf]
      %v1130 = vld [vmem:[%s3 + $0x2c] sm:$0xf]
      %v1131 = vld [vmem:[%s3 + $0x30] sm:$0xf]
      %v1132 = vld [vmem:[%s3 + $0x34] sm:$0xf]
      %v1133 = vld [vmem:[%s3 + $0x38] sm:$0xf]
      %v1134 = vld [vmem:[%s3 + $0x3c] sm:$0xf]
      %v1135 = vld [vmem:[#allocation2 + $0x8] sm:$0xff]
      %v1136 = vld [vmem:[#allocation2 + $0x10] sm:$0xff]
      %v1137 = vld [vmem:[#allocation2 + $0x18] sm:$0xff]
      %v1138 = vld [vmem:[#allocation2 + $0x20] sm:$0xff]
      %v1139 = vld [vmem:[#allocation2 + $0x28] sm:$0xff]
      %v1140 = vld [vmem:[#allocation2 + $0x30] sm:$0xff]
      %v1141 = vld [vmem:[#allocation2 + $0x38] sm:$0xff]
      %v1142 = vld [vmem:[#allocation2 + $0x40] sm:$0xff]
      %v1143 = vld [vmem:[#allocation2 + $0x48] sm:$0xff]
      %v1144 = vld [vmem:[#allocation2 + $0x50] sm:$0xff]
      %v1145 = vld [vmem:[#allocation2 + $0x58] sm:$0xff]
      %v1146 = vld [vmem:[#allocation2 + $0x60] sm:$0xff]
      %v1147 = vld [vmem:[#allocation2 + $0x68] sm:$0xff]
      %v1148 = vld [vmem:[#allocation2 + $0x70] sm:$0xff]
      %v1149 = vld [vmem:[#allocation2 + $0x78] sm:$0xff]
      %v1150 = vld [vmem:[#allocation2 + $0x80] sm:$0xff]
      %v1151 = vld [vmem:[#allocation2 + $0x88] sm:$0xff]
      %v1152 = vld [vmem:[#allocation2 + $0x90] sm:$0xff]
      %v1153 = vld [vmem:[#allocation2 + $0x98] sm:$0xff]
      %v1154 = vld [vmem:[#allocation2 + $0xa0] sm:$0xff]
      %v1155 = vld [vmem:[#allocation2 + $0xa8] sm:$0xff]
      %v1156 = vld [vmem:[#allocation2 + $0xb0] sm:$0xff]
      %v1157 = vld [vmem:[#allocation2 + $0xb8] sm:$0xff]
      %v1158 = vld [vmem:[#allocation2 + $0xc0] sm:$0xff]
      %v1159 = vld [vmem:[#allocation2 + $0xc8] sm:$0xff]
      %v1160 = vld [vmem:[#allocation2 + $0xd0] sm:$0xff]
      %v1161 = vld [vmem:[#allocation2 + $0xd8] sm:$0xff]
      %v1162 = vld [vmem:[#allocation2 + $0xe0] sm:$0xff]
      %v1163 = vld [vmem:[#allocation2 + $0xe8] sm:$0xff]
      %v1164 = vld [vmem:[#allocation2 + $0xf0] sm:$0xff]
      %v1165 = vld [vmem:[#allocation2 + $0xf8] sm:$0xff]
      %v1166 = vld [vmem:[#allocation2 + $0x100] sm:$0xff]
      %v1167 = vpack.c.bf16 %v1136, %v1135
      %v1168 = vpack.c.bf16 %v1138, %v1137
      %v1169 = vpack.c.bf16 %v1140, %v1139
      %v1170 = vpack.c.bf16 %v1142, %v1141
      %v1171 = vpack.c.bf16 %v1144, %v1143
      %v1172 = vpack.c.bf16 %v1146, %v1145
      %v1173 = vpack.c.bf16 %v1148, %v1147
      %v1174 = vpack.c.bf16 %v1150, %v1149
      %v1175 = vpack.c.bf16 %v1152, %v1151
      %v1176 = vpack.c.bf16 %v1154, %v1153
      %v1177 = vpack.c.bf16 %v1156, %v1155
      %v1178 = vpack.c.bf16 %v1158, %v1157
      %v1179 = vpack.c.bf16 %v1160, %v1159
      %v1180 = vpack.c.bf16 %v1162, %v1161
      %v1181 = vpack.c.bf16 %v1164, %v1163
      %v1182 = vpack.c.bf16 %v1166, %v1165
      %s1183 = scalar_lea.vmem %s3, 64
      %v1184 = vld [vmem:[%s1183] sm:$0xf]
      %v1185 = vld [vmem:[%s1183 + $0x4] sm:$0xf]
      %v1186 = vld [vmem:[%s1183 + $0x8] sm:$0xf]
      %v1187 = vld [vmem:[%s1183 + $0xc] sm:$0xf]
      %v1188 = vld [vmem:[%s1183 + $0x10] sm:$0xf]
      %v1189 = vld [vmem:[%s1183 + $0x14] sm:$0xf]
      %v1190 = vld [vmem:[%s1183 + $0x18] sm:$0xf]
      %v1191 = vld [vmem:[%s1183 + $0x1c] sm:$0xf]
      %v1192 = vld [vmem:[%s1183 + $0x20] sm:$0xf]
      %v1193 = vld [vmem:[%s1183 + $0x24] sm:$0xf]
      %v1194 = vld [vmem:[%s1183 + $0x28] sm:$0xf]
      %v1195 = vld [vmem:[%s1183 + $0x2c] sm:$0xf]
      %v1196 = vld [vmem:[%s1183 + $0x30] sm:$0xf]
      %v1197 = vld [vmem:[%s1183 + $0x34] sm:$0xf]
      %v1198 = vld [vmem:[%s1183 + $0x38] sm:$0xf]
      %v1199 = vld [vmem:[%s1183 + $0x3c] sm:$0xf]
      %v1216 = vunpack.c.l.b16 %v1184
      %v1217 = vunpack.c.l.b16 %v1185
      %v1218 = vunpack.c.l.b16 %v1186
      %v1219 = vunpack.c.l.b16 %v1187
      %v1220 = vunpack.c.l.b16 %v1188
      %v1221 = vunpack.c.l.b16 %v1189
      %v1222 = vunpack.c.l.b16 %v1190
      %v1223 = vunpack.c.l.b16 %v1191
      %v1224 = vunpack.c.l.b16 %v1192
      %v1225 = vunpack.c.l.b16 %v1193
      %v1226 = vunpack.c.l.b16 %v1194
      %v1227 = vunpack.c.l.b16 %v1195
      %v1228 = vunpack.c.l.b16 %v1196
      %v1229 = vunpack.c.l.b16 %v1197
      %v1230 = vunpack.c.l.b16 %v1198
      %v1231 = vunpack.c.l.b16 %v1199
      %v1232 = vpack.c.b16 %v1217, %v1216
      %v1233 = vpack.c.b16 %v1219, %v1218
      %v1234 = vpack.c.b16 %v1221, %v1220
      %v1235 = vpack.c.b16 %v1223, %v1222
      %v1236 = vpack.c.b16 %v1225, %v1224
      %v1237 = vpack.c.b16 %v1227, %v1226
      %v1238 = vpack.c.b16 %v1229, %v1228
      %v1239 = vpack.c.b16 %v1231, %v1230
      %1248 = vmatpush.bf16.msra.mxu0 %v1239
      %1249 = vmatpush.bf16.msra.mxu0 %v1238
      %1250 = vmatpush.bf16.msra.mxu0 %v1237
      %1251 = vmatpush.bf16.msra.mxu0 %v1236
      %1252 = vmatpush.bf16.msra.mxu0 %v1235
      %1253 = vmatpush.bf16.msra.mxu0 %v1234
      %1254 = vmatpush.bf16.msra.mxu0 %v1233
      %1255 = vmatpush.bf16.msra.mxu0 %v1232
      %1256 = vmatmul.bf16.gmra.mxu0 %v1167
      %v1257 = vpop.f32.mrf.mxu0
      %v1258 = vadd.f32 0.0, %v1257
      %v1259 = vpop.f32.mrf.mxu0
      %v1260 = vadd.f32 0.0, %v1259
      %1261 = vmatmul.bf16.gmra.mxu0 %v1168
      %v1262 = vpop.f32.mrf.mxu0
      %v1263 = vadd.f32 0.0, %v1262
      %v1264 = vpop.f32.mrf.mxu0
      %v1265 = vadd.f32 0.0, %v1264
      %1266 = vmatmul.bf16.gmra.mxu0 %v1169
      %v1267 = vpop.f32.mrf.mxu0
      %v1268 = vadd.f32 0.0, %v1267
      %v1269 = vpop.f32.mrf.mxu0
      %v1270 = vadd.f32 0.0, %v1269
      %1271 = vmatmul.bf16.gmra.mxu0 %v1170
      %v1272 = vpop.f32.mrf.mxu0
      %v1273 = vadd.f32 0.0, %v1272
      %v1274 = vpop.f32.mrf.mxu0
      %v1275 = vadd.f32 0.0, %v1274
      %1276 = vmatmul.bf16.gmra.mxu0 %v1171
      %v1277 = vpop.f32.mrf.mxu0
      %v1278 = vadd.f32 0.0, %v1277
      %v1279 = vpop.f32.mrf.mxu0
      %v1280 = vadd.f32 0.0, %v1279
      %1281 = vmatmul.bf16.gmra.mxu0 %v1172
      %v1282 = vpop.f32.mrf.mxu0
      %v1283 = vadd.f32 0.0, %v1282
      %v1284 = vpop.f32.mrf.mxu0
      %v1285 = vadd.f32 0.0, %v1284
      %1286 = vmatmul.bf16.gmra.mxu0 %v1173
      %v1287 = vpop.f32.mrf.mxu0
      %v1288 = vadd.f32 0.0, %v1287
      %v1289 = vpop.f32.mrf.mxu0
      %v1290 = vadd.f32 0.0, %v1289
      %1291 = vmatmul.bf16.gmra.mxu0 %v1174
      %v1292 = vpop.f32.mrf.mxu0
      %v1293 = vadd.f32 0.0, %v1292
      %v1294 = vpop.f32.mrf.mxu0
      %v1295 = vadd.f32 0.0, %v1294
      %1296 = vmatmul.bf16.gmra.mxu0 %v1175
      %v1297 = vpop.f32.mrf.mxu0
      %v1298 = vadd.f32 0.0, %v1297
      %v1299 = vpop.f32.mrf.mxu0
      %v1300 = vadd.f32 0.0, %v1299
      %1301 = vmatmul.bf16.gmra.mxu0 %v1176
      %v1302 = vpop.f32.mrf.mxu0
      %v1303 = vadd.f32 0.0, %v1302
      %v1304 = vpop.f32.mrf.mxu0
      %v1305 = vadd.f32 0.0, %v1304
      %1306 = vmatmul.bf16.gmra.mxu0 %v1177
      %v1307 = vpop.f32.mrf.mxu0
      %v1308 = vadd.f32 0.0, %v1307
      %v1309 = vpop.f32.mrf.mxu0
      %v1310 = vadd.f32 0.0, %v1309
      %1311 = vmatmul.bf16.gmra.mxu0 %v1178
      %v1312 = vpop.f32.mrf.mxu0
      %v1313 = vadd.f32 0.0, %v1312
      %v1314 = vpop.f32.mrf.mxu0
      %v1315 = vadd.f32 0.0, %v1314
      %1316 = vmatmul.bf16.gmra.mxu0 %v1179
      %v1317 = vpop.f32.mrf.mxu0
      %v1318 = vadd.f32 0.0, %v1317
      %v1319 = vpop.f32.mrf.mxu0
      %v1320 = vadd.f32 0.0, %v1319
      %1321 = vmatmul.bf16.gmra.mxu0 %v1180
      %v1322 = vpop.f32.mrf.mxu0
      %v1323 = vadd.f32 0.0, %v1322
      %v1324 = vpop.f32.mrf.mxu0
      %v1325 = vadd.f32 0.0, %v1324
      %1326 = vmatmul.bf16.gmra.mxu0 %v1181
      %v1327 = vpop.f32.mrf.mxu0
      %v1328 = vadd.f32 0.0, %v1327
      %v1329 = vpop.f32.mrf.mxu0
      %v1330 = vadd.f32 0.0, %v1329
      %1331 = vmatmul.bf16.gmra.mxu0 %v1182
      %v1332 = vpop.f32.mrf.mxu0
      %v1333 = vadd.f32 0.0, %v1332
      %v1334 = vpop.f32.mrf.mxu0
      %v1335 = vadd.f32 0.0, %v1334
      %1336 = vdwg.mxu0
      %v1353 = vunpack.c.l.b16 %v1119
      %v1354 = vunpack.c.l.b16 %v1120
      %v1355 = vunpack.c.l.b16 %v1121
      %v1356 = vunpack.c.l.b16 %v1122
      %v1357 = vunpack.c.l.b16 %v1123
      %v1358 = vunpack.c.l.b16 %v1124
      %v1359 = vunpack.c.l.b16 %v1125
      %v1360 = vunpack.c.l.b16 %v1126
      %v1361 = vunpack.c.l.b16 %v1127
      %v1362 = vunpack.c.l.b16 %v1128
      %v1363 = vunpack.c.l.b16 %v1129
      %v1364 = vunpack.c.l.b16 %v1130
      %v1365 = vunpack.c.l.b16 %v1131
      %v1366 = vunpack.c.l.b16 %v1132
      %v1367 = vunpack.c.l.b16 %v1133
      %v1368 = vunpack.c.l.b16 %v1134
      %v1369 = vpack.c.b16 %v1354, %v1353
      %v1370 = vpack.c.b16 %v1356, %v1355
      %v1371 = vpack.c.b16 %v1358, %v1357
      %v1372 = vpack.c.b16 %v1360, %v1359
      %v1373 = vpack.c.b16 %v1362, %v1361
      %v1374 = vpack.c.b16 %v1364, %v1363
      %v1375 = vpack.c.b16 %v1366, %v1365
      %v1376 = vpack.c.b16 %v1368, %v1367
      %1385 = vmatpush.bf16.msra.mxu0 %v1376
      %1386 = vmatpush.bf16.msra.mxu0 %v1375
      %1387 = vmatpush.bf16.msra.mxu0 %v1374
      %1388 = vmatpush.bf16.msra.mxu0 %v1373
      %1389 = vmatpush.bf16.msra.mxu0 %v1372
      %1390 = vmatpush.bf16.msra.mxu0 %v1371
      %1391 = vmatpush.bf16.msra.mxu0 %v1370
      %1392 = vmatpush.bf16.msra.mxu0 %v1369
      %1393 = vmatmul.bf16.gmra.mxu0 %v1103
      %v1394 = vpop.f32.mrf.mxu0
      %v1395 = vadd.f32 %v1258, %v1394
      %v1396 = vpop.f32.mrf.mxu0
      %v1397 = vadd.f32 %v1260, %v1396
      %1398 = vmatmul.bf16.gmra.mxu0 %v1104
      %v1399 = vpop.f32.mrf.mxu0
      %v1400 = vadd.f32 %v1263, %v1399
      %v1401 = vpop.f32.mrf.mxu0
      %v1402 = vadd.f32 %v1265, %v1401
      %1403 = vmatmul.bf16.gmra.mxu0 %v1105
      %v1404 = vpop.f32.mrf.mxu0
      %v1405 = vadd.f32 %v1268, %v1404
      %v1406 = vpop.f32.mrf.mxu0
      %v1407 = vadd.f32 %v1270, %v1406
      %1408 = vmatmul.bf16.gmra.mxu0 %v1106
      %v1409 = vpop.f32.mrf.mxu0
      %v1410 = vadd.f32 %v1273, %v1409
      %v1411 = vpop.f32.mrf.mxu0
      %v1412 = vadd.f32 %v1275, %v1411
      %1413 = vmatmul.bf16.gmra.mxu0 %v1107
      %v1414 = vpop.f32.mrf.mxu0
      %v1415 = vadd.f32 %v1278, %v1414
      %v1416 = vpop.f32.mrf.mxu0
      %v1417 = vadd.f32 %v1280, %v1416
      %1418 = vmatmul.bf16.gmra.mxu0 %v1108
      %v1419 = vpop.f32.mrf.mxu0
      %v1420 = vadd.f32 %v1283, %v1419
      %v1421 = vpop.f32.mrf.mxu0
      %v1422 = vadd.f32 %v1285, %v1421
      %1423 = vmatmul.bf16.gmra.mxu0 %v1109
      %v1424 = vpop.f32.mrf.mxu0
      %v1425 = vadd.f32 %v1288, %v1424
      %v1426 = vpop.f32.mrf.mxu0
      %v1427 = vadd.f32 %v1290, %v1426
      %1428 = vmatmul.bf16.gmra.mxu0 %v1110
      %v1429 = vpop.f32.mrf.mxu0
      %v1430 = vadd.f32 %v1293, %v1429
      %v1431 = vpop.f32.mrf.mxu0
      %v1432 = vadd.f32 %v1295, %v1431
      %1433 = vmatmul.bf16.gmra.mxu0 %v1111
      %v1434 = vpop.f32.mrf.mxu0
      %v1435 = vadd.f32 %v1298, %v1434
      %v1436 = vpop.f32.mrf.mxu0
      %v1437 = vadd.f32 %v1300, %v1436
      %1438 = vmatmul.bf16.gmra.mxu0 %v1112
      %v1439 = vpop.f32.mrf.mxu0
      %v1440 = vadd.f32 %v1303, %v1439
      %v1441 = vpop.f32.mrf.mxu0
      %v1442 = vadd.f32 %v1305, %v1441
      %1443 = vmatmul.bf16.gmra.mxu0 %v1113
      %v1444 = vpop.f32.mrf.mxu0
      %v1445 = vadd.f32 %v1308, %v1444
      %v1446 = vpop.f32.mrf.mxu0
      %v1447 = vadd.f32 %v1310, %v1446
      %1448 = vmatmul.bf16.gmra.mxu0 %v1114
      %v1449 = vpop.f32.mrf.mxu0
      %v1450 = vadd.f32 %v1313, %v1449
      %v1451 = vpop.f32.mrf.mxu0
      %v1452 = vadd.f32 %v1315, %v1451
      %1453 = vmatmul.bf16.gmra.mxu0 %v1115
      %v1454 = vpop.f32.mrf.mxu0
      %v1455 = vadd.f32 %v1318, %v1454
      %v1456 = vpop.f32.mrf.mxu0
      %v1457 = vadd.f32 %v1320, %v1456
      %1458 = vmatmul.bf16.gmra.mxu0 %v1116
      %v1459 = vpop.f32.mrf.mxu0
      %v1460 = vadd.f32 %v1323, %v1459
      %v1461 = vpop.f32.mrf.mxu0
      %v1462 = vadd.f32 %v1325, %v1461
      %1463 = vmatmul.bf16.gmra.mxu0 %v1117
      %v1464 = vpop.f32.mrf.mxu0
      %v1465 = vadd.f32 %v1328, %v1464
      %v1466 = vpop.f32.mrf.mxu0
      %v1467 = vadd.f32 %v1330, %v1466
      %1468 = vmatmul.bf16.gmra.mxu0 %v1118
      %v1469 = vpop.f32.mrf.mxu0
      %v1470 = vadd.f32 %v1333, %v1469
      %v1471 = vpop.f32.mrf.mxu0
      %v1472 = vadd.f32 %v1335, %v1471
      %1473 = vdwg.mxu0
      %v1474 = vld [vmem:[#allocation2 + $0x9] sm:$0xff]
      %v1475 = vld [vmem:[#allocation2 + $0x11] sm:$0xff]
      %v1476 = vld [vmem:[#allocation2 + $0x19] sm:$0xff]
      %v1477 = vld [vmem:[#allocation2 + $0x21] sm:$0xff]
      %v1478 = vld [vmem:[#allocation2 + $0x29] sm:$0xff]
      %v1479 = vld [vmem:[#allocation2 + $0x31] sm:$0xff]
      %v1480 = vld [vmem:[#allocation2 + $0x39] sm:$0xff]
      %v1481 = vld [vmem:[#allocation2 + $0x41] sm:$0xff]
      %v1482 = vld [vmem:[#allocation2 + $0x49] sm:$0xff]
      %v1483 = vld [vmem:[#allocation2 + $0x51] sm:$0xff]
      %v1484 = vld [vmem:[#allocation2 + $0x59] sm:$0xff]
      %v1485 = vld [vmem:[#allocation2 + $0x61] sm:$0xff]
      %v1486 = vld [vmem:[#allocation2 + $0x69] sm:$0xff]
      %v1487 = vld [vmem:[#allocation2 + $0x71] sm:$0xff]
      %v1488 = vld [vmem:[#allocation2 + $0x79] sm:$0xff]
      %v1489 = vld [vmem:[#allocation2 + $0x81] sm:$0xff]
      %v1490 = vld [vmem:[#allocation2 + $0x89] sm:$0xff]
      %v1491 = vld [vmem:[#allocation2 + $0x91] sm:$0xff]
      %v1492 = vld [vmem:[#allocation2 + $0x99] sm:$0xff]
      %v1493 = vld [vmem:[#allocation2 + $0xa1] sm:$0xff]
      %v1494 = vld [vmem:[#allocation2 + $0xa9] sm:$0xff]
      %v1495 = vld [vmem:[#allocation2 + $0xb1] sm:$0xff]
      %v1496 = vld [vmem:[#allocation2 + $0xb9] sm:$0xff]
      %v1497 = vld [vmem:[#allocation2 + $0xc1] sm:$0xff]
      %v1498 = vld [vmem:[#allocation2 + $0xc9] sm:$0xff]
      %v1499 = vld [vmem:[#allocation2 + $0xd1] sm:$0xff]
      %v1500 = vld [vmem:[#allocation2 + $0xd9] sm:$0xff]
      %v1501 = vld [vmem:[#allocation2 + $0xe1] sm:$0xff]
      %v1502 = vld [vmem:[#allocation2 + $0xe9] sm:$0xff]
      %v1503 = vld [vmem:[#allocation2 + $0xf1] sm:$0xff]
      %v1504 = vld [vmem:[#allocation2 + $0xf9] sm:$0xff]
      %v1505 = vld [vmem:[#allocation2 + $0x101] sm:$0xff]
      %v1506 = vsel %vm943, 1, 0
      %v1507 = vsel %vm944, 1, 0
      %v1508 = vsel %vm945, 1, 0
      %v1509 = vsel %vm946, 1, 0
      %v1510 = vsel %vm947, 1, 0
      %v1511 = vsel %vm948, 1, 0
      %v1512 = vsel %vm949, 1, 0
      %v1513 = vsel %vm950, 1, 0
      %v1514 = vsel %vm951, 1, 0
      %v1515 = vsel %vm952, 1, 0
      %v1516 = vsel %vm953, 1, 0
      %v1517 = vsel %vm954, 1, 0
      %v1518 = vsel %vm955, 1, 0
      %v1519 = vsel %vm956, 1, 0
      %v1520 = vsel %vm957, 1, 0
      %v1521 = vsel %vm958, 1, 0
      %v1522 = vsel %vm959, 1, 0
      %v1523 = vsel %vm960, 1, 0
      %v1524 = vsel %vm961, 1, 0
      %v1525 = vsel %vm962, 1, 0
      %v1526 = vsel %vm963, 1, 0
      %v1527 = vsel %vm964, 1, 0
      %v1528 = vsel %vm965, 1, 0
      %v1529 = vsel %vm966, 1, 0
      %v1530 = vsel %vm967, 1, 0
      %v1531 = vsel %vm968, 1, 0
      %v1532 = vsel %vm969, 1, 0
      %v1533 = vsel %vm970, 1, 0
      %v1534 = vsel %vm971, 1, 0
      %v1535 = vsel %vm972, 1, 0
      %v1536 = vsel %vm973, 1, 0
      %v1537 = vsel %vm974, 1, 0
      %vm1538 = vcmp.eq.s32.totalorder %v1506, 1
      %vm1539 = vcmp.eq.s32.totalorder %v1507, 1
      %vm1540 = vcmp.eq.s32.totalorder %v1508, 1
      %vm1541 = vcmp.eq.s32.totalorder %v1509, 1
      %vm1542 = vcmp.eq.s32.totalorder %v1510, 1
      %vm1543 = vcmp.eq.s32.totalorder %v1511, 1
      %vm1544 = vcmp.eq.s32.totalorder %v1512, 1
      %vm1545 = vcmp.eq.s32.totalorder %v1513, 1
      %vm1546 = vcmp.eq.s32.totalorder %v1514, 1
      %vm1547 = vcmp.eq.s32.totalorder %v1515, 1
      %vm1548 = vcmp.eq.s32.totalorder %v1516, 1
      %vm1549 = vcmp.eq.s32.totalorder %v1517, 1
      %vm1550 = vcmp.eq.s32.totalorder %v1518, 1
      %vm1551 = vcmp.eq.s32.totalorder %v1519, 1
      %vm1552 = vcmp.eq.s32.totalorder %v1520, 1
      %vm1553 = vcmp.eq.s32.totalorder %v1521, 1
      %vm1554 = vcmp.eq.s32.totalorder %v1522, 1
      %vm1555 = vcmp.eq.s32.totalorder %v1523, 1
      %vm1556 = vcmp.eq.s32.totalorder %v1524, 1
      %vm1557 = vcmp.eq.s32.totalorder %v1525, 1
      %vm1558 = vcmp.eq.s32.totalorder %v1526, 1
      %vm1559 = vcmp.eq.s32.totalorder %v1527, 1
      %vm1560 = vcmp.eq.s32.totalorder %v1528, 1
      %vm1561 = vcmp.eq.s32.totalorder %v1529, 1
      %vm1562 = vcmp.eq.s32.totalorder %v1530, 1
      %vm1563 = vcmp.eq.s32.totalorder %v1531, 1
      %vm1564 = vcmp.eq.s32.totalorder %v1532, 1
      %vm1565 = vcmp.eq.s32.totalorder %v1533, 1
      %vm1566 = vcmp.eq.s32.totalorder %v1534, 1
      %vm1567 = vcmp.eq.s32.totalorder %v1535, 1
      %vm1568 = vcmp.eq.s32.totalorder %v1536, 1
      %vm1569 = vcmp.eq.s32.totalorder %v1537, 1
      %v1570 = vsel %vm1538, %v1474, 0.0
      %v1571 = vsel %vm1539, %v1475, 0.0
      %v1572 = vsel %vm1540, %v1476, 0.0
      %v1573 = vsel %vm1541, %v1477, 0.0
      %v1574 = vsel %vm1542, %v1478, 0.0
      %v1575 = vsel %vm1543, %v1479, 0.0
      %v1576 = vsel %vm1544, %v1480, 0.0
      %v1577 = vsel %vm1545, %v1481, 0.0
      %v1578 = vsel %vm1546, %v1482, 0.0
      %v1579 = vsel %vm1547, %v1483, 0.0
      %v1580 = vsel %vm1548, %v1484, 0.0
      %v1581 = vsel %vm1549, %v1485, 0.0
      %v1582 = vsel %vm1550, %v1486, 0.0
      %v1583 = vsel %vm1551, %v1487, 0.0
      %v1584 = vsel %vm1552, %v1488, 0.0
      %v1585 = vsel %vm1553, %v1489, 0.0
      %v1586 = vsel %vm1554, %v1490, 0.0
      %v1587 = vsel %vm1555, %v1491, 0.0
      %v1588 = vsel %vm1556, %v1492, 0.0
      %v1589 = vsel %vm1557, %v1493, 0.0
      %v1590 = vsel %vm1558, %v1494, 0.0
      %v1591 = vsel %vm1559, %v1495, 0.0
      %v1592 = vsel %vm1560, %v1496, 0.0
      %v1593 = vsel %vm1561, %v1497, 0.0
      %v1594 = vsel %vm1562, %v1498, 0.0
      %v1595 = vsel %vm1563, %v1499, 0.0
      %v1596 = vsel %vm1564, %v1500, 0.0
      %v1597 = vsel %vm1565, %v1501, 0.0
      %v1598 = vsel %vm1566, %v1502, 0.0
      %v1599 = vsel %vm1567, %v1503, 0.0
      %v1600 = vsel %vm1568, %v1504, 0.0
      %v1601 = vsel %vm1569, %v1505, 0.0
      %v1602 = vpack.c.bf16 %v1571, %v1570
      %v1603 = vpack.c.bf16 %v1573, %v1572
      %v1604 = vpack.c.bf16 %v1575, %v1574
      %v1605 = vpack.c.bf16 %v1577, %v1576
      %v1606 = vpack.c.bf16 %v1579, %v1578
      %v1607 = vpack.c.bf16 %v1581, %v1580
      %v1608 = vpack.c.bf16 %v1583, %v1582
      %v1609 = vpack.c.bf16 %v1585, %v1584
      %v1610 = vpack.c.bf16 %v1587, %v1586
      %v1611 = vpack.c.bf16 %v1589, %v1588
      %v1612 = vpack.c.bf16 %v1591, %v1590
      %v1613 = vpack.c.bf16 %v1593, %v1592
      %v1614 = vpack.c.bf16 %v1595, %v1594
      %v1615 = vpack.c.bf16 %v1597, %v1596
      %v1616 = vpack.c.bf16 %v1599, %v1598
      %v1617 = vpack.c.bf16 %v1601, %v1600
      %s1618 = scalar_lea.vmem %s3, 128
      %v1619 = vld [vmem:[%s1618] sm:$0xf]
      %v1620 = vld [vmem:[%s1618 + $0x4] sm:$0xf]
      %v1621 = vld [vmem:[%s1618 + $0x8] sm:$0xf]
      %v1622 = vld [vmem:[%s1618 + $0xc] sm:$0xf]
      %v1623 = vld [vmem:[%s1618 + $0x10] sm:$0xf]
      %v1624 = vld [vmem:[%s1618 + $0x14] sm:$0xf]
      %v1625 = vld [vmem:[%s1618 + $0x18] sm:$0xf]
      %v1626 = vld [vmem:[%s1618 + $0x1c] sm:$0xf]
      %v1627 = vld [vmem:[%s1618 + $0x20] sm:$0xf]
      %v1628 = vld [vmem:[%s1618 + $0x24] sm:$0xf]
      %v1629 = vld [vmem:[%s1618 + $0x28] sm:$0xf]
      %v1630 = vld [vmem:[%s1618 + $0x2c] sm:$0xf]
      %v1631 = vld [vmem:[%s1618 + $0x30] sm:$0xf]
      %v1632 = vld [vmem:[%s1618 + $0x34] sm:$0xf]
      %v1633 = vld [vmem:[%s1618 + $0x38] sm:$0xf]
      %v1634 = vld [vmem:[%s1618 + $0x3c] sm:$0xf]
      %v1651 = vunpack.c.l.b16 %v1619
      %v1652 = vunpack.c.l.b16 %v1620
      %v1653 = vunpack.c.l.b16 %v1621
      %v1654 = vunpack.c.l.b16 %v1622
      %v1655 = vunpack.c.l.b16 %v1623
      %v1656 = vunpack.c.l.b16 %v1624
      %v1657 = vunpack.c.l.b16 %v1625
      %v1658 = vunpack.c.l.b16 %v1626
      %v1659 = vunpack.c.l.b16 %v1627
      %v1660 = vunpack.c.l.b16 %v1628
      %v1661 = vunpack.c.l.b16 %v1629
      %v1662 = vunpack.c.l.b16 %v1630
      %v1663 = vunpack.c.l.b16 %v1631
      %v1664 = vunpack.c.l.b16 %v1632
      %v1665 = vunpack.c.l.b16 %v1633
      %v1666 = vunpack.c.l.b16 %v1634
      %v1667 = vpack.c.b16 %v1652, %v1651
      %v1668 = vpack.c.b16 %v1654, %v1653
      %v1669 = vpack.c.b16 %v1656, %v1655
      %v1670 = vpack.c.b16 %v1658, %v1657
      %v1671 = vpack.c.b16 %v1660, %v1659
      %v1672 = vpack.c.b16 %v1662, %v1661
      %v1673 = vpack.c.b16 %v1664, %v1663
      %v1674 = vpack.c.b16 %v1666, %v1665
      %1683 = vmatpush.bf16.msra.mxu0 %v1674
      %1684 = vmatpush.bf16.msra.mxu0 %v1673
      %1685 = vmatpush.bf16.msra.mxu0 %v1672
      %1686 = vmatpush.bf16.msra.mxu0 %v1671
      %1687 = vmatpush.bf16.msra.mxu0 %v1670
      %1688 = vmatpush.bf16.msra.mxu0 %v1669
      %1689 = vmatpush.bf16.msra.mxu0 %v1668
      %1690 = vmatpush.bf16.msra.mxu0 %v1667
      %1691 = vmatmul.bf16.gmra.mxu0 %v1602
      %v1692 = vpop.f32.mrf.mxu0
      %v1693 = vadd.f32 0.0, %v1692
      %v1694 = vpop.f32.mrf.mxu0
      %v1695 = vadd.f32 0.0, %v1694
      %1696 = vmatmul.bf16.gmra.mxu0 %v1603
      %v1697 = vpop.f32.mrf.mxu0
      %v1698 = vadd.f32 0.0, %v1697
      %v1699 = vpop.f32.mrf.mxu0
      %v1700 = vadd.f32 0.0, %v1699
      %1701 = vmatmul.bf16.gmra.mxu0 %v1604
      %v1702 = vpop.f32.mrf.mxu0
      %v1703 = vadd.f32 0.0, %v1702
      %v1704 = vpop.f32.mrf.mxu0
      %v1705 = vadd.f32 0.0, %v1704
      %1706 = vmatmul.bf16.gmra.mxu0 %v1605
      %v1707 = vpop.f32.mrf.mxu0
      %v1708 = vadd.f32 0.0, %v1707
      %v1709 = vpop.f32.mrf.mxu0
      %v1710 = vadd.f32 0.0, %v1709
      %1711 = vmatmul.bf16.gmra.mxu0 %v1606
      %v1712 = vpop.f32.mrf.mxu0
      %v1713 = vadd.f32 0.0, %v1712
      %v1714 = vpop.f32.mrf.mxu0
      %v1715 = vadd.f32 0.0, %v1714
      %1716 = vmatmul.bf16.gmra.mxu0 %v1607
      %v1717 = vpop.f32.mrf.mxu0
      %v1718 = vadd.f32 0.0, %v1717
      %v1719 = vpop.f32.mrf.mxu0
      %v1720 = vadd.f32 0.0, %v1719
      %1721 = vmatmul.bf16.gmra.mxu0 %v1608
      %v1722 = vpop.f32.mrf.mxu0
      %v1723 = vadd.f32 0.0, %v1722
      %v1724 = vpop.f32.mrf.mxu0
      %v1725 = vadd.f32 0.0, %v1724
      %1726 = vmatmul.bf16.gmra.mxu0 %v1609
      %v1727 = vpop.f32.mrf.mxu0
      %v1728 = vadd.f32 0.0, %v1727
      %v1729 = vpop.f32.mrf.mxu0
      %v1730 = vadd.f32 0.0, %v1729
      %1731 = vmatmul.bf16.gmra.mxu0 %v1610
      %v1732 = vpop.f32.mrf.mxu0
      %v1733 = vadd.f32 0.0, %v1732
      %v1734 = vpop.f32.mrf.mxu0
      %v1735 = vadd.f32 0.0, %v1734
      %1736 = vmatmul.bf16.gmra.mxu0 %v1611
      %v1737 = vpop.f32.mrf.mxu0
      %v1738 = vadd.f32 0.0, %v1737
      %v1739 = vpop.f32.mrf.mxu0
      %v1740 = vadd.f32 0.0, %v1739
      %1741 = vmatmul.bf16.gmra.mxu0 %v1612
      %v1742 = vpop.f32.mrf.mxu0
      %v1743 = vadd.f32 0.0, %v1742
      %v1744 = vpop.f32.mrf.mxu0
      %v1745 = vadd.f32 0.0, %v1744
      %1746 = vmatmul.bf16.gmra.mxu0 %v1613
      %v1747 = vpop.f32.mrf.mxu0
      %v1748 = vadd.f32 0.0, %v1747
      %v1749 = vpop.f32.mrf.mxu0
      %v1750 = vadd.f32 0.0, %v1749
      %1751 = vmatmul.bf16.gmra.mxu0 %v1614
      %v1752 = vpop.f32.mrf.mxu0
      %v1753 = vadd.f32 0.0, %v1752
      %v1754 = vpop.f32.mrf.mxu0
      %v1755 = vadd.f32 0.0, %v1754
      %1756 = vmatmul.bf16.gmra.mxu0 %v1615
      %v1757 = vpop.f32.mrf.mxu0
      %v1758 = vadd.f32 0.0, %v1757
      %v1759 = vpop.f32.mrf.mxu0
      %v1760 = vadd.f32 0.0, %v1759
      %1761 = vmatmul.bf16.gmra.mxu0 %v1616
      %v1762 = vpop.f32.mrf.mxu0
      %v1763 = vadd.f32 0.0, %v1762
      %v1764 = vpop.f32.mrf.mxu0
      %v1765 = vadd.f32 0.0, %v1764
      %1766 = vmatmul.bf16.gmra.mxu0 %v1617
      %v1767 = vpop.f32.mrf.mxu0
      %v1768 = vadd.f32 0.0, %v1767
      %v1769 = vpop.f32.mrf.mxu0
      %v1770 = vadd.f32 0.0, %v1769
      %1771 = vdwg.mxu0
      %v1772 = vadd.f32 %v1395, %v1693
      %v1773 = vadd.f32 %v1397, %v1695
      %v1774 = vadd.f32 %v1400, %v1698
      %v1775 = vadd.f32 %v1402, %v1700
      %v1776 = vadd.f32 %v1405, %v1703
      %v1777 = vadd.f32 %v1407, %v1705
      %v1778 = vadd.f32 %v1410, %v1708
      %v1779 = vadd.f32 %v1412, %v1710
      %v1780 = vadd.f32 %v1415, %v1713
      %v1781 = vadd.f32 %v1417, %v1715
      %v1782 = vadd.f32 %v1420, %v1718
      %v1783 = vadd.f32 %v1422, %v1720
      %v1784 = vadd.f32 %v1425, %v1723
      %v1785 = vadd.f32 %v1427, %v1725
      %v1786 = vadd.f32 %v1430, %v1728
      %v1787 = vadd.f32 %v1432, %v1730
      %v1788 = vadd.f32 %v1435, %v1733
      %v1789 = vadd.f32 %v1437, %v1735
      %v1790 = vadd.f32 %v1440, %v1738
      %v1791 = vadd.f32 %v1442, %v1740
      %v1792 = vadd.f32 %v1445, %v1743
      %v1793 = vadd.f32 %v1447, %v1745
      %v1794 = vadd.f32 %v1450, %v1748
      %v1795 = vadd.f32 %v1452, %v1750
      %v1796 = vadd.f32 %v1455, %v1753
      %v1797 = vadd.f32 %v1457, %v1755
      %v1798 = vadd.f32 %v1460, %v1758
      %v1799 = vadd.f32 %v1462, %v1760
      %v1800 = vadd.f32 %v1465, %v1763
      %v1801 = vadd.f32 %v1467, %v1765
      %v1802 = vadd.f32 %v1470, %v1768
      %v1803 = vadd.f32 %v1472, %v1770
      %v1804 = vld [vmem:[#allocation2 + $0x17] sm:$0xff]
      %v1805 = vld [vmem:[#allocation2 + $0x1f] sm:$0xff]
      %v1806 = vld [vmem:[#allocation2 + $0x27] sm:$0xff]
      %v1807 = vld [vmem:[#allocation2 + $0x2f] sm:$0xff]
      %v1808 = vld [vmem:[#allocation2 + $0x37] sm:$0xff]
      %v1809 = vld [vmem:[#allocation2 + $0x3f] sm:$0xff]
      %v1810 = vld [vmem:[#allocation2 + $0x47] sm:$0xff]
      %v1811 = vld [vmem:[#allocation2 + $0x4f] sm:$0xff]
      %v1812 = vld [vmem:[#allocation2 + $0x57] sm:$0xff]
      %v1813 = vld [vmem:[#allocation2 + $0x5f] sm:$0xff]
      %v1814 = vld [vmem:[#allocation2 + $0x67] sm:$0xff]
      %v1815 = vld [vmem:[#allocation2 + $0x6f] sm:$0xff]
      %v1816 = vld [vmem:[#allocation2 + $0x77] sm:$0xff]
      %v1817 = vld [vmem:[#allocation2 + $0x7f] sm:$0xff]
      %v1818 = vld [vmem:[#allocation2 + $0x87] sm:$0xff]
      %v1819 = vld [vmem:[#allocation2 + $0x8f] sm:$0xff]
      %v1820 = vld [vmem:[#allocation2 + $0x97] sm:$0xff]
      %v1821 = vld [vmem:[#allocation2 + $0x9f] sm:$0xff]
      %v1822 = vld [vmem:[#allocation2 + $0xa7] sm:$0xff]
      %v1823 = vld [vmem:[#allocation2 + $0xaf] sm:$0xff]
      %v1824 = vld [vmem:[#allocation2 + $0xb7] sm:$0xff]
      %v1825 = vld [vmem:[#allocation2 + $0xbf] sm:$0xff]
      %v1826 = vld [vmem:[#allocation2 + $0xc7] sm:$0xff]
      %v1827 = vld [vmem:[#allocation2 + $0xcf] sm:$0xff]
      %v1828 = vld [vmem:[#allocation2 + $0xd7] sm:$0xff]
      %v1829 = vld [vmem:[#allocation2 + $0xdf] sm:$0xff]
      %v1830 = vld [vmem:[#allocation2 + $0xe7] sm:$0xff]
      %v1831 = vld [vmem:[#allocation2 + $0xef] sm:$0xff]
      %v1832 = vld [vmem:[#allocation2 + $0xf7] sm:$0xff]
      %v1833 = vld [vmem:[#allocation2 + $0xff] sm:$0xff]
      %v1834 = vld [vmem:[#allocation2 + $0x107] sm:$0xff]
      %v1835 = vld [vmem:[#allocation2 + $0x10f] sm:$0xff]
      %v1836 = vsel %vm1039, %v1804, 0.0
      %v1837 = vsel %vm1040, %v1805, 0.0
      %v1838 = vsel %vm1041, %v1806, 0.0
      %v1839 = vsel %vm1042, %v1807, 0.0
      %v1840 = vsel %vm1043, %v1808, 0.0
      %v1841 = vsel %vm1044, %v1809, 0.0
      %v1842 = vsel %vm1045, %v1810, 0.0
      %v1843 = vsel %vm1046, %v1811, 0.0
      %v1844 = vsel %vm1047, %v1812, 0.0
      %v1845 = vsel %vm1048, %v1813, 0.0
      %v1846 = vsel %vm1049, %v1814, 0.0
      %v1847 = vsel %vm1050, %v1815, 0.0
      %v1848 = vsel %vm1051, %v1816, 0.0
      %v1849 = vsel %vm1052, %v1817, 0.0
      %v1850 = vsel %vm1053, %v1818, 0.0
      %v1851 = vsel %vm1054, %v1819, 0.0
      %v1852 = vsel %vm1055, %v1820, 0.0
      %v1853 = vsel %vm1056, %v1821, 0.0
      %v1854 = vsel %vm1057, %v1822, 0.0
      %v1855 = vsel %vm1058, %v1823, 0.0
      %v1856 = vsel %vm1059, %v1824, 0.0
      %v1857 = vsel %vm1060, %v1825, 0.0
      %v1858 = vsel %vm1061, %v1826, 0.0
      %v1859 = vsel %vm1062, %v1827, 0.0
      %v1860 = vsel %vm1063, %v1828, 0.0
      %v1861 = vsel %vm1064, %v1829, 0.0
      %v1862 = vsel %vm1065, %v1830, 0.0
      %v1863 = vsel %vm1066, %v1831, 0.0
      %v1864 = vsel %vm1067, %v1832, 0.0
      %v1865 = vsel %vm1068, %v1833, 0.0
      %v1866 = vsel %vm1069, %v1834, 0.0
      %v1867 = vsel %vm1070, %v1835, 0.0
      %v1868 = vpack.c.bf16 %v1837, %v1836
      %v1869 = vpack.c.bf16 %v1839, %v1838
      %v1870 = vpack.c.bf16 %v1841, %v1840
      %v1871 = vpack.c.bf16 %v1843, %v1842
      %v1872 = vpack.c.bf16 %v1845, %v1844
      %v1873 = vpack.c.bf16 %v1847, %v1846
      %v1874 = vpack.c.bf16 %v1849, %v1848
      %v1875 = vpack.c.bf16 %v1851, %v1850
      %v1876 = vpack.c.bf16 %v1853, %v1852
      %v1877 = vpack.c.bf16 %v1855, %v1854
      %v1878 = vpack.c.bf16 %v1857, %v1856
      %v1879 = vpack.c.bf16 %v1859, %v1858
      %v1880 = vpack.c.bf16 %v1861, %v1860
      %v1881 = vpack.c.bf16 %v1863, %v1862
      %v1882 = vpack.c.bf16 %v1865, %v1864
      %v1883 = vpack.c.bf16 %v1867, %v1866
      %s1884 = scalar_lea.vmem %s3, 192
      %v1885 = vld [vmem:[%s1884] sm:$0xf]
      %v1886 = vld [vmem:[%s1884 + $0x4] sm:$0xf]
      %v1887 = vld [vmem:[%s1884 + $0x8] sm:$0xf]
      %v1888 = vld [vmem:[%s1884 + $0xc] sm:$0xf]
      %v1889 = vld [vmem:[%s1884 + $0x10] sm:$0xf]
      %v1890 = vld [vmem:[%s1884 + $0x14] sm:$0xf]
      %v1891 = vld [vmem:[%s1884 + $0x18] sm:$0xf]
      %v1892 = vld [vmem:[%s1884 + $0x1c] sm:$0xf]
      %v1893 = vld [vmem:[%s1884 + $0x20] sm:$0xf]
      %v1894 = vld [vmem:[%s1884 + $0x24] sm:$0xf]
      %v1895 = vld [vmem:[%s1884 + $0x28] sm:$0xf]
      %v1896 = vld [vmem:[%s1884 + $0x2c] sm:$0xf]
      %v1897 = vld [vmem:[%s1884 + $0x30] sm:$0xf]
      %v1898 = vld [vmem:[%s1884 + $0x34] sm:$0xf]
      %v1899 = vld [vmem:[%s1884 + $0x38] sm:$0xf]
      %v1900 = vld [vmem:[%s1884 + $0x3c] sm:$0xf]
      %v1917 = vunpack.c.l.b16 %v1885
      %v1918 = vunpack.c.l.b16 %v1886
      %v1919 = vunpack.c.l.b16 %v1887
      %v1920 = vunpack.c.l.b16 %v1888
      %v1921 = vunpack.c.l.b16 %v1889
      %v1922 = vunpack.c.l.b16 %v1890
      %v1923 = vunpack.c.l.b16 %v1891
      %v1924 = vunpack.c.l.b16 %v1892
      %v1925 = vunpack.c.l.b16 %v1893
      %v1926 = vunpack.c.l.b16 %v1894
      %v1927 = vunpack.c.l.b16 %v1895
      %v1928 = vunpack.c.l.b16 %v1896
      %v1929 = vunpack.c.l.b16 %v1897
      %v1930 = vunpack.c.l.b16 %v1898
      %v1931 = vunpack.c.l.b16 %v1899
      %v1932 = vunpack.c.l.b16 %v1900
      %v1933 = vpack.c.b16 %v1918, %v1917
      %v1934 = vpack.c.b16 %v1920, %v1919
      %v1935 = vpack.c.b16 %v1922, %v1921
      %v1936 = vpack.c.b16 %v1924, %v1923
      %v1937 = vpack.c.b16 %v1926, %v1925
      %v1938 = vpack.c.b16 %v1928, %v1927
      %v1939 = vpack.c.b16 %v1930, %v1929
      %v1940 = vpack.c.b16 %v1932, %v1931
      %1949 = vmatpush.bf16.msra.mxu0 %v1940
      %1950 = vmatpush.bf16.msra.mxu0 %v1939
      %1951 = vmatpush.bf16.msra.mxu0 %v1938
      %1952 = vmatpush.bf16.msra.mxu0 %v1937
      %1953 = vmatpush.bf16.msra.mxu0 %v1936
      %1954 = vmatpush.bf16.msra.mxu0 %v1935
      %1955 = vmatpush.bf16.msra.mxu0 %v1934
      %1956 = vmatpush.bf16.msra.mxu0 %v1933
      %1957 = vmatmul.bf16.gmra.mxu0 %v1868
      %v1958 = vpop.f32.mrf.mxu0
      %v1959 = vadd.f32 0.0, %v1958
      %v1960 = vpop.f32.mrf.mxu0
      %v1961 = vadd.f32 0.0, %v1960
      %1962 = vmatmul.bf16.gmra.mxu0 %v1869
      %v1963 = vpop.f32.mrf.mxu0
      %v1964 = vadd.f32 0.0, %v1963
      %v1965 = vpop.f32.mrf.mxu0
      %v1966 = vadd.f32 0.0, %v1965
      %1967 = vmatmul.bf16.gmra.mxu0 %v1870
      %v1968 = vpop.f32.mrf.mxu0
      %v1969 = vadd.f32 0.0, %v1968
      %v1970 = vpop.f32.mrf.mxu0
      %v1971 = vadd.f32 0.0, %v1970
      %1972 = vmatmul.bf16.gmra.mxu0 %v1871
      %v1973 = vpop.f32.mrf.mxu0
      %v1974 = vadd.f32 0.0, %v1973
      %v1975 = vpop.f32.mrf.mxu0
      %v1976 = vadd.f32 0.0, %v1975
      %1977 = vmatmul.bf16.gmra.mxu0 %v1872
      %v1978 = vpop.f32.mrf.mxu0
      %v1979 = vadd.f32 0.0, %v1978
      %v1980 = vpop.f32.mrf.mxu0
      %v1981 = vadd.f32 0.0, %v1980
      %1982 = vmatmul.bf16.gmra.mxu0 %v1873
      %v1983 = vpop.f32.mrf.mxu0
      %v1984 = vadd.f32 0.0, %v1983
      %v1985 = vpop.f32.mrf.mxu0
      %v1986 = vadd.f32 0.0, %v1985
      %1987 = vmatmul.bf16.gmra.mxu0 %v1874
      %v1988 = vpop.f32.mrf.mxu0
      %v1989 = vadd.f32 0.0, %v1988
      %v1990 = vpop.f32.mrf.mxu0
      %v1991 = vadd.f32 0.0, %v1990
      %1992 = vmatmul.bf16.gmra.mxu0 %v1875
      %v1993 = vpop.f32.mrf.mxu0
      %v1994 = vadd.f32 0.0, %v1993
      %v1995 = vpop.f32.mrf.mxu0
      %v1996 = vadd.f32 0.0, %v1995
      %1997 = vmatmul.bf16.gmra.mxu0 %v1876
      %v1998 = vpop.f32.mrf.mxu0
      %v1999 = vadd.f32 0.0, %v1998
      %v2000 = vpop.f32.mrf.mxu0
      %v2001 = vadd.f32 0.0, %v2000
      %2002 = vmatmul.bf16.gmra.mxu0 %v1877
      %v2003 = vpop.f32.mrf.mxu0
      %v2004 = vadd.f32 0.0, %v2003
      %v2005 = vpop.f32.mrf.mxu0
      %v2006 = vadd.f32 0.0, %v2005
      %2007 = vmatmul.bf16.gmra.mxu0 %v1878
      %v2008 = vpop.f32.mrf.mxu0
      %v2009 = vadd.f32 0.0, %v2008
      %v2010 = vpop.f32.mrf.mxu0
      %v2011 = vadd.f32 0.0, %v2010
      %2012 = vmatmul.bf16.gmra.mxu0 %v1879
      %v2013 = vpop.f32.mrf.mxu0
      %v2014 = vadd.f32 0.0, %v2013
      %v2015 = vpop.f32.mrf.mxu0
      %v2016 = vadd.f32 0.0, %v2015
      %2017 = vmatmul.bf16.gmra.mxu0 %v1880
      %v2018 = vpop.f32.mrf.mxu0
      %v2019 = vadd.f32 0.0, %v2018
      %v2020 = vpop.f32.mrf.mxu0
      %v2021 = vadd.f32 0.0, %v2020
      %2022 = vmatmul.bf16.gmra.mxu0 %v1881
      %v2023 = vpop.f32.mrf.mxu0
      %v2024 = vadd.f32 0.0, %v2023
      %v2025 = vpop.f32.mrf.mxu0
      %v2026 = vadd.f32 0.0, %v2025
      %2027 = vmatmul.bf16.gmra.mxu0 %v1882
      %v2028 = vpop.f32.mrf.mxu0
      %v2029 = vadd.f32 0.0, %v2028
      %v2030 = vpop.f32.mrf.mxu0
      %v2031 = vadd.f32 0.0, %v2030
      %2032 = vmatmul.bf16.gmra.mxu0 %v1883
      %v2033 = vpop.f32.mrf.mxu0
      %v2034 = vadd.f32 0.0, %v2033
      %v2035 = vpop.f32.mrf.mxu0
      %v2036 = vadd.f32 0.0, %v2035
      %2037 = vdwg.mxu0
      %v2038 = vadd.f32 %v1772, %v1959
      %v2039 = vadd.f32 %v1773, %v1961
      %v2040 = vadd.f32 %v1774, %v1964
      %v2041 = vadd.f32 %v1775, %v1966
      %v2042 = vadd.f32 %v1776, %v1969
      %v2043 = vadd.f32 %v1777, %v1971
      %v2044 = vadd.f32 %v1778, %v1974
      %v2045 = vadd.f32 %v1779, %v1976
      %v2046 = vadd.f32 %v1780, %v1979
      %v2047 = vadd.f32 %v1781, %v1981
      %v2048 = vadd.f32 %v1782, %v1984
      %v2049 = vadd.f32 %v1783, %v1986
      %v2050 = vadd.f32 %v1784, %v1989
      %v2051 = vadd.f32 %v1785, %v1991
      %v2052 = vadd.f32 %v1786, %v1994
      %v2053 = vadd.f32 %v1787, %v1996
      %v2054 = vadd.f32 %v1788, %v1999
      %v2055 = vadd.f32 %v1789, %v2001
      %v2056 = vadd.f32 %v1790, %v2004
      %v2057 = vadd.f32 %v1791, %v2006
      %v2058 = vadd.f32 %v1792, %v2009
      %v2059 = vadd.f32 %v1793, %v2011
      %v2060 = vadd.f32 %v1794, %v2014
      %v2061 = vadd.f32 %v1795, %v2016
      %v2062 = vadd.f32 %v1796, %v2019
      %v2063 = vadd.f32 %v1797, %v2021
      %v2064 = vadd.f32 %v1798, %v2024
      %v2065 = vadd.f32 %v1799, %v2026
      %v2066 = vadd.f32 %v1800, %v2029
      %v2067 = vadd.f32 %v1801, %v2031
      %v2068 = vadd.f32 %v1802, %v2034
      %v2069 = vadd.f32 %v1803, %v2036
      %v2070 = vld [vmem:[#allocation2 + $0x18] sm:$0xff]
      %v2071 = vld [vmem:[#allocation2 + $0x20] sm:$0xff]
      %v2072 = vld [vmem:[#allocation2 + $0x28] sm:$0xff]
      %v2073 = vld [vmem:[#allocation2 + $0x30] sm:$0xff]
      %v2074 = vld [vmem:[#allocation2 + $0x38] sm:$0xff]
      %v2075 = vld [vmem:[#allocation2 + $0x40] sm:$0xff]
      %v2076 = vld [vmem:[#allocation2 + $0x48] sm:$0xff]
      %v2077 = vld [vmem:[#allocation2 + $0x50] sm:$0xff]
      %v2078 = vld [vmem:[#allocation2 + $0x58] sm:$0xff]
      %v2079 = vld [vmem:[#allocation2 + $0x60] sm:$0xff]
      %v2080 = vld [vmem:[#allocation2 + $0x68] sm:$0xff]
      %v2081 = vld [vmem:[#allocation2 + $0x70] sm:$0xff]
      %v2082 = vld [vmem:[#allocation2 + $0x78] sm:$0xff]
      %v2083 = vld [vmem:[#allocation2 + $0x80] sm:$0xff]
      %v2084 = vld [vmem:[#allocation2 + $0x88] sm:$0xff]
      %v2085 = vld [vmem:[#allocation2 + $0x90] sm:$0xff]
      %v2086 = vld [vmem:[#allocation2 + $0x98] sm:$0xff]
      %v2087 = vld [vmem:[#allocation2 + $0xa0] sm:$0xff]
      %v2088 = vld [vmem:[#allocation2 + $0xa8] sm:$0xff]
      %v2089 = vld [vmem:[#allocation2 + $0xb0] sm:$0xff]
      %v2090 = vld [vmem:[#allocation2 + $0xb8] sm:$0xff]
      %v2091 = vld [vmem:[#allocation2 + $0xc0] sm:$0xff]
      %v2092 = vld [vmem:[#allocation2 + $0xc8] sm:$0xff]
      %v2093 = vld [vmem:[#allocation2 + $0xd0] sm:$0xff]
      %v2094 = vld [vmem:[#allocation2 + $0xd8] sm:$0xff]
      %v2095 = vld [vmem:[#allocation2 + $0xe0] sm:$0xff]
      %v2096 = vld [vmem:[#allocation2 + $0xe8] sm:$0xff]
      %v2097 = vld [vmem:[#allocation2 + $0xf0] sm:$0xff]
      %v2098 = vld [vmem:[#allocation2 + $0xf8] sm:$0xff]
      %v2099 = vld [vmem:[#allocation2 + $0x100] sm:$0xff]
      %v2100 = vld [vmem:[#allocation2 + $0x108] sm:$0xff]
      %v2101 = vld [vmem:[#allocation2 + $0x110] sm:$0xff]
      %v2102 = vpack.c.bf16 %v2071, %v2070
      %v2103 = vpack.c.bf16 %v2073, %v2072
      %v2104 = vpack.c.bf16 %v2075, %v2074
      %v2105 = vpack.c.bf16 %v2077, %v2076
      %v2106 = vpack.c.bf16 %v2079, %v2078
      %v2107 = vpack.c.bf16 %v2081, %v2080
      %v2108 = vpack.c.bf16 %v2083, %v2082
      %v2109 = vpack.c.bf16 %v2085, %v2084
      %v2110 = vpack.c.bf16 %v2087, %v2086
      %v2111 = vpack.c.bf16 %v2089, %v2088
      %v2112 = vpack.c.bf16 %v2091, %v2090
      %v2113 = vpack.c.bf16 %v2093, %v2092
      %v2114 = vpack.c.bf16 %v2095, %v2094
      %v2115 = vpack.c.bf16 %v2097, %v2096
      %v2116 = vpack.c.bf16 %v2099, %v2098
      %v2117 = vpack.c.bf16 %v2101, %v2100
      %s2118 = scalar_lea.vmem %s3, 256
      %v2119 = vld [vmem:[%s2118] sm:$0xf]
      %v2120 = vld [vmem:[%s2118 + $0x4] sm:$0xf]
      %v2121 = vld [vmem:[%s2118 + $0x8] sm:$0xf]
      %v2122 = vld [vmem:[%s2118 + $0xc] sm:$0xf]
      %v2123 = vld [vmem:[%s2118 + $0x10] sm:$0xf]
      %v2124 = vld [vmem:[%s2118 + $0x14] sm:$0xf]
      %v2125 = vld [vmem:[%s2118 + $0x18] sm:$0xf]
      %v2126 = vld [vmem:[%s2118 + $0x1c] sm:$0xf]
      %v2127 = vld [vmem:[%s2118 + $0x20] sm:$0xf]
      %v2128 = vld [vmem:[%s2118 + $0x24] sm:$0xf]
      %v2129 = vld [vmem:[%s2118 + $0x28] sm:$0xf]
      %v2130 = vld [vmem:[%s2118 + $0x2c] sm:$0xf]
      %v2131 = vld [vmem:[%s2118 + $0x30] sm:$0xf]
      %v2132 = vld [vmem:[%s2118 + $0x34] sm:$0xf]
      %v2133 = vld [vmem:[%s2118 + $0x38] sm:$0xf]
      %v2134 = vld [vmem:[%s2118 + $0x3c] sm:$0xf]
      %v2151 = vunpack.c.l.b16 %v2119
      %v2152 = vunpack.c.l.b16 %v2120
      %v2153 = vunpack.c.l.b16 %v2121
      %v2154 = vunpack.c.l.b16 %v2122
      %v2155 = vunpack.c.l.b16 %v2123
      %v2156 = vunpack.c.l.b16 %v2124
      %v2157 = vunpack.c.l.b16 %v2125
      %v2158 = vunpack.c.l.b16 %v2126
      %v2159 = vunpack.c.l.b16 %v2127
      %v2160 = vunpack.c.l.b16 %v2128
      %v2161 = vunpack.c.l.b16 %v2129
      %v2162 = vunpack.c.l.b16 %v2130
      %v2163 = vunpack.c.l.b16 %v2131
      %v2164 = vunpack.c.l.b16 %v2132
      %v2165 = vunpack.c.l.b16 %v2133
      %v2166 = vunpack.c.l.b16 %v2134
      %v2167 = vpack.c.b16 %v2152, %v2151
      %v2168 = vpack.c.b16 %v2154, %v2153
      %v2169 = vpack.c.b16 %v2156, %v2155
      %v2170 = vpack.c.b16 %v2158, %v2157
      %v2171 = vpack.c.b16 %v2160, %v2159
      %v2172 = vpack.c.b16 %v2162, %v2161
      %v2173 = vpack.c.b16 %v2164, %v2163
      %v2174 = vpack.c.b16 %v2166, %v2165
      %2183 = vmatpush.bf16.msra.mxu0 %v2174
      %2184 = vmatpush.bf16.msra.mxu0 %v2173
      %2185 = vmatpush.bf16.msra.mxu0 %v2172
      %2186 = vmatpush.bf16.msra.mxu0 %v2171
      %2187 = vmatpush.bf16.msra.mxu0 %v2170
      %2188 = vmatpush.bf16.msra.mxu0 %v2169
      %2189 = vmatpush.bf16.msra.mxu0 %v2168
      %2190 = vmatpush.bf16.msra.mxu0 %v2167
      %2191 = vmatmul.bf16.gmra.mxu0 %v2102
      %v2192 = vpop.f32.mrf.mxu0
      %v2193 = vadd.f32 0.0, %v2192
      %v2194 = vpop.f32.mrf.mxu0
      %v2195 = vadd.f32 0.0, %v2194
      %2196 = vmatmul.bf16.gmra.mxu0 %v2103
      %v2197 = vpop.f32.mrf.mxu0
      %v2198 = vadd.f32 0.0, %v2197
      %v2199 = vpop.f32.mrf.mxu0
      %v2200 = vadd.f32 0.0, %v2199
      %2201 = vmatmul.bf16.gmra.mxu0 %v2104
      %v2202 = vpop.f32.mrf.mxu0
      %v2203 = vadd.f32 0.0, %v2202
      %v2204 = vpop.f32.mrf.mxu0
      %v2205 = vadd.f32 0.0, %v2204
      %2206 = vmatmul.bf16.gmra.mxu0 %v2105
      %v2207 = vpop.f32.mrf.mxu0
      %v2208 = vadd.f32 0.0, %v2207
      %v2209 = vpop.f32.mrf.mxu0
      %v2210 = vadd.f32 0.0, %v2209
      %2211 = vmatmul.bf16.gmra.mxu0 %v2106
      %v2212 = vpop.f32.mrf.mxu0
      %v2213 = vadd.f32 0.0, %v2212
      %v2214 = vpop.f32.mrf.mxu0
      %v2215 = vadd.f32 0.0, %v2214
      %2216 = vmatmul.bf16.gmra.mxu0 %v2107
      %v2217 = vpop.f32.mrf.mxu0
      %v2218 = vadd.f32 0.0, %v2217
      %v2219 = vpop.f32.mrf.mxu0
      %v2220 = vadd.f32 0.0, %v2219
      %2221 = vmatmul.bf16.gmra.mxu0 %v2108
      %v2222 = vpop.f32.mrf.mxu0
      %v2223 = vadd.f32 0.0, %v2222
      %v2224 = vpop.f32.mrf.mxu0
      %v2225 = vadd.f32 0.0, %v2224
      %2226 = vmatmul.bf16.gmra.mxu0 %v2109
      %v2227 = vpop.f32.mrf.mxu0
      %v2228 = vadd.f32 0.0, %v2227
      %v2229 = vpop.f32.mrf.mxu0
      %v2230 = vadd.f32 0.0, %v2229
      %2231 = vmatmul.bf16.gmra.mxu0 %v2110
      %v2232 = vpop.f32.mrf.mxu0
      %v2233 = vadd.f32 0.0, %v2232
      %v2234 = vpop.f32.mrf.mxu0
      %v2235 = vadd.f32 0.0, %v2234
      %2236 = vmatmul.bf16.gmra.mxu0 %v2111
      %v2237 = vpop.f32.mrf.mxu0
      %v2238 = vadd.f32 0.0, %v2237
      %v2239 = vpop.f32.mrf.mxu0
      %v2240 = vadd.f32 0.0, %v2239
      %2241 = vmatmul.bf16.gmra.mxu0 %v2112
      %v2242 = vpop.f32.mrf.mxu0
      %v2243 = vadd.f32 0.0, %v2242
      %v2244 = vpop.f32.mrf.mxu0
      %v2245 = vadd.f32 0.0, %v2244
      %2246 = vmatmul.bf16.gmra.mxu0 %v2113
      %v2247 = vpop.f32.mrf.mxu0
      %v2248 = vadd.f32 0.0, %v2247
      %v2249 = vpop.f32.mrf.mxu0
      %v2250 = vadd.f32 0.0, %v2249
      %2251 = vmatmul.bf16.gmra.mxu0 %v2114
      %v2252 = vpop.f32.mrf.mxu0
      %v2253 = vadd.f32 0.0, %v2252
      %v2254 = vpop.f32.mrf.mxu0
      %v2255 = vadd.f32 0.0, %v2254
      %2256 = vmatmul.bf16.gmra.mxu0 %v2115
      %v2257 = vpop.f32.mrf.mxu0
      %v2258 = vadd.f32 0.0, %v2257
      %v2259 = vpop.f32.mrf.mxu0
      %v2260 = vadd.f32 0.0, %v2259
      %2261 = vmatmul.bf16.gmra.mxu0 %v2116
      %v2262 = vpop.f32.mrf.mxu0
      %v2263 = vadd.f32 0.0, %v2262
      %v2264 = vpop.f32.mrf.mxu0
      %v2265 = vadd.f32 0.0, %v2264
      %2266 = vmatmul.bf16.gmra.mxu0 %v2117
      %v2267 = vpop.f32.mrf.mxu0
      %v2268 = vadd.f32 0.0, %v2267
      %v2269 = vpop.f32.mrf.mxu0
      %v2270 = vadd.f32 0.0, %v2269
      %2271 = vdwg.mxu0
      %v2272 = vadd.f32 %v2038, %v2193
      %v2273 = vadd.f32 %v2039, %v2195
      %v2274 = vadd.f32 %v2040, %v2198
      %v2275 = vadd.f32 %v2041, %v2200
      %v2276 = vadd.f32 %v2042, %v2203
      %v2277 = vadd.f32 %v2043, %v2205
      %v2278 = vadd.f32 %v2044, %v2208
      %v2279 = vadd.f32 %v2045, %v2210
      %v2280 = vadd.f32 %v2046, %v2213
      %v2281 = vadd.f32 %v2047, %v2215
      %v2282 = vadd.f32 %v2048, %v2218
      %v2283 = vadd.f32 %v2049, %v2220
      %v2284 = vadd.f32 %v2050, %v2223
      %v2285 = vadd.f32 %v2051, %v2225
      %v2286 = vadd.f32 %v2052, %v2228
      %v2287 = vadd.f32 %v2053, %v2230
      %v2288 = vadd.f32 %v2054, %v2233
      %v2289 = vadd.f32 %v2055, %v2235
      %v2290 = vadd.f32 %v2056, %v2238
      %v2291 = vadd.f32 %v2057, %v2240
      %v2292 = vadd.f32 %v2058, %v2243
      %v2293 = vadd.f32 %v2059, %v2245
      %v2294 = vadd.f32 %v2060, %v2248
      %v2295 = vadd.f32 %v2061, %v2250
      %v2296 = vadd.f32 %v2062, %v2253
      %v2297 = vadd.f32 %v2063, %v2255
      %v2298 = vadd.f32 %v2064, %v2258
      %v2299 = vadd.f32 %v2065, %v2260
      %v2300 = vadd.f32 %v2066, %v2263
      %v2301 = vadd.f32 %v2067, %v2265
      %v2302 = vadd.f32 %v2068, %v2268
      %v2303 = vadd.f32 %v2069, %v2270
      %v2304 = vld [vmem:[#allocation2 + $0x19] sm:$0xff]
      %v2305 = vld [vmem:[#allocation2 + $0x21] sm:$0xff]
      %v2306 = vld [vmem:[#allocation2 + $0x29] sm:$0xff]
      %v2307 = vld [vmem:[#allocation2 + $0x31] sm:$0xff]
      %v2308 = vld [vmem:[#allocation2 + $0x39] sm:$0xff]
      %v2309 = vld [vmem:[#allocation2 + $0x41] sm:$0xff]
      %v2310 = vld [vmem:[#allocation2 + $0x49] sm:$0xff]
      %v2311 = vld [vmem:[#allocation2 + $0x51] sm:$0xff]
      %v2312 = vld [vmem:[#allocation2 + $0x59] sm:$0xff]
      %v2313 = vld [vmem:[#allocation2 + $0x61] sm:$0xff]
      %v2314 = vld [vmem:[#allocation2 + $0x69] sm:$0xff]
      %v2315 = vld [vmem:[#allocation2 + $0x71] sm:$0xff]
      %v2316 = vld [vmem:[#allocation2 + $0x79] sm:$0xff]
      %v2317 = vld [vmem:[#allocation2 + $0x81] sm:$0xff]
      %v2318 = vld [vmem:[#allocation2 + $0x89] sm:$0xff]
      %v2319 = vld [vmem:[#allocation2 + $0x91] sm:$0xff]
      %v2320 = vld [vmem:[#allocation2 + $0x99] sm:$0xff]
      %v2321 = vld [vmem:[#allocation2 + $0xa1] sm:$0xff]
      %v2322 = vld [vmem:[#allocation2 + $0xa9] sm:$0xff]
      %v2323 = vld [vmem:[#allocation2 + $0xb1] sm:$0xff]
      %v2324 = vld [vmem:[#allocation2 + $0xb9] sm:$0xff]
      %v2325 = vld [vmem:[#allocation2 + $0xc1] sm:$0xff]
      %v2326 = vld [vmem:[#allocation2 + $0xc9] sm:$0xff]
      %v2327 = vld [vmem:[#allocation2 + $0xd1] sm:$0xff]
      %v2328 = vld [vmem:[#allocation2 + $0xd9] sm:$0xff]
      %v2329 = vld [vmem:[#allocation2 + $0xe1] sm:$0xff]
      %v2330 = vld [vmem:[#allocation2 + $0xe9] sm:$0xff]
      %v2331 = vld [vmem:[#allocation2 + $0xf1] sm:$0xff]
      %v2332 = vld [vmem:[#allocation2 + $0xf9] sm:$0xff]
      %v2333 = vld [vmem:[#allocation2 + $0x101] sm:$0xff]
      %v2334 = vld [vmem:[#allocation2 + $0x109] sm:$0xff]
      %v2335 = vld [vmem:[#allocation2 + $0x111] sm:$0xff]
      %v2336 = vsel %vm1538, %v2304, 0.0
      %v2337 = vsel %vm1539, %v2305, 0.0
      %v2338 = vsel %vm1540, %v2306, 0.0
      %v2339 = vsel %vm1541, %v2307, 0.0
      %v2340 = vsel %vm1542, %v2308, 0.0
      %v2341 = vsel %vm1543, %v2309, 0.0
      %v2342 = vsel %vm1544, %v2310, 0.0
      %v2343 = vsel %vm1545, %v2311, 0.0
      %v2344 = vsel %vm1546, %v2312, 0.0
      %v2345 = vsel %vm1547, %v2313, 0.0
      %v2346 = vsel %vm1548, %v2314, 0.0
      %v2347 = vsel %vm1549, %v2315, 0.0
      %v2348 = vsel %vm1550, %v2316, 0.0
      %v2349 = vsel %vm1551, %v2317, 0.0
      %v2350 = vsel %vm1552, %v2318, 0.0
      %v2351 = vsel %vm1553, %v2319, 0.0
      %v2352 = vsel %vm1554, %v2320, 0.0
      %v2353 = vsel %vm1555, %v2321, 0.0
      %v2354 = vsel %vm1556, %v2322, 0.0
      %v2355 = vsel %vm1557, %v2323, 0.0
      %v2356 = vsel %vm1558, %v2324, 0.0
      %v2357 = vsel %vm1559, %v2325, 0.0
      %v2358 = vsel %vm1560, %v2326, 0.0
      %v2359 = vsel %vm1561, %v2327, 0.0
      %v2360 = vsel %vm1562, %v2328, 0.0
      %v2361 = vsel %vm1563, %v2329, 0.0
      %v2362 = vsel %vm1564, %v2330, 0.0
      %v2363 = vsel %vm1565, %v2331, 0.0
      %v2364 = vsel %vm1566, %v2332, 0.0
      %v2365 = vsel %vm1567, %v2333, 0.0
      %v2366 = vsel %vm1568, %v2334, 0.0
      %v2367 = vsel %vm1569, %v2335, 0.0
      %v2368 = vpack.c.bf16 %v2337, %v2336
      %v2369 = vpack.c.bf16 %v2339, %v2338
      %v2370 = vpack.c.bf16 %v2341, %v2340
      %v2371 = vpack.c.bf16 %v2343, %v2342
      %v2372 = vpack.c.bf16 %v2345, %v2344
      %v2373 = vpack.c.bf16 %v2347, %v2346
      %v2374 = vpack.c.bf16 %v2349, %v2348
      %v2375 = vpack.c.bf16 %v2351, %v2350
      %v2376 = vpack.c.bf16 %v2353, %v2352
      %v2377 = vpack.c.bf16 %v2355, %v2354
      %v2378 = vpack.c.bf16 %v2357, %v2356
      %v2379 = vpack.c.bf16 %v2359, %v2358
      %v2380 = vpack.c.bf16 %v2361, %v2360
      %v2381 = vpack.c.bf16 %v2363, %v2362
      %v2382 = vpack.c.bf16 %v2365, %v2364
      %v2383 = vpack.c.bf16 %v2367, %v2366
      %s2384 = scalar_lea.vmem %s3, 320
      %v2385 = vld [vmem:[%s2384] sm:$0xf]
      %v2386 = vld [vmem:[%s2384 + $0x4] sm:$0xf]
      %v2387 = vld [vmem:[%s2384 + $0x8] sm:$0xf]
      %v2388 = vld [vmem:[%s2384 + $0xc] sm:$0xf]
      %v2389 = vld [vmem:[%s2384 + $0x10] sm:$0xf]
      %v2390 = vld [vmem:[%s2384 + $0x14] sm:$0xf]
      %v2391 = vld [vmem:[%s2384 + $0x18] sm:$0xf]
      %v2392 = vld [vmem:[%s2384 + $0x1c] sm:$0xf]
      %v2393 = vld [vmem:[%s2384 + $0x20] sm:$0xf]
      %v2394 = vld [vmem:[%s2384 + $0x24] sm:$0xf]
      %v2395 = vld [vmem:[%s2384 + $0x28] sm:$0xf]
      %v2396 = vld [vmem:[%s2384 + $0x2c] sm:$0xf]
      %v2397 = vld [vmem:[%s2384 + $0x30] sm:$0xf]
      %v2398 = vld [vmem:[%s2384 + $0x34] sm:$0xf]
      %v2399 = vld [vmem:[%s2384 + $0x38] sm:$0xf]
      %v2400 = vld [vmem:[%s2384 + $0x3c] sm:$0xf]
      %v2417 = vunpack.c.l.b16 %v2385
      %v2418 = vunpack.c.l.b16 %v2386
      %v2419 = vunpack.c.l.b16 %v2387
      %v2420 = vunpack.c.l.b16 %v2388
      %v2421 = vunpack.c.l.b16 %v2389
      %v2422 = vunpack.c.l.b16 %v2390
      %v2423 = vunpack.c.l.b16 %v2391
      %v2424 = vunpack.c.l.b16 %v2392
      %v2425 = vunpack.c.l.b16 %v2393
      %v2426 = vunpack.c.l.b16 %v2394
      %v2427 = vunpack.c.l.b16 %v2395
      %v2428 = vunpack.c.l.b16 %v2396
      %v2429 = vunpack.c.l.b16 %v2397
      %v2430 = vunpack.c.l.b16 %v2398
      %v2431 = vunpack.c.l.b16 %v2399
      %v2432 = vunpack.c.l.b16 %v2400
      %v2433 = vpack.c.b16 %v2418, %v2417
      %v2434 = vpack.c.b16 %v2420, %v2419
      %v2435 = vpack.c.b16 %v2422, %v2421
      %v2436 = vpack.c.b16 %v2424, %v2423
      %v2437 = vpack.c.b16 %v2426, %v2425
      %v2438 = vpack.c.b16 %v2428, %v2427
      %v2439 = vpack.c.b16 %v2430, %v2429
      %v2440 = vpack.c.b16 %v2432, %v2431
      %2449 = vmatpush.bf16.msra.mxu0 %v2440
      %2450 = vmatpush.bf16.msra.mxu0 %v2439
      %2451 = vmatpush.bf16.msra.mxu0 %v2438
      %2452 = vmatpush.bf16.msra.mxu0 %v2437
      %2453 = vmatpush.bf16.msra.mxu0 %v2436
      %2454 = vmatpush.bf16.msra.mxu0 %v2435
      %2455 = vmatpush.bf16.msra.mxu0 %v2434
      %2456 = vmatpush.bf16.msra.mxu0 %v2433
      %2457 = vmatmul.bf16.gmra.mxu0 %v2368
      %v2458 = vpop.f32.mrf.mxu0
      %v2459 = vadd.f32 0.0, %v2458
      %v2460 = vpop.f32.mrf.mxu0
      %v2461 = vadd.f32 0.0, %v2460
      %2462 = vmatmul.bf16.gmra.mxu0 %v2369
      %v2463 = vpop.f32.mrf.mxu0
      %v2464 = vadd.f32 0.0, %v2463
      %v2465 = vpop.f32.mrf.mxu0
      %v2466 = vadd.f32 0.0, %v2465
      %2467 = vmatmul.bf16.gmra.mxu0 %v2370
      %v2468 = vpop.f32.mrf.mxu0
      %v2469 = vadd.f32 0.0, %v2468
      %v2470 = vpop.f32.mrf.mxu0
      %v2471 = vadd.f32 0.0, %v2470
      %2472 = vmatmul.bf16.gmra.mxu0 %v2371
      %v2473 = vpop.f32.mrf.mxu0
      %v2474 = vadd.f32 0.0, %v2473
      %v2475 = vpop.f32.mrf.mxu0
      %v2476 = vadd.f32 0.0, %v2475
      %2477 = vmatmul.bf16.gmra.mxu0 %v2372
      %v2478 = vpop.f32.mrf.mxu0
      %v2479 = vadd.f32 0.0, %v2478
      %v2480 = vpop.f32.mrf.mxu0
      %v2481 = vadd.f32 0.0, %v2480
      %2482 = vmatmul.bf16.gmra.mxu0 %v2373
      %v2483 = vpop.f32.mrf.mxu0
      %v2484 = vadd.f32 0.0, %v2483
      %v2485 = vpop.f32.mrf.mxu0
      %v2486 = vadd.f32 0.0, %v2485
      %2487 = vmatmul.bf16.gmra.mxu0 %v2374
      %v2488 = vpop.f32.mrf.mxu0
      %v2489 = vadd.f32 0.0, %v2488
      %v2490 = vpop.f32.mrf.mxu0
      %v2491 = vadd.f32 0.0, %v2490
      %2492 = vmatmul.bf16.gmra.mxu0 %v2375
      %v2493 = vpop.f32.mrf.mxu0
      %v2494 = vadd.f32 0.0, %v2493
      %v2495 = vpop.f32.mrf.mxu0
      %v2496 = vadd.f32 0.0, %v2495
      %2497 = vmatmul.bf16.gmra.mxu0 %v2376
      %v2498 = vpop.f32.mrf.mxu0
      %v2499 = vadd.f32 0.0, %v2498
      %v2500 = vpop.f32.mrf.mxu0
      %v2501 = vadd.f32 0.0, %v2500
      %2502 = vmatmul.bf16.gmra.mxu0 %v2377
      %v2503 = vpop.f32.mrf.mxu0
      %v2504 = vadd.f32 0.0, %v2503
      %v2505 = vpop.f32.mrf.mxu0
      %v2506 = vadd.f32 0.0, %v2505
      %2507 = vmatmul.bf16.gmra.mxu0 %v2378
      %v2508 = vpop.f32.mrf.mxu0
      %v2509 = vadd.f32 0.0, %v2508
      %v2510 = vpop.f32.mrf.mxu0
      %v2511 = vadd.f32 0.0, %v2510
      %2512 = vmatmul.bf16.gmra.mxu0 %v2379
      %v2513 = vpop.f32.mrf.mxu0
      %v2514 = vadd.f32 0.0, %v2513
      %v2515 = vpop.f32.mrf.mxu0
      %v2516 = vadd.f32 0.0, %v2515
      %2517 = vmatmul.bf16.gmra.mxu0 %v2380
      %v2518 = vpop.f32.mrf.mxu0
      %v2519 = vadd.f32 0.0, %v2518
      %v2520 = vpop.f32.mrf.mxu0
      %v2521 = vadd.f32 0.0, %v2520
      %2522 = vmatmul.bf16.gmra.mxu0 %v2381
      %v2523 = vpop.f32.mrf.mxu0
      %v2524 = vadd.f32 0.0, %v2523
      %v2525 = vpop.f32.mrf.mxu0
      %v2526 = vadd.f32 0.0, %v2525
      %2527 = vmatmul.bf16.gmra.mxu0 %v2382
      %v2528 = vpop.f32.mrf.mxu0
      %v2529 = vadd.f32 0.0, %v2528
      %v2530 = vpop.f32.mrf.mxu0
      %v2531 = vadd.f32 0.0, %v2530
      %2532 = vmatmul.bf16.gmra.mxu0 %v2383
      %v2533 = vpop.f32.mrf.mxu0
      %v2534 = vadd.f32 0.0, %v2533
      %v2535 = vpop.f32.mrf.mxu0
      %v2536 = vadd.f32 0.0, %v2535
      %2537 = vdwg.mxu0
      %v2538 = vadd.f32 %v2272, %v2459
      %v2539 = vadd.f32 %v2273, %v2461
      %v2540 = vadd.f32 %v2274, %v2464
      %v2541 = vadd.f32 %v2275, %v2466
      %v2542 = vadd.f32 %v2276, %v2469
      %v2543 = vadd.f32 %v2277, %v2471
      %v2544 = vadd.f32 %v2278, %v2474
      %v2545 = vadd.f32 %v2279, %v2476
      %v2546 = vadd.f32 %v2280, %v2479
      %v2547 = vadd.f32 %v2281, %v2481
      %v2548 = vadd.f32 %v2282, %v2484
      %v2549 = vadd.f32 %v2283, %v2486
      %v2550 = vadd.f32 %v2284, %v2489
      %v2551 = vadd.f32 %v2285, %v2491
      %v2552 = vadd.f32 %v2286, %v2494
      %v2553 = vadd.f32 %v2287, %v2496
      %v2554 = vadd.f32 %v2288, %v2499
      %v2555 = vadd.f32 %v2289, %v2501
      %v2556 = vadd.f32 %v2290, %v2504
      %v2557 = vadd.f32 %v2291, %v2506
      %v2558 = vadd.f32 %v2292, %v2509
      %v2559 = vadd.f32 %v2293, %v2511
      %v2560 = vadd.f32 %v2294, %v2514
      %v2561 = vadd.f32 %v2295, %v2516
      %v2562 = vadd.f32 %v2296, %v2519
      %v2563 = vadd.f32 %v2297, %v2521
      %v2564 = vadd.f32 %v2298, %v2524
      %v2565 = vadd.f32 %v2299, %v2526
      %v2566 = vadd.f32 %v2300, %v2529
      %v2567 = vadd.f32 %v2301, %v2531
      %v2568 = vadd.f32 %v2302, %v2534
      %v2569 = vadd.f32 %v2303, %v2536
      %v2570 = vld [vmem:[#allocation2 + $0x27] sm:$0xff]
      %v2571 = vld [vmem:[#allocation2 + $0x2f] sm:$0xff]
      %v2572 = vld [vmem:[#allocation2 + $0x37] sm:$0xff]
      %v2573 = vld [vmem:[#allocation2 + $0x3f] sm:$0xff]
      %v2574 = vld [vmem:[#allocation2 + $0x47] sm:$0xff]
      %v2575 = vld [vmem:[#allocation2 + $0x4f] sm:$0xff]
      %v2576 = vld [vmem:[#allocation2 + $0x57] sm:$0xff]
      %v2577 = vld [vmem:[#allocation2 + $0x5f] sm:$0xff]
      %v2578 = vld [vmem:[#allocation2 + $0x67] sm:$0xff]
      %v2579 = vld [vmem:[#allocation2 + $0x6f] sm:$0xff]
      %v2580 = vld [vmem:[#allocation2 + $0x77] sm:$0xff]
      %v2581 = vld [vmem:[#allocation2 + $0x7f] sm:$0xff]
      %v2582 = vld [vmem:[#allocation2 + $0x87] sm:$0xff]
      %v2583 = vld [vmem:[#allocation2 + $0x8f] sm:$0xff]
      %v2584 = vld [vmem:[#allocation2 + $0x97] sm:$0xff]
      %v2585 = vld [vmem:[#allocation2 + $0x9f] sm:$0xff]
      %v2586 = vld [vmem:[#allocation2 + $0xa7] sm:$0xff]
      %v2587 = vld [vmem:[#allocation2 + $0xaf] sm:$0xff]
      %v2588 = vld [vmem:[#allocation2 + $0xb7] sm:$0xff]
      %v2589 = vld [vmem:[#allocation2 + $0xbf] sm:$0xff]
      %v2590 = vld [vmem:[#allocation2 + $0xc7] sm:$0xff]
      %v2591 = vld [vmem:[#allocation2 + $0xcf] sm:$0xff]
      %v2592 = vld [vmem:[#allocation2 + $0xd7] sm:$0xff]
      %v2593 = vld [vmem:[#allocation2 + $0xdf] sm:$0xff]
      %v2594 = vld [vmem:[#allocation2 + $0xe7] sm:$0xff]
      %v2595 = vld [vmem:[#allocation2 + $0xef] sm:$0xff]
      %v2596 = vld [vmem:[#allocation2 + $0xf7] sm:$0xff]
      %v2597 = vld [vmem:[#allocation2 + $0xff] sm:$0xff]
      %v2598 = vld [vmem:[#allocation2 + $0x107] sm:$0xff]
      %v2599 = vld [vmem:[#allocation2 + $0x10f] sm:$0xff]
      %v2600 = vld [vmem:[#allocation2 + $0x117] sm:$0xff]
      %v2601 = vld [vmem:[#allocation2 + $0x11f] sm:$0xff]
      %v2602 = vsel %vm1039, %v2570, 0.0
      %v2603 = vsel %vm1040, %v2571, 0.0
      %v2604 = vsel %vm1041, %v2572, 0.0
      %v2605 = vsel %vm1042, %v2573, 0.0
      %v2606 = vsel %vm1043, %v2574, 0.0
      %v2607 = vsel %vm1044, %v2575, 0.0
      %v2608 = vsel %vm1045, %v2576, 0.0
      %v2609 = vsel %vm1046, %v2577, 0.0
      %v2610 = vsel %vm1047, %v2578, 0.0
      %v2611 = vsel %vm1048, %v2579, 0.0
      %v2612 = vsel %vm1049, %v2580, 0.0
      %v2613 = vsel %vm1050, %v2581, 0.0
      %v2614 = vsel %vm1051, %v2582, 0.0
      %v2615 = vsel %vm1052, %v2583, 0.0
      %v2616 = vsel %vm1053, %v2584, 0.0
      %v2617 = vsel %vm1054, %v2585, 0.0
      %v2618 = vsel %vm1055, %v2586, 0.0
      %v2619 = vsel %vm1056, %v2587, 0.0
      %v2620 = vsel %vm1057, %v2588, 0.0
      %v2621 = vsel %vm1058, %v2589, 0.0
      %v2622 = vsel %vm1059, %v2590, 0.0
      %v2623 = vsel %vm1060, %v2591, 0.0
      %v2624 = vsel %vm1061, %v2592, 0.0
      %v2625 = vsel %vm1062, %v2593, 0.0
      %v2626 = vsel %vm1063, %v2594, 0.0
      %v2627 = vsel %vm1064, %v2595, 0.0
      %v2628 = vsel %vm1065, %v2596, 0.0
      %v2629 = vsel %vm1066, %v2597, 0.0
      %v2630 = vsel %vm1067, %v2598, 0.0
      %v2631 = vsel %vm1068, %v2599, 0.0
      %v2632 = vsel %vm1069, %v2600, 0.0
      %v2633 = vsel %vm1070, %v2601, 0.0
      %v2634 = vpack.c.bf16 %v2603, %v2602
      %v2635 = vpack.c.bf16 %v2605, %v2604
      %v2636 = vpack.c.bf16 %v2607, %v2606
      %v2637 = vpack.c.bf16 %v2609, %v2608
      %v2638 = vpack.c.bf16 %v2611, %v2610
      %v2639 = vpack.c.bf16 %v2613, %v2612
      %v2640 = vpack.c.bf16 %v2615, %v2614
      %v2641 = vpack.c.bf16 %v2617, %v2616
      %v2642 = vpack.c.bf16 %v2619, %v2618
      %v2643 = vpack.c.bf16 %v2621, %v2620
      %v2644 = vpack.c.bf16 %v2623, %v2622
      %v2645 = vpack.c.bf16 %v2625, %v2624
      %v2646 = vpack.c.bf16 %v2627, %v2626
      %v2647 = vpack.c.bf16 %v2629, %v2628
      %v2648 = vpack.c.bf16 %v2631, %v2630
      %v2649 = vpack.c.bf16 %v2633, %v2632
      %s2650 = scalar_lea.vmem %s3, 384
      %v2651 = vld [vmem:[%s2650] sm:$0xf]
      %v2652 = vld [vmem:[%s2650 + $0x4] sm:$0xf]
      %v2653 = vld [vmem:[%s2650 + $0x8] sm:$0xf]
      %v2654 = vld [vmem:[%s2650 + $0xc] sm:$0xf]
      %v2655 = vld [vmem:[%s2650 + $0x10] sm:$0xf]
      %v2656 = vld [vmem:[%s2650 + $0x14] sm:$0xf]
      %v2657 = vld [vmem:[%s2650 + $0x18] sm:$0xf]
      %v2658 = vld [vmem:[%s2650 + $0x1c] sm:$0xf]
      %v2659 = vld [vmem:[%s2650 + $0x20] sm:$0xf]
      %v2660 = vld [vmem:[%s2650 + $0x24] sm:$0xf]
      %v2661 = vld [vmem:[%s2650 + $0x28] sm:$0xf]
      %v2662 = vld [vmem:[%s2650 + $0x2c] sm:$0xf]
      %v2663 = vld [vmem:[%s2650 + $0x30] sm:$0xf]
      %v2664 = vld [vmem:[%s2650 + $0x34] sm:$0xf]
      %v2665 = vld [vmem:[%s2650 + $0x38] sm:$0xf]
      %v2666 = vld [vmem:[%s2650 + $0x3c] sm:$0xf]
      %v2683 = vunpack.c.l.b16 %v2651
      %v2684 = vunpack.c.l.b16 %v2652
      %v2685 = vunpack.c.l.b16 %v2653
      %v2686 = vunpack.c.l.b16 %v2654
      %v2687 = vunpack.c.l.b16 %v2655
      %v2688 = vunpack.c.l.b16 %v2656
      %v2689 = vunpack.c.l.b16 %v2657
      %v2690 = vunpack.c.l.b16 %v2658
      %v2691 = vunpack.c.l.b16 %v2659
      %v2692 = vunpack.c.l.b16 %v2660
      %v2693 = vunpack.c.l.b16 %v2661
      %v2694 = vunpack.c.l.b16 %v2662
      %v2695 = vunpack.c.l.b16 %v2663
      %v2696 = vunpack.c.l.b16 %v2664
      %v2697 = vunpack.c.l.b16 %v2665
      %v2698 = vunpack.c.l.b16 %v2666
      %v2699 = vpack.c.b16 %v2684, %v2683
      %v2700 = vpack.c.b16 %v2686, %v2685
      %v2701 = vpack.c.b16 %v2688, %v2687
      %v2702 = vpack.c.b16 %v2690, %v2689
      %v2703 = vpack.c.b16 %v2692, %v2691
      %v2704 = vpack.c.b16 %v2694, %v2693
      %v2705 = vpack.c.b16 %v2696, %v2695
      %v2706 = vpack.c.b16 %v2698, %v2697
      %2715 = vmatpush.bf16.msra.mxu0 %v2706
      %2716 = vmatpush.bf16.msra.mxu0 %v2705
      %2717 = vmatpush.bf16.msra.mxu0 %v2704
      %2718 = vmatpush.bf16.msra.mxu0 %v2703
      %2719 = vmatpush.bf16.msra.mxu0 %v2702
      %2720 = vmatpush.bf16.msra.mxu0 %v2701
      %2721 = vmatpush.bf16.msra.mxu0 %v2700
      %2722 = vmatpush.bf16.msra.mxu0 %v2699
      %2723 = vmatmul.bf16.gmra.mxu0 %v2634
      %v2724 = vpop.f32.mrf.mxu0
      %v2725 = vadd.f32 0.0, %v2724
      %v2726 = vpop.f32.mrf.mxu0
      %v2727 = vadd.f32 0.0, %v2726
      %2728 = vmatmul.bf16.gmra.mxu0 %v2635
      %v2729 = vpop.f32.mrf.mxu0
      %v2730 = vadd.f32 0.0, %v2729
      %v2731 = vpop.f32.mrf.mxu0
      %v2732 = vadd.f32 0.0, %v2731
      %2733 = vmatmul.bf16.gmra.mxu0 %v2636
      %v2734 = vpop.f32.mrf.mxu0
      %v2735 = vadd.f32 0.0, %v2734
      %v2736 = vpop.f32.mrf.mxu0
      %v2737 = vadd.f32 0.0, %v2736
      %2738 = vmatmul.bf16.gmra.mxu0 %v2637
      %v2739 = vpop.f32.mrf.mxu0
      %v2740 = vadd.f32 0.0, %v2739
      %v2741 = vpop.f32.mrf.mxu0
      %v2742 = vadd.f32 0.0, %v2741
      %2743 = vmatmul.bf16.gmra.mxu0 %v2638
      %v2744 = vpop.f32.mrf.mxu0
      %v2745 = vadd.f32 0.0, %v2744
      %v2746 = vpop.f32.mrf.mxu0
      %v2747 = vadd.f32 0.0, %v2746
      %2748 = vmatmul.bf16.gmra.mxu0 %v2639
      %v2749 = vpop.f32.mrf.mxu0
      %v2750 = vadd.f32 0.0, %v2749
      %v2751 = vpop.f32.mrf.mxu0
      %v2752 = vadd.f32 0.0, %v2751
      %2753 = vmatmul.bf16.gmra.mxu0 %v2640
      %v2754 = vpop.f32.mrf.mxu0
      %v2755 = vadd.f32 0.0, %v2754
      %v2756 = vpop.f32.mrf.mxu0
      %v2757 = vadd.f32 0.0, %v2756
      %2758 = vmatmul.bf16.gmra.mxu0 %v2641
      %v2759 = vpop.f32.mrf.mxu0
      %v2760 = vadd.f32 0.0, %v2759
      %v2761 = vpop.f32.mrf.mxu0
      %v2762 = vadd.f32 0.0, %v2761
      %2763 = vmatmul.bf16.gmra.mxu0 %v2642
      %v2764 = vpop.f32.mrf.mxu0
      %v2765 = vadd.f32 0.0, %v2764
      %v2766 = vpop.f32.mrf.mxu0
      %v2767 = vadd.f32 0.0, %v2766
      %2768 = vmatmul.bf16.gmra.mxu0 %v2643
      %v2769 = vpop.f32.mrf.mxu0
      %v2770 = vadd.f32 0.0, %v2769
      %v2771 = vpop.f32.mrf.mxu0
      %v2772 = vadd.f32 0.0, %v2771
      %2773 = vmatmul.bf16.gmra.mxu0 %v2644
      %v2774 = vpop.f32.mrf.mxu0
      %v2775 = vadd.f32 0.0, %v2774
      %v2776 = vpop.f32.mrf.mxu0
      %v2777 = vadd.f32 0.0, %v2776
      %2778 = vmatmul.bf16.gmra.mxu0 %v2645
      %v2779 = vpop.f32.mrf.mxu0
      %v2780 = vadd.f32 0.0, %v2779
      %v2781 = vpop.f32.mrf.mxu0
      %v2782 = vadd.f32 0.0, %v2781
      %2783 = vmatmul.bf16.gmra.mxu0 %v2646
      %v2784 = vpop.f32.mrf.mxu0
      %v2785 = vadd.f32 0.0, %v2784
      %v2786 = vpop.f32.mrf.mxu0
      %v2787 = vadd.f32 0.0, %v2786
      %2788 = vmatmul.bf16.gmra.mxu0 %v2647
      %v2789 = vpop.f32.mrf.mxu0
      %v2790 = vadd.f32 0.0, %v2789
      %v2791 = vpop.f32.mrf.mxu0
      %v2792 = vadd.f32 0.0, %v2791
      %2793 = vmatmul.bf16.gmra.mxu0 %v2648
      %v2794 = vpop.f32.mrf.mxu0
      %v2795 = vadd.f32 0.0, %v2794
      %v2796 = vpop.f32.mrf.mxu0
      %v2797 = vadd.f32 0.0, %v2796
      %2798 = vmatmul.bf16.gmra.mxu0 %v2649
      %v2799 = vpop.f32.mrf.mxu0
      %v2800 = vadd.f32 0.0, %v2799
      %v2801 = vpop.f32.mrf.mxu0
      %v2802 = vadd.f32 0.0, %v2801
      %2803 = vdwg.mxu0
      %v2804 = vadd.f32 %v2538, %v2725
      %v2805 = vadd.f32 %v2539, %v2727
      %v2806 = vadd.f32 %v2540, %v2730
      %v2807 = vadd.f32 %v2541, %v2732
      %v2808 = vadd.f32 %v2542, %v2735
      %v2809 = vadd.f32 %v2543, %v2737
      %v2810 = vadd.f32 %v2544, %v2740
      %v2811 = vadd.f32 %v2545, %v2742
      %v2812 = vadd.f32 %v2546, %v2745
      %v2813 = vadd.f32 %v2547, %v2747
      %v2814 = vadd.f32 %v2548, %v2750
      %v2815 = vadd.f32 %v2549, %v2752
      %v2816 = vadd.f32 %v2550, %v2755
      %v2817 = vadd.f32 %v2551, %v2757
      %v2818 = vadd.f32 %v2552, %v2760
      %v2819 = vadd.f32 %v2553, %v2762
      %v2820 = vadd.f32 %v2554, %v2765
      %v2821 = vadd.f32 %v2555, %v2767
      %v2822 = vadd.f32 %v2556, %v2770
      %v2823 = vadd.f32 %v2557, %v2772
      %v2824 = vadd.f32 %v2558, %v2775
      %v2825 = vadd.f32 %v2559, %v2777
      %v2826 = vadd.f32 %v2560, %v2780
      %v2827 = vadd.f32 %v2561, %v2782
      %v2828 = vadd.f32 %v2562, %v2785
      %v2829 = vadd.f32 %v2563, %v2787
      %v2830 = vadd.f32 %v2564, %v2790
      %v2831 = vadd.f32 %v2565, %v2792
      %v2832 = vadd.f32 %v2566, %v2795
      %v2833 = vadd.f32 %v2567, %v2797
      %v2834 = vadd.f32 %v2568, %v2800
      %v2835 = vadd.f32 %v2569, %v2802
      %v2836 = vld [vmem:[#allocation2 + $0x28] sm:$0xff]
      %v2837 = vld [vmem:[#allocation2 + $0x30] sm:$0xff]
      %v2838 = vld [vmem:[#allocation2 + $0x38] sm:$0xff]
      %v2839 = vld [vmem:[#allocation2 + $0x40] sm:$0xff]
      %v2840 = vld [vmem:[#allocation2 + $0x48] sm:$0xff]
      %v2841 = vld [vmem:[#allocation2 + $0x50] sm:$0xff]
      %v2842 = vld [vmem:[#allocation2 + $0x58] sm:$0xff]
      %v2843 = vld [vmem:[#allocation2 + $0x60] sm:$0xff]
      %v2844 = vld [vmem:[#allocation2 + $0x68] sm:$0xff]
      %v2845 = vld [vmem:[#allocation2 + $0x70] sm:$0xff]
      %v2846 = vld [vmem:[#allocation2 + $0x78] sm:$0xff]
      %v2847 = vld [vmem:[#allocation2 + $0x80] sm:$0xff]
      %v2848 = vld [vmem:[#allocation2 + $0x88] sm:$0xff]
      %v2849 = vld [vmem:[#allocation2 + $0x90] sm:$0xff]
      %v2850 = vld [vmem:[#allocation2 + $0x98] sm:$0xff]
      %v2851 = vld [vmem:[#allocation2 + $0xa0] sm:$0xff]
      %v2852 = vld [vmem:[#allocation2 + $0xa8] sm:$0xff]
      %v2853 = vld [vmem:[#allocation2 + $0xb0] sm:$0xff]
      %v2854 = vld [vmem:[#allocation2 + $0xb8] sm:$0xff]
      %v2855 = vld [vmem:[#allocation2 + $0xc0] sm:$0xff]
      %v2856 = vld [vmem:[#allocation2 + $0xc8] sm:$0xff]
      %v2857 = vld [vmem:[#allocation2 + $0xd0] sm:$0xff]
      %v2858 = vld [vmem:[#allocation2 + $0xd8] sm:$0xff]
      %v2859 = vld [vmem:[#allocation2 + $0xe0] sm:$0xff]
      %v2860 = vld [vmem:[#allocation2 + $0xe8] sm:$0xff]
      %v2861 = vld [vmem:[#allocation2 + $0xf0] sm:$0xff]
      %v2862 = vld [vmem:[#allocation2 + $0xf8] sm:$0xff]
      %v2863 = vld [vmem:[#allocation2 + $0x100] sm:$0xff]
      %v2864 = vld [vmem:[#allocation2 + $0x108] sm:$0xff]
      %v2865 = vld [vmem:[#allocation2 + $0x110] sm:$0xff]
      %v2866 = vld [vmem:[#allocation2 + $0x118] sm:$0xff]
      %v2867 = vld [vmem:[#allocation2 + $0x120] sm:$0xff]
      %v2868 = vpack.c.bf16 %v2837, %v2836
      %v2869 = vpack.c.bf16 %v2839, %v2838
      %v2870 = vpack.c.bf16 %v2841, %v2840
      %v2871 = vpack.c.bf16 %v2843, %v2842
      %v2872 = vpack.c.bf16 %v2845, %v2844
      %v2873 = vpack.c.bf16 %v2847, %v2846
      %v2874 = vpack.c.bf16 %v2849, %v2848
      %v2875 = vpack.c.bf16 %v2851, %v2850
      %v2876 = vpack.c.bf16 %v2853, %v2852
      %v2877 = vpack.c.bf16 %v2855, %v2854
      %v2878 = vpack.c.bf16 %v2857, %v2856
      %v2879 = vpack.c.bf16 %v2859, %v2858
      %v2880 = vpack.c.bf16 %v2861, %v2860
      %v2881 = vpack.c.bf16 %v2863, %v2862
      %v2882 = vpack.c.bf16 %v2865, %v2864
      %v2883 = vpack.c.bf16 %v2867, %v2866
      %s2884 = scalar_lea.vmem %s3, 448
      %v2885 = vld [vmem:[%s2884] sm:$0xf]
      %v2886 = vld [vmem:[%s2884 + $0x4] sm:$0xf]
      %v2887 = vld [vmem:[%s2884 + $0x8] sm:$0xf]
      %v2888 = vld [vmem:[%s2884 + $0xc] sm:$0xf]
      %v2889 = vld [vmem:[%s2884 + $0x10] sm:$0xf]
      %v2890 = vld [vmem:[%s2884 + $0x14] sm:$0xf]
      %v2891 = vld [vmem:[%s2884 + $0x18] sm:$0xf]
      %v2892 = vld [vmem:[%s2884 + $0x1c] sm:$0xf]
      %v2893 = vld [vmem:[%s2884 + $0x20] sm:$0xf]
      %v2894 = vld [vmem:[%s2884 + $0x24] sm:$0xf]
      %v2895 = vld [vmem:[%s2884 + $0x28] sm:$0xf]
      %v2896 = vld [vmem:[%s2884 + $0x2c] sm:$0xf]
      %v2897 = vld [vmem:[%s2884 + $0x30] sm:$0xf]
      %v2898 = vld [vmem:[%s2884 + $0x34] sm:$0xf]
      %v2899 = vld [vmem:[%s2884 + $0x38] sm:$0xf]
      %v2900 = vld [vmem:[%s2884 + $0x3c] sm:$0xf]
      %v2917 = vunpack.c.l.b16 %v2885
      %v2918 = vunpack.c.l.b16 %v2886
      %v2919 = vunpack.c.l.b16 %v2887
      %v2920 = vunpack.c.l.b16 %v2888
      %v2921 = vunpack.c.l.b16 %v2889
      %v2922 = vunpack.c.l.b16 %v2890
      %v2923 = vunpack.c.l.b16 %v2891
      %v2924 = vunpack.c.l.b16 %v2892
      %v2925 = vunpack.c.l.b16 %v2893
      %v2926 = vunpack.c.l.b16 %v2894
      %v2927 = vunpack.c.l.b16 %v2895
      %v2928 = vunpack.c.l.b16 %v2896
      %v2929 = vunpack.c.l.b16 %v2897
      %v2930 = vunpack.c.l.b16 %v2898
      %v2931 = vunpack.c.l.b16 %v2899
      %v2932 = vunpack.c.l.b16 %v2900
      %v2933 = vpack.c.b16 %v2918, %v2917
      %v2934 = vpack.c.b16 %v2920, %v2919
      %v2935 = vpack.c.b16 %v2922, %v2921
      %v2936 = vpack.c.b16 %v2924, %v2923
      %v2937 = vpack.c.b16 %v2926, %v2925
      %v2938 = vpack.c.b16 %v2928, %v2927
      %v2939 = vpack.c.b16 %v2930, %v2929
      %v2940 = vpack.c.b16 %v2932, %v2931
      %2949 = vmatpush.bf16.msra.mxu0 %v2940
      %2950 = vmatpush.bf16.msra.mxu0 %v2939
      %2951 = vmatpush.bf16.msra.mxu0 %v2938
      %2952 = vmatpush.bf16.msra.mxu0 %v2937
      %2953 = vmatpush.bf16.msra.mxu0 %v2936
      %2954 = vmatpush.bf16.msra.mxu0 %v2935
      %2955 = vmatpush.bf16.msra.mxu0 %v2934
      %2956 = vmatpush.bf16.msra.mxu0 %v2933
      %2957 = vmatmul.bf16.gmra.mxu0 %v2868
      %v2958 = vpop.f32.mrf.mxu0
      %v2959 = vadd.f32 0.0, %v2958
      %v2960 = vpop.f32.mrf.mxu0
      %v2961 = vadd.f32 0.0, %v2960
      %2962 = vmatmul.bf16.gmra.mxu0 %v2869
      %v2963 = vpop.f32.mrf.mxu0
      %v2964 = vadd.f32 0.0, %v2963
      %v2965 = vpop.f32.mrf.mxu0
      %v2966 = vadd.f32 0.0, %v2965
      %2967 = vmatmul.bf16.gmra.mxu0 %v2870
      %v2968 = vpop.f32.mrf.mxu0
      %v2969 = vadd.f32 0.0, %v2968
      %v2970 = vpop.f32.mrf.mxu0
      %v2971 = vadd.f32 0.0, %v2970
      %2972 = vmatmul.bf16.gmra.mxu0 %v2871
      %v2973 = vpop.f32.mrf.mxu0
      %v2974 = vadd.f32 0.0, %v2973
      %v2975 = vpop.f32.mrf.mxu0
      %v2976 = vadd.f32 0.0, %v2975
      %2977 = vmatmul.bf16.gmra.mxu0 %v2872
      %v2978 = vpop.f32.mrf.mxu0
      %v2979 = vadd.f32 0.0, %v2978
      %v2980 = vpop.f32.mrf.mxu0
      %v2981 = vadd.f32 0.0, %v2980
      %2982 = vmatmul.bf16.gmra.mxu0 %v2873
      %v2983 = vpop.f32.mrf.mxu0
      %v2984 = vadd.f32 0.0, %v2983
      %v2985 = vpop.f32.mrf.mxu0
      %v2986 = vadd.f32 0.0, %v2985
      %2987 = vmatmul.bf16.gmra.mxu0 %v2874
      %v2988 = vpop.f32.mrf.mxu0
      %v2989 = vadd.f32 0.0, %v2988
      %v2990 = vpop.f32.mrf.mxu0
      %v2991 = vadd.f32 0.0, %v2990
      %2992 = vmatmul.bf16.gmra.mxu0 %v2875
      %v2993 = vpop.f32.mrf.mxu0
      %v2994 = vadd.f32 0.0, %v2993
      %v2995 = vpop.f32.mrf.mxu0
      %v2996 = vadd.f32 0.0, %v2995
      %2997 = vmatmul.bf16.gmra.mxu0 %v2876
      %v2998 = vpop.f32.mrf.mxu0
      %v2999 = vadd.f32 0.0, %v2998
      %v3000 = vpop.f32.mrf.mxu0
      %v3001 = vadd.f32 0.0, %v3000
      %3002 = vmatmul.bf16.gmra.mxu0 %v2877
      %v3003 = vpop.f32.mrf.mxu0
      %v3004 = vadd.f32 0.0, %v3003
      %v3005 = vpop.f32.mrf.mxu0
      %v3006 = vadd.f32 0.0, %v3005
      %3007 = vmatmul.bf16.gmra.mxu0 %v2878
      %v3008 = vpop.f32.mrf.mxu0
      %v3009 = vadd.f32 0.0, %v3008
      %v3010 = vpop.f32.mrf.mxu0
      %v3011 = vadd.f32 0.0, %v3010
      %3012 = vmatmul.bf16.gmra.mxu0 %v2879
      %v3013 = vpop.f32.mrf.mxu0
      %v3014 = vadd.f32 0.0, %v3013
      %v3015 = vpop.f32.mrf.mxu0
      %v3016 = vadd.f32 0.0, %v3015
      %3017 = vmatmul.bf16.gmra.mxu0 %v2880
      %v3018 = vpop.f32.mrf.mxu0
      %v3019 = vadd.f32 0.0, %v3018
      %v3020 = vpop.f32.mrf.mxu0
      %v3021 = vadd.f32 0.0, %v3020
      %3022 = vmatmul.bf16.gmra.mxu0 %v2881
      %v3023 = vpop.f32.mrf.mxu0
      %v3024 = vadd.f32 0.0, %v3023
      %v3025 = vpop.f32.mrf.mxu0
      %v3026 = vadd.f32 0.0, %v3025
      %3027 = vmatmul.bf16.gmra.mxu0 %v2882
      %v3028 = vpop.f32.mrf.mxu0
      %v3029 = vadd.f32 0.0, %v3028
      %v3030 = vpop.f32.mrf.mxu0
      %v3031 = vadd.f32 0.0, %v3030
      %3032 = vmatmul.bf16.gmra.mxu0 %v2883
      %v3033 = vpop.f32.mrf.mxu0
      %v3034 = vadd.f32 0.0, %v3033
      %v3035 = vpop.f32.mrf.mxu0
      %v3036 = vadd.f32 0.0, %v3035
      %3037 = vdwg.mxu0
      %v3038 = vadd.f32 %v2804, %v2959
      %v3039 = vadd.f32 %v2805, %v2961
      %v3040 = vadd.f32 %v2806, %v2964
      %v3041 = vadd.f32 %v2807, %v2966
      %v3042 = vadd.f32 %v2808, %v2969
      %v3043 = vadd.f32 %v2809, %v2971
      %v3044 = vadd.f32 %v2810, %v2974
      %v3045 = vadd.f32 %v2811, %v2976
      %v3046 = vadd.f32 %v2812, %v2979
      %v3047 = vadd.f32 %v2813, %v2981
      %v3048 = vadd.f32 %v2814, %v2984
      %v3049 = vadd.f32 %v2815, %v2986
      %v3050 = vadd.f32 %v2816, %v2989
      %v3051 = vadd.f32 %v2817, %v2991
      %v3052 = vadd.f32 %v2818, %v2994
      %v3053 = vadd.f32 %v2819, %v2996
      %v3054 = vadd.f32 %v2820, %v2999
      %v3055 = vadd.f32 %v2821, %v3001
      %v3056 = vadd.f32 %v2822, %v3004
      %v3057 = vadd.f32 %v2823, %v3006
      %v3058 = vadd.f32 %v2824, %v3009
      %v3059 = vadd.f32 %v2825, %v3011
      %v3060 = vadd.f32 %v2826, %v3014
      %v3061 = vadd.f32 %v2827, %v3016
      %v3062 = vadd.f32 %v2828, %v3019
      %v3063 = vadd.f32 %v2829, %v3021
      %v3064 = vadd.f32 %v2830, %v3024
      %v3065 = vadd.f32 %v2831, %v3026
      %v3066 = vadd.f32 %v2832, %v3029
      %v3067 = vadd.f32 %v2833, %v3031
      %v3068 = vadd.f32 %v2834, %v3034
      %v3069 = vadd.f32 %v2835, %v3036
      %v3070 = vld [vmem:[#allocation2 + $0x29] sm:$0xff]
      %v3071 = vld [vmem:[#allocation2 + $0x31] sm:$0xff]
      %v3072 = vld [vmem:[#allocation2 + $0x39] sm:$0xff]
      %v3073 = vld [vmem:[#allocation2 + $0x41] sm:$0xff]
      %v3074 = vld [vmem:[#allocation2 + $0x49] sm:$0xff]
      %v3075 = vld [vmem:[#allocation2 + $0x51] sm:$0xff]
      %v3076 = vld [vmem:[#allocation2 + $0x59] sm:$0xff]
      %v3077 = vld [vmem:[#allocation2 + $0x61] sm:$0xff]
      %v3078 = vld [vmem:[#allocation2 + $0x69] sm:$0xff]
      %v3079 = vld [vmem:[#allocation2 + $0x71] sm:$0xff]
      %v3080 = vld [vmem:[#allocation2 + $0x79] sm:$0xff]
      %v3081 = vld [vmem:[#allocation2 + $0x81] sm:$0xff]
      %v3082 = vld [vmem:[#allocation2 + $0x89] sm:$0xff]
      %v3083 = vld [vmem:[#allocation2 + $0x91] sm:$0xff]
      %v3084 = vld [vmem:[#allocation2 + $0x99] sm:$0xff]
      %v3085 = vld [vmem:[#allocation2 + $0xa1] sm:$0xff]
      %v3086 = vld [vmem:[#allocation2 + $0xa9] sm:$0xff]
      %v3087 = vld [vmem:[#allocation2 + $0xb1] sm:$0xff]
      %v3088 = vld [vmem:[#allocation2 + $0xb9] sm:$0xff]
      %v3089 = vld [vmem:[#allocation2 + $0xc1] sm:$0xff]
      %v3090 = vld [vmem:[#allocation2 + $0xc9] sm:$0xff]
      %v3091 = vld [vmem:[#allocation2 + $0xd1] sm:$0xff]
      %v3092 = vld [vmem:[#allocation2 + $0xd9] sm:$0xff]
      %v3093 = vld [vmem:[#allocation2 + $0xe1] sm:$0xff]
      %v3094 = vld [vmem:[#allocation2 + $0xe9] sm:$0xff]
      %v3095 = vld [vmem:[#allocation2 + $0xf1] sm:$0xff]
      %v3096 = vld [vmem:[#allocation2 + $0xf9] sm:$0xff]
      %v3097 = vld [vmem:[#allocation2 + $0x101] sm:$0xff]
      %v3098 = vld [vmem:[#allocation2 + $0x109] sm:$0xff]
      %v3099 = vld [vmem:[#allocation2 + $0x111] sm:$0xff]
      %v3100 = vld [vmem:[#allocation2 + $0x119] sm:$0xff]
      %v3101 = vld [vmem:[#allocation2 + $0x121] sm:$0xff]
      %v3102 = vsel %vm1538, %v3070, 0.0
      %v3103 = vsel %vm1539, %v3071, 0.0
      %v3104 = vsel %vm1540, %v3072, 0.0
      %v3105 = vsel %vm1541, %v3073, 0.0
      %v3106 = vsel %vm1542, %v3074, 0.0
      %v3107 = vsel %vm1543, %v3075, 0.0
      %v3108 = vsel %vm1544, %v3076, 0.0
      %v3109 = vsel %vm1545, %v3077, 0.0
      %v3110 = vsel %vm1546, %v3078, 0.0
      %v3111 = vsel %vm1547, %v3079, 0.0
      %v3112 = vsel %vm1548, %v3080, 0.0
      %v3113 = vsel %vm1549, %v3081, 0.0
      %v3114 = vsel %vm1550, %v3082, 0.0
      %v3115 = vsel %vm1551, %v3083, 0.0
      %v3116 = vsel %vm1552, %v3084, 0.0
      %v3117 = vsel %vm1553, %v3085, 0.0
      %v3118 = vsel %vm1554, %v3086, 0.0
      %v3119 = vsel %vm1555, %v3087, 0.0
      %v3120 = vsel %vm1556, %v3088, 0.0
      %v3121 = vsel %vm1557, %v3089, 0.0
      %v3122 = vsel %vm1558, %v3090, 0.0
      %v3123 = vsel %vm1559, %v3091, 0.0
      %v3124 = vsel %vm1560, %v3092, 0.0
      %v3125 = vsel %vm1561, %v3093, 0.0
      %v3126 = vsel %vm1562, %v3094, 0.0
      %v3127 = vsel %vm1563, %v3095, 0.0
      %v3128 = vsel %vm1564, %v3096, 0.0
      %v3129 = vsel %vm1565, %v3097, 0.0
      %v3130 = vsel %vm1566, %v3098, 0.0
      %v3131 = vsel %vm1567, %v3099, 0.0
      %v3132 = vsel %vm1568, %v3100, 0.0
      %v3133 = vsel %vm1569, %v3101, 0.0
      %v3134 = vpack.c.bf16 %v3103, %v3102
      %v3135 = vpack.c.bf16 %v3105, %v3104
      %v3136 = vpack.c.bf16 %v3107, %v3106
      %v3137 = vpack.c.bf16 %v3109, %v3108
      %v3138 = vpack.c.bf16 %v3111, %v3110
      %v3139 = vpack.c.bf16 %v3113, %v3112
      %v3140 = vpack.c.bf16 %v3115, %v3114
      %v3141 = vpack.c.bf16 %v3117, %v3116
      %v3142 = vpack.c.bf16 %v3119, %v3118
      %v3143 = vpack.c.bf16 %v3121, %v3120
      %v3144 = vpack.c.bf16 %v3123, %v3122
      %v3145 = vpack.c.bf16 %v3125, %v3124
      %v3146 = vpack.c.bf16 %v3127, %v3126
      %v3147 = vpack.c.bf16 %v3129, %v3128
      %v3148 = vpack.c.bf16 %v3131, %v3130
      %v3149 = vpack.c.bf16 %v3133, %v3132
      %s3150 = scalar_lea.vmem %s3, 512
      %v3151 = vld [vmem:[%s3150] sm:$0xf]
      %v3152 = vld [vmem:[%s3150 + $0x4] sm:$0xf]
      %v3153 = vld [vmem:[%s3150 + $0x8] sm:$0xf]
      %v3154 = vld [vmem:[%s3150 + $0xc] sm:$0xf]
      %v3155 = vld [vmem:[%s3150 + $0x10] sm:$0xf]
      %v3156 = vld [vmem:[%s3150 + $0x14] sm:$0xf]
      %v3157 = vld [vmem:[%s3150 + $0x18] sm:$0xf]
      %v3158 = vld [vmem:[%s3150 + $0x1c] sm:$0xf]
      %v3159 = vld [vmem:[%s3150 + $0x20] sm:$0xf]
      %v3160 = vld [vmem:[%s3150 + $0x24] sm:$0xf]
      %v3161 = vld [vmem:[%s3150 + $0x28] sm:$0xf]
      %v3162 = vld [vmem:[%s3150 + $0x2c] sm:$0xf]
      %v3163 = vld [vmem:[%s3150 + $0x30] sm:$0xf]
      %v3164 = vld [vmem:[%s3150 + $0x34] sm:$0xf]
      %v3165 = vld [vmem:[%s3150 + $0x38] sm:$0xf]
      %v3166 = vld [vmem:[%s3150 + $0x3c] sm:$0xf]
      %v3183 = vunpack.c.l.b16 %v3151
      %v3184 = vunpack.c.l.b16 %v3152
      %v3185 = vunpack.c.l.b16 %v3153
      %v3186 = vunpack.c.l.b16 %v3154
      %v3187 = vunpack.c.l.b16 %v3155
      %v3188 = vunpack.c.l.b16 %v3156
      %v3189 = vunpack.c.l.b16 %v3157
      %v3190 = vunpack.c.l.b16 %v3158
      %v3191 = vunpack.c.l.b16 %v3159
      %v3192 = vunpack.c.l.b16 %v3160
      %v3193 = vunpack.c.l.b16 %v3161
      %v3194 = vunpack.c.l.b16 %v3162
      %v3195 = vunpack.c.l.b16 %v3163
      %v3196 = vunpack.c.l.b16 %v3164
      %v3197 = vunpack.c.l.b16 %v3165
      %v3198 = vunpack.c.l.b16 %v3166
      %v3199 = vpack.c.b16 %v3184, %v3183
      %v3200 = vpack.c.b16 %v3186, %v3185
      %v3201 = vpack.c.b16 %v3188, %v3187
      %v3202 = vpack.c.b16 %v3190, %v3189
      %v3203 = vpack.c.b16 %v3192, %v3191
      %v3204 = vpack.c.b16 %v3194, %v3193
      %v3205 = vpack.c.b16 %v3196, %v3195
      %v3206 = vpack.c.b16 %v3198, %v3197
      %3215 = vmatpush.bf16.msra.mxu0 %v3206
      %3216 = vmatpush.bf16.msra.mxu0 %v3205
      %3217 = vmatpush.bf16.msra.mxu0 %v3204
      %3218 = vmatpush.bf16.msra.mxu0 %v3203
      %3219 = vmatpush.bf16.msra.mxu0 %v3202
      %3220 = vmatpush.bf16.msra.mxu0 %v3201
      %3221 = vmatpush.bf16.msra.mxu0 %v3200
      %3222 = vmatpush.bf16.msra.mxu0 %v3199
      %3223 = vmatmul.bf16.gmra.mxu0 %v3134
      %v3224 = vpop.f32.mrf.mxu0
      %v3225 = vadd.f32 0.0, %v3224
      %v3226 = vpop.f32.mrf.mxu0
      %v3227 = vadd.f32 0.0, %v3226
      %3228 = vmatmul.bf16.gmra.mxu0 %v3135
      %v3229 = vpop.f32.mrf.mxu0
      %v3230 = vadd.f32 0.0, %v3229
      %v3231 = vpop.f32.mrf.mxu0
      %v3232 = vadd.f32 0.0, %v3231
      %3233 = vmatmul.bf16.gmra.mxu0 %v3136
      %v3234 = vpop.f32.mrf.mxu0
      %v3235 = vadd.f32 0.0, %v3234
      %v3236 = vpop.f32.mrf.mxu0
      %v3237 = vadd.f32 0.0, %v3236
      %3238 = vmatmul.bf16.gmra.mxu0 %v3137
      %v3239 = vpop.f32.mrf.mxu0
      %v3240 = vadd.f32 0.0, %v3239
      %v3241 = vpop.f32.mrf.mxu0
      %v3242 = vadd.f32 0.0, %v3241
      %3243 = vmatmul.bf16.gmra.mxu0 %v3138
      %v3244 = vpop.f32.mrf.mxu0
      %v3245 = vadd.f32 0.0, %v3244
      %v3246 = vpop.f32.mrf.mxu0
      %v3247 = vadd.f32 0.0, %v3246
      %3248 = vmatmul.bf16.gmra.mxu0 %v3139
      %v3249 = vpop.f32.mrf.mxu0
      %v3250 = vadd.f32 0.0, %v3249
      %v3251 = vpop.f32.mrf.mxu0
      %v3252 = vadd.f32 0.0, %v3251
      %3253 = vmatmul.bf16.gmra.mxu0 %v3140
      %v3254 = vpop.f32.mrf.mxu0
      %v3255 = vadd.f32 0.0, %v3254
      %v3256 = vpop.f32.mrf.mxu0
      %v3257 = vadd.f32 0.0, %v3256
      %3258 = vmatmul.bf16.gmra.mxu0 %v3141
      %v3259 = vpop.f32.mrf.mxu0
      %v3260 = vadd.f32 0.0, %v3259
      %v3261 = vpop.f32.mrf.mxu0
      %v3262 = vadd.f32 0.0, %v3261
      %3263 = vmatmul.bf16.gmra.mxu0 %v3142
      %v3264 = vpop.f32.mrf.mxu0
      %v3265 = vadd.f32 0.0, %v3264
      %v3266 = vpop.f32.mrf.mxu0
      %v3267 = vadd.f32 0.0, %v3266
      %3268 = vmatmul.bf16.gmra.mxu0 %v3143
      %v3269 = vpop.f32.mrf.mxu0
      %v3270 = vadd.f32 0.0, %v3269
      %v3271 = vpop.f32.mrf.mxu0
      %v3272 = vadd.f32 0.0, %v3271
      %3273 = vmatmul.bf16.gmra.mxu0 %v3144
      %v3274 = vpop.f32.mrf.mxu0
      %v3275 = vadd.f32 0.0, %v3274
      %v3276 = vpop.f32.mrf.mxu0
      %v3277 = vadd.f32 0.0, %v3276
      %3278 = vmatmul.bf16.gmra.mxu0 %v3145
      %v3279 = vpop.f32.mrf.mxu0
      %v3280 = vadd.f32 0.0, %v3279
      %v3281 = vpop.f32.mrf.mxu0
      %v3282 = vadd.f32 0.0, %v3281
      %3283 = vmatmul.bf16.gmra.mxu0 %v3146
      %v3284 = vpop.f32.mrf.mxu0
      %v3285 = vadd.f32 0.0, %v3284
      %v3286 = vpop.f32.mrf.mxu0
      %v3287 = vadd.f32 0.0, %v3286
      %3288 = vmatmul.bf16.gmra.mxu0 %v3147
      %v3289 = vpop.f32.mrf.mxu0
      %v3290 = vadd.f32 0.0, %v3289
      %v3291 = vpop.f32.mrf.mxu0
      %v3292 = vadd.f32 0.0, %v3291
      %3293 = vmatmul.bf16.gmra.mxu0 %v3148
      %v3294 = vpop.f32.mrf.mxu0
      %v3295 = vadd.f32 0.0, %v3294
      %v3296 = vpop.f32.mrf.mxu0
      %v3297 = vadd.f32 0.0, %v3296
      %3298 = vmatmul.bf16.gmra.mxu0 %v3149
      %v3299 = vpop.f32.mrf.mxu0
      %v3300 = vadd.f32 0.0, %v3299
      %v3301 = vpop.f32.mrf.mxu0
      %v3302 = vadd.f32 0.0, %v3301
      %3303 = vdwg.mxu0
      %v3304 = vadd.f32 %v3038, %v3225
      %v3305 = vadd.f32 %v3039, %v3227
      %v3306 = vadd.f32 %v3040, %v3230
      %v3307 = vadd.f32 %v3041, %v3232
      %v3308 = vadd.f32 %v3042, %v3235
      %v3309 = vadd.f32 %v3043, %v3237
      %v3310 = vadd.f32 %v3044, %v3240
      %v3311 = vadd.f32 %v3045, %v3242
      %v3312 = vadd.f32 %v3046, %v3245
      %v3313 = vadd.f32 %v3047, %v3247
      %v3314 = vadd.f32 %v3048, %v3250
      %v3315 = vadd.f32 %v3049, %v3252
      %v3316 = vadd.f32 %v3050, %v3255
      %v3317 = vadd.f32 %v3051, %v3257
      %v3318 = vadd.f32 %v3052, %v3260
      %v3319 = vadd.f32 %v3053, %v3262
      %v3320 = vadd.f32 %v3054, %v3265
      %v3321 = vadd.f32 %v3055, %v3267
      %v3322 = vadd.f32 %v3056, %v3270
      %v3323 = vadd.f32 %v3057, %v3272
      %v3324 = vadd.f32 %v3058, %v3275
      %v3325 = vadd.f32 %v3059, %v3277
      %v3326 = vadd.f32 %v3060, %v3280
      %v3327 = vadd.f32 %v3061, %v3282
      %v3328 = vadd.f32 %v3062, %v3285
      %v3329 = vadd.f32 %v3063, %v3287
      %v3330 = vadd.f32 %v3064, %v3290
      %v3331 = vadd.f32 %v3065, %v3292
      %v3332 = vadd.f32 %v3066, %v3295
      %v3333 = vadd.f32 %v3067, %v3297
      %v3334 = vadd.f32 %v3068, %v3300
      %v3335 = vadd.f32 %v3069, %v3302
      %v3336 = vpack.c.bf16 %v3304, %v3304
      %v3337 = vpack.c.bf16 %v3305, %v3305
      %v3338 = vpack.c.bf16 %v3306, %v3306
      %v3339 = vpack.c.bf16 %v3307, %v3307
      %v3340 = vpack.c.bf16 %v3308, %v3308
      %v3341 = vpack.c.bf16 %v3309, %v3309
      %v3342 = vpack.c.bf16 %v3310, %v3310
      %v3343 = vpack.c.bf16 %v3311, %v3311
      %v3344 = vpack.c.bf16 %v3312, %v3312
      %v3345 = vpack.c.bf16 %v3313, %v3313
      %v3346 = vpack.c.bf16 %v3314, %v3314
      %v3347 = vpack.c.bf16 %v3315, %v3315
      %v3348 = vpack.c.bf16 %v3316, %v3316
      %v3349 = vpack.c.bf16 %v3317, %v3317
      %v3350 = vpack.c.bf16 %v3318, %v3318
      %v3351 = vpack.c.bf16 %v3319, %v3319
      %v3352 = vpack.c.bf16 %v3320, %v3320
      %v3353 = vpack.c.bf16 %v3321, %v3321
      %v3354 = vpack.c.bf16 %v3322, %v3322
      %v3355 = vpack.c.bf16 %v3323, %v3323
      %v3356 = vpack.c.bf16 %v3324, %v3324
      %v3357 = vpack.c.bf16 %v3325, %v3325
      %v3358 = vpack.c.bf16 %v3326, %v3326
      %v3359 = vpack.c.bf16 %v3327, %v3327
      %v3360 = vpack.c.bf16 %v3328, %v3328
      %v3361 = vpack.c.bf16 %v3329, %v3329
      %v3362 = vpack.c.bf16 %v3330, %v3330
      %v3363 = vpack.c.bf16 %v3331, %v3331
      %v3364 = vpack.c.bf16 %v3332, %v3332
      %v3365 = vpack.c.bf16 %v3333, %v3333
      %v3366 = vpack.c.bf16 %v3334, %v3334
      %v3367 = vpack.c.bf16 %v3335, %v3335
      %3368 = vst [vmem:[%s248] sm:$0xf] %v3336
      %3369 = vst [vmem:[%s248 + $0x4] sm:$0xf] %v3337
      %3370 = vst [vmem:[%s248 + $0x8] sm:$0xf] %v3338
      %3371 = vst [vmem:[%s248 + $0xc] sm:$0xf] %v3339
      %3372 = vst [vmem:[%s248 + $0x10] sm:$0xf] %v3340
      %3373 = vst [vmem:[%s248 + $0x14] sm:$0xf] %v3341
      %3374 = vst [vmem:[%s248 + $0x18] sm:$0xf] %v3342
      %3375 = vst [vmem:[%s248 + $0x1c] sm:$0xf] %v3343
      %3376 = vst [vmem:[%s248 + $0x20] sm:$0xf] %v3344
      %3377 = vst [vmem:[%s248 + $0x24] sm:$0xf] %v3345
      %3378 = vst [vmem:[%s248 + $0x28] sm:$0xf] %v3346
      %3379 = vst [vmem:[%s248 + $0x2c] sm:$0xf] %v3347
      %3380 = vst [vmem:[%s248 + $0x30] sm:$0xf] %v3348
      %3381 = vst [vmem:[%s248 + $0x34] sm:$0xf] %v3349
      %3382 = vst [vmem:[%s248 + $0x38] sm:$0xf] %v3350
      %3383 = vst [vmem:[%s248 + $0x3c] sm:$0xf] %v3351
      %3384 = vst [vmem:[%s248 + $0x40] sm:$0xf] %v3352
      %3385 = vst [vmem:[%s248 + $0x44] sm:$0xf] %v3353
      %3386 = vst [vmem:[%s248 + $0x48] sm:$0xf] %v3354
      %3387 = vst [vmem:[%s248 + $0x4c] sm:$0xf] %v3355
      %3388 = vst [vmem:[%s248 + $0x50] sm:$0xf] %v3356
      %3389 = vst [vmem:[%s248 + $0x54] sm:$0xf] %v3357
      %3390 = vst [vmem:[%s248 + $0x58] sm:$0xf] %v3358
      %3391 = vst [vmem:[%s248 + $0x5c] sm:$0xf] %v3359
      %3392 = vst [vmem:[%s248 + $0x60] sm:$0xf] %v3360
      %3393 = vst [vmem:[%s248 + $0x64] sm:$0xf] %v3361
      %3394 = vst [vmem:[%s248 + $0x68] sm:$0xf] %v3362
      %3395 = vst [vmem:[%s248 + $0x6c] sm:$0xf] %v3363
      %3396 = vst [vmem:[%s248 + $0x70] sm:$0xf] %v3364
      %3397 = vst [vmem:[%s248 + $0x74] sm:$0xf] %v3365
      %3398 = vst [vmem:[%s248 + $0x78] sm:$0xf] %v3366
      %3399 = vst [vmem:[%s248 + $0x7c] sm:$0xf] %v3367
      %v3400 = vunpack.c.l.bf16 %v3336
      %v3401 = vunpack.c.l.bf16 %v3337
      %v3402 = vunpack.c.l.bf16 %v3338
      %v3403 = vunpack.c.l.bf16 %v3339
      %v3404 = vunpack.c.l.bf16 %v3340
      %v3405 = vunpack.c.l.bf16 %v3341
      %v3406 = vunpack.c.l.bf16 %v3342
      %v3407 = vunpack.c.l.bf16 %v3343
      %v3408 = vunpack.c.l.bf16 %v3344
      %v3409 = vunpack.c.l.bf16 %v3345
      %v3410 = vunpack.c.l.bf16 %v3346
      %v3411 = vunpack.c.l.bf16 %v3347
      %v3412 = vunpack.c.l.bf16 %v3348
      %v3413 = vunpack.c.l.bf16 %v3349
      %v3414 = vunpack.c.l.bf16 %v3350
      %v3415 = vunpack.c.l.bf16 %v3351
      %v3416 = vunpack.c.l.bf16 %v3352
      %v3417 = vunpack.c.l.bf16 %v3353
      %v3418 = vunpack.c.l.bf16 %v3354
      %v3419 = vunpack.c.l.bf16 %v3355
      %v3420 = vunpack.c.l.bf16 %v3356
      %v3421 = vunpack.c.l.bf16 %v3357
      %v3422 = vunpack.c.l.bf16 %v3358
      %v3423 = vunpack.c.l.bf16 %v3359
      %v3424 = vunpack.c.l.bf16 %v3360
      %v3425 = vunpack.c.l.bf16 %v3361
      %v3426 = vunpack.c.l.bf16 %v3362
      %v3427 = vunpack.c.l.bf16 %v3363
      %v3428 = vunpack.c.l.bf16 %v3364
      %v3429 = vunpack.c.l.bf16 %v3365
      %v3430 = vunpack.c.l.bf16 %v3366
      %v3431 = vunpack.c.l.bf16 %v3367
      %v3432 = vld [vmem:[%s5] sm:$0x1]
      %v3433 = vadd.f32 %v3400, %v3401
      %v3434 = vadd.f32 %v3433, %v3402
      %v3435 = vadd.f32 %v3434, %v3403
      %v3436 = vadd.f32 %v3435, %v3404
      %v3437 = vadd.f32 %v3436, %v3405
      %v3438 = vadd.f32 %v3437, %v3406
      %v3439 = vadd.f32 %v3438, %v3407
      %v3440 = vadd.f32 %v3439, %v3408
      %v3441 = vadd.f32 %v3440, %v3409
      %v3442 = vadd.f32 %v3441, %v3410
      %v3443 = vadd.f32 %v3442, %v3411
      %v3444 = vadd.f32 %v3443, %v3412
      %v3445 = vadd.f32 %v3444, %v3413
      %v3446 = vadd.f32 %v3445, %v3414
      %v3447 = vadd.f32 %v3446, %v3415
      %v3448 = vadd.f32 %v3447, %v3416
      %v3449 = vadd.f32 %v3448, %v3417
      %v3450 = vadd.f32 %v3449, %v3418
      %v3451 = vadd.f32 %v3450, %v3419
      %v3452 = vadd.f32 %v3451, %v3420
      %v3453 = vadd.f32 %v3452, %v3421
      %v3454 = vadd.f32 %v3453, %v3422
      %v3455 = vadd.f32 %v3454, %v3423
      %v3456 = vadd.f32 %v3455, %v3424
      %v3457 = vadd.f32 %v3456, %v3425
      %v3458 = vadd.f32 %v3457, %v3426
      %v3459 = vadd.f32 %v3458, %v3427
      %v3460 = vadd.f32 %v3459, %v3428
      %v3461 = vadd.f32 %v3460, %v3429
      %v3462 = vadd.f32 %v3461, %v3430
      %v3463 = vadd.f32 %v3462, %v3431
      %v3464 = vrot.slane %v3463, 4
      %v3465 = vadd.f32 %v3463, %v3464
      %v3466 = vrot.slane %v3465, 2
      %v3467 = vadd.f32 %v3465, %v3466
      %v3468 = vrot.slane %v3467, 1
      %v3469 = vadd.f32 %v3467, %v3468
      %v3470 = vadd.f32 %v3432, %v3469
      %3471 = vst [vmem:[%s5] sm:$0x1] %v3470
      %v3472 = vld [vmem:[%s6] sm:$0x1]
      %v3473 = vmul.f32 %v3400, %v3400
      %v3474 = vmul.f32 %v3401, %v3401
      %v3475 = vmul.f32 %v3402, %v3402
      %v3476 = vmul.f32 %v3403, %v3403
      %v3477 = vmul.f32 %v3404, %v3404
      %v3478 = vmul.f32 %v3405, %v3405
      %v3479 = vmul.f32 %v3406, %v3406
      %v3480 = vmul.f32 %v3407, %v3407
      %v3481 = vmul.f32 %v3408, %v3408
      %v3482 = vmul.f32 %v3409, %v3409
      %v3483 = vmul.f32 %v3410, %v3410
      %v3484 = vmul.f32 %v3411, %v3411
      %v3485 = vmul.f32 %v3412, %v3412
      %v3486 = vmul.f32 %v3413, %v3413
      %v3487 = vmul.f32 %v3414, %v3414
      %v3488 = vmul.f32 %v3415, %v3415
      %v3489 = vmul.f32 %v3416, %v3416
      %v3490 = vmul.f32 %v3417, %v3417
      %v3491 = vmul.f32 %v3418, %v3418
      %v3492 = vmul.f32 %v3419, %v3419
      %v3493 = vmul.f32 %v3420, %v3420
      %v3494 = vmul.f32 %v3421, %v3421
      %v3495 = vmul.f32 %v3422, %v3422
      %v3496 = vmul.f32 %v3423, %v3423
      %v3497 = vmul.f32 %v3424, %v3424
      %v3498 = vmul.f32 %v3425, %v3425
      %v3499 = vmul.f32 %v3426, %v3426
      %v3500 = vmul.f32 %v3427, %v3427
      %v3501 = vmul.f32 %v3428, %v3428
      %v3502 = vmul.f32 %v3429, %v3429
      %v3503 = vmul.f32 %v3430, %v3430
      %v3504 = vmul.f32 %v3431, %v3431
      %v3505 = vadd.f32 %v3473, %v3474
      %v3506 = vadd.f32 %v3505, %v3475
      %v3507 = vadd.f32 %v3506, %v3476
      %v3508 = vadd.f32 %v3507, %v3477
      %v3509 = vadd.f32 %v3508, %v3478
      %v3510 = vadd.f32 %v3509, %v3479
      %v3511 = vadd.f32 %v3510, %v3480
      %v3512 = vadd.f32 %v3511, %v3481
      %v3513 = vadd.f32 %v3512, %v3482
      %v3514 = vadd.f32 %v3513, %v3483
      %v3515 = vadd.f32 %v3514, %v3484
      %v3516 = vadd.f32 %v3515, %v3485
      %v3517 = vadd.f32 %v3516, %v3486
      %v3518 = vadd.f32 %v3517, %v3487
      %v3519 = vadd.f32 %v3518, %v3488
      %v3520 = vadd.f32 %v3519, %v3489
      %v3521 = vadd.f32 %v3520, %v3490
      %v3522 = vadd.f32 %v3521, %v3491
      %v3523 = vadd.f32 %v3522, %v3492
      %v3524 = vadd.f32 %v3523, %v3493
      %v3525 = vadd.f32 %v3524, %v3494
      %v3526 = vadd.f32 %v3525, %v3495
      %v3527 = vadd.f32 %v3526, %v3496
      %v3528 = vadd.f32 %v3527, %v3497
      %v3529 = vadd.f32 %v3528, %v3498
      %v3530 = vadd.f32 %v3529, %v3499
      %v3531 = vadd.f32 %v3530, %v3500
      %v3532 = vadd.f32 %v3531, %v3501
      %v3533 = vadd.f32 %v3532, %v3502
      %v3534 = vadd.f32 %v3533, %v3503
      %v3535 = vadd.f32 %v3534, %v3504
      %v3536 = vrot.slane %v3535, 4
      %v3537 = vadd.f32 %v3535, %v3536
      %v3538 = vrot.slane %v3537, 2
      %v3539 = vadd.f32 %v3537, %v3538
      %v3540 = vrot.slane %v3539, 1
      %v3541 = vadd.f32 %v3539, %v3540
      %v3542 = vadd.f32 %v3472, %v3541
      %3543 = vst [vmem:[%s6] sm:$0x1] %v3542
      %s3544 = smul.u32 32, %s18
      %p3545 = scmp.lt.s32.totalorder %s3544, 63
      %s3546 = scalar_select %p3545, %s3544, 63
      %s3547 = smul.addr %s3546, 4
      %s3548 = scalar_lea.vmem %s4, %s3547
      // Predicated region
      $region41: #{_lambda_.6} parent=35 // pred_check
        %p3549 = pneg %p125
      $region42: #{_lambda_.6} parent=35 // pred_check_branch
        %3551 = sbr.rel (%p3549) target = $region44
      $region43: #{_lambda_.6} parent=35 // pred_region
        %s3552 = smul.u32 32, %s18
      $region44: #{_lambda_.6} parent=35 // pred_fallthru
        _
      // Predicated region
      $region45: #{_lambda_.6} parent=35 // pred_check
        %p3553 = pneg %p146
      $region46: #{_lambda_.6} parent=35 // pred_check_branch
        %3555 = sbr.rel (%p3553) target = $region48
      $region47: #{_lambda_.6} parent=35 // pred_region
        _
      $region48: #{_lambda_.6} parent=35 // pred_fallthru
        _
      // Predicated region
      $region49: #{_lambda_.6} parent=35 // pred_check
        %p3556 = pneg %p167
      $region50: #{_lambda_.6} parent=35 // pred_check_branch
        %3558 = sbr.rel (%p3556) target = $region52
      $region51: #{_lambda_.6} parent=35 // pred_region
        _
      $region52: #{_lambda_.6} parent=35 // pred_fallthru
        _
      // Predicated region
      $region53: #{_lambda_.6} parent=35 // pred_check
        %p3559 = pneg %p146
      $region54: #{_lambda_.6} parent=35 // pred_check_branch
        %3561 = sbr.rel (%p3559) target = $region56
      $region55: #{_lambda_.6} parent=35 // pred_region
        _
      $region56: #{_lambda_.6} parent=35 // pred_fallthru
        _
      // Predicated region
      $region57: #{_lambda_.6} parent=35 // pred_check
        %p3562 = pneg %p167
      $region58: #{_lambda_.6} parent=35 // pred_check_branch
        %3564 = sbr.rel (%p3562) target = $region60
      $region59: #{_lambda_.6} parent=35 // pred_region
        _
      $region60: #{_lambda_.6} parent=35 // pred_fallthru
        _
    $region36: #{_lambda_.6} parent=5 // pred_fallthru
      _
    %p3565 = scmp.le.s32.totalorder 2, %s13
    // Predicated region
    $region61: #{_lambda_.6} parent=5 // pred_check
      %p3566 = pneg %p3565
    $region62: #{_lambda_.6} parent=5 // pred_check_branch
      %3568 = sbr.rel (%p3566) target = $region64
    $region63: #{_lambda_.6} parent=5 // pred_region
      %s3569 = ssub.s32 %s13, 2
      // Predicated region
      $region65: #{_lambda_.6} parent=63 // pred_check
        %p3570 = pneg %p131
      $region66: #{_lambda_.6} parent=63 // pred_check_branch
        %3572 = sbr.rel (%p3570) target = $region68
      $region67: #{_lambda_.6} parent=63 // pred_region
        %s3573 = smul.u32 32, %s19
        %p3574 = scmp.lt.s32.totalorder %s3573, 63
        %s3575 = scalar_select %p3574, %s3573, 63
        %s3576 = smul.addr %s3575, 4
        %s3577 = scalar_lea.vmem %s4, %s3576
      $region68: #{_lambda_.6} parent=63 // pred_fallthru
        _
    $region64: #{_lambda_.6} parent=5 // pred_fallthru
      _
  $region6: #{_lambda_.6} parent=0 // loop_footer
    %s17 = sadd.s32 1, %s13
  $region7: #{_lambda_.6} parent=0 // loop_footer_branch
    %12 = sbr.rel target = $region3
  $region8: #{_lambda_.6} parent=0 // loop_exit
    _

</llo_original>
